<compile_context>
chip_gen: v7x
topology: tpu7x:2x2x1
jax: 0.10.0
libtpu: 0.0.40
codegen_flags: <defaults>
</compile_context>

<pallas_src>
import jax
import jax.numpy as jnp
from jax import lax
from jax.experimental import pallas as pl
from jax.experimental.pallas import tpu as pltpu

EPS = 1e-5


# --------------------------------------------------------------------------------------
# Pallas kernels
# --------------------------------------------------------------------------------------
def _conv_stats_kernel(p_ref, w_ref, y_ref, stats_ref):
    """One row tile of conv-as-matmul plus BN sum / sum-of-squares accumulation.

    p_ref:     (TM, K)    im2col patches tile, K = 9 * Cin
    w_ref:     (K, Cout)  flattened HWIO conv weight
    y_ref:     (TM, Cout) pre-BN conv output tile
    stats_ref: (2, Cout)  VMEM-resident accumulator (row 0 = sum, row 1 = sum(x^2))
    """
    # Single MXU matmul with the full 9*Cin contraction, f32 accumulation.
    y = jnp.dot(p_ref[...], w_ref[...], preferred_element_type=jnp.float32)
    y_ref[...] = y

    # One-pass BN statistics accumulated across the row-tile grid (P3 pattern).
    @pl.when(pl.program_id(0) == 0)
    def _():
        stats_ref[...] = jnp.zeros_like(stats_ref)

    stats_ref[...] += jnp.concatenate(
        [jnp.sum(y, axis=0, keepdims=True),
         jnp.sum(y * y, axis=0, keepdims=True)], axis=0)


def _bn_relu_kernel(y_ref, scale_ref, shift_ref, o_ref):
    """Fused BN affine + ReLU on a lane-dense (rows, W*Cout) slab tile."""
    o_ref[...] = jnp.maximum(y_ref[...] * scale_ref[...] + shift_ref[...], 0.0)


# --------------------------------------------------------------------------------------
# Wrappers (plain-JAX glue + pallas_call plumbing)
# --------------------------------------------------------------------------------------
def _pick_tile(m, target=256):
    """Largest divisor of m that is <= target and a multiple of 8 (or m if m <= target)."""
    if m <= target:
        return m
    t = (target // 8) * 8
    while t >= 8:
        if m % t == 0:
            return t
        t -= 8
    return m


def _im2col(x_nhwc):
    """(N, H, W, C) -> (N*H*W, 9*C) patches for a 3x3 SAME conv (wrapper glue)."""
    n, h, w, c = x_nhwc.shape
    xp = jnp.pad(x_nhwc, ((0, 0), (1, 1), (1, 1), (0, 0)))
    cols = [xp[:, dy:dy + h, dx:dx + w, :] for dy in range(3) for dx in range(3)]
    return jnp.concatenate(cols, axis=-1).reshape(n * h * w, 9 * c)


def conv_bn_relu(x_nhwc, w_hwio, gamma, beta):
    """One (Conv2d 3x3 pad=1 => BatchNorm2d(train) => ReLU) stage in NHWC."""
    n, h, w, cin = x_nhwc.shape
    cout = w_hwio.shape[-1]
    m = n * h * w
    k = 9 * cin

    patches = _im2col(x_nhwc)                 # (M, K)   plain-JAX glue
    wmat = w_hwio.reshape(k, cout)            # (K, Cout)

    # ---- pass 1: row-tiled conv matmul + one-pass BN statistics -------------------
    tm = _pick_tile(m)
    y, stats = pl.pallas_call(
        _conv_stats_kernel,
        out_shape=(jax.ShapeDtypeStruct((m, cout), jnp.float32),
                   jax.ShapeDtypeStruct((2, cout), jnp.float32)),
        grid_spec=pltpu.PrefetchScalarGridSpec(
            num_scalar_prefetch=0,
            grid=(m // tm,),
            in_specs=[pl.BlockSpec((tm, k), lambda i: (i, 0)),
                      pl.BlockSpec((k, cout), lambda i: (0, 0))],
            out_specs=(pl.BlockSpec((tm, cout), lambda i: (i, 0)),
                       pl.BlockSpec((2, cout), lambda i: (0, 0)))),
        compiler_params=pltpu.CompilerParams(
            dimension_semantics=("arbitrary",),          # BN-stat reduction axis
            vmem_limit_bytes=32 * 1024 * 1024),
        cost_estimate=pl.CostEstimate(
            flops=2 * m * k * cout,
            transcendentals=0,
            bytes_accessed=4 * (m * k + k * cout + m * cout + 2 * cout)),
    )(patches, wmat)

    # ---- finalize BN affine on (Cout,) vectors (tiny glue) -------------------------
    # Training-mode batch stats, biased variance, eps=1e-5. Conv bias is cancelled by
    # the mean subtraction (and is zero-init in Encoder_conv_com), so it is omitted.
    mean = stats[0] / m
    var = jnp.maximum(stats[1] / m - mean * mean, 0.0)
    scale = gamma * lax.rsqrt(var + EPS)
    shift = beta - mean * scale

    # ---- pass 2: lane-dense normalize + ReLU ---------------------------------------
    nh, wc = n * h, w * cout
    y_slab = y.reshape(nh, wc)                        # free row-major view
    scale_row = jnp.tile(scale, w).reshape(1, wc)     # per-lane scale (c innermost)
    shift_row = jnp.tile(shift, w).reshape(1, wc)
    tr = _pick_tile(nh)
    out = pl.pallas_call(
        _bn_relu_kernel,
        out_shape=jax.ShapeDtypeStruct((nh, wc), jnp.float32),
        grid_spec=pltpu.PrefetchScalarGridSpec(
            num_scalar_prefetch=0,
            grid=(nh // tr,),
            in_specs=[pl.BlockSpec((tr, wc), lambda i: (i, 0)),
                      pl.BlockSpec((1, wc), lambda i: (0, 0)),
                      pl.BlockSpec((1, wc), lambda i: (0, 0))],
            out_specs=pl.BlockSpec((tr, wc), lambda i: (i, 0))),
        compiler_params=pltpu.CompilerParams(
            dimension_semantics=("parallel",)),           # spatially independent
    )(y_slab, scale_row, shift_row)
    return out.reshape(n, h, w, cout)


def maxpool2x2(x_nhwc):
    """nn.MaxPool2d(2): memory-bound window reduce left to XLA as wrapper glue."""
    # TODO(synk): maxpool is plain-JAX glue; it could be folded into the following
    # stage's patch extraction or written as its own Pallas kernel if profiled hot.
    n, h, w, c = x_nhwc.shape
    return x_nhwc.reshape(n, h // 2, 2, w // 2, 2, c).max(axis=(2, 4))


def double_conv(x_nhwc, params):
    """DoubleConv.forward (NHWC)."""
    w1, g1, b1, w2, g2, b2 = params
    y = conv_bn_relu(x_nhwc, w1, g1, b1)
    return conv_bn_relu(y, w2, g2, b2)


def encoder_conv_com(x_nchw, all_params):
    """Encoder_conv_com.forward: Down(1,64) .. Down(128,128), then z.squeeze()."""
    x = jnp.transpose(x_nchw, (0, 2, 3, 1))       # single NCHW -> NHWC transpose
    for params in all_params:                     # Down = MaxPool2d(2) -> DoubleConv
        x = double_conv(maxpool2x2(x), params)
    z = jnp.transpose(x, (0, 3, 1, 2))            # back to NCHW at the boundary
    return jnp.squeeze(z)                         # matches z.squeeze()


# --------------------------------------------------------------------------------------
# Pure-JAX reference (PyTorch semantics: conv pad=1, training-mode BN, ReLU, maxpool)
# --------------------------------------------------------------------------------------
def _ref_conv_bn_relu(x_nchw, w_hwio, gamma, beta):
    y = lax.conv_general_dilated(
        x_nchw, w_hwio, window_strides=(1, 1), padding="SAME",
        dimension_numbers=("NCHW", "HWIO", "NCHW"),
        precision=lax.Precision.HIGHEST)
    m = jnp.mean(y, axis=(0, 2, 3), keepdims=True)
    # Same biased batch variance as PyTorch training-mode BN, written in the one-pass
    # E[x^2]-E[x]^2 form used by the tiled kernel (mathematically identical).
    v = jnp.maximum(jnp.mean(y * y, axis=(0, 2, 3), keepdims=True) - m * m, 0.0)
    y = (y - m) * lax.rsqrt(v + EPS) * gamma[None, :, None, None] \
        + beta[None, :, None, None]
    return jnp.maximum(y, 0.0)


def encoder_conv_com_ref(x_nchw, all_params):
    x = x_nchw
    for (w1, g1, b1, w2, g2, b2) in all_params:
        x = lax.reduce_window(x, -jnp.inf, lax.max,
                              (1, 1, 2, 2), (1, 1, 2, 2), "VALID")
        x = _ref_conv_bn_relu(x, w1, g1, b1)
        x = _ref_conv_bn_relu(x, w2, g2, b2)
    return jnp.squeeze(x)


# --------------------------------------------------------------------------------------
# main
# --------------------------------------------------------------------------------------
if __name__ == "__main__":
    # Encoder_conv_com channel plan: Down(1,64), Down(64,64), Down(64,128),
    # Down(128,128), Down(128,128). Spatial 32 -> 1 after the five 2x2 pools.
    N, H, W = 2, 32, 32
    plan = [(1, 64), (64, 64), (64, 128), (128, 128), (128, 128)]

    key = jax.random.PRNGKey(0)
    all_params = []
    for cin, cout in plan:
        key, k1, k2, k3, k4, k5, k6 = jax.random.split(key, 7)
        w1 = 0.1 * jax.random.normal(k1, (3, 3, cin, cout), jnp.float32)   # HWIO
        g1 = 1.0 + 0.1 * jax.random.normal(k2, (cout,), jnp.float32)        # BN gamma
        b1 = 0.1 * jax.random.normal(k3, (cout,), jnp.float32)              # BN beta
        w2 = 0.1 * jax.random.normal(k4, (3, 3, cout, cout), jnp.float32)
        g2 = 1.0 + 0.1 * jax.random.normal(k5, (cout,), jnp.float32)
        b2 = 0.1 * jax.random.normal(k6, (cout,), jnp.float32)
        all_params.append((w1, g1, b1, w2, g2, b2))
    all_params = tuple(all_params)

    key, kx = jax.random.split(key)
    x = jax.random.normal(kx, (N, 1, H, W), jnp.float32)

    out = jax.block_until_ready(jax.jit(encoder_conv_com)(x, all_params))
    ref = jax.block_until_ready(jax.jit(encoder_conv_com_ref)(x, all_params))

    assert out.shape == (N, 128), out.shape
    err = jnp.max(jnp.abs(out - ref))
    assert jnp.allclose(out, ref, atol=5e-3, rtol=5e-3), f"max abs err {err}"

    print("KERNEL_OK")
</pallas_src>

<mosaic_0001>
module attributes {stable_mosaic.version = 11 : i64} {
  func.func @_conv_stats_kernel(%arg0: i32, %arg1: memref<256x9xf32, #tpu.memory_space<vmem>>, %arg2: memref<9x64xf32, #tpu.memory_space<vmem>>, %arg3: memref<256x64xf32, #tpu.memory_space<vmem>>, %arg4: memref<2x64xf32, #tpu.memory_space<vmem>>) attributes {dimension_semantics = [#tpu.dimension_semantics<arbitrary>], iteration_bounds = array<i64: 2>, scalar_prefetch = 0 : i64, scratch_operands = 0 : i64, tpu.core_type = #tpu.core_type<tc>, window_params = [{transform_indices = @transform_0, window_bounds = array<i64: 256, 9>}, {pipeline_mode = #tpu.pipeline_mode<synchronous>, transform_indices = @transform_1, window_bounds = array<i64: 9, 64>}, {transform_indices = @transform_2, window_bounds = array<i64: 256, 64>}, {pipeline_mode = #tpu.pipeline_mode<synchronous>, transform_indices = @transform_3, window_bounds = array<i64: 2, 64>}]} {
    %c0 = arith.constant 0 : index
    %c0_0 = arith.constant 0 : index
    %0 = vector.load %arg1[%c0, %c0_0] : memref<256x9xf32, #tpu.memory_space<vmem>>, vector<256x9xf32>
    %c0_1 = arith.constant 0 : index
    %c0_2 = arith.constant 0 : index
    %1 = vector.load %arg2[%c0_1, %c0_2] : memref<9x64xf32, #tpu.memory_space<vmem>>, vector<9x64xf32>
    %cst = arith.constant dense<0.000000e+00> : vector<256x64xf32>
    %2 = tpu.matmul %0, %1, %cst {dimension_numbers = #tpu.dot_dimension_numbers<[1], [0], [0], [1], [0, 0, 1, 1], [], []>} : vector<256x9xf32>, vector<9x64xf32>, vector<256x64xf32> -> vector<256x64xf32>
    %c0_3 = arith.constant 0 : index
    %c0_4 = arith.constant 0 : index
    %3 = vector.load %arg3[%c0_3, %c0_4] : memref<256x64xf32, #tpu.memory_space<vmem>>, vector<256x64xf32>
    tpu.vector_store %arg3[%c0_3, %c0_4], %2 {strides = array<i32>} : memref<256x64xf32, #tpu.memory_space<vmem>>, vector<256x64xf32>,
    %c0_i32 = arith.constant 0 : i32
    %4 = arith.cmpi eq, %arg0, %c0_i32 : i32
    %5 = arith.extui %4 : i1 to i32
    %c0_i32_5 = arith.constant 0 : i32
    %6 = arith.cmpi ne, %5, %c0_i32_5 : i32
    scf.if %6 {
      %cst_12 = arith.constant 0.000000e+00 : f32
      %16 = vector.broadcast %cst_12 : f32 to vector<2x64xf32>
      %c0_13 = arith.constant 0 : index
      %c0_14 = arith.constant 0 : index
      %17 = vector.load %arg4[%c0_13, %c0_14] : memref<2x64xf32, #tpu.memory_space<vmem>>, vector<2x64xf32>
      tpu.vector_store %arg4[%c0_13, %c0_14], %16 {strides = array<i32>} : memref<2x64xf32, #tpu.memory_space<vmem>>, vector<2x64xf32>,
    } else {
    }
    %c0_6 = arith.constant 0 : index
    %c0_7 = arith.constant 0 : index
    %7 = vector.load %arg4[%c0_6, %c0_7] : memref<2x64xf32, #tpu.memory_space<vmem>>, vector<2x64xf32>
    %cst_8 = arith.constant dense<0.000000e+00> : vector<64xf32>
    %8 = vector.multi_reduction <add>, %2, %cst_8 [0] : vector<256x64xf32> to vector<64xf32>
    %9 = vector.shape_cast %8 : vector<64xf32> to vector<1x64xf32>
    %10 = arith.mulf %2, %2 : vector<256x64xf32>
    %cst_9 = arith.constant dense<0.000000e+00> : vector<64xf32>
    %11 = vector.multi_reduction <add>, %10, %cst_9 [0] : vector<256x64xf32> to vector<64xf32>
    %12 = vector.shape_cast %11 : vector<64xf32> to vector<1x64xf32>
    %13 = tpu.concatenate %9, %12 in 0 : vector<1x64xf32>, vector<1x64xf32> -> vector<2x64xf32>
    %14 = arith.addf %7, %13 : vector<2x64xf32>
    %c0_10 = arith.constant 0 : index
    %c0_11 = arith.constant 0 : index
    %15 = vector.load %arg4[%c0_10, %c0_11] : memref<2x64xf32, #tpu.memory_space<vmem>>, vector<2x64xf32>
    tpu.vector_store %arg4[%c0_10, %c0_11], %14 {strides = array<i32>} : memref<2x64xf32, #tpu.memory_space<vmem>>, vector<2x64xf32>,
    return
  }
  func.func @transform_0(%arg0: i32) -> (i32, i32) {
    %c0_i32 = arith.constant 0 : i32
    %c0_i32_0 = arith.constant 0 : i32
    return %arg0, %c0_i32 : i32, i32
  }
  func.func @transform_1(%arg0: i32) -> (i32, i32) {
    %c0_i32 = arith.constant 0 : i32
    %c0_i32_0 = arith.constant 0 : i32
    %c0_i32_1 = arith.constant 0 : i32
    return %c0_i32, %c0_i32_0 : i32, i32
  }
  func.func @transform_2(%arg0: i32) -> (i32, i32) {
    %c0_i32 = arith.constant 0 : i32
    %c0_i32_0 = arith.constant 0 : i32
    return %arg0, %c0_i32 : i32, i32
  }
  func.func @transform_3(%arg0: i32) -> (i32, i32) {
    %c0_i32 = arith.constant 0 : i32
    %c0_i32_0 = arith.constant 0 : i32
    %c0_i32_1 = arith.constant 0 : i32
    return %c0_i32, %c0_i32_0 : i32, i32
  }
}

module attributes {stable_mosaic.version = 11 : i64} {
  func.func @_bn_relu_kernel(%arg0: i32, %arg1: memref<32x1024xf32, #tpu.memory_space<vmem>>, %arg2: memref<1x1024xf32, #tpu.memory_space<vmem>>, %arg3: memref<1x1024xf32, #tpu.memory_space<vmem>>, %arg4: memref<32x1024xf32, #tpu.memory_space<vmem>>) attributes {dimension_semantics = [#tpu.dimension_semantics<parallel>], iteration_bounds = array<i64: 1>, scalar_prefetch = 0 : i64, scratch_operands = 0 : i64, tpu.core_type = #tpu.core_type<tc>, window_params = [{transform_indices = @transform_0, window_bounds = array<i64: 32, 1024>}, {pipeline_mode = #tpu.pipeline_mode<synchronous>, transform_indices = @transform_1, window_bounds = array<i64: 1, 1024>}, {pipeline_mode = #tpu.pipeline_mode<synchronous>, transform_indices = @transform_2, window_bounds = array<i64: 1, 1024>}, {transform_indices = @transform_3, window_bounds = array<i64: 32, 1024>}]} {
    %c0 = arith.constant 0 : index
    %c0_0 = arith.constant 0 : index
    %0 = vector.load %arg1[%c0, %c0_0] : memref<32x1024xf32, #tpu.memory_space<vmem>>, vector<32x1024xf32>
    %c0_1 = arith.constant 0 : index
    %c0_2 = arith.constant 0 : index
    %1 = vector.load %arg2[%c0_1, %c0_2] : memref<1x1024xf32, #tpu.memory_space<vmem>>, vector<1x1024xf32>
    %2 = vector.broadcast %1 : vector<1x1024xf32> to vector<32x1024xf32>
    %3 = arith.mulf %0, %2 : vector<32x1024xf32>
    %c0_3 = arith.constant 0 : index
    %c0_4 = arith.constant 0 : index
    %4 = vector.load %arg3[%c0_3, %c0_4] : memref<1x1024xf32, #tpu.memory_space<vmem>>, vector<1x1024xf32>
    %5 = vector.broadcast %4 : vector<1x1024xf32> to vector<32x1024xf32>
    %6 = arith.addf %3, %5 : vector<32x1024xf32>
    %cst = arith.constant 0.000000e+00 : f32
    %7 = vector.broadcast %cst : f32 to vector<32x1024xf32>
    %8 = arith.maximumf %6, %7 : vector<32x1024xf32>
    %c0_5 = arith.constant 0 : index
    %c0_6 = arith.constant 0 : index
    %9 = vector.load %arg4[%c0_5, %c0_6] : memref<32x1024xf32, #tpu.memory_space<vmem>>, vector<32x1024xf32>
    tpu.vector_store %arg4[%c0_5, %c0_6], %8 {strides = array<i32>} : memref<32x1024xf32, #tpu.memory_space<vmem>>, vector<32x1024xf32>,
    return
  }
  func.func @transform_0(%arg0: i32) -> (i32, i32) {
    %c0_i32 = arith.constant 0 : i32
    %c0_i32_0 = arith.constant 0 : i32
    return %arg0, %c0_i32 : i32, i32
  }
  func.func @transform_1(%arg0: i32) -> (i32, i32) {
    %c0_i32 = arith.constant 0 : i32
    %c0_i32_0 = arith.constant 0 : i32
    %c0_i32_1 = arith.constant 0 : i32
    return %c0_i32, %c0_i32_0 : i32, i32
  }
  func.func @transform_2(%arg0: i32) -> (i32, i32) {
    %c0_i32 = arith.constant 0 : i32
    %c0_i32_0 = arith.constant 0 : i32
    %c0_i32_1 = arith.constant 0 : i32
    return %c0_i32, %c0_i32_0 : i32, i32
  }
  func.func @transform_3(%arg0: i32) -> (i32, i32) {
    %c0_i32 = arith.constant 0 : i32
    %c0_i32_0 = arith.constant 0 : i32
    return %arg0, %c0_i32 : i32, i32
  }
}

module attributes {stable_mosaic.version = 11 : i64} {
  func.func @_conv_stats_kernel(%arg0: i32, %arg1: memref<256x576xf32, #tpu.memory_space<vmem>>, %arg2: memref<576x64xf32, #tpu.memory_space<vmem>>, %arg3: memref<256x64xf32, #tpu.memory_space<vmem>>, %arg4: memref<2x64xf32, #tpu.memory_space<vmem>>) attributes {dimension_semantics = [#tpu.dimension_semantics<arbitrary>], iteration_bounds = array<i64: 2>, scalar_prefetch = 0 : i64, scratch_operands = 0 : i64, tpu.core_type = #tpu.core_type<tc>, window_params = [{transform_indices = @transform_0, window_bounds = array<i64: 256, 576>}, {pipeline_mode = #tpu.pipeline_mode<synchronous>, transform_indices = @transform_1, window_bounds = array<i64: 576, 64>}, {transform_indices = @transform_2, window_bounds = array<i64: 256, 64>}, {pipeline_mode = #tpu.pipeline_mode<synchronous>, transform_indices = @transform_3, window_bounds = array<i64: 2, 64>}]} {
    %c0 = arith.constant 0 : index
    %c0_0 = arith.constant 0 : index
    %0 = vector.load %arg1[%c0, %c0_0] : memref<256x576xf32, #tpu.memory_space<vmem>>, vector<256x576xf32>
    %c0_1 = arith.constant 0 : index
    %c0_2 = arith.constant 0 : index
    %1 = vector.load %arg2[%c0_1, %c0_2] : memref<576x64xf32, #tpu.memory_space<vmem>>, vector<576x64xf32>
    %cst = arith.constant dense<0.000000e+00> : vector<256x64xf32>
    %2 = tpu.matmul %0, %1, %cst {dimension_numbers = #tpu.dot_dimension_numbers<[1], [0], [0], [1], [0, 0, 1, 1], [], []>} : vector<256x576xf32>, vector<576x64xf32>, vector<256x64xf32> -> vector<256x64xf32>
    %c0_3 = arith.constant 0 : index
    %c0_4 = arith.constant 0 : index
    %3 = vector.load %arg3[%c0_3, %c0_4] : memref<256x64xf32, #tpu.memory_space<vmem>>, vector<256x64xf32>
    tpu.vector_store %arg3[%c0_3, %c0_4], %2 {strides = array<i32>} : memref<256x64xf32, #tpu.memory_space<vmem>>, vector<256x64xf32>,
    %c0_i32 = arith.constant 0 : i32
    %4 = arith.cmpi eq, %arg0, %c0_i32 : i32
    %5 = arith.extui %4 : i1 to i32
    %c0_i32_5 = arith.constant 0 : i32
    %6 = arith.cmpi ne, %5, %c0_i32_5 : i32
    scf.if %6 {
      %cst_12 = arith.constant 0.000000e+00 : f32
      %16 = vector.broadcast %cst_12 : f32 to vector<2x64xf32>
      %c0_13 = arith.constant 0 : index
      %c0_14 = arith.constant 0 : index
      %17 = vector.load %arg4[%c0_13, %c0_14] : memref<2x64xf32, #tpu.memory_space<vmem>>, vector<2x64xf32>
      tpu.vector_store %arg4[%c0_13, %c0_14], %16 {strides = array<i32>} : memref<2x64xf32, #tpu.memory_space<vmem>>, vector<2x64xf32>,
    } else {
    }
    %c0_6 = arith.constant 0 : index
    %c0_7 = arith.constant 0 : index
    %7 = vector.load %arg4[%c0_6, %c0_7] : memref<2x64xf32, #tpu.memory_space<vmem>>, vector<2x64xf32>
    %cst_8 = arith.constant dense<0.000000e+00> : vector<64xf32>
    %8 = vector.multi_reduction <add>, %2, %cst_8 [0] : vector<256x64xf32> to vector<64xf32>
    %9 = vector.shape_cast %8 : vector<64xf32> to vector<1x64xf32>
    %10 = arith.mulf %2, %2 : vector<256x64xf32>
    %cst_9 = arith.constant dense<0.000000e+00> : vector<64xf32>
    %11 = vector.multi_reduction <add>, %10, %cst_9 [0] : vector<256x64xf32> to vector<64xf32>
    %12 = vector.shape_cast %11 : vector<64xf32> to vector<1x64xf32>
    %13 = tpu.concatenate %9, %12 in 0 : vector<1x64xf32>, vector<1x64xf32> -> vector<2x64xf32>
    %14 = arith.addf %7, %13 : vector<2x64xf32>
    %c0_10 = arith.constant 0 : index
    %c0_11 = arith.constant 0 : index
    %15 = vector.load %arg4[%c0_10, %c0_11] : memref<2x64xf32, #tpu.memory_space<vmem>>, vector<2x64xf32>
    tpu.vector_store %arg4[%c0_10, %c0_11], %14 {strides = array<i32>} : memref<2x64xf32, #tpu.memory_space<vmem>>, vector<2x64xf32>,
    return
  }
  func.func @transform_0(%arg0: i32) -> (i32, i32) {
    %c0_i32 = arith.constant 0 : i32
    %c0_i32_0 = arith.constant 0 : i32
    return %arg0, %c0_i32 : i32, i32
  }
  func.func @transform_1(%arg0: i32) -> (i32, i32) {
    %c0_i32 = arith.constant 0 : i32
    %c0_i32_0 = arith.constant 0 : i32
    %c0_i32_1 = arith.constant 0 : i32
    return %c0_i32, %c0_i32_0 : i32, i32
  }
  func.func @transform_2(%arg0: i32) -> (i32, i32) {
    %c0_i32 = arith.constant 0 : i32
    %c0_i32_0 = arith.constant 0 : i32
    return %arg0, %c0_i32 : i32, i32
  }
  func.func @transform_3(%arg0: i32) -> (i32, i32) {
    %c0_i32 = arith.constant 0 : i32
    %c0_i32_0 = arith.constant 0 : i32
    %c0_i32_1 = arith.constant 0 : i32
    return %c0_i32, %c0_i32_0 : i32, i32
  }
}

module attributes {stable_mosaic.version = 11 : i64} {
  func.func @_conv_stats_kernel(%arg0: i32, %arg1: memref<128x576xf32, #tpu.memory_space<vmem>>, %arg2: memref<576x64xf32, #tpu.memory_space<vmem>>, %arg3: memref<128x64xf32, #tpu.memory_space<vmem>>, %arg4: memref<2x64xf32, #tpu.memory_space<vmem>>) attributes {dimension_semantics = [#tpu.dimension_semantics<arbitrary>], iteration_bounds = array<i64: 1>, scalar_prefetch = 0 : i64, scratch_operands = 0 : i64, tpu.core_type = #tpu.core_type<tc>, window_params = [{transform_indices = @transform_0, window_bounds = array<i64: 128, 576>}, {pipeline_mode = #tpu.pipeline_mode<synchronous>, transform_indices = @transform_1, window_bounds = array<i64: 576, 64>}, {transform_indices = @transform_2, window_bounds = array<i64: 128, 64>}, {pipeline_mode = #tpu.pipeline_mode<synchronous>, transform_indices = @transform_3, window_bounds = array<i64: 2, 64>}]} {
    %c0 = arith.constant 0 : index
    %c0_0 = arith.constant 0 : index
    %0 = vector.load %arg1[%c0, %c0_0] : memref<128x576xf32, #tpu.memory_space<vmem>>, vector<128x576xf32>
    %c0_1 = arith.constant 0 : index
    %c0_2 = arith.constant 0 : index
    %1 = vector.load %arg2[%c0_1, %c0_2] : memref<576x64xf32, #tpu.memory_space<vmem>>, vector<576x64xf32>
    %cst = arith.constant dense<0.000000e+00> : vector<128x64xf32>
    %2 = tpu.matmul %0, %1, %cst {dimension_numbers = #tpu.dot_dimension_numbers<[1], [0], [0], [1], [0, 0, 1, 1], [], []>} : vector<128x576xf32>, vector<576x64xf32>, vector<128x64xf32> -> vector<128x64xf32>
    %c0_3 = arith.constant 0 : index
    %c0_4 = arith.constant 0 : index
    %3 = vector.load %arg3[%c0_3, %c0_4] : memref<128x64xf32, #tpu.memory_space<vmem>>, vector<128x64xf32>
    tpu.vector_store %arg3[%c0_3, %c0_4], %2 {strides = array<i32>} : memref<128x64xf32, #tpu.memory_space<vmem>>, vector<128x64xf32>,
    %c0_i32 = arith.constant 0 : i32
    %4 = arith.cmpi eq, %arg0, %c0_i32 : i32
    %5 = arith.extui %4 : i1 to i32
    %c0_i32_5 = arith.constant 0 : i32
    %6 = arith.cmpi ne, %5, %c0_i32_5 : i32
    scf.if %6 {
      %cst_12 = arith.constant 0.000000e+00 : f32
      %16 = vector.broadcast %cst_12 : f32 to vector<2x64xf32>
      %c0_13 = arith.constant 0 : index
      %c0_14 = arith.constant 0 : index
      %17 = vector.load %arg4[%c0_13, %c0_14] : memref<2x64xf32, #tpu.memory_space<vmem>>, vector<2x64xf32>
      tpu.vector_store %arg4[%c0_13, %c0_14], %16 {strides = array<i32>} : memref<2x64xf32, #tpu.memory_space<vmem>>, vector<2x64xf32>,
    } else {
    }
    %c0_6 = arith.constant 0 : index
    %c0_7 = arith.constant 0 : index
    %7 = vector.load %arg4[%c0_6, %c0_7] : memref<2x64xf32, #tpu.memory_space<vmem>>, vector<2x64xf32>
    %cst_8 = arith.constant dense<0.000000e+00> : vector<64xf32>
    %8 = vector.multi_reduction <add>, %2, %cst_8 [0] : vector<128x64xf32> to vector<64xf32>
    %9 = vector.shape_cast %8 : vector<64xf32> to vector<1x64xf32>
    %10 = arith.mulf %2, %2 : vector<128x64xf32>
    %cst_9 = arith.constant dense<0.000000e+00> : vector<64xf32>
    %11 = vector.multi_reduction <add>, %10, %cst_9 [0] : vector<128x64xf32> to vector<64xf32>
    %12 = vector.shape_cast %11 : vector<64xf32> to vector<1x64xf32>
    %13 = tpu.concatenate %9, %12 in 0 : vector<1x64xf32>, vector<1x64xf32> -> vector<2x64xf32>
    %14 = arith.addf %7, %13 : vector<2x64xf32>
    %c0_10 = arith.constant 0 : index
    %c0_11 = arith.constant 0 : index
    %15 = vector.load %arg4[%c0_10, %c0_11] : memref<2x64xf32, #tpu.memory_space<vmem>>, vector<2x64xf32>
    tpu.vector_store %arg4[%c0_10, %c0_11], %14 {strides = array<i32>} : memref<2x64xf32, #tpu.memory_space<vmem>>, vector<2x64xf32>,
    return
  }
  func.func @transform_0(%arg0: i32) -> (i32, i32) {
    %c0_i32 = arith.constant 0 : i32
    %c0_i32_0 = arith.constant 0 : i32
    return %arg0, %c0_i32 : i32, i32
  }
  func.func @transform_1(%arg0: i32) -> (i32, i32) {
    %c0_i32 = arith.constant 0 : i32
    %c0_i32_0 = arith.constant 0 : i32
    %c0_i32_1 = arith.constant 0 : i32
    return %c0_i32, %c0_i32_0 : i32, i32
  }
  func.func @transform_2(%arg0: i32) -> (i32, i32) {
    %c0_i32 = arith.constant 0 : i32
    %c0_i32_0 = arith.constant 0 : i32
    return %arg0, %c0_i32 : i32, i32
  }
  func.func @transform_3(%arg0: i32) -> (i32, i32) {
    %c0_i32 = arith.constant 0 : i32
    %c0_i32_0 = arith.constant 0 : i32
    %c0_i32_1 = arith.constant 0 : i32
    return %c0_i32, %c0_i32_0 : i32, i32
  }
}

module attributes {stable_mosaic.version = 11 : i64} {
  func.func @_bn_relu_kernel(%arg0: i32, %arg1: memref<16x512xf32, #tpu.memory_space<vmem>>, %arg2: memref<1x512xf32, #tpu.memory_space<vmem>>, %arg3: memref<1x512xf32, #tpu.memory_space<vmem>>, %arg4: memref<16x512xf32, #tpu.memory_space<vmem>>) attributes {dimension_semantics = [#tpu.dimension_semantics<parallel>], iteration_bounds = array<i64: 1>, scalar_prefetch = 0 : i64, scratch_operands = 0 : i64, tpu.core_type = #tpu.core_type<tc>, window_params = [{transform_indices = @transform_0, window_bounds = array<i64: 16, 512>}, {pipeline_mode = #tpu.pipeline_mode<synchronous>, transform_indices = @transform_1, window_bounds = array<i64: 1, 512>}, {pipeline_mode = #tpu.pipeline_mode<synchronous>, transform_indices = @transform_2, window_bounds = array<i64: 1, 512>}, {transform_indices = @transform_3, window_bounds = array<i64: 16, 512>}]} {
    %c0 = arith.constant 0 : index
    %c0_0 = arith.constant 0 : index
    %0 = vector.load %arg1[%c0, %c0_0] : memref<16x512xf32, #tpu.memory_space<vmem>>, vector<16x512xf32>
    %c0_1 = arith.constant 0 : index
    %c0_2 = arith.constant 0 : index
    %1 = vector.load %arg2[%c0_1, %c0_2] : memref<1x512xf32, #tpu.memory_space<vmem>>, vector<1x512xf32>
    %2 = vector.broadcast %1 : vector<1x512xf32> to vector<16x512xf32>
    %3 = arith.mulf %0, %2 : vector<16x512xf32>
    %c0_3 = arith.constant 0 : index
    %c0_4 = arith.constant 0 : index
    %4 = vector.load %arg3[%c0_3, %c0_4] : memref<1x512xf32, #tpu.memory_space<vmem>>, vector<1x512xf32>
    %5 = vector.broadcast %4 : vector<1x512xf32> to vector<16x512xf32>
    %6 = arith.addf %3, %5 : vector<16x512xf32>
    %cst = arith.constant 0.000000e+00 : f32
    %7 = vector.broadcast %cst : f32 to vector<16x512xf32>
    %8 = arith.maximumf %6, %7 : vector<16x512xf32>
    %c0_5 = arith.constant 0 : index
    %c0_6 = arith.constant 0 : index
    %9 = vector.load %arg4[%c0_5, %c0_6] : memref<16x512xf32, #tpu.memory_space<vmem>>, vector<16x512xf32>
    tpu.vector_store %arg4[%c0_5, %c0_6], %8 {strides = array<i32>} : memref<16x512xf32, #tpu.memory_space<vmem>>, vector<16x512xf32>,
    return
  }
  func.func @transform_0(%arg0: i32) -> (i32, i32) {
    %c0_i32 = arith.constant 0 : i32
    %c0_i32_0 = arith.constant 0 : i32
    return %arg0, %c0_i32 : i32, i32
  }
  func.func @transform_1(%arg0: i32) -> (i32, i32) {
    %c0_i32 = arith.constant 0 : i32
    %c0_i32_0 = arith.constant 0 : i32
    %c0_i32_1 = arith.constant 0 : i32
    return %c0_i32, %c0_i32_0 : i32, i32
  }
  func.func @transform_2(%arg0: i32) -> (i32, i32) {
    %c0_i32 = arith.constant 0 : i32
    %c0_i32_0 = arith.constant 0 : i32
    %c0_i32_1 = arith.constant 0 : i32
    return %c0_i32, %c0_i32_0 : i32, i32
  }
  func.func @transform_3(%arg0: i32) -> (i32, i32) {
    %c0_i32 = arith.constant 0 : i32
    %c0_i32_0 = arith.constant 0 : i32
    return %arg0, %c0_i32 : i32, i32
  }
}

module attributes {stable_mosaic.version = 11 : i64} {
  func.func @_conv_stats_kernel(%arg0: i32, %arg1: memref<32x576xf32, #tpu.memory_space<vmem>>, %arg2: memref<576x128xf32, #tpu.memory_space<vmem>>, %arg3: memref<32x128xf32, #tpu.memory_space<vmem>>, %arg4: memref<2x128xf32, #tpu.memory_space<vmem>>) attributes {dimension_semantics = [#tpu.dimension_semantics<arbitrary>], iteration_bounds = array<i64: 1>, scalar_prefetch = 0 : i64, scratch_operands = 0 : i64, tpu.core_type = #tpu.core_type<tc>, window_params = [{transform_indices = @transform_0, window_bounds = array<i64: 32, 576>}, {pipeline_mode = #tpu.pipeline_mode<synchronous>, transform_indices = @transform_1, window_bounds = array<i64: 576, 128>}, {transform_indices = @transform_2, window_bounds = array<i64: 32, 128>}, {pipeline_mode = #tpu.pipeline_mode<synchronous>, transform_indices = @transform_3, window_bounds = array<i64: 2, 128>}]} {
    %c0 = arith.constant 0 : index
    %c0_0 = arith.constant 0 : index
    %0 = vector.load %arg1[%c0, %c0_0] : memref<32x576xf32, #tpu.memory_space<vmem>>, vector<32x576xf32>
    %c0_1 = arith.constant 0 : index
    %c0_2 = arith.constant 0 : index
    %1 = vector.load %arg2[%c0_1, %c0_2] : memref<576x128xf32, #tpu.memory_space<vmem>>, vector<576x128xf32>
    %cst = arith.constant dense<0.000000e+00> : vector<32x128xf32>
    %2 = tpu.matmul %0, %1, %cst {dimension_numbers = #tpu.dot_dimension_numbers<[1], [0], [0], [1], [0, 0, 1, 1], [], []>} : vector<32x576xf32>, vector<576x128xf32>, vector<32x128xf32> -> vector<32x128xf32>
    %c0_3 = arith.constant 0 : index
    %c0_4 = arith.constant 0 : index
    %3 = vector.load %arg3[%c0_3, %c0_4] : memref<32x128xf32, #tpu.memory_space<vmem>>, vector<32x128xf32>
    tpu.vector_store %arg3[%c0_3, %c0_4], %2 {strides = array<i32>} : memref<32x128xf32, #tpu.memory_space<vmem>>, vector<32x128xf32>,
    %c0_i32 = arith.constant 0 : i32
    %4 = arith.cmpi eq, %arg0, %c0_i32 : i32
    %5 = arith.extui %4 : i1 to i32
    %c0_i32_5 = arith.constant 0 : i32
    %6 = arith.cmpi ne, %5, %c0_i32_5 : i32
    scf.if %6 {
      %cst_12 = arith.constant 0.000000e+00 : f32
      %16 = vector.broadcast %cst_12 : f32 to vector<2x128xf32>
      %c0_13 = arith.constant 0 : index
      %c0_14 = arith.constant 0 : index
      %17 = vector.load %arg4[%c0_13, %c0_14] : memref<2x128xf32, #tpu.memory_space<vmem>>, vector<2x128xf32>
      tpu.vector_store %arg4[%c0_13, %c0_14], %16 {strides = array<i32>} : memref<2x128xf32, #tpu.memory_space<vmem>>, vector<2x128xf32>,
    } else {
    }
    %c0_6 = arith.constant 0 : index
    %c0_7 = arith.constant 0 : index
    %7 = vector.load %arg4[%c0_6, %c0_7] : memref<2x128xf32, #tpu.memory_space<vmem>>, vector<2x128xf32>
    %cst_8 = arith.constant dense<0.000000e+00> : vector<128xf32>
    %8 = vector.multi_reduction <add>, %2, %cst_8 [0] : vector<32x128xf32> to vector<128xf32>
    %9 = vector.shape_cast %8 : vector<128xf32> to vector<1x128xf32>
    %10 = arith.mulf %2, %2 : vector<32x128xf32>
    %cst_9 = arith.constant dense<0.000000e+00> : vector<128xf32>
    %11 = vector.multi_reduction <add>, %10, %cst_9 [0] : vector<32x128xf32> to vector<128xf32>
    %12 = vector.shape_cast %11 : vector<128xf32> to vector<1x128xf32>
    %13 = tpu.concatenate %9, %12 in 0 : vector<1x128xf32>, vector<1x128xf32> -> vector<2x128xf32>
    %14 = arith.addf %7, %13 : vector<2x128xf32>
    %c0_10 = arith.constant 0 : index
    %c0_11 = arith.constant 0 : index
    %15 = vector.load %arg4[%c0_10, %c0_11] : memref<2x128xf32, #tpu.memory_space<vmem>>, vector<2x128xf32>
    tpu.vector_store %arg4[%c0_10, %c0_11], %14 {strides = array<i32>} : memref<2x128xf32, #tpu.memory_space<vmem>>, vector<2x128xf32>,
    return
  }
  func.func @transform_0(%arg0: i32) -> (i32, i32) {
    %c0_i32 = arith.constant 0 : i32
    %c0_i32_0 = arith.constant 0 : i32
    return %arg0, %c0_i32 : i32, i32
  }
  func.func @transform_1(%arg0: i32) -> (i32, i32) {
    %c0_i32 = arith.constant 0 : i32
    %c0_i32_0 = arith.constant 0 : i32
    %c0_i32_1 = arith.constant 0 : i32
    return %c0_i32, %c0_i32_0 : i32, i32
  }
  func.func @transform_2(%arg0: i32) -> (i32, i32) {
    %c0_i32 = arith.constant 0 : i32
    %c0_i32_0 = arith.constant 0 : i32
    return %arg0, %c0_i32 : i32, i32
  }
  func.func @transform_3(%arg0: i32) -> (i32, i32) {
    %c0_i32 = arith.constant 0 : i32
    %c0_i32_0 = arith.constant 0 : i32
    %c0_i32_1 = arith.constant 0 : i32
    return %c0_i32, %c0_i32_0 : i32, i32
  }
}

module attributes {stable_mosaic.version = 11 : i64} {
  func.func @_bn_relu_kernel(%arg0: i32, %arg1: memref<8x512xf32, #tpu.memory_space<vmem>>, %arg2: memref<1x512xf32, #tpu.memory_space<vmem>>, %arg3: memref<1x512xf32, #tpu.memory_space<vmem>>, %arg4: memref<8x512xf32, #tpu.memory_space<vmem>>) attributes {dimension_semantics = [#tpu.dimension_semantics<parallel>], iteration_bounds = array<i64: 1>, scalar_prefetch = 0 : i64, scratch_operands = 0 : i64, tpu.core_type = #tpu.core_type<tc>, window_params = [{transform_indices = @transform_0, window_bounds = array<i64: 8, 512>}, {pipeline_mode = #tpu.pipeline_mode<synchronous>, transform_indices = @transform_1, window_bounds = array<i64: 1, 512>}, {pipeline_mode = #tpu.pipeline_mode<synchronous>, transform_indices = @transform_2, window_bounds = array<i64: 1, 512>}, {transform_indices = @transform_3, window_bounds = array<i64: 8, 512>}]} {
    %c0 = arith.constant 0 : index
    %c0_0 = arith.constant 0 : index
    %0 = vector.load %arg1[%c0, %c0_0] : memref<8x512xf32, #tpu.memory_space<vmem>>, vector<8x512xf32>
    %c0_1 = arith.constant 0 : index
    %c0_2 = arith.constant 0 : index
    %1 = vector.load %arg2[%c0_1, %c0_2] : memref<1x512xf32, #tpu.memory_space<vmem>>, vector<1x512xf32>
    %2 = vector.broadcast %1 : vector<1x512xf32> to vector<8x512xf32>
    %3 = arith.mulf %0, %2 : vector<8x512xf32>
    %c0_3 = arith.constant 0 : index
    %c0_4 = arith.constant 0 : index
    %4 = vector.load %arg3[%c0_3, %c0_4] : memref<1x512xf32, #tpu.memory_space<vmem>>, vector<1x512xf32>
    %5 = vector.broadcast %4 : vector<1x512xf32> to vector<8x512xf32>
    %6 = arith.addf %3, %5 : vector<8x512xf32>
    %cst = arith.constant 0.000000e+00 : f32
    %7 = vector.broadcast %cst : f32 to vector<8x512xf32>
    %8 = arith.maximumf %6, %7 : vector<8x512xf32>
    %c0_5 = arith.constant 0 : index
    %c0_6 = arith.constant 0 : index
    %9 = vector.load %arg4[%c0_5, %c0_6] : memref<8x512xf32, #tpu.memory_space<vmem>>, vector<8x512xf32>
    tpu.vector_store %arg4[%c0_5, %c0_6], %8 {strides = array<i32>} : memref<8x512xf32, #tpu.memory_space<vmem>>, vector<8x512xf32>,
    return
  }
  func.func @transform_0(%arg0: i32) -> (i32, i32) {
    %c0_i32 = arith.constant 0 : i32
    %c0_i32_0 = arith.constant 0 : i32
    return %arg0, %c0_i32 : i32, i32
  }
  func.func @transform_1(%arg0: i32) -> (i32, i32) {
    %c0_i32 = arith.constant 0 : i32
    %c0_i32_0 = arith.constant 0 : i32
    %c0_i32_1 = arith.constant 0 : i32
    return %c0_i32, %c0_i32_0 : i32, i32
  }
  func.func @transform_2(%arg0: i32) -> (i32, i32) {
    %c0_i32 = arith.constant 0 : i32
    %c0_i32_0 = arith.constant 0 : i32
    %c0_i32_1 = arith.constant 0 : i32
    return %c0_i32, %c0_i32_0 : i32, i32
  }
  func.func @transform_3(%arg0: i32) -> (i32, i32) {
    %c0_i32 = arith.constant 0 : i32
    %c0_i32_0 = arith.constant 0 : i32
    return %arg0, %c0_i32 : i32, i32
  }
}

module attributes {stable_mosaic.version = 11 : i64} {
  func.func @_conv_stats_kernel(%arg0: i32, %arg1: memref<32x1152xf32, #tpu.memory_space<vmem>>, %arg2: memref<1152x128xf32, #tpu.memory_space<vmem>>, %arg3: memref<32x128xf32, #tpu.memory_space<vmem>>, %arg4: memref<2x128xf32, #tpu.memory_space<vmem>>) attributes {dimension_semantics = [#tpu.dimension_semantics<arbitrary>], iteration_bounds = array<i64: 1>, scalar_prefetch = 0 : i64, scratch_operands = 0 : i64, tpu.core_type = #tpu.core_type<tc>, window_params = [{transform_indices = @transform_0, window_bounds = array<i64: 32, 1152>}, {pipeline_mode = #tpu.pipeline_mode<synchronous>, transform_indices = @transform_1, window_bounds = array<i64: 1152, 128>}, {transform_indices = @transform_2, window_bounds = array<i64: 32, 128>}, {pipeline_mode = #tpu.pipeline_mode<synchronous>, transform_indices = @transform_3, window_bounds = array<i64: 2, 128>}]} {
    %c0 = arith.constant 0 : index
    %c0_0 = arith.constant 0 : index
    %0 = vector.load %arg1[%c0, %c0_0] : memref<32x1152xf32, #tpu.memory_space<vmem>>, vector<32x1152xf32>
    %c0_1 = arith.constant 0 : index
    %c0_2 = arith.constant 0 : index
    %1 = vector.load %arg2[%c0_1, %c0_2] : memref<1152x128xf32, #tpu.memory_space<vmem>>, vector<1152x128xf32>
    %cst = arith.constant dense<0.000000e+00> : vector<32x128xf32>
    %2 = tpu.matmul %0, %1, %cst {dimension_numbers = #tpu.dot_dimension_numbers<[1], [0], [0], [1], [0, 0, 1, 1], [], []>} : vector<32x1152xf32>, vector<1152x128xf32>, vector<32x128xf32> -> vector<32x128xf32>
    %c0_3 = arith.constant 0 : index
    %c0_4 = arith.constant 0 : index
    %3 = vector.load %arg3[%c0_3, %c0_4] : memref<32x128xf32, #tpu.memory_space<vmem>>, vector<32x128xf32>
    tpu.vector_store %arg3[%c0_3, %c0_4], %2 {strides = array<i32>} : memref<32x128xf32, #tpu.memory_space<vmem>>, vector<32x128xf32>,
    %c0_i32 = arith.constant 0 : i32
    %4 = arith.cmpi eq, %arg0, %c0_i32 : i32
    %5 = arith.extui %4 : i1 to i32
    %c0_i32_5 = arith.constant 0 : i32
    %6 = arith.cmpi ne, %5, %c0_i32_5 : i32
    scf.if %6 {
      %cst_12 = arith.constant 0.000000e+00 : f32
      %16 = vector.broadcast %cst_12 : f32 to vector<2x128xf32>
      %c0_13 = arith.constant 0 : index
      %c0_14 = arith.constant 0 : index
      %17 = vector.load %arg4[%c0_13, %c0_14] : memref<2x128xf32, #tpu.memory_space<vmem>>, vector<2x128xf32>
      tpu.vector_store %arg4[%c0_13, %c0_14], %16 {strides = array<i32>} : memref<2x128xf32, #tpu.memory_space<vmem>>, vector<2x128xf32>,
    } else {
    }
    %c0_6 = arith.constant 0 : index
    %c0_7 = arith.constant 0 : index
    %7 = vector.load %arg4[%c0_6, %c0_7] : memref<2x128xf32, #tpu.memory_space<vmem>>, vector<2x128xf32>
    %cst_8 = arith.constant dense<0.000000e+00> : vector<128xf32>
    %8 = vector.multi_reduction <add>, %2, %cst_8 [0] : vector<32x128xf32> to vector<128xf32>
    %9 = vector.shape_cast %8 : vector<128xf32> to vector<1x128xf32>
    %10 = arith.mulf %2, %2 : vector<32x128xf32>
    %cst_9 = arith.constant dense<0.000000e+00> : vector<128xf32>
    %11 = vector.multi_reduction <add>, %10, %cst_9 [0] : vector<32x128xf32> to vector<128xf32>
    %12 = vector.shape_cast %11 : vector<128xf32> to vector<1x128xf32>
    %13 = tpu.concatenate %9, %12 in 0 : vector<1x128xf32>, vector<1x128xf32> -> vector<2x128xf32>
    %14 = arith.addf %7, %13 : vector<2x128xf32>
    %c0_10 = arith.constant 0 : index
    %c0_11 = arith.constant 0 : index
    %15 = vector.load %arg4[%c0_10, %c0_11] : memref<2x128xf32, #tpu.memory_space<vmem>>, vector<2x128xf32>
    tpu.vector_store %arg4[%c0_10, %c0_11], %14 {strides = array<i32>} : memref<2x128xf32, #tpu.memory_space<vmem>>, vector<2x128xf32>,
    return
  }
  func.func @transform_0(%arg0: i32) -> (i32, i32) {
    %c0_i32 = arith.constant 0 : i32
    %c0_i32_0 = arith.constant 0 : i32
    return %arg0, %c0_i32 : i32, i32
  }
  func.func @transform_1(%arg0: i32) -> (i32, i32) {
    %c0_i32 = arith.constant 0 : i32
    %c0_i32_0 = arith.constant 0 : i32
    %c0_i32_1 = arith.constant 0 : i32
    return %c0_i32, %c0_i32_0 : i32, i32
  }
  func.func @transform_2(%arg0: i32) -> (i32, i32) {
    %c0_i32 = arith.constant 0 : i32
    %c0_i32_0 = arith.constant 0 : i32
    return %arg0, %c0_i32 : i32, i32
  }
  func.func @transform_3(%arg0: i32) -> (i32, i32) {
    %c0_i32 = arith.constant 0 : i32
    %c0_i32_0 = arith.constant 0 : i32
    %c0_i32_1 = arith.constant 0 : i32
    return %c0_i32, %c0_i32_0 : i32, i32
  }
}

module attributes {stable_mosaic.version = 11 : i64} {
  func.func @_conv_stats_kernel(%arg0: i32, %arg1: memref<8x1152xf32, #tpu.memory_space<vmem>>, %arg2: memref<1152x128xf32, #tpu.memory_space<vmem>>, %arg3: memref<8x128xf32, #tpu.memory_space<vmem>>, %arg4: memref<2x128xf32, #tpu.memory_space<vmem>>) attributes {dimension_semantics = [#tpu.dimension_semantics<arbitrary>], iteration_bounds = array<i64: 1>, scalar_prefetch = 0 : i64, scratch_operands = 0 : i64, tpu.core_type = #tpu.core_type<tc>, window_params = [{transform_indices = @transform_0, window_bounds = array<i64: 8, 1152>}, {pipeline_mode = #tpu.pipeline_mode<synchronous>, transform_indices = @transform_1, window_bounds = array<i64: 1152, 128>}, {transform_indices = @transform_2, window_bounds = array<i64: 8, 128>}, {pipeline_mode = #tpu.pipeline_mode<synchronous>, transform_indices = @transform_3, window_bounds = array<i64: 2, 128>}]} {
    %c0 = arith.constant 0 : index
    %c0_0 = arith.constant 0 : index
    %0 = vector.load %arg1[%c0, %c0_0] : memref<8x1152xf32, #tpu.memory_space<vmem>>, vector<8x1152xf32>
    %c0_1 = arith.constant 0 : index
    %c0_2 = arith.constant 0 : index
    %1 = vector.load %arg2[%c0_1, %c0_2] : memref<1152x128xf32, #tpu.memory_space<vmem>>, vector<1152x128xf32>
    %cst = arith.constant dense<0.000000e+00> : vector<8x128xf32>
    %2 = tpu.matmul %0, %1, %cst {dimension_numbers = #tpu.dot_dimension_numbers<[1], [0], [0], [1], [0, 0, 1, 1], [], []>} : vector<8x1152xf32>, vector<1152x128xf32>, vector<8x128xf32> -> vector<8x128xf32>
    %c0_3 = arith.constant 0 : index
    %c0_4 = arith.constant 0 : index
    %3 = vector.load %arg3[%c0_3, %c0_4] : memref<8x128xf32, #tpu.memory_space<vmem>>, vector<8x128xf32>
    tpu.vector_store %arg3[%c0_3, %c0_4], %2 {strides = array<i32>} : memref<8x128xf32, #tpu.memory_space<vmem>>, vector<8x128xf32>,
    %c0_i32 = arith.constant 0 : i32
    %4 = arith.cmpi eq, %arg0, %c0_i32 : i32
    %5 = arith.extui %4 : i1 to i32
    %c0_i32_5 = arith.constant 0 : i32
    %6 = arith.cmpi ne, %5, %c0_i32_5 : i32
    scf.if %6 {
      %cst_12 = arith.constant 0.000000e+00 : f32
      %16 = vector.broadcast %cst_12 : f32 to vector<2x128xf32>
      %c0_13 = arith.constant 0 : index
      %c0_14 = arith.constant 0 : index
      %17 = vector.load %arg4[%c0_13, %c0_14] : memref<2x128xf32, #tpu.memory_space<vmem>>, vector<2x128xf32>
      tpu.vector_store %arg4[%c0_13, %c0_14], %16 {strides = array<i32>} : memref<2x128xf32, #tpu.memory_space<vmem>>, vector<2x128xf32>,
    } else {
    }
    %c0_6 = arith.constant 0 : index
    %c0_7 = arith.constant 0 : index
    %7 = vector.load %arg4[%c0_6, %c0_7] : memref<2x128xf32, #tpu.memory_space<vmem>>, vector<2x128xf32>
    %cst_8 = arith.constant dense<0.000000e+00> : vector<128xf32>
    %8 = vector.multi_reduction <add>, %2, %cst_8 [0] : vector<8x128xf32> to vector<128xf32>
    %9 = vector.shape_cast %8 : vector<128xf32> to vector<1x128xf32>
    %10 = arith.mulf %2, %2 : vector<8x128xf32>
    %cst_9 = arith.constant dense<0.000000e+00> : vector<128xf32>
    %11 = vector.multi_reduction <add>, %10, %cst_9 [0] : vector<8x128xf32> to vector<128xf32>
    %12 = vector.shape_cast %11 : vector<128xf32> to vector<1x128xf32>
    %13 = tpu.concatenate %9, %12 in 0 : vector<1x128xf32>, vector<1x128xf32> -> vector<2x128xf32>
    %14 = arith.addf %7, %13 : vector<2x128xf32>
    %c0_10 = arith.constant 0 : index
    %c0_11 = arith.constant 0 : index
    %15 = vector.load %arg4[%c0_10, %c0_11] : memref<2x128xf32, #tpu.memory_space<vmem>>, vector<2x128xf32>
    tpu.vector_store %arg4[%c0_10, %c0_11], %14 {strides = array<i32>} : memref<2x128xf32, #tpu.memory_space<vmem>>, vector<2x128xf32>,
    return
  }
  func.func @transform_0(%arg0: i32) -> (i32, i32) {
    %c0_i32 = arith.constant 0 : i32
    %c0_i32_0 = arith.constant 0 : i32
    return %arg0, %c0_i32 : i32, i32
  }
  func.func @transform_1(%arg0: i32) -> (i32, i32) {
    %c0_i32 = arith.constant 0 : i32
    %c0_i32_0 = arith.constant 0 : i32
    %c0_i32_1 = arith.constant 0 : i32
    return %c0_i32, %c0_i32_0 : i32, i32
  }
  func.func @transform_2(%arg0: i32) -> (i32, i32) {
    %c0_i32 = arith.constant 0 : i32
    %c0_i32_0 = arith.constant 0 : i32
    return %arg0, %c0_i32 : i32, i32
  }
  func.func @transform_3(%arg0: i32) -> (i32, i32) {
    %c0_i32 = arith.constant 0 : i32
    %c0_i32_0 = arith.constant 0 : i32
    %c0_i32_1 = arith.constant 0 : i32
    return %c0_i32, %c0_i32_0 : i32, i32
  }
}

module attributes {stable_mosaic.version = 11 : i64} {
  func.func @_bn_relu_kernel(%arg0: i32, %arg1: memref<4x256xf32, #tpu.memory_space<vmem>>, %arg2: memref<1x256xf32, #tpu.memory_space<vmem>>, %arg3: memref<1x256xf32, #tpu.memory_space<vmem>>, %arg4: memref<4x256xf32, #tpu.memory_space<vmem>>) attributes {dimension_semantics = [#tpu.dimension_semantics<parallel>], iteration_bounds = array<i64: 1>, scalar_prefetch = 0 : i64, scratch_operands = 0 : i64, tpu.core_type = #tpu.core_type<tc>, window_params = [{transform_indices = @transform_0, window_bounds = array<i64: 4, 256>}, {pipeline_mode = #tpu.pipeline_mode<synchronous>, transform_indices = @transform_1, window_bounds = array<i64: 1, 256>}, {pipeline_mode = #tpu.pipeline_mode<synchronous>, transform_indices = @transform_2, window_bounds = array<i64: 1, 256>}, {transform_indices = @transform_3, window_bounds = array<i64: 4, 256>}]} {
    %c0 = arith.constant 0 : index
    %c0_0 = arith.constant 0 : index
    %0 = vector.load %arg1[%c0, %c0_0] : memref<4x256xf32, #tpu.memory_space<vmem>>, vector<4x256xf32>
    %c0_1 = arith.constant 0 : index
    %c0_2 = arith.constant 0 : index
    %1 = vector.load %arg2[%c0_1, %c0_2] : memref<1x256xf32, #tpu.memory_space<vmem>>, vector<1x256xf32>
    %2 = vector.broadcast %1 : vector<1x256xf32> to vector<4x256xf32>
    %3 = arith.mulf %0, %2 : vector<4x256xf32>
    %c0_3 = arith.constant 0 : index
    %c0_4 = arith.constant 0 : index
    %4 = vector.load %arg3[%c0_3, %c0_4] : memref<1x256xf32, #tpu.memory_space<vmem>>, vector<1x256xf32>
    %5 = vector.broadcast %4 : vector<1x256xf32> to vector<4x256xf32>
    %6 = arith.addf %3, %5 : vector<4x256xf32>
    %cst = arith.constant 0.000000e+00 : f32
    %7 = vector.broadcast %cst : f32 to vector<4x256xf32>
    %8 = arith.maximumf %6, %7 : vector<4x256xf32>
    %c0_5 = arith.constant 0 : index
    %c0_6 = arith.constant 0 : index
    %9 = vector.load %arg4[%c0_5, %c0_6] : memref<4x256xf32, #tpu.memory_space<vmem>>, vector<4x256xf32>
    tpu.vector_store %arg4[%c0_5, %c0_6], %8 {strides = array<i32>} : memref<4x256xf32, #tpu.memory_space<vmem>>, vector<4x256xf32>,
    return
  }
  func.func @transform_0(%arg0: i32) -> (i32, i32) {
    %c0_i32 = arith.constant 0 : i32
    %c0_i32_0 = arith.constant 0 : i32
    return %arg0, %c0_i32 : i32, i32
  }
  func.func @transform_1(%arg0: i32) -> (i32, i32) {
    %c0_i32 = arith.constant 0 : i32
    %c0_i32_0 = arith.constant 0 : i32
    %c0_i32_1 = arith.constant 0 : i32
    return %c0_i32, %c0_i32_0 : i32, i32
  }
  func.func @transform_2(%arg0: i32) -> (i32, i32) {
    %c0_i32 = arith.constant 0 : i32
    %c0_i32_0 = arith.constant 0 : i32
    %c0_i32_1 = arith.constant 0 : i32
    return %c0_i32, %c0_i32_0 : i32, i32
  }
  func.func @transform_3(%arg0: i32) -> (i32, i32) {
    %c0_i32 = arith.constant 0 : i32
    %c0_i32_0 = arith.constant 0 : i32
    return %arg0, %c0_i32 : i32, i32
  }
}

module attributes {stable_mosaic.version = 11 : i64} {
  func.func @_conv_stats_kernel(%arg0: i32, %arg1: memref<2x1152xf32, #tpu.memory_space<vmem>>, %arg2: memref<1152x128xf32, #tpu.memory_space<vmem>>, %arg3: memref<2x128xf32, #tpu.memory_space<vmem>>, %arg4: memref<2x128xf32, #tpu.memory_space<vmem>>) attributes {dimension_semantics = [#tpu.dimension_semantics<arbitrary>], iteration_bounds = array<i64: 1>, scalar_prefetch = 0 : i64, scratch_operands = 0 : i64, tpu.core_type = #tpu.core_type<tc>, window_params = [{transform_indices = @transform_0, window_bounds = array<i64: 2, 1152>}, {pipeline_mode = #tpu.pipeline_mode<synchronous>, transform_indices = @transform_1, window_bounds = array<i64: 1152, 128>}, {transform_indices = @transform_2, window_bounds = array<i64: 2, 128>}, {pipeline_mode = #tpu.pipeline_mode<synchronous>, transform_indices = @transform_3, window_bounds = array<i64: 2, 128>}]} {
    %c0 = arith.constant 0 : index
    %c0_0 = arith.constant 0 : index
    %0 = vector.load %arg1[%c0, %c0_0] : memref<2x1152xf32, #tpu.memory_space<vmem>>, vector<2x1152xf32>
    %c0_1 = arith.constant 0 : index
    %c0_2 = arith.constant 0 : index
    %1 = vector.load %arg2[%c0_1, %c0_2] : memref<1152x128xf32, #tpu.memory_space<vmem>>, vector<1152x128xf32>
    %cst = arith.constant dense<0.000000e+00> : vector<2x128xf32>
    %2 = tpu.matmul %0, %1, %cst {dimension_numbers = #tpu.dot_dimension_numbers<[1], [0], [0], [1], [0, 0, 1, 1], [], []>} : vector<2x1152xf32>, vector<1152x128xf32>, vector<2x128xf32> -> vector<2x128xf32>
    %c0_3 = arith.constant 0 : index
    %c0_4 = arith.constant 0 : index
    %3 = vector.load %arg3[%c0_3, %c0_4] : memref<2x128xf32, #tpu.memory_space<vmem>>, vector<2x128xf32>
    tpu.vector_store %arg3[%c0_3, %c0_4], %2 {strides = array<i32>} : memref<2x128xf32, #tpu.memory_space<vmem>>, vector<2x128xf32>,
    %c0_i32 = arith.constant 0 : i32
    %4 = arith.cmpi eq, %arg0, %c0_i32 : i32
    %5 = arith.extui %4 : i1 to i32
    %c0_i32_5 = arith.constant 0 : i32
    %6 = arith.cmpi ne, %5, %c0_i32_5 : i32
    scf.if %6 {
      %cst_12 = arith.constant 0.000000e+00 : f32
      %16 = vector.broadcast %cst_12 : f32 to vector<2x128xf32>
      %c0_13 = arith.constant 0 : index
      %c0_14 = arith.constant 0 : index
      %17 = vector.load %arg4[%c0_13, %c0_14] : memref<2x128xf32, #tpu.memory_space<vmem>>, vector<2x128xf32>
      tpu.vector_store %arg4[%c0_13, %c0_14], %16 {strides = array<i32>} : memref<2x128xf32, #tpu.memory_space<vmem>>, vector<2x128xf32>,
    } else {
    }
    %c0_6 = arith.constant 0 : index
    %c0_7 = arith.constant 0 : index
    %7 = vector.load %arg4[%c0_6, %c0_7] : memref<2x128xf32, #tpu.memory_space<vmem>>, vector<2x128xf32>
    %cst_8 = arith.constant dense<0.000000e+00> : vector<128xf32>
    %8 = vector.multi_reduction <add>, %2, %cst_8 [0] : vector<2x128xf32> to vector<128xf32>
    %9 = vector.shape_cast %8 : vector<128xf32> to vector<1x128xf32>
    %10 = arith.mulf %2, %2 : vector<2x128xf32>
    %cst_9 = arith.constant dense<0.000000e+00> : vector<128xf32>
    %11 = vector.multi_reduction <add>, %10, %cst_9 [0] : vector<2x128xf32> to vector<128xf32>
    %12 = vector.shape_cast %11 : vector<128xf32> to vector<1x128xf32>
    %13 = tpu.concatenate %9, %12 in 0 : vector<1x128xf32>, vector<1x128xf32> -> vector<2x128xf32>
    %14 = arith.addf %7, %13 : vector<2x128xf32>
    %c0_10 = arith.constant 0 : index
    %c0_11 = arith.constant 0 : index
    %15 = vector.load %arg4[%c0_10, %c0_11] : memref<2x128xf32, #tpu.memory_space<vmem>>, vector<2x128xf32>
    tpu.vector_store %arg4[%c0_10, %c0_11], %14 {strides = array<i32>} : memref<2x128xf32, #tpu.memory_space<vmem>>, vector<2x128xf32>,
    return
  }
  func.func @transform_0(%arg0: i32) -> (i32, i32) {
    %c0_i32 = arith.constant 0 : i32
    %c0_i32_0 = arith.constant 0 : i32
    return %arg0, %c0_i32 : i32, i32
  }
  func.func @transform_1(%arg0: i32) -> (i32, i32) {
    %c0_i32 = arith.constant 0 : i32
    %c0_i32_0 = arith.constant 0 : i32
    %c0_i32_1 = arith.constant 0 : i32
    return %c0_i32, %c0_i32_0 : i32, i32
  }
  func.func @transform_2(%arg0: i32) -> (i32, i32) {
    %c0_i32 = arith.constant 0 : i32
    %c0_i32_0 = arith.constant 0 : i32
    return %arg0, %c0_i32 : i32, i32
  }
  func.func @transform_3(%arg0: i32) -> (i32, i32) {
    %c0_i32 = arith.constant 0 : i32
    %c0_i32_0 = arith.constant 0 : i32
    %c0_i32_1 = arith.constant 0 : i32
    return %c0_i32, %c0_i32_0 : i32, i32
  }
}

module attributes {stable_mosaic.version = 11 : i64} {
  func.func @_bn_relu_kernel(%arg0: i32, %arg1: memref<2x128xf32, #tpu.memory_space<vmem>>, %arg2: memref<1x128xf32, #tpu.memory_space<vmem>>, %arg3: memref<1x128xf32, #tpu.memory_space<vmem>>, %arg4: memref<2x128xf32, #tpu.memory_space<vmem>>) attributes {dimension_semantics = [#tpu.dimension_semantics<parallel>], iteration_bounds = array<i64: 1>, scalar_prefetch = 0 : i64, scratch_operands = 0 : i64, tpu.core_type = #tpu.core_type<tc>, window_params = [{transform_indices = @transform_0, window_bounds = array<i64: 2, 128>}, {pipeline_mode = #tpu.pipeline_mode<synchronous>, transform_indices = @transform_1, window_bounds = array<i64: 1, 128>}, {pipeline_mode = #tpu.pipeline_mode<synchronous>, transform_indices = @transform_2, window_bounds = array<i64: 1, 128>}, {transform_indices = @transform_3, window_bounds = array<i64: 2, 128>}]} {
    %c0 = arith.constant 0 : index
    %c0_0 = arith.constant 0 : index
    %0 = vector.load %arg1[%c0, %c0_0] : memref<2x128xf32, #tpu.memory_space<vmem>>, vector<2x128xf32>
    %c0_1 = arith.constant 0 : index
    %c0_2 = arith.constant 0 : index
    %1 = vector.load %arg2[%c0_1, %c0_2] : memref<1x128xf32, #tpu.memory_space<vmem>>, vector<1x128xf32>
    %2 = vector.broadcast %1 : vector<1x128xf32> to vector<2x128xf32>
    %3 = arith.mulf %0, %2 : vector<2x128xf32>
    %c0_3 = arith.constant 0 : index
    %c0_4 = arith.constant 0 : index
    %4 = vector.load %arg3[%c0_3, %c0_4] : memref<1x128xf32, #tpu.memory_space<vmem>>, vector<1x128xf32>
    %5 = vector.broadcast %4 : vector<1x128xf32> to vector<2x128xf32>
    %6 = arith.addf %3, %5 : vector<2x128xf32>
    %cst = arith.constant 0.000000e+00 : f32
    %7 = vector.broadcast %cst : f32 to vector<2x128xf32>
    %8 = arith.maximumf %6, %7 : vector<2x128xf32>
    %c0_5 = arith.constant 0 : index
    %c0_6 = arith.constant 0 : index
    %9 = vector.load %arg4[%c0_5, %c0_6] : memref<2x128xf32, #tpu.memory_space<vmem>>, vector<2x128xf32>
    tpu.vector_store %arg4[%c0_5, %c0_6], %8 {strides = array<i32>} : memref<2x128xf32, #tpu.memory_space<vmem>>, vector<2x128xf32>,
    return
  }
  func.func @transform_0(%arg0: i32) -> (i32, i32) {
    %c0_i32 = arith.constant 0 : i32
    %c0_i32_0 = arith.constant 0 : i32
    return %arg0, %c0_i32 : i32, i32
  }
  func.func @transform_1(%arg0: i32) -> (i32, i32) {
    %c0_i32 = arith.constant 0 : i32
    %c0_i32_0 = arith.constant 0 : i32
    %c0_i32_1 = arith.constant 0 : i32
    return %c0_i32, %c0_i32_0 : i32, i32
  }
  func.func @transform_2(%arg0: i32) -> (i32, i32) {
    %c0_i32 = arith.constant 0 : i32
    %c0_i32_0 = arith.constant 0 : i32
    %c0_i32_1 = arith.constant 0 : i32
    return %c0_i32, %c0_i32_0 : i32, i32
  }
  func.func @transform_3(%arg0: i32) -> (i32, i32) {
    %c0_i32 = arith.constant 0 : i32
    %c0_i32_0 = arith.constant 0 : i32
    return %arg0, %c0_i32 : i32, i32
  }
}

module attributes {stable_mosaic.version = 11 : i64} {
  func.func @_bn_relu_kernel(%arg0: i32, %arg1: memref<2x128xf32, #tpu.memory_space<vmem>>, %arg2: memref<1x128xf32, #tpu.memory_space<vmem>>, %arg3: memref<1x128xf32, #tpu.memory_space<vmem>>, %arg4: memref<2x128xf32, #tpu.memory_space<vmem>>) attributes {dimension_semantics = [#tpu.dimension_semantics<parallel>], iteration_bounds = array<i64: 1>, scalar_prefetch = 0 : i64, scratch_operands = 0 : i64, tpu.core_type = #tpu.core_type<tc>, window_params = [{transform_indices = @transform_0, window_bounds = array<i64: 2, 128>}, {pipeline_mode = #tpu.pipeline_mode<synchronous>, transform_indices = @transform_1, window_bounds = array<i64: 1, 128>}, {pipeline_mode = #tpu.pipeline_mode<synchronous>, transform_indices = @transform_2, window_bounds = array<i64: 1, 128>}, {transform_indices = @transform_3, window_bounds = array<i64: 2, 128>}]} {
    %c0 = arith.constant 0 : index
    %c0_0 = arith.constant 0 : index
    %0 = vector.load %arg1[%c0, %c0_0] : memref<2x128xf32, #tpu.memory_space<vmem>>, vector<2x128xf32>
    %c0_1 = arith.constant 0 : index
    %c0_2 = arith.constant 0 : index
    %1 = vector.load %arg2[%c0_1, %c0_2] : memref<1x128xf32, #tpu.memory_space<vmem>>, vector<1x128xf32>
    %2 = vector.broadcast %1 : vector<1x128xf32> to vector<2x128xf32>
    %3 = arith.mulf %0, %2 : vector<2x128xf32>
    %c0_3 = arith.constant 0 : index
    %c0_4 = arith.constant 0 : index
    %4 = vector.load %arg3[%c0_3, %c0_4] : memref<1x128xf32, #tpu.memory_space<vmem>>, vector<1x128xf32>
    %5 = vector.broadcast %4 : vector<1x128xf32> to vector<2x128xf32>
    %6 = arith.addf %3, %5 : vector<2x128xf32>
    %cst = arith.constant 0.000000e+00 : f32
    %7 = vector.broadcast %cst : f32 to vector<2x128xf32>
    %8 = arith.maximumf %6, %7 : vector<2x128xf32>
    %c0_5 = arith.constant 0 : index
    %c0_6 = arith.constant 0 : index
    %9 = vector.load %arg4[%c0_5, %c0_6] : memref<2x128xf32, #tpu.memory_space<vmem>>, vector<2x128xf32>
    tpu.vector_store %arg4[%c0_5, %c0_6], %8 {strides = array<i32>} : memref<2x128xf32, #tpu.memory_space<vmem>>, vector<2x128xf32>,
    return
  }
  func.func @transform_0(%arg0: i32) -> (i32, i32) {
    %c0_i32 = arith.constant 0 : i32
    %c0_i32_0 = arith.constant 0 : i32
    return %arg0, %c0_i32 : i32, i32
  }
  func.func @transform_1(%arg0: i32) -> (i32, i32) {
    %c0_i32 = arith.constant 0 : i32
    %c0_i32_0 = arith.constant 0 : i32
    %c0_i32_1 = arith.constant 0 : i32
    return %c0_i32, %c0_i32_0 : i32, i32
  }
  func.func @transform_2(%arg0: i32) -> (i32, i32) {
    %c0_i32 = arith.constant 0 : i32
    %c0_i32_0 = arith.constant 0 : i32
    %c0_i32_1 = arith.constant 0 : i32
    return %c0_i32, %c0_i32_0 : i32, i32
  }
  func.func @transform_3(%arg0: i32) -> (i32, i32) {
    %c0_i32 = arith.constant 0 : i32
    %c0_i32_0 = arith.constant 0 : i32
    return %arg0, %c0_i32 : i32, i32
  }
}

</mosaic_0001>

<llo_original>
// kernel: tile.87
$region0: #{tile.87}
  #allocation0 [shape = 's32[1]{0}', space=sflag, size = 0x4, scoped, tag = 'scoped memory for tile.87']
  %s0 = inlined_call_operand.vmem [shape: f32[64], index: 0, kind: input, shape index: {}]
  %s1 = inlined_call_operand.vmem [shape: f32[16,64], index: 1, kind: output, shape index: {}]
  // Predicated region
  $region2: #{tile.87} parent=0 // pred_check
    _
  $region3: #{tile.87} parent=0 // pred_check_branch
    %3 = sbr.rel (0) target = $region5
  $region4: #{tile.87} parent=0 // pred_region
    _
  $region5: #{tile.87} parent=0 // pred_fallthru
    _
  %v4 = vld [vmem:[%s0] ss:$0 sm:$0xff]
  %5 = vst [vmem:[%s1] sm:$0xff] %v4
  %s6 = scalar_lea.vmem %s1, 8
  %7 = vst [vmem:[%s6] sm:$0xff] %v4

// kernel: tile.88
$region0: #{tile.88}
  %s0 = inlined_call_operand.vmem [shape: f32[16,64], index: 0, kind: input, shape index: {}]
  %s1 = inlined_call_operand.vmem [shape: f32[1,1024], index: 1, kind: output, shape index: {}]
  $region1: #{tile.88} parent=0
    #allocation0 [shape = 'u8[32768]{0}', space=vmem, size = 0x8000, scoped, tag = 'scoped mem for output reshape']
    %v2 = vld [vmem:[%s0] ss:$2 sm:$0xff]
    %vm3 = vcmask 523264
    %4 = vst.msk [vmem:[#allocation0] ss:$8 sm:$0xf] %vm3, %v2
    %5 = vst.msk [vmem:[#allocation0] ss:$8 sm:$0xf0] %vm3, %v2
    %s6 = scalar_lea.vmem %s0, 1
    %v7 = vld [vmem:[%s6] ss:$2 sm:$0xff]
    %8 = vrot.lane.b32.xlu0 %v7, 64
    %v9 = vpop.permute.xlu0 %8
    %vm10 = vcmask 1048064
    %11 = vst.msk [vmem:[#allocation0] ss:$8 sm:$0xf] %vm10, %v9
    %12 = vst.msk [vmem:[#allocation0] ss:$8 sm:$0xf0] %vm10, %v9
    %s14 = sshllo.u32 0, 1
    %v16 = vld [vmem:[#allocation0] sm:%s14]
    %s17 = sshllo.u32 0, 1
    %18 = vst [vmem:[%s1] sm:%s17] %v16
    %s19 = scalar_lea.vmem [#allocation0], 8
    %v20 = vld [vmem:[%s19] sm:%s14]
    %s21 = sshllo.u32 0, 1
    %s22 = scalar_lea.vmem %s1, 1
    %23 = vst [vmem:[%s22] sm:%s21] %v20
    %s24 = scalar_lea.vmem [#allocation0], 16
    %v25 = vld [vmem:[%s24] sm:%s14]
    %s26 = sshllo.u32 0, 1
    %s27 = smul.addr 1, 2
    %s28 = scalar_lea.vmem %s1, %s27
    %29 = vst [vmem:[%s28] sm:%s26] %v25
    %s30 = scalar_lea.vmem [#allocation0], 24
    %v31 = vld [vmem:[%s30] sm:%s14]
    %s32 = sshllo.u32 0, 1
    %s33 = smul.addr 1, 3
    %s34 = scalar_lea.vmem %s1, %s33
    %35 = vst [vmem:[%s34] sm:%s32] %v31
    %s36 = scalar_lea.vmem [#allocation0], 32
    %v37 = vld [vmem:[%s36] sm:%s14]
    %s38 = sshllo.u32 0, 1
    %s39 = smul.addr 1, 4
    %s40 = scalar_lea.vmem %s1, %s39
    %41 = vst [vmem:[%s40] sm:%s38] %v37
    %s42 = scalar_lea.vmem [#allocation0], 40
    %v43 = vld [vmem:[%s42] sm:%s14]
    %s44 = sshllo.u32 0, 1
    %s45 = smul.addr 1, 5
    %s46 = scalar_lea.vmem %s1, %s45
    %47 = vst [vmem:[%s46] sm:%s44] %v43
    %s48 = scalar_lea.vmem [#allocation0], 48
    %v49 = vld [vmem:[%s48] sm:%s14]
    %s50 = sshllo.u32 0, 1
    %s51 = smul.addr 1, 6
    %s52 = scalar_lea.vmem %s1, %s51
    %53 = vst [vmem:[%s52] sm:%s50] %v49
    %s54 = scalar_lea.vmem [#allocation0], 56
    %v55 = vld [vmem:[%s54] sm:%s14]
    %s56 = sshllo.u32 0, 1
    %s57 = smul.addr 1, 7
    %s58 = scalar_lea.vmem %s1, %s57
    %59 = vst [vmem:[%s58] sm:%s56] %v55

// kernel: encoder_conv_com.21
$region0: #{encoder_conv_com.21}
  #allocation0 [shape = 'u32[]', space=smem, size = 0x4, offset = 0x4, fixed_abs, tag = 'smem constant byte address 0x4 - core index']
  #allocation1 [shape = 'u32[144,128]{1,0:T(1,128)}', space=vmem, size = 0x12000, scoped, tag = 'internal scratch']
  %s0 = inlined_call_operand.vmem [shape: f32[32,1024], index: 0, kind: input, shape index: {}]
  %s1 = inlined_call_operand.vmem [shape: f32[1,1024], index: 1, kind: input, shape index: {}]
  %s2 = inlined_call_operand.vmem [shape: f32[1,1024], index: 2, kind: input, shape index: {}]
  %s3 = inlined_call_operand.vmem [shape: f32[32,1024], index: 3, kind: output, shape index: {}]
  %s4 = sld [smem:[#allocation0]]
  $region22: #{encoder_conv_com.21} parent=0
    _
  %s6 = ssub.s32 1, %s4
  %s7 = scalar_select 0, %s6, %s4
  // Predicated region
  $region2: #{encoder_conv_com.21} parent=0 // pred_check
    _
  $region3: #{encoder_conv_com.21} parent=0 // pred_check_branch
    %9 = sbr.rel (0) target = $region5
  $region4: #{encoder_conv_com.21} parent=0 // pred_region
    _
  $region5: #{encoder_conv_com.21} parent=0 // pred_fallthru
    _
  // Predicated region
  $region6: #{encoder_conv_com.21} parent=0 // pred_check
    _
  $region7: #{encoder_conv_com.21} parent=0 // pred_check_branch
    %11 = sbr.rel (0) target = $region9
  $region8: #{encoder_conv_com.21} parent=0 // pred_region
    _
  $region9: #{encoder_conv_com.21} parent=0 // pred_fallthru
    _
  // Predicated region
  $region10: #{encoder_conv_com.21} parent=0 // pred_check
    _
  $region11: #{encoder_conv_com.21} parent=0 // pred_check_branch
    %13 = sbr.rel (0) target = $region13
  $region12: #{encoder_conv_com.21} parent=0 // pred_region
    _
  $region13: #{encoder_conv_com.21} parent=0 // pred_fallthru
    _
  %v14 = vld [vmem:[%s0] sm:$0xff]
  %v15 = vld [vmem:[%s0 + $0x8] sm:$0xff]
  %v16 = vld [vmem:[%s0 + $0x10] sm:$0xff]
  %v17 = vld [vmem:[%s0 + $0x18] sm:$0xff]
  %v18 = vld [vmem:[%s0 + $0x20] sm:$0xff]
  %v19 = vld [vmem:[%s0 + $0x28] sm:$0xff]
  %v20 = vld [vmem:[%s0 + $0x30] sm:$0xff]
  %v21 = vld [vmem:[%s0 + $0x38] sm:$0xff]
  %v22 = vld [vmem:[%s0 + $0x40] sm:$0xff]
  %v23 = vld [vmem:[%s0 + $0x48] sm:$0xff]
  %v24 = vld [vmem:[%s0 + $0x50] sm:$0xff]
  %v25 = vld [vmem:[%s0 + $0x58] sm:$0xff]
  %v26 = vld [vmem:[%s0 + $0x60] sm:$0xff]
  %v27 = vld [vmem:[%s0 + $0x68] sm:$0xff]
  %v28 = vld [vmem:[%s0 + $0x70] sm:$0xff]
  %v29 = vld [vmem:[%s0 + $0x78] sm:$0xff]
  %v30 = vld [vmem:[%s0 + $0x80] sm:$0xff]
  %v31 = vld [vmem:[%s0 + $0x88] sm:$0xff]
  %v32 = vld [vmem:[%s0 + $0x90] sm:$0xff]
  %v33 = vld [vmem:[%s0 + $0x98] sm:$0xff]
  %v34 = vld [vmem:[%s0 + $0xa0] sm:$0xff]
  %v35 = vld [vmem:[%s0 + $0xa8] sm:$0xff]
  %v36 = vld [vmem:[%s0 + $0xb0] sm:$0xff]
  %v37 = vld [vmem:[%s0 + $0xb8] sm:$0xff]
  %v38 = vld [vmem:[%s0 + $0xc0] sm:$0xff]
  %v39 = vld [vmem:[%s0 + $0xc8] sm:$0xff]
  %v40 = vld [vmem:[%s0 + $0xd0] sm:$0xff]
  %v41 = vld [vmem:[%s0 + $0xd8] sm:$0xff]
  %v42 = vld [vmem:[%s0 + $0xe0] sm:$0xff]
  %v43 = vld [vmem:[%s0 + $0xe8] sm:$0xff]
  %v44 = vld [vmem:[%s0 + $0xf0] sm:$0xff]
  %v45 = vld [vmem:[%s0 + $0xf8] sm:$0xff]
  %v46 = vld [vmem:[%s1] sm:$0xff]
  %v48 = vlaneseq
  %v49 = vshrl.u32 %v48, 7
  %v50 = vsub.s32 0, %v49
  %v51 = vrot.slane %v46, %v50
  %v52 = vlaneseq
  %v53 = vshrl.u32 %v52, 7
  %v54 = vsub.s32 1, %v53
  %v55 = vrot.slane %v46, %v54
  %v56 = vlaneseq
  %v57 = vshrl.u32 %v56, 7
  %v58 = vsub.s32 2, %v57
  %v59 = vrot.slane %v46, %v58
  %v60 = vlaneseq
  %v61 = vshrl.u32 %v60, 7
  %v62 = vsub.s32 3, %v61
  %v63 = vrot.slane %v46, %v62
  %v64 = vlaneseq
  %v65 = vshrl.u32 %v64, 7
  %v66 = vsub.s32 4, %v65
  %v67 = vrot.slane %v46, %v66
  %v68 = vlaneseq
  %v69 = vshrl.u32 %v68, 7
  %v70 = vsub.s32 5, %v69
  %v71 = vrot.slane %v46, %v70
  %v72 = vlaneseq
  %v73 = vshrl.u32 %v72, 7
  %v74 = vsub.s32 6, %v73
  %v75 = vrot.slane %v46, %v74
  %v76 = vlaneseq
  %v77 = vshrl.u32 %v76, 7
  %v78 = vsub.s32 7, %v77
  %v79 = vrot.slane %v46, %v78
  %v88 = vmul.f32 %v14, %v51
  %v89 = vmul.f32 %v15, %v55
  %v90 = vmul.f32 %v16, %v59
  %v91 = vmul.f32 %v17, %v63
  %v92 = vmul.f32 %v18, %v67
  %v93 = vmul.f32 %v19, %v71
  %v94 = vmul.f32 %v20, %v75
  %v95 = vmul.f32 %v21, %v79
  %v96 = vmul.f32 %v22, %v51
  %v97 = vmul.f32 %v23, %v55
  %v98 = vmul.f32 %v24, %v59
  %v99 = vmul.f32 %v25, %v63
  %v100 = vmul.f32 %v26, %v67
  %v101 = vmul.f32 %v27, %v71
  %v102 = vmul.f32 %v28, %v75
  %v103 = vmul.f32 %v29, %v79
  %v104 = vmul.f32 %v30, %v51
  %v105 = vmul.f32 %v31, %v55
  %v106 = vmul.f32 %v32, %v59
  %v107 = vmul.f32 %v33, %v63
  %v108 = vmul.f32 %v34, %v67
  %v109 = vmul.f32 %v35, %v71
  %v110 = vmul.f32 %v36, %v75
  %v111 = vmul.f32 %v37, %v79
  %v112 = vmul.f32 %v38, %v51
  %v113 = vmul.f32 %v39, %v55
  %v114 = vmul.f32 %v40, %v59
  %v115 = vmul.f32 %v41, %v63
  %v116 = vmul.f32 %v42, %v67
  %v117 = vmul.f32 %v43, %v71
  %v118 = vmul.f32 %v44, %v75
  %v119 = vmul.f32 %v45, %v79
  %v120 = vld [vmem:[%s2] sm:$0xff]
  %v122 = vlaneseq
  %v123 = vshrl.u32 %v122, 7
  %v124 = vsub.s32 0, %v123
  %v125 = vrot.slane %v120, %v124
  %v126 = vlaneseq
  %v127 = vshrl.u32 %v126, 7
  %v128 = vsub.s32 1, %v127
  %v129 = vrot.slane %v120, %v128
  %v130 = vlaneseq
  %v131 = vshrl.u32 %v130, 7
  %v132 = vsub.s32 2, %v131
  %v133 = vrot.slane %v120, %v132
  %v134 = vlaneseq
  %v135 = vshrl.u32 %v134, 7
  %v136 = vsub.s32 3, %v135
  %v137 = vrot.slane %v120, %v136
  %v138 = vlaneseq
  %v139 = vshrl.u32 %v138, 7
  %v140 = vsub.s32 4, %v139
  %v141 = vrot.slane %v120, %v140
  %v142 = vlaneseq
  %v143 = vshrl.u32 %v142, 7
  %v144 = vsub.s32 5, %v143
  %v145 = vrot.slane %v120, %v144
  %v146 = vlaneseq
  %v147 = vshrl.u32 %v146, 7
  %v148 = vsub.s32 6, %v147
  %v149 = vrot.slane %v120, %v148
  %v150 = vlaneseq
  %v151 = vshrl.u32 %v150, 7
  %v152 = vsub.s32 7, %v151
  %v153 = vrot.slane %v120, %v152
  %v162 = vadd.f32 %v88, %v125
  %v163 = vadd.f32 %v89, %v129
  %v164 = vadd.f32 %v90, %v133
  %v165 = vadd.f32 %v91, %v137
  %v166 = vadd.f32 %v92, %v141
  %v167 = vadd.f32 %v93, %v145
  %v168 = vadd.f32 %v94, %v149
  %v169 = vadd.f32 %v95, %v153
  %v170 = vadd.f32 %v96, %v125
  %v171 = vadd.f32 %v97, %v129
  %v172 = vadd.f32 %v98, %v133
  %v173 = vadd.f32 %v99, %v137
  %v174 = vadd.f32 %v100, %v141
  %v175 = vadd.f32 %v101, %v145
  %v176 = vadd.f32 %v102, %v149
  %v177 = vadd.f32 %v103, %v153
  %v178 = vadd.f32 %v104, %v125
  %v179 = vadd.f32 %v105, %v129
  %v180 = vadd.f32 %v106, %v133
  %v181 = vadd.f32 %v107, %v137
  %v182 = vadd.f32 %v108, %v141
  %v183 = vadd.f32 %v109, %v145
  %v184 = vadd.f32 %v110, %v149
  %v185 = vadd.f32 %v111, %v153
  %v186 = vadd.f32 %v112, %v125
  %v187 = vadd.f32 %v113, %v129
  %v188 = vadd.f32 %v114, %v133
  %v189 = vadd.f32 %v115, %v137
  %v190 = vadd.f32 %v116, %v141
  %v191 = vadd.f32 %v117, %v145
  %v192 = vadd.f32 %v118, %v149
  %v193 = vadd.f32 %v119, %v153
  %v194 = vmax.f32 %v162, 0.0
  %v195 = vmax.f32 %v163, 0.0
  %v196 = vmax.f32 %v164, 0.0
  %v197 = vmax.f32 %v165, 0.0
  %v198 = vmax.f32 %v166, 0.0
  %v199 = vmax.f32 %v167, 0.0
  %v200 = vmax.f32 %v168, 0.0
  %v201 = vmax.f32 %v169, 0.0
  %v202 = vmax.f32 %v170, 0.0
  %v203 = vmax.f32 %v171, 0.0
  %v204 = vmax.f32 %v172, 0.0
  %v205 = vmax.f32 %v173, 0.0
  %v206 = vmax.f32 %v174, 0.0
  %v207 = vmax.f32 %v175, 0.0
  %v208 = vmax.f32 %v176, 0.0
  %v209 = vmax.f32 %v177, 0.0
  %v210 = vmax.f32 %v178, 0.0
  %v211 = vmax.f32 %v179, 0.0
  %v212 = vmax.f32 %v180, 0.0
  %v213 = vmax.f32 %v181, 0.0
  %v214 = vmax.f32 %v182, 0.0
  %v215 = vmax.f32 %v183, 0.0
  %v216 = vmax.f32 %v184, 0.0
  %v217 = vmax.f32 %v185, 0.0
  %v218 = vmax.f32 %v186, 0.0
  %v219 = vmax.f32 %v187, 0.0
  %v220 = vmax.f32 %v188, 0.0
  %v221 = vmax.f32 %v189, 0.0
  %v222 = vmax.f32 %v190, 0.0
  %v223 = vmax.f32 %v191, 0.0
  %v224 = vmax.f32 %v192, 0.0
  %v225 = vmax.f32 %v193, 0.0
  %226 = vst [vmem:[%s3] sm:$0xff] %v194
  %227 = vst [vmem:[%s3 + $0x8] sm:$0xff] %v195
  %228 = vst [vmem:[%s3 + $0x10] sm:$0xff] %v196
  %229 = vst [vmem:[%s3 + $0x18] sm:$0xff] %v197
  %230 = vst [vmem:[%s3 + $0x20] sm:$0xff] %v198
  %231 = vst [vmem:[%s3 + $0x28] sm:$0xff] %v199
  %232 = vst [vmem:[%s3 + $0x30] sm:$0xff] %v200
  %233 = vst [vmem:[%s3 + $0x38] sm:$0xff] %v201
  %234 = vst [vmem:[%s3 + $0x40] sm:$0xff] %v202
  %235 = vst [vmem:[%s3 + $0x48] sm:$0xff] %v203
  %236 = vst [vmem:[%s3 + $0x50] sm:$0xff] %v204
  %237 = vst [vmem:[%s3 + $0x58] sm:$0xff] %v205
  %238 = vst [vmem:[%s3 + $0x60] sm:$0xff] %v206
  %239 = vst [vmem:[%s3 + $0x68] sm:$0xff] %v207
  %240 = vst [vmem:[%s3 + $0x70] sm:$0xff] %v208
  %241 = vst [vmem:[%s3 + $0x78] sm:$0xff] %v209
  %242 = vst [vmem:[%s3 + $0x80] sm:$0xff] %v210
  %243 = vst [vmem:[%s3 + $0x88] sm:$0xff] %v211
  %244 = vst [vmem:[%s3 + $0x90] sm:$0xff] %v212
  %245 = vst [vmem:[%s3 + $0x98] sm:$0xff] %v213
  %246 = vst [vmem:[%s3 + $0xa0] sm:$0xff] %v214
  %247 = vst [vmem:[%s3 + $0xa8] sm:$0xff] %v215
  %248 = vst [vmem:[%s3 + $0xb0] sm:$0xff] %v216
  %249 = vst [vmem:[%s3 + $0xb8] sm:$0xff] %v217
  %250 = vst [vmem:[%s3 + $0xc0] sm:$0xff] %v218
  %251 = vst [vmem:[%s3 + $0xc8] sm:$0xff] %v219
  %252 = vst [vmem:[%s3 + $0xd0] sm:$0xff] %v220
  %253 = vst [vmem:[%s3 + $0xd8] sm:$0xff] %v221
  %254 = vst [vmem:[%s3 + $0xe0] sm:$0xff] %v222
  %255 = vst [vmem:[%s3 + $0xe8] sm:$0xff] %v223
  %256 = vst [vmem:[%s3 + $0xf0] sm:$0xff] %v224
  %257 = vst [vmem:[%s3 + $0xf8] sm:$0xff] %v225
  // Predicated region
  $region14: #{encoder_conv_com.21} parent=0 // pred_check
    _
  $region15: #{encoder_conv_com.21} parent=0 // pred_check_branch
    %259 = sbr.rel (0) target = $region17
  $region16: #{encoder_conv_com.21} parent=0 // pred_region
    _
  $region17: #{encoder_conv_com.21} parent=0 // pred_fallthru
    _
  // Predicated region
  $region18: #{encoder_conv_com.21} parent=0 // pred_check
    _
  $region19: #{encoder_conv_com.21} parent=0 // pred_check_branch
    %261 = sbr.rel (0) target = $region21
  $region20: #{encoder_conv_com.21} parent=0 // pred_region
    _
  $region21: #{encoder_conv_com.21} parent=0 // pred_fallthru
    _

// kernel: encoder_conv_com.20
$region0: #{encoder_conv_com.20}
  #allocation0 [shape = 'u32[]', space=smem, size = 0x4, offset = 0x4, fixed_abs, tag = 'smem constant byte address 0x4 - core index']
  #allocation1 [shape = 'u32[144,128]{1,0:T(1,128)}', space=vmem, size = 0x12000, scoped, tag = 'internal scratch']
  %s0 = inlined_call_operand.vmem [shape: f32[512,9], index: 0, kind: input, shape index: {}]
  %s1 = inlined_call_operand.vmem [shape: f32[9,64], index: 1, kind: input, shape index: {}]
  %s2 = inlined_call_operand.vmem [shape: f32[512,64], index: 2, kind: output, shape index: {0}]
  %s3 = inlined_call_operand.vmem [shape: f32[2,64], index: 3, kind: output, shape index: {1}]
  %4 = xla_tuple %s2, %s3
  %s5 = sld [smem:[#allocation0]]
  $region53: #{encoder_conv_com.20} parent=0
    _
  %s7 = ssub.s32 1, %s5
  %s8 = scalar_select 0, %s7, %s5
  loop: start=0, step=1, limit=4
  $region2: #{encoder_conv_com.20} parent=0 // loop_pre_header
    _
  $region3: #{encoder_conv_com.20} parent=0 // loop_header
    %s10 = sphi 0, %s14
    %p11 = scmp.ge.s32.totalorder %s10, 4
    %s20 = sphi 0, %s22
    %s23 = sphi 0, %s20
    %s24 = sphi 0, %s23
    %s40 = sphi 0, %s24
    %s44 = sphi 0, %s44
    %s46 = sphi 0, %s44
    %s47 = sphi 0, %s46
    %s61 = sphi 0, %s47
    %s67 = sphi 0, %s69
    %s70 = sphi 0, %s67
    %s71 = sphi 0, %s70
    %s87 = sphi 0, %s71
    %s91 = sphi 0, %s91
    %s93 = sphi 0, %s91
    %s94 = sphi 0, %s93
    %s108 = sphi 0, %s94
  $region4: #{encoder_conv_com.20} parent=0 // loop_header_branch
    %13 = sbr.rel (%p11) target = $region8
  $region5: #{encoder_conv_com.20} parent=0 // loop_body
    %s15 = ssub.s32 %s10, 1
    %s16 = ssub.s32 %s10, 2
    %s17 = sadd.s32 %s10, 1
    %s18 = ssub.s32 %s10, %s17
    %p19 = scmp.eq.s32.totalorder %s18, 0
    %s21 = sadd.s32 %s20, 1
    %s22 = scalar_select %p19, %s20, %s21
    %p25 = pneg %p19
    %p26 = scmp.eq.s32.totalorder %s10, 1
    %p27 = por %p25, %p26
    %p28 = scmp.ne.s32.totalorder %s20, %s23
    %p29 = scmp.eq.s32.totalorder %s10, 0
    %p30 = por %p28, %p29
    %p31 = scmp.ne.s32.totalorder %s20, %s23
    %p32 = scmp.eq.s32.totalorder %s15, 1
    %p33 = por %p31, %p32
    %p34 = scmp.ne.s32.totalorder %s23, %s24
    %p35 = scmp.eq.s32.totalorder %s15, 0
    %p36 = por %p34, %p35
    %p37 = scmp.ne.s32.totalorder %s23, %s24
    %p38 = scmp.eq.s32.totalorder %s16, 1
    %p39 = por %p37, %p38
    %p41 = scmp.ne.s32.totalorder %s24, %s40
    %p42 = scmp.eq.s32.totalorder %s16, 0
    %p43 = por %p41, %p42
    %s45 = sadd.s32 %s44, 1
    %p48 = scmp.eq.s32.totalorder %s10, 1
    %p49 = scmp.ne.s32.totalorder %s44, %s46
    %p50 = scmp.eq.s32.totalorder %s10, 0
    %p51 = por %p49, %p50
    %p52 = scmp.ne.s32.totalorder %s44, %s46
    %p53 = scmp.eq.s32.totalorder %s15, 1
    %p54 = por %p52, %p53
    %p55 = scmp.ne.s32.totalorder %s46, %s47
    %p56 = scmp.eq.s32.totalorder %s15, 0
    %p57 = por %p55, %p56
    %p58 = scmp.ne.s32.totalorder %s46, %s47
    %p59 = scmp.eq.s32.totalorder %s16, 1
    %p60 = por %p58, %p59
    %p62 = scmp.ne.s32.totalorder %s47, %s61
    %p63 = scmp.eq.s32.totalorder %s16, 0
    %p64 = por %p62, %p63
    %s65 = ssub.s32 %s10, %s17
    %p66 = scmp.eq.s32.totalorder %s65, 0
    %s68 = sadd.s32 %s67, 1
    %s69 = scalar_select %p66, %s67, %s68
    %p72 = pneg %p66
    %p73 = scmp.eq.s32.totalorder %s10, 1
    %p74 = por %p72, %p73
    %p75 = scmp.ne.s32.totalorder %s67, %s70
    %p76 = scmp.eq.s32.totalorder %s10, 0
    %p77 = por %p75, %p76
    %p78 = scmp.ne.s32.totalorder %s67, %s70
    %p79 = scmp.eq.s32.totalorder %s15, 1
    %p80 = por %p78, %p79
    %p81 = scmp.ne.s32.totalorder %s70, %s71
    %p82 = scmp.eq.s32.totalorder %s15, 0
    %p83 = por %p81, %p82
    %p84 = scmp.ne.s32.totalorder %s70, %s71
    %p85 = scmp.eq.s32.totalorder %s16, 1
    %p86 = por %p84, %p85
    %p88 = scmp.ne.s32.totalorder %s71, %s87
    %p89 = scmp.eq.s32.totalorder %s16, 0
    %p90 = por %p88, %p89
    %s92 = sadd.s32 %s91, 1
    %p95 = scmp.eq.s32.totalorder %s10, 1
    %p96 = scmp.ne.s32.totalorder %s91, %s93
    %p97 = scmp.eq.s32.totalorder %s10, 0
    %p98 = por %p96, %p97
    %p99 = scmp.ne.s32.totalorder %s91, %s93
    %p100 = scmp.eq.s32.totalorder %s15, 1
    %p101 = por %p99, %p100
    %p102 = scmp.ne.s32.totalorder %s93, %s94
    %p103 = scmp.eq.s32.totalorder %s15, 0
    %p104 = por %p102, %p103
    %p105 = scmp.ne.s32.totalorder %s93, %s94
    %p106 = scmp.eq.s32.totalorder %s16, 1
    %p107 = por %p105, %p106
    %p109 = scmp.ne.s32.totalorder %s94, %s108
    %p110 = scmp.eq.s32.totalorder %s16, 0
    %p111 = por %p109, %p110
    %p112 = scmp.le.s32.totalorder 1, %s10
    %p113 = scmp.lt.s32.totalorder %s10, 3
    %p114 = pnand %p112, %p113
    %p115 = pneg %p114
    // Predicated region
    $region9: #{encoder_conv_com.20} parent=5 // pred_check
      _
    $region10: #{encoder_conv_com.20} parent=5 // pred_check_branch
      %117 = sbr.rel (%p114) target = $region12
    $region11: #{encoder_conv_com.20} parent=5 // pred_region
      %s118 = ssub.s32 %s10, 1
      // Predicated region
      $region13: #{encoder_conv_com.20} parent=11 // pred_check
        %p119 = pneg %p57
      $region14: #{encoder_conv_com.20} parent=11 // pred_check_branch
        %121 = sbr.rel (%p119) target = $region16
      $region15: #{encoder_conv_com.20} parent=11 // pred_region
        _
      $region16: #{encoder_conv_com.20} parent=11 // pred_fallthru
        _
    $region12: #{encoder_conv_com.20} parent=5 // pred_fallthru
      _
    %p122 = scmp.lt.s32.totalorder %s10, 2
    // Predicated region
    $region17: #{encoder_conv_com.20} parent=5 // pred_check
      %p123 = pneg %p122
    $region18: #{encoder_conv_com.20} parent=5 // pred_check_branch
      %125 = sbr.rel (%p123) target = $region20
    $region19: #{encoder_conv_com.20} parent=5 // pred_region
      // Predicated region
      $region21: #{encoder_conv_com.20} parent=19 // pred_check
        %p126 = pneg %p30
      $region22: #{encoder_conv_com.20} parent=19 // pred_check_branch
        %128 = sbr.rel (%p126) target = $region24
      $region23: #{encoder_conv_com.20} parent=19 // pred_region
        %s129 = smul.u32 32, %s10
        %p130 = scmp.lt.s32.totalorder %s129, 63
        %s131 = scalar_select %p130, %s129, 63
        %s132 = smul.addr %s131, 8
        %s133 = scalar_lea.vmem %s0, %s132
        %s134 = smul.u32 32, %s10
      $region24: #{encoder_conv_com.20} parent=19 // pred_fallthru
        _
    $region20: #{encoder_conv_com.20} parent=5 // pred_fallthru
      _
    %p135 = scmp.le.s32.totalorder 1, %s10
    %p136 = scmp.lt.s32.totalorder %s10, 3
    %p137 = pnand %p135, %p136
    %p138 = pneg %p137
    // Predicated region
    $region25: #{encoder_conv_com.20} parent=5 // pred_check
      _
    $region26: #{encoder_conv_com.20} parent=5 // pred_check_branch
      %140 = sbr.rel (%p137) target = $region28
    $region27: #{encoder_conv_com.20} parent=5 // pred_region
      %s141 = ssub.s32 %s10, 1
      %s142 = smul.u32 32, %s15
      %p143 = scmp.lt.s32.totalorder %s142, 63
      %s144 = scalar_select %p143, %s142, 63
      %s145 = smul.addr %s144, 8
      %s146 = scalar_lea.vmem %s0, %s145
      %p147 = pneg %p36
      %p148 = pneg %p33
      %p149 = pneg %p57
      %p150 = pneg %p54
      %p151 = pneg %p83
      %p152 = pneg %p80
      %s153 = smul.u32 32, %s15
      %p154 = scmp.lt.s32.totalorder %s153, 63
      %s155 = scalar_select %p154, %s153, 63
      %s156 = smul.addr %s155, 8
      %s157 = scalar_lea.vmem %s2, %s156
      %p158 = pneg %p104
      %p159 = pneg %p101
      %s160 = smul.u32 32, %s15
      %p161 = scmp.lt.s32.totalorder %s160, 63
      %s162 = scalar_select %p161, %s160, 63
      %s163 = smul.addr %s162, 8
      %s164 = scalar_lea.vmem %s0, %s163
      %s165 = smul.u32 32, %s15
      %s166 = smul.u32 32, %s15
      %p167 = scmp.lt.s32.totalorder %s166, 63
      %s168 = scalar_select %p167, %s166, 63
      %s169 = smul.addr %s168, 8
      %s170 = scalar_lea.vmem %s2, %s169
      %s171 = smul.u32 32, %s15
      %v172 = vld [vmem:[%s164] sm:$0xff]
      %v173 = vld [vmem:[%s164 + $0x8] sm:$0xff]
      %v174 = vld [vmem:[%s164 + $0x10] sm:$0xff]
      %v175 = vld [vmem:[%s164 + $0x18] sm:$0xff]
      %v176 = vld [vmem:[%s164 + $0x20] sm:$0xff]
      %v177 = vld [vmem:[%s164 + $0x28] sm:$0xff]
      %v178 = vld [vmem:[%s164 + $0x30] sm:$0xff]
      %v179 = vld [vmem:[%s164 + $0x38] sm:$0xff]
      %v180 = vld [vmem:[%s164 + $0x40] sm:$0xff]
      %v181 = vld [vmem:[%s164 + $0x48] sm:$0xff]
      %v182 = vld [vmem:[%s164 + $0x50] sm:$0xff]
      %v183 = vld [vmem:[%s164 + $0x58] sm:$0xff]
      %v184 = vld [vmem:[%s164 + $0x60] sm:$0xff]
      %v185 = vld [vmem:[%s164 + $0x68] sm:$0xff]
      %v186 = vld [vmem:[%s164 + $0x70] sm:$0xff]
      %v187 = vld [vmem:[%s164 + $0x78] sm:$0xff]
      %v188 = vld [vmem:[%s164 + $0x80] sm:$0xff]
      %v189 = vld [vmem:[%s164 + $0x88] sm:$0xff]
      %v190 = vld [vmem:[%s164 + $0x90] sm:$0xff]
      %v191 = vld [vmem:[%s164 + $0x98] sm:$0xff]
      %v192 = vld [vmem:[%s164 + $0xa0] sm:$0xff]
      %v193 = vld [vmem:[%s164 + $0xa8] sm:$0xff]
      %v194 = vld [vmem:[%s164 + $0xb0] sm:$0xff]
      %v195 = vld [vmem:[%s164 + $0xb8] sm:$0xff]
      %v196 = vld [vmem:[%s164 + $0xc0] sm:$0xff]
      %v197 = vld [vmem:[%s164 + $0xc8] sm:$0xff]
      %v198 = vld [vmem:[%s164 + $0xd0] sm:$0xff]
      %v199 = vld [vmem:[%s164 + $0xd8] sm:$0xff]
      %v200 = vld [vmem:[%s164 + $0xe0] sm:$0xff]
      %v201 = vld [vmem:[%s164 + $0xe8] sm:$0xff]
      %v202 = vld [vmem:[%s164 + $0xf0] sm:$0xff]
      %v203 = vld [vmem:[%s164 + $0xf8] sm:$0xff]
      %v204 = vld [vmem:[%s1] sm:$0xff]
      %v205 = vld [vmem:[%s1 + $0x8] sm:$0x1]
      %vm206 = vcmask 72704
      %v208 = vsel %vm206, %v172, 0
      %v211 = vsel %vm206, %v173, 0
      %v214 = vsel %vm206, %v174, 0
      %v217 = vsel %vm206, %v175, 0
      %v220 = vsel %vm206, %v176, 0
      %v223 = vsel %vm206, %v177, 0
      %v226 = vsel %vm206, %v178, 0
      %v229 = vsel %vm206, %v179, 0
      %v232 = vsel %vm206, %v180, 0
      %v235 = vsel %vm206, %v181, 0
      %v238 = vsel %vm206, %v182, 0
      %v241 = vsel %vm206, %v183, 0
      %v244 = vsel %vm206, %v184, 0
      %v247 = vsel %vm206, %v185, 0
      %v250 = vsel %vm206, %v186, 0
      %v253 = vsel %vm206, %v187, 0
      %v256 = vsel %vm206, %v188, 0
      %v259 = vsel %vm206, %v189, 0
      %v262 = vsel %vm206, %v190, 0
      %v265 = vsel %vm206, %v191, 0
      %v268 = vsel %vm206, %v192, 0
      %v271 = vsel %vm206, %v193, 0
      %v274 = vsel %vm206, %v194, 0
      %v277 = vsel %vm206, %v195, 0
      %v280 = vsel %vm206, %v196, 0
      %v283 = vsel %vm206, %v197, 0
      %v286 = vsel %vm206, %v198, 0
      %v289 = vsel %vm206, %v199, 0
      %v292 = vsel %vm206, %v200, 0
      %v295 = vsel %vm206, %v201, 0
      %v298 = vsel %vm206, %v202, 0
      %v301 = vsel %vm206, %v203, 0
      %vm303 = vcmask 1040384
      %v305 = vsel %vm303, %v205, 0
      %307 = vmatprep.subr.mxu0 0.0
      %308 = vmatpush1.msra.mxu0 %v204
      %309 = vmatprep.subr.mxu0 0.0
      %310 = vmatpush1.msra.mxu0 %v305
      %311 = vmatprep.subr.mxu0 0.0
      %312 = vmatpush1.msra.mxu0 0.0
      %313 = vmatprep.subr.mxu0 0.0
      %314 = vmatpush1.msra.mxu0 0.0
      %315 = vmatprep.subr.mxu0 0.0
      %316 = vmatpush1.msra.mxu0 0.0
      %317 = vmatprep.subr.mxu0 0.0
      %318 = vmatpush1.msra.mxu0 0.0
      %319 = vmatprep.subr.mxu0 0.0
      %320 = vmatpush1.msra.mxu0 0.0
      %321 = vmatprep.subr.mxu0 0.0
      %322 = vmatpush1.msra.mxu0 0.0
      %323 = vmatprep.subr.mxu0 0.0
      %324 = vmatpush1.msra.mxu0 0.0
      %325 = vmatprep.subr.mxu0 0.0
      %326 = vmatpush1.msra.mxu0 0.0
      %327 = vmatprep.subr.mxu0 0.0
      %328 = vmatpush1.msra.mxu0 0.0
      %329 = vmatprep.subr.mxu0 0.0
      %330 = vmatpush1.msra.mxu0 0.0
      %331 = vmatprep.subr.mxu0 0.0
      %332 = vmatpush1.msra.mxu0 0.0
      %333 = vmatprep.subr.mxu0 0.0
      %334 = vmatpush1.msra.mxu0 0.0
      %335 = vmatprep.subr.mxu0 0.0
      %336 = vmatpush1.msra.mxu0 0.0
      %337 = vmatprep.subr.mxu0 0.0
      %338 = vmatpush1.msra.mxu0 0.0
      %339 = vmatprep.subr.mxu0 0.0
      %340 = vmatpush1.msra.mxu0 0.0
      %341 = vmatprep.subr.mxu0 0.0
      %342 = vmatpush1.msra.mxu0 0.0
      %343 = vmatprep.subr.mxu0 0.0
      %344 = vmatpush1.msra.mxu0 0.0
      %345 = vmatprep.subr.mxu0 0.0
      %346 = vmatpush1.msra.mxu0 0.0
      %347 = vmatprep.subr.mxu0 0.0
      %348 = vmatpush1.msra.mxu0 0.0
      %349 = vmatprep.subr.mxu0 0.0
      %350 = vmatpush1.msra.mxu0 0.0
      %351 = vmatprep.subr.mxu0 0.0
      %352 = vmatpush1.msra.mxu0 0.0
      %353 = vmatprep.subr.mxu0 0.0
      %354 = vmatpush1.msra.mxu0 0.0
      %355 = vmatprep.subr.mxu0 0.0
      %356 = vmatpush1.msra.mxu0 0.0
      %357 = vmatprep.subr.mxu0 0.0
      %358 = vmatpush1.msra.mxu0 0.0
      %359 = vmatprep.subr.mxu0 0.0
      %360 = vmatpush1.msra.mxu0 0.0
      %361 = vmatprep.subr.mxu0 0.0
      %362 = vmatpush1.msra.mxu0 0.0
      %363 = vmatprep.subr.mxu0 0.0
      %364 = vmatpush1.msra.mxu0 0.0
      %365 = vmatprep.subr.mxu0 0.0
      %366 = vmatpush1.msra.mxu0 0.0
      %367 = vmatprep.subr.mxu0 0.0
      %368 = vmatpush1.msra.mxu0 0.0
      %369 = vmatprep.subr.mxu0 0.0
      %370 = vmatpush1.msra.mxu0 0.0
      %371 = vmatprep.mubr.f32.mxu0 0.0
      %372 = vmatmul.mubr.f32.gmra.mrb[0].mxu0 %v208
      %v373 = vpop.f32.mrb[0].mxu0
      %v374 = vadd.f32 0.0, %v373
      %v375 = vpop.f32.mrb[0].mxu0
      %376 = vmatprep.mubr.f32.mxu0 0.0
      %377 = vmatmul.mubr.f32.gmra.mrb[0].mxu0 %v211
      %v378 = vpop.f32.mrb[0].mxu0
      %v379 = vadd.f32 0.0, %v378
      %v380 = vpop.f32.mrb[0].mxu0
      %381 = vmatprep.mubr.f32.mxu0 0.0
      %382 = vmatmul.mubr.f32.gmra.mrb[0].mxu0 %v214
      %v383 = vpop.f32.mrb[0].mxu0
      %v384 = vadd.f32 0.0, %v383
      %v385 = vpop.f32.mrb[0].mxu0
      %386 = vmatprep.mubr.f32.mxu0 0.0
      %387 = vmatmul.mubr.f32.gmra.mrb[0].mxu0 %v217
      %v388 = vpop.f32.mrb[0].mxu0
      %v389 = vadd.f32 0.0, %v388
      %v390 = vpop.f32.mrb[0].mxu0
      %391 = vmatprep.mubr.f32.mxu0 0.0
      %392 = vmatmul.mubr.f32.gmra.mrb[0].mxu0 %v220
      %v393 = vpop.f32.mrb[0].mxu0
      %v394 = vadd.f32 0.0, %v393
      %v395 = vpop.f32.mrb[0].mxu0
      %396 = vmatprep.mubr.f32.mxu0 0.0
      %397 = vmatmul.mubr.f32.gmra.mrb[0].mxu0 %v223
      %v398 = vpop.f32.mrb[0].mxu0
      %v399 = vadd.f32 0.0, %v398
      %v400 = vpop.f32.mrb[0].mxu0
      %401 = vmatprep.mubr.f32.mxu0 0.0
      %402 = vmatmul.mubr.f32.gmra.mrb[0].mxu0 %v226
      %v403 = vpop.f32.mrb[0].mxu0
      %v404 = vadd.f32 0.0, %v403
      %v405 = vpop.f32.mrb[0].mxu0
      %406 = vmatprep.mubr.f32.mxu0 0.0
      %407 = vmatmul.mubr.f32.gmra.mrb[0].mxu0 %v229
      %v408 = vpop.f32.mrb[0].mxu0
      %v409 = vadd.f32 0.0, %v408
      %v410 = vpop.f32.mrb[0].mxu0
      %411 = vmatprep.mubr.f32.mxu0 0.0
      %412 = vmatmul.mubr.f32.gmra.mrb[0].mxu0 %v232
      %v413 = vpop.f32.mrb[0].mxu0
      %v414 = vadd.f32 0.0, %v413
      %v415 = vpop.f32.mrb[0].mxu0
      %416 = vmatprep.mubr.f32.mxu0 0.0
      %417 = vmatmul.mubr.f32.gmra.mrb[0].mxu0 %v235
      %v418 = vpop.f32.mrb[0].mxu0
      %v419 = vadd.f32 0.0, %v418
      %v420 = vpop.f32.mrb[0].mxu0
      %421 = vmatprep.mubr.f32.mxu0 0.0
      %422 = vmatmul.mubr.f32.gmra.mrb[0].mxu0 %v238
      %v423 = vpop.f32.mrb[0].mxu0
      %v424 = vadd.f32 0.0, %v423
      %v425 = vpop.f32.mrb[0].mxu0
      %426 = vmatprep.mubr.f32.mxu0 0.0
      %427 = vmatmul.mubr.f32.gmra.mrb[0].mxu0 %v241
      %v428 = vpop.f32.mrb[0].mxu0
      %v429 = vadd.f32 0.0, %v428
      %v430 = vpop.f32.mrb[0].mxu0
      %431 = vmatprep.mubr.f32.mxu0 0.0
      %432 = vmatmul.mubr.f32.gmra.mrb[0].mxu0 %v244
      %v433 = vpop.f32.mrb[0].mxu0
      %v434 = vadd.f32 0.0, %v433
      %v435 = vpop.f32.mrb[0].mxu0
      %436 = vmatprep.mubr.f32.mxu0 0.0
      %437 = vmatmul.mubr.f32.gmra.mrb[0].mxu0 %v247
      %v438 = vpop.f32.mrb[0].mxu0
      %v439 = vadd.f32 0.0, %v438
      %v440 = vpop.f32.mrb[0].mxu0
      %441 = vmatprep.mubr.f32.mxu0 0.0
      %442 = vmatmul.mubr.f32.gmra.mrb[0].mxu0 %v250
      %v443 = vpop.f32.mrb[0].mxu0
      %v444 = vadd.f32 0.0, %v443
      %v445 = vpop.f32.mrb[0].mxu0
      %446 = vmatprep.mubr.f32.mxu0 0.0
      %447 = vmatmul.mubr.f32.gmra.mrb[0].mxu0 %v253
      %v448 = vpop.f32.mrb[0].mxu0
      %v449 = vadd.f32 0.0, %v448
      %v450 = vpop.f32.mrb[0].mxu0
      %451 = vmatprep.mubr.f32.mxu0 0.0
      %452 = vmatmul.mubr.f32.gmra.mrb[0].mxu0 %v256
      %v453 = vpop.f32.mrb[0].mxu0
      %v454 = vadd.f32 0.0, %v453
      %v455 = vpop.f32.mrb[0].mxu0
      %456 = vmatprep.mubr.f32.mxu0 0.0
      %457 = vmatmul.mubr.f32.gmra.mrb[0].mxu0 %v259
      %v458 = vpop.f32.mrb[0].mxu0
      %v459 = vadd.f32 0.0, %v458
      %v460 = vpop.f32.mrb[0].mxu0
      %461 = vmatprep.mubr.f32.mxu0 0.0
      %462 = vmatmul.mubr.f32.gmra.mrb[0].mxu0 %v262
      %v463 = vpop.f32.mrb[0].mxu0
      %v464 = vadd.f32 0.0, %v463
      %v465 = vpop.f32.mrb[0].mxu0
      %466 = vmatprep.mubr.f32.mxu0 0.0
      %467 = vmatmul.mubr.f32.gmra.mrb[0].mxu0 %v265
      %v468 = vpop.f32.mrb[0].mxu0
      %v469 = vadd.f32 0.0, %v468
      %v470 = vpop.f32.mrb[0].mxu0
      %471 = vmatprep.mubr.f32.mxu0 0.0
      %472 = vmatmul.mubr.f32.gmra.mrb[0].mxu0 %v268
      %v473 = vpop.f32.mrb[0].mxu0
      %v474 = vadd.f32 0.0, %v473
      %v475 = vpop.f32.mrb[0].mxu0
      %476 = vmatprep.mubr.f32.mxu0 0.0
      %477 = vmatmul.mubr.f32.gmra.mrb[0].mxu0 %v271
      %v478 = vpop.f32.mrb[0].mxu0
      %v479 = vadd.f32 0.0, %v478
      %v480 = vpop.f32.mrb[0].mxu0
      %481 = vmatprep.mubr.f32.mxu0 0.0
      %482 = vmatmul.mubr.f32.gmra.mrb[0].mxu0 %v274
      %v483 = vpop.f32.mrb[0].mxu0
      %v484 = vadd.f32 0.0, %v483
      %v485 = vpop.f32.mrb[0].mxu0
      %486 = vmatprep.mubr.f32.mxu0 0.0
      %487 = vmatmul.mubr.f32.gmra.mrb[0].mxu0 %v277
      %v488 = vpop.f32.mrb[0].mxu0
      %v489 = vadd.f32 0.0, %v488
      %v490 = vpop.f32.mrb[0].mxu0
      %491 = vmatprep.mubr.f32.mxu0 0.0
      %492 = vmatmul.mubr.f32.gmra.mrb[0].mxu0 %v280
      %v493 = vpop.f32.mrb[0].mxu0
      %v494 = vadd.f32 0.0, %v493
      %v495 = vpop.f32.mrb[0].mxu0
      %496 = vmatprep.mubr.f32.mxu0 0.0
      %497 = vmatmul.mubr.f32.gmra.mrb[0].mxu0 %v283
      %v498 = vpop.f32.mrb[0].mxu0
      %v499 = vadd.f32 0.0, %v498
      %v500 = vpop.f32.mrb[0].mxu0
      %501 = vmatprep.mubr.f32.mxu0 0.0
      %502 = vmatmul.mubr.f32.gmra.mrb[0].mxu0 %v286
      %v503 = vpop.f32.mrb[0].mxu0
      %v504 = vadd.f32 0.0, %v503
      %v505 = vpop.f32.mrb[0].mxu0
      %506 = vmatprep.mubr.f32.mxu0 0.0
      %507 = vmatmul.mubr.f32.gmra.mrb[0].mxu0 %v289
      %v508 = vpop.f32.mrb[0].mxu0
      %v509 = vadd.f32 0.0, %v508
      %v510 = vpop.f32.mrb[0].mxu0
      %511 = vmatprep.mubr.f32.mxu0 0.0
      %512 = vmatmul.mubr.f32.gmra.mrb[0].mxu0 %v292
      %v513 = vpop.f32.mrb[0].mxu0
      %v514 = vadd.f32 0.0, %v513
      %v515 = vpop.f32.mrb[0].mxu0
      %516 = vmatprep.mubr.f32.mxu0 0.0
      %517 = vmatmul.mubr.f32.gmra.mrb[0].mxu0 %v295
      %v518 = vpop.f32.mrb[0].mxu0
      %v519 = vadd.f32 0.0, %v518
      %v520 = vpop.f32.mrb[0].mxu0
      %521 = vmatprep.mubr.f32.mxu0 0.0
      %522 = vmatmul.mubr.f32.gmra.mrb[0].mxu0 %v298
      %v523 = vpop.f32.mrb[0].mxu0
      %v524 = vadd.f32 0.0, %v523
      %v525 = vpop.f32.mrb[0].mxu0
      %526 = vmatprep.mubr.f32.mxu0 0.0
      %527 = vmatmul.mubr.f32.gmra.mrb[0].mxu0 %v301
      %v528 = vpop.f32.mrb[0].mxu0
      %v529 = vadd.f32 0.0, %v528
      %v530 = vpop.f32.mrb[0].mxu0
      %531 = vdwg.mxu0
      %vm532 = vcmask 523264
      %533 = vst.msk [vmem:[%s170] sm:$0xff] %vm532, %v374
      %534 = vst.msk [vmem:[%s170 + $0x8] sm:$0xff] %vm532, %v379
      %535 = vst.msk [vmem:[%s170 + $0x10] sm:$0xff] %vm532, %v384
      %536 = vst.msk [vmem:[%s170 + $0x18] sm:$0xff] %vm532, %v389
      %537 = vst.msk [vmem:[%s170 + $0x20] sm:$0xff] %vm532, %v394
      %538 = vst.msk [vmem:[%s170 + $0x28] sm:$0xff] %vm532, %v399
      %539 = vst.msk [vmem:[%s170 + $0x30] sm:$0xff] %vm532, %v404
      %540 = vst.msk [vmem:[%s170 + $0x38] sm:$0xff] %vm532, %v409
      %541 = vst.msk [vmem:[%s170 + $0x40] sm:$0xff] %vm532, %v414
      %542 = vst.msk [vmem:[%s170 + $0x48] sm:$0xff] %vm532, %v419
      %543 = vst.msk [vmem:[%s170 + $0x50] sm:$0xff] %vm532, %v424
      %544 = vst.msk [vmem:[%s170 + $0x58] sm:$0xff] %vm532, %v429
      %545 = vst.msk [vmem:[%s170 + $0x60] sm:$0xff] %vm532, %v434
      %546 = vst.msk [vmem:[%s170 + $0x68] sm:$0xff] %vm532, %v439
      %547 = vst.msk [vmem:[%s170 + $0x70] sm:$0xff] %vm532, %v444
      %548 = vst.msk [vmem:[%s170 + $0x78] sm:$0xff] %vm532, %v449
      %549 = vst.msk [vmem:[%s170 + $0x80] sm:$0xff] %vm532, %v454
      %550 = vst.msk [vmem:[%s170 + $0x88] sm:$0xff] %vm532, %v459
      %551 = vst.msk [vmem:[%s170 + $0x90] sm:$0xff] %vm532, %v464
      %552 = vst.msk [vmem:[%s170 + $0x98] sm:$0xff] %vm532, %v469
      %553 = vst.msk [vmem:[%s170 + $0xa0] sm:$0xff] %vm532, %v474
      %554 = vst.msk [vmem:[%s170 + $0xa8] sm:$0xff] %vm532, %v479
      %555 = vst.msk [vmem:[%s170 + $0xb0] sm:$0xff] %vm532, %v484
      %556 = vst.msk [vmem:[%s170 + $0xb8] sm:$0xff] %vm532, %v489
      %557 = vst.msk [vmem:[%s170 + $0xc0] sm:$0xff] %vm532, %v494
      %558 = vst.msk [vmem:[%s170 + $0xc8] sm:$0xff] %vm532, %v499
      %559 = vst.msk [vmem:[%s170 + $0xd0] sm:$0xff] %vm532, %v504
      %560 = vst.msk [vmem:[%s170 + $0xd8] sm:$0xff] %vm532, %v509
      %561 = vst.msk [vmem:[%s170 + $0xe0] sm:$0xff] %vm532, %v514
      %562 = vst.msk [vmem:[%s170 + $0xe8] sm:$0xff] %vm532, %v519
      %563 = vst.msk [vmem:[%s170 + $0xf0] sm:$0xff] %vm532, %v524
      %564 = vst.msk [vmem:[%s170 + $0xf8] sm:$0xff] %vm532, %v529
      %p565 = scmp.eq.s32.totalorder %s15, 0
      // Predicated region
      $region29: #{encoder_conv_com.20} parent=27 // pred_check
        %p566 = pneg %p565
      $region30: #{encoder_conv_com.20} parent=27 // pred_check_branch
        %568 = sbr.rel (%p566) target = $region32
      $region31: #{encoder_conv_com.20} parent=27 // pred_region
        %vm569 = vcmask 517120
        %570 = vst.msk [vmem:[%s3] sm:$0x3] %vm569, 0.0
      $region32: #{encoder_conv_com.20} parent=27 // pred_fallthru
        _
      %v571 = vld [vmem:[%s3] sm:$0x3]
      %v572 = vsel %vm532, %v374, 0.0
      %v573 = vsel %vm532, %v379, 0.0
      %v574 = vadd.f32 %v572, %v573
      %v575 = vsel %vm532, %v384, 0.0
      %v576 = vadd.f32 %v574, %v575
      %v577 = vsel %vm532, %v389, 0.0
      %v578 = vadd.f32 %v576, %v577
      %v579 = vsel %vm532, %v394, 0.0
      %v580 = vadd.f32 %v578, %v579
      %v581 = vsel %vm532, %v399, 0.0
      %v582 = vadd.f32 %v580, %v581
      %v583 = vsel %vm532, %v404, 0.0
      %v584 = vadd.f32 %v582, %v583
      %v585 = vsel %vm532, %v409, 0.0
      %v586 = vadd.f32 %v584, %v585
      %v587 = vsel %vm532, %v414, 0.0
      %v588 = vadd.f32 %v586, %v587
      %v589 = vsel %vm532, %v419, 0.0
      %v590 = vadd.f32 %v588, %v589
      %v591 = vsel %vm532, %v424, 0.0
      %v592 = vadd.f32 %v590, %v591
      %v593 = vsel %vm532, %v429, 0.0
      %v594 = vadd.f32 %v592, %v593
      %v595 = vsel %vm532, %v434, 0.0
      %v596 = vadd.f32 %v594, %v595
      %v597 = vsel %vm532, %v439, 0.0
      %v598 = vadd.f32 %v596, %v597
      %v599 = vsel %vm532, %v444, 0.0
      %v600 = vadd.f32 %v598, %v599
      %v601 = vsel %vm532, %v449, 0.0
      %v602 = vadd.f32 %v600, %v601
      %v603 = vsel %vm532, %v454, 0.0
      %v604 = vadd.f32 %v602, %v603
      %v605 = vsel %vm532, %v459, 0.0
      %v606 = vadd.f32 %v604, %v605
      %v607 = vsel %vm532, %v464, 0.0
      %v608 = vadd.f32 %v606, %v607
      %v609 = vsel %vm532, %v469, 0.0
      %v610 = vadd.f32 %v608, %v609
      %v611 = vsel %vm532, %v474, 0.0
      %v612 = vadd.f32 %v610, %v611
      %v613 = vsel %vm532, %v479, 0.0
      %v614 = vadd.f32 %v612, %v613
      %v615 = vsel %vm532, %v484, 0.0
      %v616 = vadd.f32 %v614, %v615
      %v617 = vsel %vm532, %v489, 0.0
      %v618 = vadd.f32 %v616, %v617
      %v619 = vsel %vm532, %v494, 0.0
      %v620 = vadd.f32 %v618, %v619
      %v621 = vsel %vm532, %v499, 0.0
      %v622 = vadd.f32 %v620, %v621
      %v623 = vsel %vm532, %v504, 0.0
      %v624 = vadd.f32 %v622, %v623
      %v625 = vsel %vm532, %v509, 0.0
      %v626 = vadd.f32 %v624, %v625
      %v627 = vsel %vm532, %v514, 0.0
      %v628 = vadd.f32 %v626, %v627
      %v629 = vsel %vm532, %v519, 0.0
      %v630 = vadd.f32 %v628, %v629
      %v631 = vsel %vm532, %v524, 0.0
      %v632 = vadd.f32 %v630, %v631
      %v633 = vsel %vm532, %v529, 0.0
      %v634 = vadd.f32 %v632, %v633
      %v635 = vrot.slane %v634, 4
      %v636 = vadd.f32 %v634, %v635
      %v637 = vrot.slane %v636, 2
      %v638 = vadd.f32 %v636, %v637
      %v639 = vrot.slane %v638, 1
      %v640 = vadd.f32 %v638, %v639
      %v641 = vmul.f32 %v374, %v374
      %v642 = vmul.f32 %v379, %v379
      %v643 = vmul.f32 %v384, %v384
      %v644 = vmul.f32 %v389, %v389
      %v645 = vmul.f32 %v394, %v394
      %v646 = vmul.f32 %v399, %v399
      %v647 = vmul.f32 %v404, %v404
      %v648 = vmul.f32 %v409, %v409
      %v649 = vmul.f32 %v414, %v414
      %v650 = vmul.f32 %v419, %v419
      %v651 = vmul.f32 %v424, %v424
      %v652 = vmul.f32 %v429, %v429
      %v653 = vmul.f32 %v434, %v434
      %v654 = vmul.f32 %v439, %v439
      %v655 = vmul.f32 %v444, %v444
      %v656 = vmul.f32 %v449, %v449
      %v657 = vmul.f32 %v454, %v454
      %v658 = vmul.f32 %v459, %v459
      %v659 = vmul.f32 %v464, %v464
      %v660 = vmul.f32 %v469, %v469
      %v661 = vmul.f32 %v474, %v474
      %v662 = vmul.f32 %v479, %v479
      %v663 = vmul.f32 %v484, %v484
      %v664 = vmul.f32 %v489, %v489
      %v665 = vmul.f32 %v494, %v494
      %v666 = vmul.f32 %v499, %v499
      %v667 = vmul.f32 %v504, %v504
      %v668 = vmul.f32 %v509, %v509
      %v669 = vmul.f32 %v514, %v514
      %v670 = vmul.f32 %v519, %v519
      %v671 = vmul.f32 %v524, %v524
      %v672 = vmul.f32 %v529, %v529
      %v673 = vsel %vm532, %v641, 0.0
      %v674 = vsel %vm532, %v642, 0.0
      %v675 = vadd.f32 %v673, %v674
      %v676 = vsel %vm532, %v643, 0.0
      %v677 = vadd.f32 %v675, %v676
      %v678 = vsel %vm532, %v644, 0.0
      %v679 = vadd.f32 %v677, %v678
      %v680 = vsel %vm532, %v645, 0.0
      %v681 = vadd.f32 %v679, %v680
      %v682 = vsel %vm532, %v646, 0.0
      %v683 = vadd.f32 %v681, %v682
      %v684 = vsel %vm532, %v647, 0.0
      %v685 = vadd.f32 %v683, %v684
      %v686 = vsel %vm532, %v648, 0.0
      %v687 = vadd.f32 %v685, %v686
      %v688 = vsel %vm532, %v649, 0.0
      %v689 = vadd.f32 %v687, %v688
      %v690 = vsel %vm532, %v650, 0.0
      %v691 = vadd.f32 %v689, %v690
      %v692 = vsel %vm532, %v651, 0.0
      %v693 = vadd.f32 %v691, %v692
      %v694 = vsel %vm532, %v652, 0.0
      %v695 = vadd.f32 %v693, %v694
      %v696 = vsel %vm532, %v653, 0.0
      %v697 = vadd.f32 %v695, %v696
      %v698 = vsel %vm532, %v654, 0.0
      %v699 = vadd.f32 %v697, %v698
      %v700 = vsel %vm532, %v655, 0.0
      %v701 = vadd.f32 %v699, %v700
      %v702 = vsel %vm532, %v656, 0.0
      %v703 = vadd.f32 %v701, %v702
      %v704 = vsel %vm532, %v657, 0.0
      %v705 = vadd.f32 %v703, %v704
      %v706 = vsel %vm532, %v658, 0.0
      %v707 = vadd.f32 %v705, %v706
      %v708 = vsel %vm532, %v659, 0.0
      %v709 = vadd.f32 %v707, %v708
      %v710 = vsel %vm532, %v660, 0.0
      %v711 = vadd.f32 %v709, %v710
      %v712 = vsel %vm532, %v661, 0.0
      %v713 = vadd.f32 %v711, %v712
      %v714 = vsel %vm532, %v662, 0.0
      %v715 = vadd.f32 %v713, %v714
      %v716 = vsel %vm532, %v663, 0.0
      %v717 = vadd.f32 %v715, %v716
      %v718 = vsel %vm532, %v664, 0.0
      %v719 = vadd.f32 %v717, %v718
      %v720 = vsel %vm532, %v665, 0.0
      %v721 = vadd.f32 %v719, %v720
      %v722 = vsel %vm532, %v666, 0.0
      %v723 = vadd.f32 %v721, %v722
      %v724 = vsel %vm532, %v667, 0.0
      %v725 = vadd.f32 %v723, %v724
      %v726 = vsel %vm532, %v668, 0.0
      %v727 = vadd.f32 %v725, %v726
      %v728 = vsel %vm532, %v669, 0.0
      %v729 = vadd.f32 %v727, %v728
      %v730 = vsel %vm532, %v670, 0.0
      %v731 = vadd.f32 %v729, %v730
      %v732 = vsel %vm532, %v671, 0.0
      %v733 = vadd.f32 %v731, %v732
      %v734 = vsel %vm532, %v672, 0.0
      %v735 = vadd.f32 %v733, %v734
      %v736 = vrot.slane %v735, 4
      %v737 = vadd.f32 %v735, %v736
      %v738 = vrot.slane %v737, 2
      %v739 = vadd.f32 %v737, %v738
      %v740 = vrot.slane %v739, 1
      %v741 = vadd.f32 %v739, %v740
      %v742 = vsel %vm303, %v640, %v741
      %v743 = vadd.f32 %v571, %v742
      %vm744 = vcmask 517120
      %745 = vst.msk [vmem:[%s3] sm:$0x3] %vm744, %v743
      %s746 = smul.u32 32, %s15
      %p747 = scmp.lt.s32.totalorder %s746, 63
      %s748 = scalar_select %p747, %s746, 63
      %s749 = smul.addr %s748, 8
      %s750 = scalar_lea.vmem %s2, %s749
      // Predicated region
      $region33: #{encoder_conv_com.20} parent=27 // pred_check
        %p751 = pneg %p80
      $region34: #{encoder_conv_com.20} parent=27 // pred_check_branch
        %753 = sbr.rel (%p751) target = $region36
      $region35: #{encoder_conv_com.20} parent=27 // pred_region
        %s754 = smul.u32 32, %s15
      $region36: #{encoder_conv_com.20} parent=27 // pred_fallthru
        _
      // Predicated region
      $region37: #{encoder_conv_com.20} parent=27 // pred_check
        %p755 = pneg %p101
      $region38: #{encoder_conv_com.20} parent=27 // pred_check_branch
        %757 = sbr.rel (%p755) target = $region40
      $region39: #{encoder_conv_com.20} parent=27 // pred_region
        _
      $region40: #{encoder_conv_com.20} parent=27 // pred_fallthru
        _
      // Predicated region
      $region41: #{encoder_conv_com.20} parent=27 // pred_check
        %p758 = pneg %p101
      $region42: #{encoder_conv_com.20} parent=27 // pred_check_branch
        %760 = sbr.rel (%p758) target = $region44
      $region43: #{encoder_conv_com.20} parent=27 // pred_region
        _
      $region44: #{encoder_conv_com.20} parent=27 // pred_fallthru
        _
    $region28: #{encoder_conv_com.20} parent=5 // pred_fallthru
      _
    %p761 = scmp.le.s32.totalorder 2, %s10
    // Predicated region
    $region45: #{encoder_conv_com.20} parent=5 // pred_check
      %p762 = pneg %p761
    $region46: #{encoder_conv_com.20} parent=5 // pred_check_branch
      %764 = sbr.rel (%p762) target = $region48
    $region47: #{encoder_conv_com.20} parent=5 // pred_region
      %s765 = ssub.s32 %s10, 2
      // Predicated region
      $region49: #{encoder_conv_com.20} parent=47 // pred_check
        %p766 = pneg %p86
      $region50: #{encoder_conv_com.20} parent=47 // pred_check_branch
        %768 = sbr.rel (%p766) target = $region52
      $region51: #{encoder_conv_com.20} parent=47 // pred_region
        %s769 = smul.u32 32, %s16
        %p770 = scmp.lt.s32.totalorder %s769, 63
        %s771 = scalar_select %p770, %s769, 63
        %s772 = smul.addr %s771, 8
        %s773 = scalar_lea.vmem %s2, %s772
      $region52: #{encoder_conv_com.20} parent=47 // pred_fallthru
        _
    $region48: #{encoder_conv_com.20} parent=5 // pred_fallthru
      _
  $region6: #{encoder_conv_com.20} parent=0 // loop_footer
    %s14 = sadd.s32 1, %s10
  $region7: #{encoder_conv_com.20} parent=0 // loop_footer_branch
    %9 = sbr.rel target = $region3
  $region8: #{encoder_conv_com.20} parent=0 // loop_exit
    _

// kernel: encoder_conv_com.22
$region0: #{encoder_conv_com.22}
  #allocation0 [shape = 'u32[]', space=smem, size = 0x4, offset = 0x4, fixed_abs, tag = 'smem constant byte address 0x4 - core index']
  #allocation1 [shape = 'u32[144,128]{1,0:T(1,128)}', space=vmem, size = 0x12000, scoped, tag = 'internal scratch']
  %s0 = inlined_call_operand.vmem [shape: f32[512,576], index: 0, kind: input, shape index: {}]
  %s1 = inlined_call_operand.vmem [shape: f32[576,64], index: 1, kind: input, shape index: {}]
  %s2 = inlined_call_operand.vmem [shape: f32[512,64], index: 2, kind: output, shape index: {0}]
  %s3 = inlined_call_operand.vmem [shape: f32[2,64], index: 3, kind: output, shape index: {1}]
  %4 = xla_tuple %s2, %s3
  %s5 = sld [smem:[#allocation0]]
  $region53: #{encoder_conv_com.22} parent=0
    _
  %s7 = ssub.s32 1, %s5
  %s8 = scalar_select 0, %s7, %s5
  loop: start=0, step=1, limit=4
  $region2: #{encoder_conv_com.22} parent=0 // loop_pre_header
    _
  $region3: #{encoder_conv_com.22} parent=0 // loop_header
    %s10 = sphi 0, %s14
    %p11 = scmp.ge.s32.totalorder %s10, 4
    %s20 = sphi 0, %s22
    %s23 = sphi 0, %s20
    %s24 = sphi 0, %s23
    %s40 = sphi 0, %s24
    %s44 = sphi 0, %s44
    %s46 = sphi 0, %s44
    %s47 = sphi 0, %s46
    %s61 = sphi 0, %s47
    %s67 = sphi 0, %s69
    %s70 = sphi 0, %s67
    %s71 = sphi 0, %s70
    %s87 = sphi 0, %s71
    %s91 = sphi 0, %s91
    %s93 = sphi 0, %s91
    %s94 = sphi 0, %s93
    %s108 = sphi 0, %s94
  $region4: #{encoder_conv_com.22} parent=0 // loop_header_branch
    %13 = sbr.rel (%p11) target = $region8
  $region5: #{encoder_conv_com.22} parent=0 // loop_body
    %s15 = ssub.s32 %s10, 1
    %s16 = ssub.s32 %s10, 2
    %s17 = sadd.s32 %s10, 1
    %s18 = ssub.s32 %s10, %s17
    %p19 = scmp.eq.s32.totalorder %s18, 0
    %s21 = sadd.s32 %s20, 1
    %s22 = scalar_select %p19, %s20, %s21
    %p25 = pneg %p19
    %p26 = scmp.eq.s32.totalorder %s10, 1
    %p27 = por %p25, %p26
    %p28 = scmp.ne.s32.totalorder %s20, %s23
    %p29 = scmp.eq.s32.totalorder %s10, 0
    %p30 = por %p28, %p29
    %p31 = scmp.ne.s32.totalorder %s20, %s23
    %p32 = scmp.eq.s32.totalorder %s15, 1
    %p33 = por %p31, %p32
    %p34 = scmp.ne.s32.totalorder %s23, %s24
    %p35 = scmp.eq.s32.totalorder %s15, 0
    %p36 = por %p34, %p35
    %p37 = scmp.ne.s32.totalorder %s23, %s24
    %p38 = scmp.eq.s32.totalorder %s16, 1
    %p39 = por %p37, %p38
    %p41 = scmp.ne.s32.totalorder %s24, %s40
    %p42 = scmp.eq.s32.totalorder %s16, 0
    %p43 = por %p41, %p42
    %s45 = sadd.s32 %s44, 1
    %p48 = scmp.eq.s32.totalorder %s10, 1
    %p49 = scmp.ne.s32.totalorder %s44, %s46
    %p50 = scmp.eq.s32.totalorder %s10, 0
    %p51 = por %p49, %p50
    %p52 = scmp.ne.s32.totalorder %s44, %s46
    %p53 = scmp.eq.s32.totalorder %s15, 1
    %p54 = por %p52, %p53
    %p55 = scmp.ne.s32.totalorder %s46, %s47
    %p56 = scmp.eq.s32.totalorder %s15, 0
    %p57 = por %p55, %p56
    %p58 = scmp.ne.s32.totalorder %s46, %s47
    %p59 = scmp.eq.s32.totalorder %s16, 1
    %p60 = por %p58, %p59
    %p62 = scmp.ne.s32.totalorder %s47, %s61
    %p63 = scmp.eq.s32.totalorder %s16, 0
    %p64 = por %p62, %p63
    %s65 = ssub.s32 %s10, %s17
    %p66 = scmp.eq.s32.totalorder %s65, 0
    %s68 = sadd.s32 %s67, 1
    %s69 = scalar_select %p66, %s67, %s68
    %p72 = pneg %p66
    %p73 = scmp.eq.s32.totalorder %s10, 1
    %p74 = por %p72, %p73
    %p75 = scmp.ne.s32.totalorder %s67, %s70
    %p76 = scmp.eq.s32.totalorder %s10, 0
    %p77 = por %p75, %p76
    %p78 = scmp.ne.s32.totalorder %s67, %s70
    %p79 = scmp.eq.s32.totalorder %s15, 1
    %p80 = por %p78, %p79
    %p81 = scmp.ne.s32.totalorder %s70, %s71
    %p82 = scmp.eq.s32.totalorder %s15, 0
    %p83 = por %p81, %p82
    %p84 = scmp.ne.s32.totalorder %s70, %s71
    %p85 = scmp.eq.s32.totalorder %s16, 1
    %p86 = por %p84, %p85
    %p88 = scmp.ne.s32.totalorder %s71, %s87
    %p89 = scmp.eq.s32.totalorder %s16, 0
    %p90 = por %p88, %p89
    %s92 = sadd.s32 %s91, 1
    %p95 = scmp.eq.s32.totalorder %s10, 1
    %p96 = scmp.ne.s32.totalorder %s91, %s93
    %p97 = scmp.eq.s32.totalorder %s10, 0
    %p98 = por %p96, %p97
    %p99 = scmp.ne.s32.totalorder %s91, %s93
    %p100 = scmp.eq.s32.totalorder %s15, 1
    %p101 = por %p99, %p100
    %p102 = scmp.ne.s32.totalorder %s93, %s94
    %p103 = scmp.eq.s32.totalorder %s15, 0
    %p104 = por %p102, %p103
    %p105 = scmp.ne.s32.totalorder %s93, %s94
    %p106 = scmp.eq.s32.totalorder %s16, 1
    %p107 = por %p105, %p106
    %p109 = scmp.ne.s32.totalorder %s94, %s108
    %p110 = scmp.eq.s32.totalorder %s16, 0
    %p111 = por %p109, %p110
    %p112 = scmp.le.s32.totalorder 1, %s10
    %p113 = scmp.lt.s32.totalorder %s10, 3
    %p114 = pnand %p112, %p113
    %p115 = pneg %p114
    // Predicated region
    $region9: #{encoder_conv_com.22} parent=5 // pred_check
      _
    $region10: #{encoder_conv_com.22} parent=5 // pred_check_branch
      %117 = sbr.rel (%p114) target = $region12
    $region11: #{encoder_conv_com.22} parent=5 // pred_region
      %s118 = ssub.s32 %s10, 1
      // Predicated region
      $region13: #{encoder_conv_com.22} parent=11 // pred_check
        %p119 = pneg %p57
      $region14: #{encoder_conv_com.22} parent=11 // pred_check_branch
        %121 = sbr.rel (%p119) target = $region16
      $region15: #{encoder_conv_com.22} parent=11 // pred_region
        _
      $region16: #{encoder_conv_com.22} parent=11 // pred_fallthru
        _
    $region12: #{encoder_conv_com.22} parent=5 // pred_fallthru
      _
    %p122 = scmp.lt.s32.totalorder %s10, 2
    // Predicated region
    $region17: #{encoder_conv_com.22} parent=5 // pred_check
      %p123 = pneg %p122
    $region18: #{encoder_conv_com.22} parent=5 // pred_check_branch
      %125 = sbr.rel (%p123) target = $region20
    $region19: #{encoder_conv_com.22} parent=5 // pred_region
      // Predicated region
      $region21: #{encoder_conv_com.22} parent=19 // pred_check
        %p126 = pneg %p30
      $region22: #{encoder_conv_com.22} parent=19 // pred_check_branch
        %128 = sbr.rel (%p126) target = $region24
      $region23: #{encoder_conv_com.22} parent=19 // pred_region
        %s129 = smul.u32 32, %s10
        %p130 = scmp.lt.s32.totalorder %s129, 63
        %s131 = scalar_select %p130, %s129, 63
        %s132 = smul.addr %s131, 5
        %s133 = smul.addr %s132, 8
        %s134 = scalar_lea.vmem %s0, %s133
        %s135 = smul.u32 32, %s10
      $region24: #{encoder_conv_com.22} parent=19 // pred_fallthru
        _
    $region20: #{encoder_conv_com.22} parent=5 // pred_fallthru
      _
    %p136 = scmp.le.s32.totalorder 1, %s10
    %p137 = scmp.lt.s32.totalorder %s10, 3
    %p138 = pnand %p136, %p137
    %p139 = pneg %p138
    // Predicated region
    $region25: #{encoder_conv_com.22} parent=5 // pred_check
      _
    $region26: #{encoder_conv_com.22} parent=5 // pred_check_branch
      %141 = sbr.rel (%p138) target = $region28
    $region27: #{encoder_conv_com.22} parent=5 // pred_region
      %s142 = ssub.s32 %s10, 1
      %s143 = smul.u32 32, %s15
      %p144 = scmp.lt.s32.totalorder %s143, 63
      %s145 = scalar_select %p144, %s143, 63
      %s146 = smul.addr %s145, 5
      %s147 = smul.addr %s146, 8
      %s148 = scalar_lea.vmem %s0, %s147
      %p149 = pneg %p36
      %p150 = pneg %p33
      %p151 = pneg %p57
      %p152 = pneg %p54
      %p153 = pneg %p83
      %p154 = pneg %p80
      %s155 = smul.u32 32, %s15
      %p156 = scmp.lt.s32.totalorder %s155, 63
      %s157 = scalar_select %p156, %s155, 63
      %s158 = smul.addr %s157, 8
      %s159 = scalar_lea.vmem %s2, %s158
      %p160 = pneg %p104
      %p161 = pneg %p101
      %s162 = smul.u32 32, %s15
      %p163 = scmp.lt.s32.totalorder %s162, 63
      %s164 = scalar_select %p163, %s162, 63
      %s165 = smul.addr %s164, 5
      %s166 = smul.addr %s165, 8
      %s167 = scalar_lea.vmem %s0, %s166
      %s168 = smul.u32 32, %s15
      %s169 = smul.u32 32, %s15
      %p170 = scmp.lt.s32.totalorder %s169, 63
      %s171 = scalar_select %p170, %s169, 63
      %s172 = smul.addr %s171, 8
      %s173 = scalar_lea.vmem %s2, %s172
      %s174 = smul.u32 32, %s15
      %v175 = vld [vmem:[%s167] sm:$0xff]
      %v176 = vld [vmem:[%s167 + $0x8] sm:$0xff]
      %v177 = vld [vmem:[%s167 + $0x10] sm:$0xff]
      %v178 = vld [vmem:[%s167 + $0x18] sm:$0xff]
      %v179 = vld [vmem:[%s167 + $0x20] sm:$0xff]
      %v180 = vld [vmem:[%s167 + $0x28] sm:$0xff]
      %v181 = vld [vmem:[%s167 + $0x30] sm:$0xff]
      %v182 = vld [vmem:[%s167 + $0x38] sm:$0xff]
      %v183 = vld [vmem:[%s167 + $0x40] sm:$0xff]
      %v184 = vld [vmem:[%s167 + $0x48] sm:$0xff]
      %v185 = vld [vmem:[%s167 + $0x50] sm:$0xff]
      %v186 = vld [vmem:[%s167 + $0x58] sm:$0xff]
      %v187 = vld [vmem:[%s167 + $0x60] sm:$0xff]
      %v188 = vld [vmem:[%s167 + $0x68] sm:$0xff]
      %v189 = vld [vmem:[%s167 + $0x70] sm:$0xff]
      %v190 = vld [vmem:[%s167 + $0x78] sm:$0xff]
      %v191 = vld [vmem:[%s167 + $0x80] sm:$0xff]
      %v192 = vld [vmem:[%s167 + $0x88] sm:$0xff]
      %v193 = vld [vmem:[%s167 + $0x90] sm:$0xff]
      %v194 = vld [vmem:[%s167 + $0x98] sm:$0xff]
      %v195 = vld [vmem:[%s167 + $0xa0] sm:$0xff]
      %v196 = vld [vmem:[%s167 + $0xa8] sm:$0xff]
      %v197 = vld [vmem:[%s167 + $0xb0] sm:$0xff]
      %v198 = vld [vmem:[%s167 + $0xb8] sm:$0xff]
      %v199 = vld [vmem:[%s167 + $0xc0] sm:$0xff]
      %v200 = vld [vmem:[%s167 + $0xc8] sm:$0xff]
      %v201 = vld [vmem:[%s167 + $0xd0] sm:$0xff]
      %v202 = vld [vmem:[%s167 + $0xd8] sm:$0xff]
      %v203 = vld [vmem:[%s167 + $0xe0] sm:$0xff]
      %v204 = vld [vmem:[%s167 + $0xe8] sm:$0xff]
      %v205 = vld [vmem:[%s167 + $0xf0] sm:$0xff]
      %v206 = vld [vmem:[%s167 + $0xf8] sm:$0xff]
      %v207 = vld [vmem:[%s167 + $0x100] sm:$0xff]
      %v208 = vld [vmem:[%s167 + $0x108] sm:$0xff]
      %v209 = vld [vmem:[%s167 + $0x110] sm:$0xff]
      %v210 = vld [vmem:[%s167 + $0x118] sm:$0xff]
      %v211 = vld [vmem:[%s167 + $0x120] sm:$0xff]
      %v212 = vld [vmem:[%s167 + $0x128] sm:$0xff]
      %v213 = vld [vmem:[%s167 + $0x130] sm:$0xff]
      %v214 = vld [vmem:[%s167 + $0x138] sm:$0xff]
      %v215 = vld [vmem:[%s167 + $0x140] sm:$0xff]
      %v216 = vld [vmem:[%s167 + $0x148] sm:$0xff]
      %v217 = vld [vmem:[%s167 + $0x150] sm:$0xff]
      %v218 = vld [vmem:[%s167 + $0x158] sm:$0xff]
      %v219 = vld [vmem:[%s167 + $0x160] sm:$0xff]
      %v220 = vld [vmem:[%s167 + $0x168] sm:$0xff]
      %v221 = vld [vmem:[%s167 + $0x170] sm:$0xff]
      %v222 = vld [vmem:[%s167 + $0x178] sm:$0xff]
      %v223 = vld [vmem:[%s167 + $0x180] sm:$0xff]
      %v224 = vld [vmem:[%s167 + $0x188] sm:$0xff]
      %v225 = vld [vmem:[%s167 + $0x190] sm:$0xff]
      %v226 = vld [vmem:[%s167 + $0x198] sm:$0xff]
      %v227 = vld [vmem:[%s167 + $0x1a0] sm:$0xff]
      %v228 = vld [vmem:[%s167 + $0x1a8] sm:$0xff]
      %v229 = vld [vmem:[%s167 + $0x1b0] sm:$0xff]
      %v230 = vld [vmem:[%s167 + $0x1b8] sm:$0xff]
      %v231 = vld [vmem:[%s167 + $0x1c0] sm:$0xff]
      %v232 = vld [vmem:[%s167 + $0x1c8] sm:$0xff]
      %v233 = vld [vmem:[%s167 + $0x1d0] sm:$0xff]
      %v234 = vld [vmem:[%s167 + $0x1d8] sm:$0xff]
      %v235 = vld [vmem:[%s167 + $0x1e0] sm:$0xff]
      %v236 = vld [vmem:[%s167 + $0x1e8] sm:$0xff]
      %v237 = vld [vmem:[%s167 + $0x1f0] sm:$0xff]
      %v238 = vld [vmem:[%s167 + $0x1f8] sm:$0xff]
      %v239 = vld [vmem:[%s167 + $0x200] sm:$0xff]
      %v240 = vld [vmem:[%s167 + $0x208] sm:$0xff]
      %v241 = vld [vmem:[%s167 + $0x210] sm:$0xff]
      %v242 = vld [vmem:[%s167 + $0x218] sm:$0xff]
      %v243 = vld [vmem:[%s167 + $0x220] sm:$0xff]
      %v244 = vld [vmem:[%s167 + $0x228] sm:$0xff]
      %v245 = vld [vmem:[%s167 + $0x230] sm:$0xff]
      %v246 = vld [vmem:[%s167 + $0x238] sm:$0xff]
      %v247 = vld [vmem:[%s167 + $0x240] sm:$0xff]
      %v248 = vld [vmem:[%s167 + $0x248] sm:$0xff]
      %v249 = vld [vmem:[%s167 + $0x250] sm:$0xff]
      %v250 = vld [vmem:[%s167 + $0x258] sm:$0xff]
      %v251 = vld [vmem:[%s167 + $0x260] sm:$0xff]
      %v252 = vld [vmem:[%s167 + $0x268] sm:$0xff]
      %v253 = vld [vmem:[%s167 + $0x270] sm:$0xff]
      %v254 = vld [vmem:[%s167 + $0x278] sm:$0xff]
      %v255 = vld [vmem:[%s167 + $0x280] sm:$0xff]
      %v256 = vld [vmem:[%s167 + $0x288] sm:$0xff]
      %v257 = vld [vmem:[%s167 + $0x290] sm:$0xff]
      %v258 = vld [vmem:[%s167 + $0x298] sm:$0xff]
      %v259 = vld [vmem:[%s167 + $0x2a0] sm:$0xff]
      %v260 = vld [vmem:[%s167 + $0x2a8] sm:$0xff]
      %v261 = vld [vmem:[%s167 + $0x2b0] sm:$0xff]
      %v262 = vld [vmem:[%s167 + $0x2b8] sm:$0xff]
      %v263 = vld [vmem:[%s167 + $0x2c0] sm:$0xff]
      %v264 = vld [vmem:[%s167 + $0x2c8] sm:$0xff]
      %v265 = vld [vmem:[%s167 + $0x2d0] sm:$0xff]
      %v266 = vld [vmem:[%s167 + $0x2d8] sm:$0xff]
      %v267 = vld [vmem:[%s167 + $0x2e0] sm:$0xff]
      %v268 = vld [vmem:[%s167 + $0x2e8] sm:$0xff]
      %v269 = vld [vmem:[%s167 + $0x2f0] sm:$0xff]
      %v270 = vld [vmem:[%s167 + $0x2f8] sm:$0xff]
      %v271 = vld [vmem:[%s167 + $0x300] sm:$0xff]
      %v272 = vld [vmem:[%s167 + $0x308] sm:$0xff]
      %v273 = vld [vmem:[%s167 + $0x310] sm:$0xff]
      %v274 = vld [vmem:[%s167 + $0x318] sm:$0xff]
      %v275 = vld [vmem:[%s167 + $0x320] sm:$0xff]
      %v276 = vld [vmem:[%s167 + $0x328] sm:$0xff]
      %v277 = vld [vmem:[%s167 + $0x330] sm:$0xff]
      %v278 = vld [vmem:[%s167 + $0x338] sm:$0xff]
      %v279 = vld [vmem:[%s167 + $0x340] sm:$0xff]
      %v280 = vld [vmem:[%s167 + $0x348] sm:$0xff]
      %v281 = vld [vmem:[%s167 + $0x350] sm:$0xff]
      %v282 = vld [vmem:[%s167 + $0x358] sm:$0xff]
      %v283 = vld [vmem:[%s167 + $0x360] sm:$0xff]
      %v284 = vld [vmem:[%s167 + $0x368] sm:$0xff]
      %v285 = vld [vmem:[%s167 + $0x370] sm:$0xff]
      %v286 = vld [vmem:[%s167 + $0x378] sm:$0xff]
      %v287 = vld [vmem:[%s167 + $0x380] sm:$0xff]
      %v288 = vld [vmem:[%s167 + $0x388] sm:$0xff]
      %v289 = vld [vmem:[%s167 + $0x390] sm:$0xff]
      %v290 = vld [vmem:[%s167 + $0x398] sm:$0xff]
      %v291 = vld [vmem:[%s167 + $0x3a0] sm:$0xff]
      %v292 = vld [vmem:[%s167 + $0x3a8] sm:$0xff]
      %v293 = vld [vmem:[%s167 + $0x3b0] sm:$0xff]
      %v294 = vld [vmem:[%s167 + $0x3b8] sm:$0xff]
      %v295 = vld [vmem:[%s167 + $0x3c0] sm:$0xff]
      %v296 = vld [vmem:[%s167 + $0x3c8] sm:$0xff]
      %v297 = vld [vmem:[%s167 + $0x3d0] sm:$0xff]
      %v298 = vld [vmem:[%s167 + $0x3d8] sm:$0xff]
      %v299 = vld [vmem:[%s167 + $0x3e0] sm:$0xff]
      %v300 = vld [vmem:[%s167 + $0x3e8] sm:$0xff]
      %v301 = vld [vmem:[%s167 + $0x3f0] sm:$0xff]
      %v302 = vld [vmem:[%s167 + $0x3f8] sm:$0xff]
      %v303 = vld [vmem:[%s167 + $0x400] sm:$0xff]
      %v304 = vld [vmem:[%s167 + $0x408] sm:$0xff]
      %v305 = vld [vmem:[%s167 + $0x410] sm:$0xff]
      %v306 = vld [vmem:[%s167 + $0x418] sm:$0xff]
      %v307 = vld [vmem:[%s167 + $0x420] sm:$0xff]
      %v308 = vld [vmem:[%s167 + $0x428] sm:$0xff]
      %v309 = vld [vmem:[%s167 + $0x430] sm:$0xff]
      %v310 = vld [vmem:[%s167 + $0x438] sm:$0xff]
      %v311 = vld [vmem:[%s167 + $0x440] sm:$0xff]
      %v312 = vld [vmem:[%s167 + $0x448] sm:$0xff]
      %v313 = vld [vmem:[%s167 + $0x450] sm:$0xff]
      %v314 = vld [vmem:[%s167 + $0x458] sm:$0xff]
      %v315 = vld [vmem:[%s167 + $0x460] sm:$0xff]
      %v316 = vld [vmem:[%s167 + $0x468] sm:$0xff]
      %v317 = vld [vmem:[%s167 + $0x470] sm:$0xff]
      %v318 = vld [vmem:[%s167 + $0x478] sm:$0xff]
      %v319 = vld [vmem:[%s167 + $0x480] sm:$0xff]
      %v320 = vld [vmem:[%s167 + $0x488] sm:$0xff]
      %v321 = vld [vmem:[%s167 + $0x490] sm:$0xff]
      %v322 = vld [vmem:[%s167 + $0x498] sm:$0xff]
      %v323 = vld [vmem:[%s167 + $0x4a0] sm:$0xff]
      %v324 = vld [vmem:[%s167 + $0x4a8] sm:$0xff]
      %v325 = vld [vmem:[%s167 + $0x4b0] sm:$0xff]
      %v326 = vld [vmem:[%s167 + $0x4b8] sm:$0xff]
      %v327 = vld [vmem:[%s167 + $0x4c0] sm:$0xff]
      %v328 = vld [vmem:[%s167 + $0x4c8] sm:$0xff]
      %v329 = vld [vmem:[%s167 + $0x4d0] sm:$0xff]
      %v330 = vld [vmem:[%s167 + $0x4d8] sm:$0xff]
      %v331 = vld [vmem:[%s167 + $0x4e0] sm:$0xff]
      %v332 = vld [vmem:[%s167 + $0x4e8] sm:$0xff]
      %v333 = vld [vmem:[%s167 + $0x4f0] sm:$0xff]
      %v334 = vld [vmem:[%s167 + $0x4f8] sm:$0xff]
      %v335 = vld [vmem:[%s1] sm:$0xff]
      %v336 = vld [vmem:[%s1 + $0x8] sm:$0xff]
      %v337 = vld [vmem:[%s1 + $0x10] sm:$0xff]
      %v338 = vld [vmem:[%s1 + $0x18] sm:$0xff]
      %v339 = vld [vmem:[%s1 + $0x20] sm:$0xff]
      %v340 = vld [vmem:[%s1 + $0x28] sm:$0xff]
      %v341 = vld [vmem:[%s1 + $0x30] sm:$0xff]
      %v342 = vld [vmem:[%s1 + $0x38] sm:$0xff]
      %v343 = vld [vmem:[%s1 + $0x40] sm:$0xff]
      %v344 = vld [vmem:[%s1 + $0x48] sm:$0xff]
      %v345 = vld [vmem:[%s1 + $0x50] sm:$0xff]
      %v346 = vld [vmem:[%s1 + $0x58] sm:$0xff]
      %v347 = vld [vmem:[%s1 + $0x60] sm:$0xff]
      %v348 = vld [vmem:[%s1 + $0x68] sm:$0xff]
      %v349 = vld [vmem:[%s1 + $0x70] sm:$0xff]
      %v350 = vld [vmem:[%s1 + $0x78] sm:$0xff]
      %v351 = vld [vmem:[%s1 + $0x80] sm:$0xff]
      %v352 = vld [vmem:[%s1 + $0x88] sm:$0xff]
      %v353 = vld [vmem:[%s1 + $0x90] sm:$0xff]
      %v354 = vld [vmem:[%s1 + $0x98] sm:$0xff]
      %v355 = vld [vmem:[%s1 + $0xa0] sm:$0xff]
      %v356 = vld [vmem:[%s1 + $0xa8] sm:$0xff]
      %v357 = vld [vmem:[%s1 + $0xb0] sm:$0xff]
      %v358 = vld [vmem:[%s1 + $0xb8] sm:$0xff]
      %v359 = vld [vmem:[%s1 + $0xc0] sm:$0xff]
      %v360 = vld [vmem:[%s1 + $0xc8] sm:$0xff]
      %v361 = vld [vmem:[%s1 + $0xd0] sm:$0xff]
      %v362 = vld [vmem:[%s1 + $0xd8] sm:$0xff]
      %v363 = vld [vmem:[%s1 + $0xe0] sm:$0xff]
      %v364 = vld [vmem:[%s1 + $0xe8] sm:$0xff]
      %v365 = vld [vmem:[%s1 + $0xf0] sm:$0xff]
      %v366 = vld [vmem:[%s1 + $0xf8] sm:$0xff]
      %v367 = vld [vmem:[%s1 + $0x100] sm:$0xff]
      %v368 = vld [vmem:[%s1 + $0x108] sm:$0xff]
      %v369 = vld [vmem:[%s1 + $0x110] sm:$0xff]
      %v370 = vld [vmem:[%s1 + $0x118] sm:$0xff]
      %v371 = vld [vmem:[%s1 + $0x120] sm:$0xff]
      %v372 = vld [vmem:[%s1 + $0x128] sm:$0xff]
      %v373 = vld [vmem:[%s1 + $0x130] sm:$0xff]
      %v374 = vld [vmem:[%s1 + $0x138] sm:$0xff]
      %v375 = vld [vmem:[%s1 + $0x140] sm:$0xff]
      %v376 = vld [vmem:[%s1 + $0x148] sm:$0xff]
      %v377 = vld [vmem:[%s1 + $0x150] sm:$0xff]
      %v378 = vld [vmem:[%s1 + $0x158] sm:$0xff]
      %v379 = vld [vmem:[%s1 + $0x160] sm:$0xff]
      %v380 = vld [vmem:[%s1 + $0x168] sm:$0xff]
      %v381 = vld [vmem:[%s1 + $0x170] sm:$0xff]
      %v382 = vld [vmem:[%s1 + $0x178] sm:$0xff]
      %v383 = vld [vmem:[%s1 + $0x180] sm:$0xff]
      %v384 = vld [vmem:[%s1 + $0x188] sm:$0xff]
      %v385 = vld [vmem:[%s1 + $0x190] sm:$0xff]
      %v386 = vld [vmem:[%s1 + $0x198] sm:$0xff]
      %v387 = vld [vmem:[%s1 + $0x1a0] sm:$0xff]
      %v388 = vld [vmem:[%s1 + $0x1a8] sm:$0xff]
      %v389 = vld [vmem:[%s1 + $0x1b0] sm:$0xff]
      %v390 = vld [vmem:[%s1 + $0x1b8] sm:$0xff]
      %v391 = vld [vmem:[%s1 + $0x1c0] sm:$0xff]
      %v392 = vld [vmem:[%s1 + $0x1c8] sm:$0xff]
      %v393 = vld [vmem:[%s1 + $0x1d0] sm:$0xff]
      %v394 = vld [vmem:[%s1 + $0x1d8] sm:$0xff]
      %v395 = vld [vmem:[%s1 + $0x1e0] sm:$0xff]
      %v396 = vld [vmem:[%s1 + $0x1e8] sm:$0xff]
      %v397 = vld [vmem:[%s1 + $0x1f0] sm:$0xff]
      %v398 = vld [vmem:[%s1 + $0x1f8] sm:$0xff]
      %v399 = vld [vmem:[%s1 + $0x200] sm:$0xff]
      %v400 = vld [vmem:[%s1 + $0x208] sm:$0xff]
      %v401 = vld [vmem:[%s1 + $0x210] sm:$0xff]
      %v402 = vld [vmem:[%s1 + $0x218] sm:$0xff]
      %v403 = vld [vmem:[%s1 + $0x220] sm:$0xff]
      %v404 = vld [vmem:[%s1 + $0x228] sm:$0xff]
      %v405 = vld [vmem:[%s1 + $0x230] sm:$0xff]
      %v406 = vld [vmem:[%s1 + $0x238] sm:$0xff]
      %vm407 = vcmask 523264
      %v409 = vsel %vm407, %v179, 0
      %v412 = vsel %vm407, %v184, 0
      %v415 = vsel %vm407, %v189, 0
      %v418 = vsel %vm407, %v194, 0
      %v421 = vsel %vm407, %v199, 0
      %v424 = vsel %vm407, %v204, 0
      %v427 = vsel %vm407, %v209, 0
      %v430 = vsel %vm407, %v214, 0
      %v433 = vsel %vm407, %v219, 0
      %v436 = vsel %vm407, %v224, 0
      %v439 = vsel %vm407, %v229, 0
      %v442 = vsel %vm407, %v234, 0
      %v445 = vsel %vm407, %v239, 0
      %v448 = vsel %vm407, %v244, 0
      %v451 = vsel %vm407, %v249, 0
      %v454 = vsel %vm407, %v254, 0
      %v457 = vsel %vm407, %v259, 0
      %v460 = vsel %vm407, %v264, 0
      %v463 = vsel %vm407, %v269, 0
      %v466 = vsel %vm407, %v274, 0
      %v469 = vsel %vm407, %v279, 0
      %v472 = vsel %vm407, %v284, 0
      %v475 = vsel %vm407, %v289, 0
      %v478 = vsel %vm407, %v294, 0
      %v481 = vsel %vm407, %v299, 0
      %v484 = vsel %vm407, %v304, 0
      %v487 = vsel %vm407, %v309, 0
      %v490 = vsel %vm407, %v314, 0
      %v493 = vsel %vm407, %v319, 0
      %v496 = vsel %vm407, %v324, 0
      %v499 = vsel %vm407, %v329, 0
      %v502 = vsel %vm407, %v334, 0
      %504 = vmatprep.subr.mxu0 0.0
      %505 = vmatpush1.msra.mxu0 %v335
      %506 = vmatprep.subr.mxu0 0.0
      %507 = vmatpush1.msra.mxu0 %v336
      %508 = vmatprep.subr.mxu0 0.0
      %509 = vmatpush1.msra.mxu0 %v337
      %510 = vmatprep.subr.mxu0 0.0
      %511 = vmatpush1.msra.mxu0 %v338
      %512 = vmatprep.subr.mxu0 0.0
      %513 = vmatpush1.msra.mxu0 %v339
      %514 = vmatprep.subr.mxu0 0.0
      %515 = vmatpush1.msra.mxu0 %v340
      %516 = vmatprep.subr.mxu0 0.0
      %517 = vmatpush1.msra.mxu0 %v341
      %518 = vmatprep.subr.mxu0 0.0
      %519 = vmatpush1.msra.mxu0 %v342
      %520 = vmatprep.subr.mxu0 0.0
      %521 = vmatpush1.msra.mxu0 %v343
      %522 = vmatprep.subr.mxu0 0.0
      %523 = vmatpush1.msra.mxu0 %v344
      %524 = vmatprep.subr.mxu0 0.0
      %525 = vmatpush1.msra.mxu0 %v345
      %526 = vmatprep.subr.mxu0 0.0
      %527 = vmatpush1.msra.mxu0 %v346
      %528 = vmatprep.subr.mxu0 0.0
      %529 = vmatpush1.msra.mxu0 %v347
      %530 = vmatprep.subr.mxu0 0.0
      %531 = vmatpush1.msra.mxu0 %v348
      %532 = vmatprep.subr.mxu0 0.0
      %533 = vmatpush1.msra.mxu0 %v349
      %534 = vmatprep.subr.mxu0 0.0
      %535 = vmatpush1.msra.mxu0 %v350
      %536 = vmatprep.subr.mxu0 0.0
      %537 = vmatpush1.msra.mxu0 %v351
      %538 = vmatprep.subr.mxu0 0.0
      %539 = vmatpush1.msra.mxu0 %v352
      %540 = vmatprep.subr.mxu0 0.0
      %541 = vmatpush1.msra.mxu0 %v353
      %542 = vmatprep.subr.mxu0 0.0
      %543 = vmatpush1.msra.mxu0 %v354
      %544 = vmatprep.subr.mxu0 0.0
      %545 = vmatpush1.msra.mxu0 %v355
      %546 = vmatprep.subr.mxu0 0.0
      %547 = vmatpush1.msra.mxu0 %v356
      %548 = vmatprep.subr.mxu0 0.0
      %549 = vmatpush1.msra.mxu0 %v357
      %550 = vmatprep.subr.mxu0 0.0
      %551 = vmatpush1.msra.mxu0 %v358
      %552 = vmatprep.subr.mxu0 0.0
      %553 = vmatpush1.msra.mxu0 %v359
      %554 = vmatprep.subr.mxu0 0.0
      %555 = vmatpush1.msra.mxu0 %v360
      %556 = vmatprep.subr.mxu0 0.0
      %557 = vmatpush1.msra.mxu0 %v361
      %558 = vmatprep.subr.mxu0 0.0
      %559 = vmatpush1.msra.mxu0 %v362
      %560 = vmatprep.subr.mxu0 0.0
      %561 = vmatpush1.msra.mxu0 %v363
      %562 = vmatprep.subr.mxu0 0.0
      %563 = vmatpush1.msra.mxu0 %v364
      %564 = vmatprep.subr.mxu0 0.0
      %565 = vmatpush1.msra.mxu0 %v365
      %566 = vmatprep.subr.mxu0 0.0
      %567 = vmatpush1.msra.mxu0 %v366
      %568 = vmatprep.mubr.f32.mxu0 %v176
      %569 = vmatmul.mubr.f32.gmra.mrb[0].mxu0 %v175
      %v570 = vpop.f32.mrb[0].mxu0
      %v571 = vadd.f32 0.0, %v570
      %v572 = vpop.f32.mrb[0].mxu0
      %573 = vmatprep.mubr.f32.mxu0 %v181
      %574 = vmatmul.mubr.f32.gmra.mrb[0].mxu0 %v180
      %v575 = vpop.f32.mrb[0].mxu0
      %v576 = vadd.f32 0.0, %v575
      %v577 = vpop.f32.mrb[0].mxu0
      %578 = vmatprep.mubr.f32.mxu0 %v186
      %579 = vmatmul.mubr.f32.gmra.mrb[0].mxu0 %v185
      %v580 = vpop.f32.mrb[0].mxu0
      %v581 = vadd.f32 0.0, %v580
      %v582 = vpop.f32.mrb[0].mxu0
      %583 = vmatprep.mubr.f32.mxu0 %v191
      %584 = vmatmul.mubr.f32.gmra.mrb[0].mxu0 %v190
      %v585 = vpop.f32.mrb[0].mxu0
      %v586 = vadd.f32 0.0, %v585
      %v587 = vpop.f32.mrb[0].mxu0
      %588 = vmatprep.mubr.f32.mxu0 %v196
      %589 = vmatmul.mubr.f32.gmra.mrb[0].mxu0 %v195
      %v590 = vpop.f32.mrb[0].mxu0
      %v591 = vadd.f32 0.0, %v590
      %v592 = vpop.f32.mrb[0].mxu0
      %593 = vmatprep.mubr.f32.mxu0 %v201
      %594 = vmatmul.mubr.f32.gmra.mrb[0].mxu0 %v200
      %v595 = vpop.f32.mrb[0].mxu0
      %v596 = vadd.f32 0.0, %v595
      %v597 = vpop.f32.mrb[0].mxu0
      %598 = vmatprep.mubr.f32.mxu0 %v206
      %599 = vmatmul.mubr.f32.gmra.mrb[0].mxu0 %v205
      %v600 = vpop.f32.mrb[0].mxu0
      %v601 = vadd.f32 0.0, %v600
      %v602 = vpop.f32.mrb[0].mxu0
      %603 = vmatprep.mubr.f32.mxu0 %v211
      %604 = vmatmul.mubr.f32.gmra.mrb[0].mxu0 %v210
      %v605 = vpop.f32.mrb[0].mxu0
      %v606 = vadd.f32 0.0, %v605
      %v607 = vpop.f32.mrb[0].mxu0
      %608 = vmatprep.mubr.f32.mxu0 %v216
      %609 = vmatmul.mubr.f32.gmra.mrb[0].mxu0 %v215
      %v610 = vpop.f32.mrb[0].mxu0
      %v611 = vadd.f32 0.0, %v610
      %v612 = vpop.f32.mrb[0].mxu0
      %613 = vmatprep.mubr.f32.mxu0 %v221
      %614 = vmatmul.mubr.f32.gmra.mrb[0].mxu0 %v220
      %v615 = vpop.f32.mrb[0].mxu0
      %v616 = vadd.f32 0.0, %v615
      %v617 = vpop.f32.mrb[0].mxu0
      %618 = vmatprep.mubr.f32.mxu0 %v226
      %619 = vmatmul.mubr.f32.gmra.mrb[0].mxu0 %v225
      %v620 = vpop.f32.mrb[0].mxu0
      %v621 = vadd.f32 0.0, %v620
      %v622 = vpop.f32.mrb[0].mxu0
      %623 = vmatprep.mubr.f32.mxu0 %v231
      %624 = vmatmul.mubr.f32.gmra.mrb[0].mxu0 %v230
      %v625 = vpop.f32.mrb[0].mxu0
      %v626 = vadd.f32 0.0, %v625
      %v627 = vpop.f32.mrb[0].mxu0
      %628 = vmatprep.mubr.f32.mxu0 %v236
      %629 = vmatmul.mubr.f32.gmra.mrb[0].mxu0 %v235
      %v630 = vpop.f32.mrb[0].mxu0
      %v631 = vadd.f32 0.0, %v630
      %v632 = vpop.f32.mrb[0].mxu0
      %633 = vmatprep.mubr.f32.mxu0 %v241
      %634 = vmatmul.mubr.f32.gmra.mrb[0].mxu0 %v240
      %v635 = vpop.f32.mrb[0].mxu0
      %v636 = vadd.f32 0.0, %v635
      %v637 = vpop.f32.mrb[0].mxu0
      %638 = vmatprep.mubr.f32.mxu0 %v246
      %639 = vmatmul.mubr.f32.gmra.mrb[0].mxu0 %v245
      %v640 = vpop.f32.mrb[0].mxu0
      %v641 = vadd.f32 0.0, %v640
      %v642 = vpop.f32.mrb[0].mxu0
      %643 = vmatprep.mubr.f32.mxu0 %v251
      %644 = vmatmul.mubr.f32.gmra.mrb[0].mxu0 %v250
      %v645 = vpop.f32.mrb[0].mxu0
      %v646 = vadd.f32 0.0, %v645
      %v647 = vpop.f32.mrb[0].mxu0
      %648 = vmatprep.mubr.f32.mxu0 %v256
      %649 = vmatmul.mubr.f32.gmra.mrb[0].mxu0 %v255
      %v650 = vpop.f32.mrb[0].mxu0
      %v651 = vadd.f32 0.0, %v650
      %v652 = vpop.f32.mrb[0].mxu0
      %653 = vmatprep.mubr.f32.mxu0 %v261
      %654 = vmatmul.mubr.f32.gmra.mrb[0].mxu0 %v260
      %v655 = vpop.f32.mrb[0].mxu0
      %v656 = vadd.f32 0.0, %v655
      %v657 = vpop.f32.mrb[0].mxu0
      %658 = vmatprep.mubr.f32.mxu0 %v266
      %659 = vmatmul.mubr.f32.gmra.mrb[0].mxu0 %v265
      %v660 = vpop.f32.mrb[0].mxu0
      %v661 = vadd.f32 0.0, %v660
      %v662 = vpop.f32.mrb[0].mxu0
      %663 = vmatprep.mubr.f32.mxu0 %v271
      %664 = vmatmul.mubr.f32.gmra.mrb[0].mxu0 %v270
      %v665 = vpop.f32.mrb[0].mxu0
      %v666 = vadd.f32 0.0, %v665
      %v667 = vpop.f32.mrb[0].mxu0
      %668 = vmatprep.mubr.f32.mxu0 %v276
      %669 = vmatmul.mubr.f32.gmra.mrb[0].mxu0 %v275
      %v670 = vpop.f32.mrb[0].mxu0
      %v671 = vadd.f32 0.0, %v670
      %v672 = vpop.f32.mrb[0].mxu0
      %673 = vmatprep.mubr.f32.mxu0 %v281
      %674 = vmatmul.mubr.f32.gmra.mrb[0].mxu0 %v280
      %v675 = vpop.f32.mrb[0].mxu0
      %v676 = vadd.f32 0.0, %v675
      %v677 = vpop.f32.mrb[0].mxu0
      %678 = vmatprep.mubr.f32.mxu0 %v286
      %679 = vmatmul.mubr.f32.gmra.mrb[0].mxu0 %v285
      %v680 = vpop.f32.mrb[0].mxu0
      %v681 = vadd.f32 0.0, %v680
      %v682 = vpop.f32.mrb[0].mxu0
      %683 = vmatprep.mubr.f32.mxu0 %v291
      %684 = vmatmul.mubr.f32.gmra.mrb[0].mxu0 %v290
      %v685 = vpop.f32.mrb[0].mxu0
      %v686 = vadd.f32 0.0, %v685
      %v687 = vpop.f32.mrb[0].mxu0
      %688 = vmatprep.mubr.f32.mxu0 %v296
      %689 = vmatmul.mubr.f32.gmra.mrb[0].mxu0 %v295
      %v690 = vpop.f32.mrb[0].mxu0
      %v691 = vadd.f32 0.0, %v690
      %v692 = vpop.f32.mrb[0].mxu0
      %693 = vmatprep.mubr.f32.mxu0 %v301
      %694 = vmatmul.mubr.f32.gmra.mrb[0].mxu0 %v300
      %v695 = vpop.f32.mrb[0].mxu0
      %v696 = vadd.f32 0.0, %v695
      %v697 = vpop.f32.mrb[0].mxu0
      %698 = vmatprep.mubr.f32.mxu0 %v306
      %699 = vmatmul.mubr.f32.gmra.mrb[0].mxu0 %v305
      %v700 = vpop.f32.mrb[0].mxu0
      %v701 = vadd.f32 0.0, %v700
      %v702 = vpop.f32.mrb[0].mxu0
      %703 = vmatprep.mubr.f32.mxu0 %v311
      %704 = vmatmul.mubr.f32.gmra.mrb[0].mxu0 %v310
      %v705 = vpop.f32.mrb[0].mxu0
      %v706 = vadd.f32 0.0, %v705
      %v707 = vpop.f32.mrb[0].mxu0
      %708 = vmatprep.mubr.f32.mxu0 %v316
      %709 = vmatmul.mubr.f32.gmra.mrb[0].mxu0 %v315
      %v710 = vpop.f32.mrb[0].mxu0
      %v711 = vadd.f32 0.0, %v710
      %v712 = vpop.f32.mrb[0].mxu0
      %713 = vmatprep.mubr.f32.mxu0 %v321
      %714 = vmatmul.mubr.f32.gmra.mrb[0].mxu0 %v320
      %v715 = vpop.f32.mrb[0].mxu0
      %v716 = vadd.f32 0.0, %v715
      %v717 = vpop.f32.mrb[0].mxu0
      %718 = vmatprep.mubr.f32.mxu0 %v326
      %719 = vmatmul.mubr.f32.gmra.mrb[0].mxu0 %v325
      %v720 = vpop.f32.mrb[0].mxu0
      %v721 = vadd.f32 0.0, %v720
      %v722 = vpop.f32.mrb[0].mxu0
      %723 = vmatprep.mubr.f32.mxu0 %v331
      %724 = vmatmul.mubr.f32.gmra.mrb[0].mxu0 %v330
      %v725 = vpop.f32.mrb[0].mxu0
      %v726 = vadd.f32 0.0, %v725
      %v727 = vpop.f32.mrb[0].mxu0
      %728 = vdwg.mxu0
      %729 = vmatprep.subr.mxu0 0.0
      %730 = vmatpush1.msra.mxu0 %v367
      %731 = vmatprep.subr.mxu0 0.0
      %732 = vmatpush1.msra.mxu0 %v368
      %733 = vmatprep.subr.mxu0 0.0
      %734 = vmatpush1.msra.mxu0 %v369
      %735 = vmatprep.subr.mxu0 0.0
      %736 = vmatpush1.msra.mxu0 %v370
      %737 = vmatprep.subr.mxu0 0.0
      %738 = vmatpush1.msra.mxu0 %v371
      %739 = vmatprep.subr.mxu0 0.0
      %740 = vmatpush1.msra.mxu0 %v372
      %741 = vmatprep.subr.mxu0 0.0
      %742 = vmatpush1.msra.mxu0 %v373
      %743 = vmatprep.subr.mxu0 0.0
      %744 = vmatpush1.msra.mxu0 %v374
      %745 = vmatprep.subr.mxu0 0.0
      %746 = vmatpush1.msra.mxu0 %v375
      %747 = vmatprep.subr.mxu0 0.0
      %748 = vmatpush1.msra.mxu0 %v376
      %749 = vmatprep.subr.mxu0 0.0
      %750 = vmatpush1.msra.mxu0 %v377
      %751 = vmatprep.subr.mxu0 0.0
      %752 = vmatpush1.msra.mxu0 %v378
      %753 = vmatprep.subr.mxu0 0.0
      %754 = vmatpush1.msra.mxu0 %v379
      %755 = vmatprep.subr.mxu0 0.0
      %756 = vmatpush1.msra.mxu0 %v380
      %757 = vmatprep.subr.mxu0 0.0
      %758 = vmatpush1.msra.mxu0 %v381
      %759 = vmatprep.subr.mxu0 0.0
      %760 = vmatpush1.msra.mxu0 %v382
      %761 = vmatprep.subr.mxu0 0.0
      %762 = vmatpush1.msra.mxu0 %v383
      %763 = vmatprep.subr.mxu0 0.0
      %764 = vmatpush1.msra.mxu0 %v384
      %765 = vmatprep.subr.mxu0 0.0
      %766 = vmatpush1.msra.mxu0 %v385
      %767 = vmatprep.subr.mxu0 0.0
      %768 = vmatpush1.msra.mxu0 %v386
      %769 = vmatprep.subr.mxu0 0.0
      %770 = vmatpush1.msra.mxu0 %v387
      %771 = vmatprep.subr.mxu0 0.0
      %772 = vmatpush1.msra.mxu0 %v388
      %773 = vmatprep.subr.mxu0 0.0
      %774 = vmatpush1.msra.mxu0 %v389
      %775 = vmatprep.subr.mxu0 0.0
      %776 = vmatpush1.msra.mxu0 %v390
      %777 = vmatprep.subr.mxu0 0.0
      %778 = vmatpush1.msra.mxu0 %v391
      %779 = vmatprep.subr.mxu0 0.0
      %780 = vmatpush1.msra.mxu0 %v392
      %781 = vmatprep.subr.mxu0 0.0
      %782 = vmatpush1.msra.mxu0 %v393
      %783 = vmatprep.subr.mxu0 0.0
      %784 = vmatpush1.msra.mxu0 %v394
      %785 = vmatprep.subr.mxu0 0.0
      %786 = vmatpush1.msra.mxu0 %v395
      %787 = vmatprep.subr.mxu0 0.0
      %788 = vmatpush1.msra.mxu0 %v396
      %789 = vmatprep.subr.mxu0 0.0
      %790 = vmatpush1.msra.mxu0 %v397
      %791 = vmatprep.subr.mxu0 0.0
      %792 = vmatpush1.msra.mxu0 %v398
      %793 = vmatprep.mubr.f32.mxu0 %v178
      %794 = vmatmul.mubr.f32.gmra.mrb[0].mxu0 %v177
      %v795 = vpop.f32.mrb[0].mxu0
      %v796 = vadd.f32 %v571, %v795
      %v797 = vpop.f32.mrb[0].mxu0
      %798 = vmatprep.mubr.f32.mxu0 %v183
      %799 = vmatmul.mubr.f32.gmra.mrb[0].mxu0 %v182
      %v800 = vpop.f32.mrb[0].mxu0
      %v801 = vadd.f32 %v576, %v800
      %v802 = vpop.f32.mrb[0].mxu0
      %803 = vmatprep.mubr.f32.mxu0 %v188
      %804 = vmatmul.mubr.f32.gmra.mrb[0].mxu0 %v187
      %v805 = vpop.f32.mrb[0].mxu0
      %v806 = vadd.f32 %v581, %v805
      %v807 = vpop.f32.mrb[0].mxu0
      %808 = vmatprep.mubr.f32.mxu0 %v193
      %809 = vmatmul.mubr.f32.gmra.mrb[0].mxu0 %v192
      %v810 = vpop.f32.mrb[0].mxu0
      %v811 = vadd.f32 %v586, %v810
      %v812 = vpop.f32.mrb[0].mxu0
      %813 = vmatprep.mubr.f32.mxu0 %v198
      %814 = vmatmul.mubr.f32.gmra.mrb[0].mxu0 %v197
      %v815 = vpop.f32.mrb[0].mxu0
      %v816 = vadd.f32 %v591, %v815
      %v817 = vpop.f32.mrb[0].mxu0
      %818 = vmatprep.mubr.f32.mxu0 %v203
      %819 = vmatmul.mubr.f32.gmra.mrb[0].mxu0 %v202
      %v820 = vpop.f32.mrb[0].mxu0
      %v821 = vadd.f32 %v596, %v820
      %v822 = vpop.f32.mrb[0].mxu0
      %823 = vmatprep.mubr.f32.mxu0 %v208
      %824 = vmatmul.mubr.f32.gmra.mrb[0].mxu0 %v207
      %v825 = vpop.f32.mrb[0].mxu0
      %v826 = vadd.f32 %v601, %v825
      %v827 = vpop.f32.mrb[0].mxu0
      %828 = vmatprep.mubr.f32.mxu0 %v213
      %829 = vmatmul.mubr.f32.gmra.mrb[0].mxu0 %v212
      %v830 = vpop.f32.mrb[0].mxu0
      %v831 = vadd.f32 %v606, %v830
      %v832 = vpop.f32.mrb[0].mxu0
      %833 = vmatprep.mubr.f32.mxu0 %v218
      %834 = vmatmul.mubr.f32.gmra.mrb[0].mxu0 %v217
      %v835 = vpop.f32.mrb[0].mxu0
      %v836 = vadd.f32 %v611, %v835
      %v837 = vpop.f32.mrb[0].mxu0
      %838 = vmatprep.mubr.f32.mxu0 %v223
      %839 = vmatmul.mubr.f32.gmra.mrb[0].mxu0 %v222
      %v840 = vpop.f32.mrb[0].mxu0
      %v841 = vadd.f32 %v616, %v840
      %v842 = vpop.f32.mrb[0].mxu0
      %843 = vmatprep.mubr.f32.mxu0 %v228
      %844 = vmatmul.mubr.f32.gmra.mrb[0].mxu0 %v227
      %v845 = vpop.f32.mrb[0].mxu0
      %v846 = vadd.f32 %v621, %v845
      %v847 = vpop.f32.mrb[0].mxu0
      %848 = vmatprep.mubr.f32.mxu0 %v233
      %849 = vmatmul.mubr.f32.gmra.mrb[0].mxu0 %v232
      %v850 = vpop.f32.mrb[0].mxu0
      %v851 = vadd.f32 %v626, %v850
      %v852 = vpop.f32.mrb[0].mxu0
      %853 = vmatprep.mubr.f32.mxu0 %v238
      %854 = vmatmul.mubr.f32.gmra.mrb[0].mxu0 %v237
      %v855 = vpop.f32.mrb[0].mxu0
      %v856 = vadd.f32 %v631, %v855
      %v857 = vpop.f32.mrb[0].mxu0
      %858 = vmatprep.mubr.f32.mxu0 %v243
      %859 = vmatmul.mubr.f32.gmra.mrb[0].mxu0 %v242
      %v860 = vpop.f32.mrb[0].mxu0
      %v861 = vadd.f32 %v636, %v860
      %v862 = vpop.f32.mrb[0].mxu0
      %863 = vmatprep.mubr.f32.mxu0 %v248
      %864 = vmatmul.mubr.f32.gmra.mrb[0].mxu0 %v247
      %v865 = vpop.f32.mrb[0].mxu0
      %v866 = vadd.f32 %v641, %v865
      %v867 = vpop.f32.mrb[0].mxu0
      %868 = vmatprep.mubr.f32.mxu0 %v253
      %869 = vmatmul.mubr.f32.gmra.mrb[0].mxu0 %v252
      %v870 = vpop.f32.mrb[0].mxu0
      %v871 = vadd.f32 %v646, %v870
      %v872 = vpop.f32.mrb[0].mxu0
      %873 = vmatprep.mubr.f32.mxu0 %v258
      %874 = vmatmul.mubr.f32.gmra.mrb[0].mxu0 %v257
      %v875 = vpop.f32.mrb[0].mxu0
      %v876 = vadd.f32 %v651, %v875
      %v877 = vpop.f32.mrb[0].mxu0
      %878 = vmatprep.mubr.f32.mxu0 %v263
      %879 = vmatmul.mubr.f32.gmra.mrb[0].mxu0 %v262
      %v880 = vpop.f32.mrb[0].mxu0
      %v881 = vadd.f32 %v656, %v880
      %v882 = vpop.f32.mrb[0].mxu0
      %883 = vmatprep.mubr.f32.mxu0 %v268
      %884 = vmatmul.mubr.f32.gmra.mrb[0].mxu0 %v267
      %v885 = vpop.f32.mrb[0].mxu0
      %v886 = vadd.f32 %v661, %v885
      %v887 = vpop.f32.mrb[0].mxu0
      %888 = vmatprep.mubr.f32.mxu0 %v273
      %889 = vmatmul.mubr.f32.gmra.mrb[0].mxu0 %v272
      %v890 = vpop.f32.mrb[0].mxu0
      %v891 = vadd.f32 %v666, %v890
      %v892 = vpop.f32.mrb[0].mxu0
      %893 = vmatprep.mubr.f32.mxu0 %v278
      %894 = vmatmul.mubr.f32.gmra.mrb[0].mxu0 %v277
      %v895 = vpop.f32.mrb[0].mxu0
      %v896 = vadd.f32 %v671, %v895
      %v897 = vpop.f32.mrb[0].mxu0
      %898 = vmatprep.mubr.f32.mxu0 %v283
      %899 = vmatmul.mubr.f32.gmra.mrb[0].mxu0 %v282
      %v900 = vpop.f32.mrb[0].mxu0
      %v901 = vadd.f32 %v676, %v900
      %v902 = vpop.f32.mrb[0].mxu0
      %903 = vmatprep.mubr.f32.mxu0 %v288
      %904 = vmatmul.mubr.f32.gmra.mrb[0].mxu0 %v287
      %v905 = vpop.f32.mrb[0].mxu0
      %v906 = vadd.f32 %v681, %v905
      %v907 = vpop.f32.mrb[0].mxu0
      %908 = vmatprep.mubr.f32.mxu0 %v293
      %909 = vmatmul.mubr.f32.gmra.mrb[0].mxu0 %v292
      %v910 = vpop.f32.mrb[0].mxu0
      %v911 = vadd.f32 %v686, %v910
      %v912 = vpop.f32.mrb[0].mxu0
      %913 = vmatprep.mubr.f32.mxu0 %v298
      %914 = vmatmul.mubr.f32.gmra.mrb[0].mxu0 %v297
      %v915 = vpop.f32.mrb[0].mxu0
      %v916 = vadd.f32 %v691, %v915
      %v917 = vpop.f32.mrb[0].mxu0
      %918 = vmatprep.mubr.f32.mxu0 %v303
      %919 = vmatmul.mubr.f32.gmra.mrb[0].mxu0 %v302
      %v920 = vpop.f32.mrb[0].mxu0
      %v921 = vadd.f32 %v696, %v920
      %v922 = vpop.f32.mrb[0].mxu0
      %923 = vmatprep.mubr.f32.mxu0 %v308
      %924 = vmatmul.mubr.f32.gmra.mrb[0].mxu0 %v307
      %v925 = vpop.f32.mrb[0].mxu0
      %v926 = vadd.f32 %v701, %v925
      %v927 = vpop.f32.mrb[0].mxu0
      %928 = vmatprep.mubr.f32.mxu0 %v313
      %929 = vmatmul.mubr.f32.gmra.mrb[0].mxu0 %v312
      %v930 = vpop.f32.mrb[0].mxu0
      %v931 = vadd.f32 %v706, %v930
      %v932 = vpop.f32.mrb[0].mxu0
      %933 = vmatprep.mubr.f32.mxu0 %v318
      %934 = vmatmul.mubr.f32.gmra.mrb[0].mxu0 %v317
      %v935 = vpop.f32.mrb[0].mxu0
      %v936 = vadd.f32 %v711, %v935
      %v937 = vpop.f32.mrb[0].mxu0
      %938 = vmatprep.mubr.f32.mxu0 %v323
      %939 = vmatmul.mubr.f32.gmra.mrb[0].mxu0 %v322
      %v940 = vpop.f32.mrb[0].mxu0
      %v941 = vadd.f32 %v716, %v940
      %v942 = vpop.f32.mrb[0].mxu0
      %943 = vmatprep.mubr.f32.mxu0 %v328
      %944 = vmatmul.mubr.f32.gmra.mrb[0].mxu0 %v327
      %v945 = vpop.f32.mrb[0].mxu0
      %v946 = vadd.f32 %v721, %v945
      %v947 = vpop.f32.mrb[0].mxu0
      %948 = vmatprep.mubr.f32.mxu0 %v333
      %949 = vmatmul.mubr.f32.gmra.mrb[0].mxu0 %v332
      %v950 = vpop.f32.mrb[0].mxu0
      %v951 = vadd.f32 %v726, %v950
      %v952 = vpop.f32.mrb[0].mxu0
      %953 = vdwg.mxu0
      %954 = vmatprep.subr.mxu0 0.0
      %955 = vmatpush1.msra.mxu0 %v399
      %956 = vmatprep.subr.mxu0 0.0
      %957 = vmatpush1.msra.mxu0 %v400
      %958 = vmatprep.subr.mxu0 0.0
      %959 = vmatpush1.msra.mxu0 %v401
      %960 = vmatprep.subr.mxu0 0.0
      %961 = vmatpush1.msra.mxu0 %v402
      %962 = vmatprep.subr.mxu0 0.0
      %963 = vmatpush1.msra.mxu0 %v403
      %964 = vmatprep.subr.mxu0 0.0
      %965 = vmatpush1.msra.mxu0 %v404
      %966 = vmatprep.subr.mxu0 0.0
      %967 = vmatpush1.msra.mxu0 %v405
      %968 = vmatprep.subr.mxu0 0.0
      %969 = vmatpush1.msra.mxu0 %v406
      %970 = vmatprep.subr.mxu0 0.0
      %971 = vmatpush1.msra.mxu0 0.0
      %972 = vmatprep.subr.mxu0 0.0
      %973 = vmatpush1.msra.mxu0 0.0
      %974 = vmatprep.subr.mxu0 0.0
      %975 = vmatpush1.msra.mxu0 0.0
      %976 = vmatprep.subr.mxu0 0.0
      %977 = vmatpush1.msra.mxu0 0.0
      %978 = vmatprep.subr.mxu0 0.0
      %979 = vmatpush1.msra.mxu0 0.0
      %980 = vmatprep.subr.mxu0 0.0
      %981 = vmatpush1.msra.mxu0 0.0
      %982 = vmatprep.subr.mxu0 0.0
      %983 = vmatpush1.msra.mxu0 0.0
      %984 = vmatprep.subr.mxu0 0.0
      %985 = vmatpush1.msra.mxu0 0.0
      %986 = vmatprep.subr.mxu0 0.0
      %987 = vmatpush1.msra.mxu0 0.0
      %988 = vmatprep.subr.mxu0 0.0
      %989 = vmatpush1.msra.mxu0 0.0
      %990 = vmatprep.subr.mxu0 0.0
      %991 = vmatpush1.msra.mxu0 0.0
      %992 = vmatprep.subr.mxu0 0.0
      %993 = vmatpush1.msra.mxu0 0.0
      %994 = vmatprep.subr.mxu0 0.0
      %995 = vmatpush1.msra.mxu0 0.0
      %996 = vmatprep.subr.mxu0 0.0
      %997 = vmatpush1.msra.mxu0 0.0
      %998 = vmatprep.subr.mxu0 0.0
      %999 = vmatpush1.msra.mxu0 0.0
      %1000 = vmatprep.subr.mxu0 0.0
      %1001 = vmatpush1.msra.mxu0 0.0
      %1002 = vmatprep.subr.mxu0 0.0
      %1003 = vmatpush1.msra.mxu0 0.0
      %1004 = vmatprep.subr.mxu0 0.0
      %1005 = vmatpush1.msra.mxu0 0.0
      %1006 = vmatprep.subr.mxu0 0.0
      %1007 = vmatpush1.msra.mxu0 0.0
      %1008 = vmatprep.subr.mxu0 0.0
      %1009 = vmatpush1.msra.mxu0 0.0
      %1010 = vmatprep.subr.mxu0 0.0
      %1011 = vmatpush1.msra.mxu0 0.0
      %1012 = vmatprep.subr.mxu0 0.0
      %1013 = vmatpush1.msra.mxu0 0.0
      %1014 = vmatprep.subr.mxu0 0.0
      %1015 = vmatpush1.msra.mxu0 0.0
      %1016 = vmatprep.subr.mxu0 0.0
      %1017 = vmatpush1.msra.mxu0 0.0
      %1018 = vmatprep.mubr.f32.mxu0 0.0
      %1019 = vmatmul.mubr.f32.gmra.mrb[0].mxu0 %v409
      %v1020 = vpop.f32.mrb[0].mxu0
      %v1021 = vadd.f32 %v796, %v1020
      %v1022 = vpop.f32.mrb[0].mxu0
      %1023 = vmatprep.mubr.f32.mxu0 0.0
      %1024 = vmatmul.mubr.f32.gmra.mrb[0].mxu0 %v412
      %v1025 = vpop.f32.mrb[0].mxu0
      %v1026 = vadd.f32 %v801, %v1025
      %v1027 = vpop.f32.mrb[0].mxu0
      %1028 = vmatprep.mubr.f32.mxu0 0.0
      %1029 = vmatmul.mubr.f32.gmra.mrb[0].mxu0 %v415
      %v1030 = vpop.f32.mrb[0].mxu0
      %v1031 = vadd.f32 %v806, %v1030
      %v1032 = vpop.f32.mrb[0].mxu0
      %1033 = vmatprep.mubr.f32.mxu0 0.0
      %1034 = vmatmul.mubr.f32.gmra.mrb[0].mxu0 %v418
      %v1035 = vpop.f32.mrb[0].mxu0
      %v1036 = vadd.f32 %v811, %v1035
      %v1037 = vpop.f32.mrb[0].mxu0
      %1038 = vmatprep.mubr.f32.mxu0 0.0
      %1039 = vmatmul.mubr.f32.gmra.mrb[0].mxu0 %v421
      %v1040 = vpop.f32.mrb[0].mxu0
      %v1041 = vadd.f32 %v816, %v1040
      %v1042 = vpop.f32.mrb[0].mxu0
      %1043 = vmatprep.mubr.f32.mxu0 0.0
      %1044 = vmatmul.mubr.f32.gmra.mrb[0].mxu0 %v424
      %v1045 = vpop.f32.mrb[0].mxu0
      %v1046 = vadd.f32 %v821, %v1045
      %v1047 = vpop.f32.mrb[0].mxu0
      %1048 = vmatprep.mubr.f32.mxu0 0.0
      %1049 = vmatmul.mubr.f32.gmra.mrb[0].mxu0 %v427
      %v1050 = vpop.f32.mrb[0].mxu0
      %v1051 = vadd.f32 %v826, %v1050
      %v1052 = vpop.f32.mrb[0].mxu0
      %1053 = vmatprep.mubr.f32.mxu0 0.0
      %1054 = vmatmul.mubr.f32.gmra.mrb[0].mxu0 %v430
      %v1055 = vpop.f32.mrb[0].mxu0
      %v1056 = vadd.f32 %v831, %v1055
      %v1057 = vpop.f32.mrb[0].mxu0
      %1058 = vmatprep.mubr.f32.mxu0 0.0
      %1059 = vmatmul.mubr.f32.gmra.mrb[0].mxu0 %v433
      %v1060 = vpop.f32.mrb[0].mxu0
      %v1061 = vadd.f32 %v836, %v1060
      %v1062 = vpop.f32.mrb[0].mxu0
      %1063 = vmatprep.mubr.f32.mxu0 0.0
      %1064 = vmatmul.mubr.f32.gmra.mrb[0].mxu0 %v436
      %v1065 = vpop.f32.mrb[0].mxu0
      %v1066 = vadd.f32 %v841, %v1065
      %v1067 = vpop.f32.mrb[0].mxu0
      %1068 = vmatprep.mubr.f32.mxu0 0.0
      %1069 = vmatmul.mubr.f32.gmra.mrb[0].mxu0 %v439
      %v1070 = vpop.f32.mrb[0].mxu0
      %v1071 = vadd.f32 %v846, %v1070
      %v1072 = vpop.f32.mrb[0].mxu0
      %1073 = vmatprep.mubr.f32.mxu0 0.0
      %1074 = vmatmul.mubr.f32.gmra.mrb[0].mxu0 %v442
      %v1075 = vpop.f32.mrb[0].mxu0
      %v1076 = vadd.f32 %v851, %v1075
      %v1077 = vpop.f32.mrb[0].mxu0
      %1078 = vmatprep.mubr.f32.mxu0 0.0
      %1079 = vmatmul.mubr.f32.gmra.mrb[0].mxu0 %v445
      %v1080 = vpop.f32.mrb[0].mxu0
      %v1081 = vadd.f32 %v856, %v1080
      %v1082 = vpop.f32.mrb[0].mxu0
      %1083 = vmatprep.mubr.f32.mxu0 0.0
      %1084 = vmatmul.mubr.f32.gmra.mrb[0].mxu0 %v448
      %v1085 = vpop.f32.mrb[0].mxu0
      %v1086 = vadd.f32 %v861, %v1085
      %v1087 = vpop.f32.mrb[0].mxu0
      %1088 = vmatprep.mubr.f32.mxu0 0.0
      %1089 = vmatmul.mubr.f32.gmra.mrb[0].mxu0 %v451
      %v1090 = vpop.f32.mrb[0].mxu0
      %v1091 = vadd.f32 %v866, %v1090
      %v1092 = vpop.f32.mrb[0].mxu0
      %1093 = vmatprep.mubr.f32.mxu0 0.0
      %1094 = vmatmul.mubr.f32.gmra.mrb[0].mxu0 %v454
      %v1095 = vpop.f32.mrb[0].mxu0
      %v1096 = vadd.f32 %v871, %v1095
      %v1097 = vpop.f32.mrb[0].mxu0
      %1098 = vmatprep.mubr.f32.mxu0 0.0
      %1099 = vmatmul.mubr.f32.gmra.mrb[0].mxu0 %v457
      %v1100 = vpop.f32.mrb[0].mxu0
      %v1101 = vadd.f32 %v876, %v1100
      %v1102 = vpop.f32.mrb[0].mxu0
      %1103 = vmatprep.mubr.f32.mxu0 0.0
      %1104 = vmatmul.mubr.f32.gmra.mrb[0].mxu0 %v460
      %v1105 = vpop.f32.mrb[0].mxu0
      %v1106 = vadd.f32 %v881, %v1105
      %v1107 = vpop.f32.mrb[0].mxu0
      %1108 = vmatprep.mubr.f32.mxu0 0.0
      %1109 = vmatmul.mubr.f32.gmra.mrb[0].mxu0 %v463
      %v1110 = vpop.f32.mrb[0].mxu0
      %v1111 = vadd.f32 %v886, %v1110
      %v1112 = vpop.f32.mrb[0].mxu0
      %1113 = vmatprep.mubr.f32.mxu0 0.0
      %1114 = vmatmul.mubr.f32.gmra.mrb[0].mxu0 %v466
      %v1115 = vpop.f32.mrb[0].mxu0
      %v1116 = vadd.f32 %v891, %v1115
      %v1117 = vpop.f32.mrb[0].mxu0
      %1118 = vmatprep.mubr.f32.mxu0 0.0
      %1119 = vmatmul.mubr.f32.gmra.mrb[0].mxu0 %v469
      %v1120 = vpop.f32.mrb[0].mxu0
      %v1121 = vadd.f32 %v896, %v1120
      %v1122 = vpop.f32.mrb[0].mxu0
      %1123 = vmatprep.mubr.f32.mxu0 0.0
      %1124 = vmatmul.mubr.f32.gmra.mrb[0].mxu0 %v472
      %v1125 = vpop.f32.mrb[0].mxu0
      %v1126 = vadd.f32 %v901, %v1125
      %v1127 = vpop.f32.mrb[0].mxu0
      %1128 = vmatprep.mubr.f32.mxu0 0.0
      %1129 = vmatmul.mubr.f32.gmra.mrb[0].mxu0 %v475
      %v1130 = vpop.f32.mrb[0].mxu0
      %v1131 = vadd.f32 %v906, %v1130
      %v1132 = vpop.f32.mrb[0].mxu0
      %1133 = vmatprep.mubr.f32.mxu0 0.0
      %1134 = vmatmul.mubr.f32.gmra.mrb[0].mxu0 %v478
      %v1135 = vpop.f32.mrb[0].mxu0
      %v1136 = vadd.f32 %v911, %v1135
      %v1137 = vpop.f32.mrb[0].mxu0
      %1138 = vmatprep.mubr.f32.mxu0 0.0
      %1139 = vmatmul.mubr.f32.gmra.mrb[0].mxu0 %v481
      %v1140 = vpop.f32.mrb[0].mxu0
      %v1141 = vadd.f32 %v916, %v1140
      %v1142 = vpop.f32.mrb[0].mxu0
      %1143 = vmatprep.mubr.f32.mxu0 0.0
      %1144 = vmatmul.mubr.f32.gmra.mrb[0].mxu0 %v484
      %v1145 = vpop.f32.mrb[0].mxu0
      %v1146 = vadd.f32 %v921, %v1145
      %v1147 = vpop.f32.mrb[0].mxu0
      %1148 = vmatprep.mubr.f32.mxu0 0.0
      %1149 = vmatmul.mubr.f32.gmra.mrb[0].mxu0 %v487
      %v1150 = vpop.f32.mrb[0].mxu0
      %v1151 = vadd.f32 %v926, %v1150
      %v1152 = vpop.f32.mrb[0].mxu0
      %1153 = vmatprep.mubr.f32.mxu0 0.0
      %1154 = vmatmul.mubr.f32.gmra.mrb[0].mxu0 %v490
      %v1155 = vpop.f32.mrb[0].mxu0
      %v1156 = vadd.f32 %v931, %v1155
      %v1157 = vpop.f32.mrb[0].mxu0
      %1158 = vmatprep.mubr.f32.mxu0 0.0
      %1159 = vmatmul.mubr.f32.gmra.mrb[0].mxu0 %v493
      %v1160 = vpop.f32.mrb[0].mxu0
      %v1161 = vadd.f32 %v936, %v1160
      %v1162 = vpop.f32.mrb[0].mxu0
      %1163 = vmatprep.mubr.f32.mxu0 0.0
      %1164 = vmatmul.mubr.f32.gmra.mrb[0].mxu0 %v496
      %v1165 = vpop.f32.mrb[0].mxu0
      %v1166 = vadd.f32 %v941, %v1165
      %v1167 = vpop.f32.mrb[0].mxu0
      %1168 = vmatprep.mubr.f32.mxu0 0.0
      %1169 = vmatmul.mubr.f32.gmra.mrb[0].mxu0 %v499
      %v1170 = vpop.f32.mrb[0].mxu0
      %v1171 = vadd.f32 %v946, %v1170
      %v1172 = vpop.f32.mrb[0].mxu0
      %1173 = vmatprep.mubr.f32.mxu0 0.0
      %1174 = vmatmul.mubr.f32.gmra.mrb[0].mxu0 %v502
      %v1175 = vpop.f32.mrb[0].mxu0
      %v1176 = vadd.f32 %v951, %v1175
      %v1177 = vpop.f32.mrb[0].mxu0
      %1178 = vdwg.mxu0
      %1179 = vst.msk [vmem:[%s173] sm:$0xff] %vm407, %v1021
      %1180 = vst.msk [vmem:[%s173 + $0x8] sm:$0xff] %vm407, %v1026
      %1181 = vst.msk [vmem:[%s173 + $0x10] sm:$0xff] %vm407, %v1031
      %1182 = vst.msk [vmem:[%s173 + $0x18] sm:$0xff] %vm407, %v1036
      %1183 = vst.msk [vmem:[%s173 + $0x20] sm:$0xff] %vm407, %v1041
      %1184 = vst.msk [vmem:[%s173 + $0x28] sm:$0xff] %vm407, %v1046
      %1185 = vst.msk [vmem:[%s173 + $0x30] sm:$0xff] %vm407, %v1051
      %1186 = vst.msk [vmem:[%s173 + $0x38] sm:$0xff] %vm407, %v1056
      %1187 = vst.msk [vmem:[%s173 + $0x40] sm:$0xff] %vm407, %v1061
      %1188 = vst.msk [vmem:[%s173 + $0x48] sm:$0xff] %vm407, %v1066
      %1189 = vst.msk [vmem:[%s173 + $0x50] sm:$0xff] %vm407, %v1071
      %1190 = vst.msk [vmem:[%s173 + $0x58] sm:$0xff] %vm407, %v1076
      %1191 = vst.msk [vmem:[%s173 + $0x60] sm:$0xff] %vm407, %v1081
      %1192 = vst.msk [vmem:[%s173 + $0x68] sm:$0xff] %vm407, %v1086
      %1193 = vst.msk [vmem:[%s173 + $0x70] sm:$0xff] %vm407, %v1091
      %1194 = vst.msk [vmem:[%s173 + $0x78] sm:$0xff] %vm407, %v1096
      %1195 = vst.msk [vmem:[%s173 + $0x80] sm:$0xff] %vm407, %v1101
      %1196 = vst.msk [vmem:[%s173 + $0x88] sm:$0xff] %vm407, %v1106
      %1197 = vst.msk [vmem:[%s173 + $0x90] sm:$0xff] %vm407, %v1111
      %1198 = vst.msk [vmem:[%s173 + $0x98] sm:$0xff] %vm407, %v1116
      %1199 = vst.msk [vmem:[%s173 + $0xa0] sm:$0xff] %vm407, %v1121
      %1200 = vst.msk [vmem:[%s173 + $0xa8] sm:$0xff] %vm407, %v1126
      %1201 = vst.msk [vmem:[%s173 + $0xb0] sm:$0xff] %vm407, %v1131
      %1202 = vst.msk [vmem:[%s173 + $0xb8] sm:$0xff] %vm407, %v1136
      %1203 = vst.msk [vmem:[%s173 + $0xc0] sm:$0xff] %vm407, %v1141
      %1204 = vst.msk [vmem:[%s173 + $0xc8] sm:$0xff] %vm407, %v1146
      %1205 = vst.msk [vmem:[%s173 + $0xd0] sm:$0xff] %vm407, %v1151
      %1206 = vst.msk [vmem:[%s173 + $0xd8] sm:$0xff] %vm407, %v1156
      %1207 = vst.msk [vmem:[%s173 + $0xe0] sm:$0xff] %vm407, %v1161
      %1208 = vst.msk [vmem:[%s173 + $0xe8] sm:$0xff] %vm407, %v1166
      %1209 = vst.msk [vmem:[%s173 + $0xf0] sm:$0xff] %vm407, %v1171
      %1210 = vst.msk [vmem:[%s173 + $0xf8] sm:$0xff] %vm407, %v1176
      %p1211 = scmp.eq.s32.totalorder %s15, 0
      // Predicated region
      $region29: #{encoder_conv_com.22} parent=27 // pred_check
        %p1212 = pneg %p1211
      $region30: #{encoder_conv_com.22} parent=27 // pred_check_branch
        %1214 = sbr.rel (%p1212) target = $region32
      $region31: #{encoder_conv_com.22} parent=27 // pred_region
        %vm1215 = vcmask 517120
        %1216 = vst.msk [vmem:[%s3] sm:$0x3] %vm1215, 0.0
      $region32: #{encoder_conv_com.22} parent=27 // pred_fallthru
        _
      %v1217 = vld [vmem:[%s3] sm:$0x3]
      %v1218 = vsel %vm407, %v1021, 0.0
      %v1219 = vsel %vm407, %v1026, 0.0
      %v1220 = vadd.f32 %v1218, %v1219
      %v1221 = vsel %vm407, %v1031, 0.0
      %v1222 = vadd.f32 %v1220, %v1221
      %v1223 = vsel %vm407, %v1036, 0.0
      %v1224 = vadd.f32 %v1222, %v1223
      %v1225 = vsel %vm407, %v1041, 0.0
      %v1226 = vadd.f32 %v1224, %v1225
      %v1227 = vsel %vm407, %v1046, 0.0
      %v1228 = vadd.f32 %v1226, %v1227
      %v1229 = vsel %vm407, %v1051, 0.0
      %v1230 = vadd.f32 %v1228, %v1229
      %v1231 = vsel %vm407, %v1056, 0.0
      %v1232 = vadd.f32 %v1230, %v1231
      %v1233 = vsel %vm407, %v1061, 0.0
      %v1234 = vadd.f32 %v1232, %v1233
      %v1235 = vsel %vm407, %v1066, 0.0
      %v1236 = vadd.f32 %v1234, %v1235
      %v1237 = vsel %vm407, %v1071, 0.0
      %v1238 = vadd.f32 %v1236, %v1237
      %v1239 = vsel %vm407, %v1076, 0.0
      %v1240 = vadd.f32 %v1238, %v1239
      %v1241 = vsel %vm407, %v1081, 0.0
      %v1242 = vadd.f32 %v1240, %v1241
      %v1243 = vsel %vm407, %v1086, 0.0
      %v1244 = vadd.f32 %v1242, %v1243
      %v1245 = vsel %vm407, %v1091, 0.0
      %v1246 = vadd.f32 %v1244, %v1245
      %v1247 = vsel %vm407, %v1096, 0.0
      %v1248 = vadd.f32 %v1246, %v1247
      %v1249 = vsel %vm407, %v1101, 0.0
      %v1250 = vadd.f32 %v1248, %v1249
      %v1251 = vsel %vm407, %v1106, 0.0
      %v1252 = vadd.f32 %v1250, %v1251
      %v1253 = vsel %vm407, %v1111, 0.0
      %v1254 = vadd.f32 %v1252, %v1253
      %v1255 = vsel %vm407, %v1116, 0.0
      %v1256 = vadd.f32 %v1254, %v1255
      %v1257 = vsel %vm407, %v1121, 0.0
      %v1258 = vadd.f32 %v1256, %v1257
      %v1259 = vsel %vm407, %v1126, 0.0
      %v1260 = vadd.f32 %v1258, %v1259
      %v1261 = vsel %vm407, %v1131, 0.0
      %v1262 = vadd.f32 %v1260, %v1261
      %v1263 = vsel %vm407, %v1136, 0.0
      %v1264 = vadd.f32 %v1262, %v1263
      %v1265 = vsel %vm407, %v1141, 0.0
      %v1266 = vadd.f32 %v1264, %v1265
      %v1267 = vsel %vm407, %v1146, 0.0
      %v1268 = vadd.f32 %v1266, %v1267
      %v1269 = vsel %vm407, %v1151, 0.0
      %v1270 = vadd.f32 %v1268, %v1269
      %v1271 = vsel %vm407, %v1156, 0.0
      %v1272 = vadd.f32 %v1270, %v1271
      %v1273 = vsel %vm407, %v1161, 0.0
      %v1274 = vadd.f32 %v1272, %v1273
      %v1275 = vsel %vm407, %v1166, 0.0
      %v1276 = vadd.f32 %v1274, %v1275
      %v1277 = vsel %vm407, %v1171, 0.0
      %v1278 = vadd.f32 %v1276, %v1277
      %v1279 = vsel %vm407, %v1176, 0.0
      %v1280 = vadd.f32 %v1278, %v1279
      %v1281 = vrot.slane %v1280, 4
      %v1282 = vadd.f32 %v1280, %v1281
      %v1283 = vrot.slane %v1282, 2
      %v1284 = vadd.f32 %v1282, %v1283
      %v1285 = vrot.slane %v1284, 1
      %v1286 = vadd.f32 %v1284, %v1285
      %v1287 = vmul.f32 %v1021, %v1021
      %v1288 = vmul.f32 %v1026, %v1026
      %v1289 = vmul.f32 %v1031, %v1031
      %v1290 = vmul.f32 %v1036, %v1036
      %v1291 = vmul.f32 %v1041, %v1041
      %v1292 = vmul.f32 %v1046, %v1046
      %v1293 = vmul.f32 %v1051, %v1051
      %v1294 = vmul.f32 %v1056, %v1056
      %v1295 = vmul.f32 %v1061, %v1061
      %v1296 = vmul.f32 %v1066, %v1066
      %v1297 = vmul.f32 %v1071, %v1071
      %v1298 = vmul.f32 %v1076, %v1076
      %v1299 = vmul.f32 %v1081, %v1081
      %v1300 = vmul.f32 %v1086, %v1086
      %v1301 = vmul.f32 %v1091, %v1091
      %v1302 = vmul.f32 %v1096, %v1096
      %v1303 = vmul.f32 %v1101, %v1101
      %v1304 = vmul.f32 %v1106, %v1106
      %v1305 = vmul.f32 %v1111, %v1111
      %v1306 = vmul.f32 %v1116, %v1116
      %v1307 = vmul.f32 %v1121, %v1121
      %v1308 = vmul.f32 %v1126, %v1126
      %v1309 = vmul.f32 %v1131, %v1131
      %v1310 = vmul.f32 %v1136, %v1136
      %v1311 = vmul.f32 %v1141, %v1141
      %v1312 = vmul.f32 %v1146, %v1146
      %v1313 = vmul.f32 %v1151, %v1151
      %v1314 = vmul.f32 %v1156, %v1156
      %v1315 = vmul.f32 %v1161, %v1161
      %v1316 = vmul.f32 %v1166, %v1166
      %v1317 = vmul.f32 %v1171, %v1171
      %v1318 = vmul.f32 %v1176, %v1176
      %v1319 = vsel %vm407, %v1287, 0.0
      %v1320 = vsel %vm407, %v1288, 0.0
      %v1321 = vadd.f32 %v1319, %v1320
      %v1322 = vsel %vm407, %v1289, 0.0
      %v1323 = vadd.f32 %v1321, %v1322
      %v1324 = vsel %vm407, %v1290, 0.0
      %v1325 = vadd.f32 %v1323, %v1324
      %v1326 = vsel %vm407, %v1291, 0.0
      %v1327 = vadd.f32 %v1325, %v1326
      %v1328 = vsel %vm407, %v1292, 0.0
      %v1329 = vadd.f32 %v1327, %v1328
      %v1330 = vsel %vm407, %v1293, 0.0
      %v1331 = vadd.f32 %v1329, %v1330
      %v1332 = vsel %vm407, %v1294, 0.0
      %v1333 = vadd.f32 %v1331, %v1332
      %v1334 = vsel %vm407, %v1295, 0.0
      %v1335 = vadd.f32 %v1333, %v1334
      %v1336 = vsel %vm407, %v1296, 0.0
      %v1337 = vadd.f32 %v1335, %v1336
      %v1338 = vsel %vm407, %v1297, 0.0
      %v1339 = vadd.f32 %v1337, %v1338
      %v1340 = vsel %vm407, %v1298, 0.0
      %v1341 = vadd.f32 %v1339, %v1340
      %v1342 = vsel %vm407, %v1299, 0.0
      %v1343 = vadd.f32 %v1341, %v1342
      %v1344 = vsel %vm407, %v1300, 0.0
      %v1345 = vadd.f32 %v1343, %v1344
      %v1346 = vsel %vm407, %v1301, 0.0
      %v1347 = vadd.f32 %v1345, %v1346
      %v1348 = vsel %vm407, %v1302, 0.0
      %v1349 = vadd.f32 %v1347, %v1348
      %v1350 = vsel %vm407, %v1303, 0.0
      %v1351 = vadd.f32 %v1349, %v1350
      %v1352 = vsel %vm407, %v1304, 0.0
      %v1353 = vadd.f32 %v1351, %v1352
      %v1354 = vsel %vm407, %v1305, 0.0
      %v1355 = vadd.f32 %v1353, %v1354
      %v1356 = vsel %vm407, %v1306, 0.0
      %v1357 = vadd.f32 %v1355, %v1356
      %v1358 = vsel %vm407, %v1307, 0.0
      %v1359 = vadd.f32 %v1357, %v1358
      %v1360 = vsel %vm407, %v1308, 0.0
      %v1361 = vadd.f32 %v1359, %v1360
      %v1362 = vsel %vm407, %v1309, 0.0
      %v1363 = vadd.f32 %v1361, %v1362
      %v1364 = vsel %vm407, %v1310, 0.0
      %v1365 = vadd.f32 %v1363, %v1364
      %v1366 = vsel %vm407, %v1311, 0.0
      %v1367 = vadd.f32 %v1365, %v1366
      %v1368 = vsel %vm407, %v1312, 0.0
      %v1369 = vadd.f32 %v1367, %v1368
      %v1370 = vsel %vm407, %v1313, 0.0
      %v1371 = vadd.f32 %v1369, %v1370
      %v1372 = vsel %vm407, %v1314, 0.0
      %v1373 = vadd.f32 %v1371, %v1372
      %v1374 = vsel %vm407, %v1315, 0.0
      %v1375 = vadd.f32 %v1373, %v1374
      %v1376 = vsel %vm407, %v1316, 0.0
      %v1377 = vadd.f32 %v1375, %v1376
      %v1378 = vsel %vm407, %v1317, 0.0
      %v1379 = vadd.f32 %v1377, %v1378
      %v1380 = vsel %vm407, %v1318, 0.0
      %v1381 = vadd.f32 %v1379, %v1380
      %v1382 = vrot.slane %v1381, 4
      %v1383 = vadd.f32 %v1381, %v1382
      %v1384 = vrot.slane %v1383, 2
      %v1385 = vadd.f32 %v1383, %v1384
      %v1386 = vrot.slane %v1385, 1
      %v1387 = vadd.f32 %v1385, %v1386
      %vm1388 = vcmask 1040384
      %v1389 = vsel %vm1388, %v1286, %v1387
      %v1390 = vadd.f32 %v1217, %v1389
      %vm1391 = vcmask 517120
      %1392 = vst.msk [vmem:[%s3] sm:$0x3] %vm1391, %v1390
      %s1393 = smul.u32 32, %s15
      %p1394 = scmp.lt.s32.totalorder %s1393, 63
      %s1395 = scalar_select %p1394, %s1393, 63
      %s1396 = smul.addr %s1395, 8
      %s1397 = scalar_lea.vmem %s2, %s1396
      // Predicated region
      $region33: #{encoder_conv_com.22} parent=27 // pred_check
        %p1398 = pneg %p80
      $region34: #{encoder_conv_com.22} parent=27 // pred_check_branch
        %1400 = sbr.rel (%p1398) target = $region36
      $region35: #{encoder_conv_com.22} parent=27 // pred_region
        %s1401 = smul.u32 32, %s15
      $region36: #{encoder_conv_com.22} parent=27 // pred_fallthru
        _
      // Predicated region
      $region37: #{encoder_conv_com.22} parent=27 // pred_check
        %p1402 = pneg %p101
      $region38: #{encoder_conv_com.22} parent=27 // pred_check_branch
        %1404 = sbr.rel (%p1402) target = $region40
      $region39: #{encoder_conv_com.22} parent=27 // pred_region
        _
      $region40: #{encoder_conv_com.22} parent=27 // pred_fallthru
        _
      // Predicated region
      $region41: #{encoder_conv_com.22} parent=27 // pred_check
        %p1405 = pneg %p101
      $region42: #{encoder_conv_com.22} parent=27 // pred_check_branch
        %1407 = sbr.rel (%p1405) target = $region44
      $region43: #{encoder_conv_com.22} parent=27 // pred_region
        _
      $region44: #{encoder_conv_com.22} parent=27 // pred_fallthru
        _
    $region28: #{encoder_conv_com.22} parent=5 // pred_fallthru
      _
    %p1408 = scmp.le.s32.totalorder 2, %s10
    // Predicated region
    $region45: #{encoder_conv_com.22} parent=5 // pred_check
      %p1409 = pneg %p1408
    $region46: #{encoder_conv_com.22} parent=5 // pred_check_branch
      %1411 = sbr.rel (%p1409) target = $region48
    $region47: #{encoder_conv_com.22} parent=5 // pred_region
      %s1412 = ssub.s32 %s10, 2
      // Predicated region
      $region49: #{encoder_conv_com.22} parent=47 // pred_check
        %p1413 = pneg %p86
      $region50: #{encoder_conv_com.22} parent=47 // pred_check_branch
        %1415 = sbr.rel (%p1413) target = $region52
      $region51: #{encoder_conv_com.22} parent=47 // pred_region
        %s1416 = smul.u32 32, %s16
        %p1417 = scmp.lt.s32.totalorder %s1416, 63
        %s1418 = scalar_select %p1417, %s1416, 63
        %s1419 = smul.addr %s1418, 8
        %s1420 = scalar_lea.vmem %s2, %s1419
      $region52: #{encoder_conv_com.22} parent=47 // pred_fallthru
        _
    $region48: #{encoder_conv_com.22} parent=5 // pred_fallthru
      _
  $region6: #{encoder_conv_com.22} parent=0 // loop_footer
    %s14 = sadd.s32 1, %s10
  $region7: #{encoder_conv_com.22} parent=0 // loop_footer_branch
    %9 = sbr.rel target = $region3
  $region8: #{encoder_conv_com.22} parent=0 // loop_exit
    _

// kernel: tile.107
$region0: #{tile.107}
  #allocation0 [shape = 's32[1]{0}', space=sflag, size = 0x4, scoped, tag = 'scoped memory for tile.107']
  %s0 = inlined_call_operand.vmem [shape: f32[64], index: 0, kind: input, shape index: {}]
  %s1 = inlined_call_operand.vmem [shape: f32[8,64], index: 1, kind: output, shape index: {}]
  // Predicated region
  $region2: #{tile.107} parent=0 // pred_check
    _
  $region3: #{tile.107} parent=0 // pred_check_branch
    %3 = sbr.rel (0) target = $region5
  $region4: #{tile.107} parent=0 // pred_region
    _
  $region5: #{tile.107} parent=0 // pred_fallthru
    _
  %v4 = vld [vmem:[%s0] ss:$0 sm:$0xff]
  %5 = vst [vmem:[%s1] sm:$0xff] %v4

// kernel: tile.108
$region0: #{tile.108}
  %s0 = inlined_call_operand.vmem [shape: f32[8,64], index: 0, kind: input, shape index: {}]
  %s1 = inlined_call_operand.vmem [shape: f32[1,512], index: 1, kind: output, shape index: {}]
  $region1: #{tile.108} parent=0
    #allocation0 [shape = 'u8[16384]{0}', space=vmem, size = 0x4000, scoped, tag = 'scoped mem for output reshape']
    %v2 = vld [vmem:[%s0] ss:$2 sm:$0xf]
    %vm3 = vcmask 523264
    %4 = vst.msk [vmem:[#allocation0] ss:$8 sm:$0xf] %vm3, %v2
    %s5 = scalar_lea.vmem %s0, 1
    %v6 = vld [vmem:[%s5] ss:$2 sm:$0xf]
    %7 = vrot.lane.b32.xlu0 %v6, 64
    %v8 = vpop.permute.xlu0 %7
    %vm9 = vcmask 1048064
    %10 = vst.msk [vmem:[#allocation0] ss:$8 sm:$0xf] %vm9, %v8
    %s12 = sshllo.u32 0, 1
    %v14 = vld [vmem:[#allocation0] sm:%s12]
    %s15 = sshllo.u32 0, 1
    %16 = vst [vmem:[%s1] sm:%s15] %v14
    %s17 = scalar_lea.vmem [#allocation0], 8
    %v18 = vld [vmem:[%s17] sm:%s12]
    %s19 = sshllo.u32 0, 1
    %s20 = scalar_lea.vmem %s1, 1
    %21 = vst [vmem:[%s20] sm:%s19] %v18
    %s22 = scalar_lea.vmem [#allocation0], 16
    %v23 = vld [vmem:[%s22] sm:%s12]
    %s24 = sshllo.u32 0, 1
    %s25 = smul.addr 1, 2
    %s26 = scalar_lea.vmem %s1, %s25
    %27 = vst [vmem:[%s26] sm:%s24] %v23
    %s28 = scalar_lea.vmem [#allocation0], 24
    %v29 = vld [vmem:[%s28] sm:%s12]
    %s30 = sshllo.u32 0, 1
    %s31 = smul.addr 1, 3
    %s32 = scalar_lea.vmem %s1, %s31
    %33 = vst [vmem:[%s32] sm:%s30] %v29

// kernel: encoder_conv_com.24
$region0: #{encoder_conv_com.24}
  #allocation0 [shape = 'u32[]', space=smem, size = 0x4, offset = 0x4, fixed_abs, tag = 'smem constant byte address 0x4 - core index']
  #allocation1 [shape = 'u32[144,128]{1,0:T(1,128)}', space=vmem, size = 0x12000, scoped, tag = 'internal scratch']
  %s0 = inlined_call_operand.vmem [shape: f32[128,576], index: 0, kind: input, shape index: {}]
  %s1 = inlined_call_operand.vmem [shape: f32[576,64], index: 1, kind: input, shape index: {}]
  %s2 = inlined_call_operand.vmem [shape: f32[128,64], index: 2, kind: output, shape index: {0}]
  %s3 = inlined_call_operand.vmem [shape: f32[2,64], index: 3, kind: output, shape index: {1}]
  %4 = xla_tuple %s2, %s3
  %s5 = sld [smem:[#allocation0]]
  $region30: #{encoder_conv_com.24} parent=0
    _
  %s7 = ssub.s32 1, %s5
  %s8 = scalar_select 0, %s7, %s5
  // Predicated region
  $region2: #{encoder_conv_com.24} parent=0 // pred_check
    _
  $region3: #{encoder_conv_com.24} parent=0 // pred_check_branch
    %10 = sbr.rel (0) target = $region5
  $region4: #{encoder_conv_com.24} parent=0 // pred_region
    _
  $region5: #{encoder_conv_com.24} parent=0 // pred_fallthru
    _
  // Predicated region
  $region6: #{encoder_conv_com.24} parent=0 // pred_check
    _
  $region7: #{encoder_conv_com.24} parent=0 // pred_check_branch
    %12 = sbr.rel (0) target = $region9
  $region8: #{encoder_conv_com.24} parent=0 // pred_region
    _
  $region9: #{encoder_conv_com.24} parent=0 // pred_fallthru
    _
  %v13 = vld [vmem:[%s0] sm:$0xff]
  %v14 = vld [vmem:[%s0 + $0x8] sm:$0xff]
  %v15 = vld [vmem:[%s0 + $0x10] sm:$0xff]
  %v16 = vld [vmem:[%s0 + $0x18] sm:$0xff]
  %v17 = vld [vmem:[%s0 + $0x20] sm:$0xff]
  %v18 = vld [vmem:[%s0 + $0x28] sm:$0xff]
  %v19 = vld [vmem:[%s0 + $0x30] sm:$0xff]
  %v20 = vld [vmem:[%s0 + $0x38] sm:$0xff]
  %v21 = vld [vmem:[%s0 + $0x40] sm:$0xff]
  %v22 = vld [vmem:[%s0 + $0x48] sm:$0xff]
  %v23 = vld [vmem:[%s0 + $0x50] sm:$0xff]
  %v24 = vld [vmem:[%s0 + $0x58] sm:$0xff]
  %v25 = vld [vmem:[%s0 + $0x60] sm:$0xff]
  %v26 = vld [vmem:[%s0 + $0x68] sm:$0xff]
  %v27 = vld [vmem:[%s0 + $0x70] sm:$0xff]
  %v28 = vld [vmem:[%s0 + $0x78] sm:$0xff]
  %v29 = vld [vmem:[%s0 + $0x80] sm:$0xff]
  %v30 = vld [vmem:[%s0 + $0x88] sm:$0xff]
  %v31 = vld [vmem:[%s0 + $0x90] sm:$0xff]
  %v32 = vld [vmem:[%s0 + $0x98] sm:$0xff]
  %v33 = vld [vmem:[%s0 + $0xa0] sm:$0xff]
  %v34 = vld [vmem:[%s0 + $0xa8] sm:$0xff]
  %v35 = vld [vmem:[%s0 + $0xb0] sm:$0xff]
  %v36 = vld [vmem:[%s0 + $0xb8] sm:$0xff]
  %v37 = vld [vmem:[%s0 + $0xc0] sm:$0xff]
  %v38 = vld [vmem:[%s0 + $0xc8] sm:$0xff]
  %v39 = vld [vmem:[%s0 + $0xd0] sm:$0xff]
  %v40 = vld [vmem:[%s0 + $0xd8] sm:$0xff]
  %v41 = vld [vmem:[%s0 + $0xe0] sm:$0xff]
  %v42 = vld [vmem:[%s0 + $0xe8] sm:$0xff]
  %v43 = vld [vmem:[%s0 + $0xf0] sm:$0xff]
  %v44 = vld [vmem:[%s0 + $0xf8] sm:$0xff]
  %v45 = vld [vmem:[%s0 + $0x100] sm:$0xff]
  %v46 = vld [vmem:[%s0 + $0x108] sm:$0xff]
  %v47 = vld [vmem:[%s0 + $0x110] sm:$0xff]
  %v48 = vld [vmem:[%s0 + $0x118] sm:$0xff]
  %v49 = vld [vmem:[%s0 + $0x120] sm:$0xff]
  %v50 = vld [vmem:[%s0 + $0x128] sm:$0xff]
  %v51 = vld [vmem:[%s0 + $0x130] sm:$0xff]
  %v52 = vld [vmem:[%s0 + $0x138] sm:$0xff]
  %v53 = vld [vmem:[%s0 + $0x140] sm:$0xff]
  %v54 = vld [vmem:[%s0 + $0x148] sm:$0xff]
  %v55 = vld [vmem:[%s0 + $0x150] sm:$0xff]
  %v56 = vld [vmem:[%s0 + $0x158] sm:$0xff]
  %v57 = vld [vmem:[%s0 + $0x160] sm:$0xff]
  %v58 = vld [vmem:[%s0 + $0x168] sm:$0xff]
  %v59 = vld [vmem:[%s0 + $0x170] sm:$0xff]
  %v60 = vld [vmem:[%s0 + $0x178] sm:$0xff]
  %v61 = vld [vmem:[%s0 + $0x180] sm:$0xff]
  %v62 = vld [vmem:[%s0 + $0x188] sm:$0xff]
  %v63 = vld [vmem:[%s0 + $0x190] sm:$0xff]
  %v64 = vld [vmem:[%s0 + $0x198] sm:$0xff]
  %v65 = vld [vmem:[%s0 + $0x1a0] sm:$0xff]
  %v66 = vld [vmem:[%s0 + $0x1a8] sm:$0xff]
  %v67 = vld [vmem:[%s0 + $0x1b0] sm:$0xff]
  %v68 = vld [vmem:[%s0 + $0x1b8] sm:$0xff]
  %v69 = vld [vmem:[%s0 + $0x1c0] sm:$0xff]
  %v70 = vld [vmem:[%s0 + $0x1c8] sm:$0xff]
  %v71 = vld [vmem:[%s0 + $0x1d0] sm:$0xff]
  %v72 = vld [vmem:[%s0 + $0x1d8] sm:$0xff]
  %v73 = vld [vmem:[%s0 + $0x1e0] sm:$0xff]
  %v74 = vld [vmem:[%s0 + $0x1e8] sm:$0xff]
  %v75 = vld [vmem:[%s0 + $0x1f0] sm:$0xff]
  %v76 = vld [vmem:[%s0 + $0x1f8] sm:$0xff]
  %v77 = vld [vmem:[%s0 + $0x200] sm:$0xff]
  %v78 = vld [vmem:[%s0 + $0x208] sm:$0xff]
  %v79 = vld [vmem:[%s0 + $0x210] sm:$0xff]
  %v80 = vld [vmem:[%s0 + $0x218] sm:$0xff]
  %v81 = vld [vmem:[%s0 + $0x220] sm:$0xff]
  %v82 = vld [vmem:[%s0 + $0x228] sm:$0xff]
  %v83 = vld [vmem:[%s0 + $0x230] sm:$0xff]
  %v84 = vld [vmem:[%s0 + $0x238] sm:$0xff]
  %v85 = vld [vmem:[%s0 + $0x240] sm:$0xff]
  %v86 = vld [vmem:[%s0 + $0x248] sm:$0xff]
  %v87 = vld [vmem:[%s0 + $0x250] sm:$0xff]
  %v88 = vld [vmem:[%s0 + $0x258] sm:$0xff]
  %v89 = vld [vmem:[%s0 + $0x260] sm:$0xff]
  %v90 = vld [vmem:[%s0 + $0x268] sm:$0xff]
  %v91 = vld [vmem:[%s0 + $0x270] sm:$0xff]
  %v92 = vld [vmem:[%s0 + $0x278] sm:$0xff]
  %v93 = vld [vmem:[%s1] sm:$0xff]
  %v94 = vld [vmem:[%s1 + $0x8] sm:$0xff]
  %v95 = vld [vmem:[%s1 + $0x10] sm:$0xff]
  %v96 = vld [vmem:[%s1 + $0x18] sm:$0xff]
  %v97 = vld [vmem:[%s1 + $0x20] sm:$0xff]
  %v98 = vld [vmem:[%s1 + $0x28] sm:$0xff]
  %v99 = vld [vmem:[%s1 + $0x30] sm:$0xff]
  %v100 = vld [vmem:[%s1 + $0x38] sm:$0xff]
  %v101 = vld [vmem:[%s1 + $0x40] sm:$0xff]
  %v102 = vld [vmem:[%s1 + $0x48] sm:$0xff]
  %v103 = vld [vmem:[%s1 + $0x50] sm:$0xff]
  %v104 = vld [vmem:[%s1 + $0x58] sm:$0xff]
  %v105 = vld [vmem:[%s1 + $0x60] sm:$0xff]
  %v106 = vld [vmem:[%s1 + $0x68] sm:$0xff]
  %v107 = vld [vmem:[%s1 + $0x70] sm:$0xff]
  %v108 = vld [vmem:[%s1 + $0x78] sm:$0xff]
  %v109 = vld [vmem:[%s1 + $0x80] sm:$0xff]
  %v110 = vld [vmem:[%s1 + $0x88] sm:$0xff]
  %v111 = vld [vmem:[%s1 + $0x90] sm:$0xff]
  %v112 = vld [vmem:[%s1 + $0x98] sm:$0xff]
  %v113 = vld [vmem:[%s1 + $0xa0] sm:$0xff]
  %v114 = vld [vmem:[%s1 + $0xa8] sm:$0xff]
  %v115 = vld [vmem:[%s1 + $0xb0] sm:$0xff]
  %v116 = vld [vmem:[%s1 + $0xb8] sm:$0xff]
  %v117 = vld [vmem:[%s1 + $0xc0] sm:$0xff]
  %v118 = vld [vmem:[%s1 + $0xc8] sm:$0xff]
  %v119 = vld [vmem:[%s1 + $0xd0] sm:$0xff]
  %v120 = vld [vmem:[%s1 + $0xd8] sm:$0xff]
  %v121 = vld [vmem:[%s1 + $0xe0] sm:$0xff]
  %v122 = vld [vmem:[%s1 + $0xe8] sm:$0xff]
  %v123 = vld [vmem:[%s1 + $0xf0] sm:$0xff]
  %v124 = vld [vmem:[%s1 + $0xf8] sm:$0xff]
  %v125 = vld [vmem:[%s1 + $0x100] sm:$0xff]
  %v126 = vld [vmem:[%s1 + $0x108] sm:$0xff]
  %v127 = vld [vmem:[%s1 + $0x110] sm:$0xff]
  %v128 = vld [vmem:[%s1 + $0x118] sm:$0xff]
  %v129 = vld [vmem:[%s1 + $0x120] sm:$0xff]
  %v130 = vld [vmem:[%s1 + $0x128] sm:$0xff]
  %v131 = vld [vmem:[%s1 + $0x130] sm:$0xff]
  %v132 = vld [vmem:[%s1 + $0x138] sm:$0xff]
  %v133 = vld [vmem:[%s1 + $0x140] sm:$0xff]
  %v134 = vld [vmem:[%s1 + $0x148] sm:$0xff]
  %v135 = vld [vmem:[%s1 + $0x150] sm:$0xff]
  %v136 = vld [vmem:[%s1 + $0x158] sm:$0xff]
  %v137 = vld [vmem:[%s1 + $0x160] sm:$0xff]
  %v138 = vld [vmem:[%s1 + $0x168] sm:$0xff]
  %v139 = vld [vmem:[%s1 + $0x170] sm:$0xff]
  %v140 = vld [vmem:[%s1 + $0x178] sm:$0xff]
  %v141 = vld [vmem:[%s1 + $0x180] sm:$0xff]
  %v142 = vld [vmem:[%s1 + $0x188] sm:$0xff]
  %v143 = vld [vmem:[%s1 + $0x190] sm:$0xff]
  %v144 = vld [vmem:[%s1 + $0x198] sm:$0xff]
  %v145 = vld [vmem:[%s1 + $0x1a0] sm:$0xff]
  %v146 = vld [vmem:[%s1 + $0x1a8] sm:$0xff]
  %v147 = vld [vmem:[%s1 + $0x1b0] sm:$0xff]
  %v148 = vld [vmem:[%s1 + $0x1b8] sm:$0xff]
  %v149 = vld [vmem:[%s1 + $0x1c0] sm:$0xff]
  %v150 = vld [vmem:[%s1 + $0x1c8] sm:$0xff]
  %v151 = vld [vmem:[%s1 + $0x1d0] sm:$0xff]
  %v152 = vld [vmem:[%s1 + $0x1d8] sm:$0xff]
  %v153 = vld [vmem:[%s1 + $0x1e0] sm:$0xff]
  %v154 = vld [vmem:[%s1 + $0x1e8] sm:$0xff]
  %v155 = vld [vmem:[%s1 + $0x1f0] sm:$0xff]
  %v156 = vld [vmem:[%s1 + $0x1f8] sm:$0xff]
  %v157 = vld [vmem:[%s1 + $0x200] sm:$0xff]
  %v158 = vld [vmem:[%s1 + $0x208] sm:$0xff]
  %v159 = vld [vmem:[%s1 + $0x210] sm:$0xff]
  %v160 = vld [vmem:[%s1 + $0x218] sm:$0xff]
  %v161 = vld [vmem:[%s1 + $0x220] sm:$0xff]
  %v162 = vld [vmem:[%s1 + $0x228] sm:$0xff]
  %v163 = vld [vmem:[%s1 + $0x230] sm:$0xff]
  %v164 = vld [vmem:[%s1 + $0x238] sm:$0xff]
  %vm165 = vcmask 523264
  %v167 = vsel %vm165, %v17, 0
  %v170 = vsel %vm165, %v22, 0
  %v173 = vsel %vm165, %v27, 0
  %v176 = vsel %vm165, %v32, 0
  %v179 = vsel %vm165, %v37, 0
  %v182 = vsel %vm165, %v42, 0
  %v185 = vsel %vm165, %v47, 0
  %v188 = vsel %vm165, %v52, 0
  %v191 = vsel %vm165, %v57, 0
  %v194 = vsel %vm165, %v62, 0
  %v197 = vsel %vm165, %v67, 0
  %v200 = vsel %vm165, %v72, 0
  %v203 = vsel %vm165, %v77, 0
  %v206 = vsel %vm165, %v82, 0
  %v209 = vsel %vm165, %v87, 0
  %v212 = vsel %vm165, %v92, 0
  %214 = vmatprep.subr.mxu0 0.0
  %215 = vmatpush1.msra.mxu0 %v93
  %216 = vmatprep.subr.mxu0 0.0
  %217 = vmatpush1.msra.mxu0 %v94
  %218 = vmatprep.subr.mxu0 0.0
  %219 = vmatpush1.msra.mxu0 %v95
  %220 = vmatprep.subr.mxu0 0.0
  %221 = vmatpush1.msra.mxu0 %v96
  %222 = vmatprep.subr.mxu0 0.0
  %223 = vmatpush1.msra.mxu0 %v97
  %224 = vmatprep.subr.mxu0 0.0
  %225 = vmatpush1.msra.mxu0 %v98
  %226 = vmatprep.subr.mxu0 0.0
  %227 = vmatpush1.msra.mxu0 %v99
  %228 = vmatprep.subr.mxu0 0.0
  %229 = vmatpush1.msra.mxu0 %v100
  %230 = vmatprep.subr.mxu0 0.0
  %231 = vmatpush1.msra.mxu0 %v101
  %232 = vmatprep.subr.mxu0 0.0
  %233 = vmatpush1.msra.mxu0 %v102
  %234 = vmatprep.subr.mxu0 0.0
  %235 = vmatpush1.msra.mxu0 %v103
  %236 = vmatprep.subr.mxu0 0.0
  %237 = vmatpush1.msra.mxu0 %v104
  %238 = vmatprep.subr.mxu0 0.0
  %239 = vmatpush1.msra.mxu0 %v105
  %240 = vmatprep.subr.mxu0 0.0
  %241 = vmatpush1.msra.mxu0 %v106
  %242 = vmatprep.subr.mxu0 0.0
  %243 = vmatpush1.msra.mxu0 %v107
  %244 = vmatprep.subr.mxu0 0.0
  %245 = vmatpush1.msra.mxu0 %v108
  %246 = vmatprep.subr.mxu0 0.0
  %247 = vmatpush1.msra.mxu0 %v109
  %248 = vmatprep.subr.mxu0 0.0
  %249 = vmatpush1.msra.mxu0 %v110
  %250 = vmatprep.subr.mxu0 0.0
  %251 = vmatpush1.msra.mxu0 %v111
  %252 = vmatprep.subr.mxu0 0.0
  %253 = vmatpush1.msra.mxu0 %v112
  %254 = vmatprep.subr.mxu0 0.0
  %255 = vmatpush1.msra.mxu0 %v113
  %256 = vmatprep.subr.mxu0 0.0
  %257 = vmatpush1.msra.mxu0 %v114
  %258 = vmatprep.subr.mxu0 0.0
  %259 = vmatpush1.msra.mxu0 %v115
  %260 = vmatprep.subr.mxu0 0.0
  %261 = vmatpush1.msra.mxu0 %v116
  %262 = vmatprep.subr.mxu0 0.0
  %263 = vmatpush1.msra.mxu0 %v117
  %264 = vmatprep.subr.mxu0 0.0
  %265 = vmatpush1.msra.mxu0 %v118
  %266 = vmatprep.subr.mxu0 0.0
  %267 = vmatpush1.msra.mxu0 %v119
  %268 = vmatprep.subr.mxu0 0.0
  %269 = vmatpush1.msra.mxu0 %v120
  %270 = vmatprep.subr.mxu0 0.0
  %271 = vmatpush1.msra.mxu0 %v121
  %272 = vmatprep.subr.mxu0 0.0
  %273 = vmatpush1.msra.mxu0 %v122
  %274 = vmatprep.subr.mxu0 0.0
  %275 = vmatpush1.msra.mxu0 %v123
  %276 = vmatprep.subr.mxu0 0.0
  %277 = vmatpush1.msra.mxu0 %v124
  %278 = vmatprep.mubr.f32.mxu0 %v14
  %279 = vmatmul.mubr.f32.gmra.mrb[0].mxu0 %v13
  %v280 = vpop.f32.mrb[0].mxu0
  %v281 = vadd.f32 0.0, %v280
  %v282 = vpop.f32.mrb[0].mxu0
  %283 = vmatprep.mubr.f32.mxu0 %v19
  %284 = vmatmul.mubr.f32.gmra.mrb[0].mxu0 %v18
  %v285 = vpop.f32.mrb[0].mxu0
  %v286 = vadd.f32 0.0, %v285
  %v287 = vpop.f32.mrb[0].mxu0
  %288 = vmatprep.mubr.f32.mxu0 %v24
  %289 = vmatmul.mubr.f32.gmra.mrb[0].mxu0 %v23
  %v290 = vpop.f32.mrb[0].mxu0
  %v291 = vadd.f32 0.0, %v290
  %v292 = vpop.f32.mrb[0].mxu0
  %293 = vmatprep.mubr.f32.mxu0 %v29
  %294 = vmatmul.mubr.f32.gmra.mrb[0].mxu0 %v28
  %v295 = vpop.f32.mrb[0].mxu0
  %v296 = vadd.f32 0.0, %v295
  %v297 = vpop.f32.mrb[0].mxu0
  %298 = vmatprep.mubr.f32.mxu0 %v34
  %299 = vmatmul.mubr.f32.gmra.mrb[0].mxu0 %v33
  %v300 = vpop.f32.mrb[0].mxu0
  %v301 = vadd.f32 0.0, %v300
  %v302 = vpop.f32.mrb[0].mxu0
  %303 = vmatprep.mubr.f32.mxu0 %v39
  %304 = vmatmul.mubr.f32.gmra.mrb[0].mxu0 %v38
  %v305 = vpop.f32.mrb[0].mxu0
  %v306 = vadd.f32 0.0, %v305
  %v307 = vpop.f32.mrb[0].mxu0
  %308 = vmatprep.mubr.f32.mxu0 %v44
  %309 = vmatmul.mubr.f32.gmra.mrb[0].mxu0 %v43
  %v310 = vpop.f32.mrb[0].mxu0
  %v311 = vadd.f32 0.0, %v310
  %v312 = vpop.f32.mrb[0].mxu0
  %313 = vmatprep.mubr.f32.mxu0 %v49
  %314 = vmatmul.mubr.f32.gmra.mrb[0].mxu0 %v48
  %v315 = vpop.f32.mrb[0].mxu0
  %v316 = vadd.f32 0.0, %v315
  %v317 = vpop.f32.mrb[0].mxu0
  %318 = vmatprep.mubr.f32.mxu0 %v54
  %319 = vmatmul.mubr.f32.gmra.mrb[0].mxu0 %v53
  %v320 = vpop.f32.mrb[0].mxu0
  %v321 = vadd.f32 0.0, %v320
  %v322 = vpop.f32.mrb[0].mxu0
  %323 = vmatprep.mubr.f32.mxu0 %v59
  %324 = vmatmul.mubr.f32.gmra.mrb[0].mxu0 %v58
  %v325 = vpop.f32.mrb[0].mxu0
  %v326 = vadd.f32 0.0, %v325
  %v327 = vpop.f32.mrb[0].mxu0
  %328 = vmatprep.mubr.f32.mxu0 %v64
  %329 = vmatmul.mubr.f32.gmra.mrb[0].mxu0 %v63
  %v330 = vpop.f32.mrb[0].mxu0
  %v331 = vadd.f32 0.0, %v330
  %v332 = vpop.f32.mrb[0].mxu0
  %333 = vmatprep.mubr.f32.mxu0 %v69
  %334 = vmatmul.mubr.f32.gmra.mrb[0].mxu0 %v68
  %v335 = vpop.f32.mrb[0].mxu0
  %v336 = vadd.f32 0.0, %v335
  %v337 = vpop.f32.mrb[0].mxu0
  %338 = vmatprep.mubr.f32.mxu0 %v74
  %339 = vmatmul.mubr.f32.gmra.mrb[0].mxu0 %v73
  %v340 = vpop.f32.mrb[0].mxu0
  %v341 = vadd.f32 0.0, %v340
  %v342 = vpop.f32.mrb[0].mxu0
  %343 = vmatprep.mubr.f32.mxu0 %v79
  %344 = vmatmul.mubr.f32.gmra.mrb[0].mxu0 %v78
  %v345 = vpop.f32.mrb[0].mxu0
  %v346 = vadd.f32 0.0, %v345
  %v347 = vpop.f32.mrb[0].mxu0
  %348 = vmatprep.mubr.f32.mxu0 %v84
  %349 = vmatmul.mubr.f32.gmra.mrb[0].mxu0 %v83
  %v350 = vpop.f32.mrb[0].mxu0
  %v351 = vadd.f32 0.0, %v350
  %v352 = vpop.f32.mrb[0].mxu0
  %353 = vmatprep.mubr.f32.mxu0 %v89
  %354 = vmatmul.mubr.f32.gmra.mrb[0].mxu0 %v88
  %v355 = vpop.f32.mrb[0].mxu0
  %v356 = vadd.f32 0.0, %v355
  %v357 = vpop.f32.mrb[0].mxu0
  %358 = vdwg.mxu0
  %359 = vmatprep.subr.mxu0 0.0
  %360 = vmatpush1.msra.mxu0 %v125
  %361 = vmatprep.subr.mxu0 0.0
  %362 = vmatpush1.msra.mxu0 %v126
  %363 = vmatprep.subr.mxu0 0.0
  %364 = vmatpush1.msra.mxu0 %v127
  %365 = vmatprep.subr.mxu0 0.0
  %366 = vmatpush1.msra.mxu0 %v128
  %367 = vmatprep.subr.mxu0 0.0
  %368 = vmatpush1.msra.mxu0 %v129
  %369 = vmatprep.subr.mxu0 0.0
  %370 = vmatpush1.msra.mxu0 %v130
  %371 = vmatprep.subr.mxu0 0.0
  %372 = vmatpush1.msra.mxu0 %v131
  %373 = vmatprep.subr.mxu0 0.0
  %374 = vmatpush1.msra.mxu0 %v132
  %375 = vmatprep.subr.mxu0 0.0
  %376 = vmatpush1.msra.mxu0 %v133
  %377 = vmatprep.subr.mxu0 0.0
  %378 = vmatpush1.msra.mxu0 %v134
  %379 = vmatprep.subr.mxu0 0.0
  %380 = vmatpush1.msra.mxu0 %v135
  %381 = vmatprep.subr.mxu0 0.0
  %382 = vmatpush1.msra.mxu0 %v136
  %383 = vmatprep.subr.mxu0 0.0
  %384 = vmatpush1.msra.mxu0 %v137
  %385 = vmatprep.subr.mxu0 0.0
  %386 = vmatpush1.msra.mxu0 %v138
  %387 = vmatprep.subr.mxu0 0.0
  %388 = vmatpush1.msra.mxu0 %v139
  %389 = vmatprep.subr.mxu0 0.0
  %390 = vmatpush1.msra.mxu0 %v140
  %391 = vmatprep.subr.mxu0 0.0
  %392 = vmatpush1.msra.mxu0 %v141
  %393 = vmatprep.subr.mxu0 0.0
  %394 = vmatpush1.msra.mxu0 %v142
  %395 = vmatprep.subr.mxu0 0.0
  %396 = vmatpush1.msra.mxu0 %v143
  %397 = vmatprep.subr.mxu0 0.0
  %398 = vmatpush1.msra.mxu0 %v144
  %399 = vmatprep.subr.mxu0 0.0
  %400 = vmatpush1.msra.mxu0 %v145
  %401 = vmatprep.subr.mxu0 0.0
  %402 = vmatpush1.msra.mxu0 %v146
  %403 = vmatprep.subr.mxu0 0.0
  %404 = vmatpush1.msra.mxu0 %v147
  %405 = vmatprep.subr.mxu0 0.0
  %406 = vmatpush1.msra.mxu0 %v148
  %407 = vmatprep.subr.mxu0 0.0
  %408 = vmatpush1.msra.mxu0 %v149
  %409 = vmatprep.subr.mxu0 0.0
  %410 = vmatpush1.msra.mxu0 %v150
  %411 = vmatprep.subr.mxu0 0.0
  %412 = vmatpush1.msra.mxu0 %v151
  %413 = vmatprep.subr.mxu0 0.0
  %414 = vmatpush1.msra.mxu0 %v152
  %415 = vmatprep.subr.mxu0 0.0
  %416 = vmatpush1.msra.mxu0 %v153
  %417 = vmatprep.subr.mxu0 0.0
  %418 = vmatpush1.msra.mxu0 %v154
  %419 = vmatprep.subr.mxu0 0.0
  %420 = vmatpush1.msra.mxu0 %v155
  %421 = vmatprep.subr.mxu0 0.0
  %422 = vmatpush1.msra.mxu0 %v156
  %423 = vmatprep.mubr.f32.mxu0 %v16
  %424 = vmatmul.mubr.f32.gmra.mrb[0].mxu0 %v15
  %v425 = vpop.f32.mrb[0].mxu0
  %v426 = vadd.f32 %v281, %v425
  %v427 = vpop.f32.mrb[0].mxu0
  %428 = vmatprep.mubr.f32.mxu0 %v21
  %429 = vmatmul.mubr.f32.gmra.mrb[0].mxu0 %v20
  %v430 = vpop.f32.mrb[0].mxu0
  %v431 = vadd.f32 %v286, %v430
  %v432 = vpop.f32.mrb[0].mxu0
  %433 = vmatprep.mubr.f32.mxu0 %v26
  %434 = vmatmul.mubr.f32.gmra.mrb[0].mxu0 %v25
  %v435 = vpop.f32.mrb[0].mxu0
  %v436 = vadd.f32 %v291, %v435
  %v437 = vpop.f32.mrb[0].mxu0
  %438 = vmatprep.mubr.f32.mxu0 %v31
  %439 = vmatmul.mubr.f32.gmra.mrb[0].mxu0 %v30
  %v440 = vpop.f32.mrb[0].mxu0
  %v441 = vadd.f32 %v296, %v440
  %v442 = vpop.f32.mrb[0].mxu0
  %443 = vmatprep.mubr.f32.mxu0 %v36
  %444 = vmatmul.mubr.f32.gmra.mrb[0].mxu0 %v35
  %v445 = vpop.f32.mrb[0].mxu0
  %v446 = vadd.f32 %v301, %v445
  %v447 = vpop.f32.mrb[0].mxu0
  %448 = vmatprep.mubr.f32.mxu0 %v41
  %449 = vmatmul.mubr.f32.gmra.mrb[0].mxu0 %v40
  %v450 = vpop.f32.mrb[0].mxu0
  %v451 = vadd.f32 %v306, %v450
  %v452 = vpop.f32.mrb[0].mxu0
  %453 = vmatprep.mubr.f32.mxu0 %v46
  %454 = vmatmul.mubr.f32.gmra.mrb[0].mxu0 %v45
  %v455 = vpop.f32.mrb[0].mxu0
  %v456 = vadd.f32 %v311, %v455
  %v457 = vpop.f32.mrb[0].mxu0
  %458 = vmatprep.mubr.f32.mxu0 %v51
  %459 = vmatmul.mubr.f32.gmra.mrb[0].mxu0 %v50
  %v460 = vpop.f32.mrb[0].mxu0
  %v461 = vadd.f32 %v316, %v460
  %v462 = vpop.f32.mrb[0].mxu0
  %463 = vmatprep.mubr.f32.mxu0 %v56
  %464 = vmatmul.mubr.f32.gmra.mrb[0].mxu0 %v55
  %v465 = vpop.f32.mrb[0].mxu0
  %v466 = vadd.f32 %v321, %v465
  %v467 = vpop.f32.mrb[0].mxu0
  %468 = vmatprep.mubr.f32.mxu0 %v61
  %469 = vmatmul.mubr.f32.gmra.mrb[0].mxu0 %v60
  %v470 = vpop.f32.mrb[0].mxu0
  %v471 = vadd.f32 %v326, %v470
  %v472 = vpop.f32.mrb[0].mxu0
  %473 = vmatprep.mubr.f32.mxu0 %v66
  %474 = vmatmul.mubr.f32.gmra.mrb[0].mxu0 %v65
  %v475 = vpop.f32.mrb[0].mxu0
  %v476 = vadd.f32 %v331, %v475
  %v477 = vpop.f32.mrb[0].mxu0
  %478 = vmatprep.mubr.f32.mxu0 %v71
  %479 = vmatmul.mubr.f32.gmra.mrb[0].mxu0 %v70
  %v480 = vpop.f32.mrb[0].mxu0
  %v481 = vadd.f32 %v336, %v480
  %v482 = vpop.f32.mrb[0].mxu0
  %483 = vmatprep.mubr.f32.mxu0 %v76
  %484 = vmatmul.mubr.f32.gmra.mrb[0].mxu0 %v75
  %v485 = vpop.f32.mrb[0].mxu0
  %v486 = vadd.f32 %v341, %v485
  %v487 = vpop.f32.mrb[0].mxu0
  %488 = vmatprep.mubr.f32.mxu0 %v81
  %489 = vmatmul.mubr.f32.gmra.mrb[0].mxu0 %v80
  %v490 = vpop.f32.mrb[0].mxu0
  %v491 = vadd.f32 %v346, %v490
  %v492 = vpop.f32.mrb[0].mxu0
  %493 = vmatprep.mubr.f32.mxu0 %v86
  %494 = vmatmul.mubr.f32.gmra.mrb[0].mxu0 %v85
  %v495 = vpop.f32.mrb[0].mxu0
  %v496 = vadd.f32 %v351, %v495
  %v497 = vpop.f32.mrb[0].mxu0
  %498 = vmatprep.mubr.f32.mxu0 %v91
  %499 = vmatmul.mubr.f32.gmra.mrb[0].mxu0 %v90
  %v500 = vpop.f32.mrb[0].mxu0
  %v501 = vadd.f32 %v356, %v500
  %v502 = vpop.f32.mrb[0].mxu0
  %503 = vdwg.mxu0
  %504 = vmatprep.subr.mxu0 0.0
  %505 = vmatpush1.msra.mxu0 %v157
  %506 = vmatprep.subr.mxu0 0.0
  %507 = vmatpush1.msra.mxu0 %v158
  %508 = vmatprep.subr.mxu0 0.0
  %509 = vmatpush1.msra.mxu0 %v159
  %510 = vmatprep.subr.mxu0 0.0
  %511 = vmatpush1.msra.mxu0 %v160
  %512 = vmatprep.subr.mxu0 0.0
  %513 = vmatpush1.msra.mxu0 %v161
  %514 = vmatprep.subr.mxu0 0.0
  %515 = vmatpush1.msra.mxu0 %v162
  %516 = vmatprep.subr.mxu0 0.0
  %517 = vmatpush1.msra.mxu0 %v163
  %518 = vmatprep.subr.mxu0 0.0
  %519 = vmatpush1.msra.mxu0 %v164
  %520 = vmatprep.subr.mxu0 0.0
  %521 = vmatpush1.msra.mxu0 0.0
  %522 = vmatprep.subr.mxu0 0.0
  %523 = vmatpush1.msra.mxu0 0.0
  %524 = vmatprep.subr.mxu0 0.0
  %525 = vmatpush1.msra.mxu0 0.0
  %526 = vmatprep.subr.mxu0 0.0
  %527 = vmatpush1.msra.mxu0 0.0
  %528 = vmatprep.subr.mxu0 0.0
  %529 = vmatpush1.msra.mxu0 0.0
  %530 = vmatprep.subr.mxu0 0.0
  %531 = vmatpush1.msra.mxu0 0.0
  %532 = vmatprep.subr.mxu0 0.0
  %533 = vmatpush1.msra.mxu0 0.0
  %534 = vmatprep.subr.mxu0 0.0
  %535 = vmatpush1.msra.mxu0 0.0
  %536 = vmatprep.subr.mxu0 0.0
  %537 = vmatpush1.msra.mxu0 0.0
  %538 = vmatprep.subr.mxu0 0.0
  %539 = vmatpush1.msra.mxu0 0.0
  %540 = vmatprep.subr.mxu0 0.0
  %541 = vmatpush1.msra.mxu0 0.0
  %542 = vmatprep.subr.mxu0 0.0
  %543 = vmatpush1.msra.mxu0 0.0
  %544 = vmatprep.subr.mxu0 0.0
  %545 = vmatpush1.msra.mxu0 0.0
  %546 = vmatprep.subr.mxu0 0.0
  %547 = vmatpush1.msra.mxu0 0.0
  %548 = vmatprep.subr.mxu0 0.0
  %549 = vmatpush1.msra.mxu0 0.0
  %550 = vmatprep.subr.mxu0 0.0
  %551 = vmatpush1.msra.mxu0 0.0
  %552 = vmatprep.subr.mxu0 0.0
  %553 = vmatpush1.msra.mxu0 0.0
  %554 = vmatprep.subr.mxu0 0.0
  %555 = vmatpush1.msra.mxu0 0.0
  %556 = vmatprep.subr.mxu0 0.0
  %557 = vmatpush1.msra.mxu0 0.0
  %558 = vmatprep.subr.mxu0 0.0
  %559 = vmatpush1.msra.mxu0 0.0
  %560 = vmatprep.subr.mxu0 0.0
  %561 = vmatpush1.msra.mxu0 0.0
  %562 = vmatprep.subr.mxu0 0.0
  %563 = vmatpush1.msra.mxu0 0.0
  %564 = vmatprep.subr.mxu0 0.0
  %565 = vmatpush1.msra.mxu0 0.0
  %566 = vmatprep.subr.mxu0 0.0
  %567 = vmatpush1.msra.mxu0 0.0
  %568 = vmatprep.mubr.f32.mxu0 0.0
  %569 = vmatmul.mubr.f32.gmra.mrb[0].mxu0 %v167
  %v570 = vpop.f32.mrb[0].mxu0
  %v571 = vadd.f32 %v426, %v570
  %v572 = vpop.f32.mrb[0].mxu0
  %573 = vmatprep.mubr.f32.mxu0 0.0
  %574 = vmatmul.mubr.f32.gmra.mrb[0].mxu0 %v170
  %v575 = vpop.f32.mrb[0].mxu0
  %v576 = vadd.f32 %v431, %v575
  %v577 = vpop.f32.mrb[0].mxu0
  %578 = vmatprep.mubr.f32.mxu0 0.0
  %579 = vmatmul.mubr.f32.gmra.mrb[0].mxu0 %v173
  %v580 = vpop.f32.mrb[0].mxu0
  %v581 = vadd.f32 %v436, %v580
  %v582 = vpop.f32.mrb[0].mxu0
  %583 = vmatprep.mubr.f32.mxu0 0.0
  %584 = vmatmul.mubr.f32.gmra.mrb[0].mxu0 %v176
  %v585 = vpop.f32.mrb[0].mxu0
  %v586 = vadd.f32 %v441, %v585
  %v587 = vpop.f32.mrb[0].mxu0
  %588 = vmatprep.mubr.f32.mxu0 0.0
  %589 = vmatmul.mubr.f32.gmra.mrb[0].mxu0 %v179
  %v590 = vpop.f32.mrb[0].mxu0
  %v591 = vadd.f32 %v446, %v590
  %v592 = vpop.f32.mrb[0].mxu0
  %593 = vmatprep.mubr.f32.mxu0 0.0
  %594 = vmatmul.mubr.f32.gmra.mrb[0].mxu0 %v182
  %v595 = vpop.f32.mrb[0].mxu0
  %v596 = vadd.f32 %v451, %v595
  %v597 = vpop.f32.mrb[0].mxu0
  %598 = vmatprep.mubr.f32.mxu0 0.0
  %599 = vmatmul.mubr.f32.gmra.mrb[0].mxu0 %v185
  %v600 = vpop.f32.mrb[0].mxu0
  %v601 = vadd.f32 %v456, %v600
  %v602 = vpop.f32.mrb[0].mxu0
  %603 = vmatprep.mubr.f32.mxu0 0.0
  %604 = vmatmul.mubr.f32.gmra.mrb[0].mxu0 %v188
  %v605 = vpop.f32.mrb[0].mxu0
  %v606 = vadd.f32 %v461, %v605
  %v607 = vpop.f32.mrb[0].mxu0
  %608 = vmatprep.mubr.f32.mxu0 0.0
  %609 = vmatmul.mubr.f32.gmra.mrb[0].mxu0 %v191
  %v610 = vpop.f32.mrb[0].mxu0
  %v611 = vadd.f32 %v466, %v610
  %v612 = vpop.f32.mrb[0].mxu0
  %613 = vmatprep.mubr.f32.mxu0 0.0
  %614 = vmatmul.mubr.f32.gmra.mrb[0].mxu0 %v194
  %v615 = vpop.f32.mrb[0].mxu0
  %v616 = vadd.f32 %v471, %v615
  %v617 = vpop.f32.mrb[0].mxu0
  %618 = vmatprep.mubr.f32.mxu0 0.0
  %619 = vmatmul.mubr.f32.gmra.mrb[0].mxu0 %v197
  %v620 = vpop.f32.mrb[0].mxu0
  %v621 = vadd.f32 %v476, %v620
  %v622 = vpop.f32.mrb[0].mxu0
  %623 = vmatprep.mubr.f32.mxu0 0.0
  %624 = vmatmul.mubr.f32.gmra.mrb[0].mxu0 %v200
  %v625 = vpop.f32.mrb[0].mxu0
  %v626 = vadd.f32 %v481, %v625
  %v627 = vpop.f32.mrb[0].mxu0
  %628 = vmatprep.mubr.f32.mxu0 0.0
  %629 = vmatmul.mubr.f32.gmra.mrb[0].mxu0 %v203
  %v630 = vpop.f32.mrb[0].mxu0
  %v631 = vadd.f32 %v486, %v630
  %v632 = vpop.f32.mrb[0].mxu0
  %633 = vmatprep.mubr.f32.mxu0 0.0
  %634 = vmatmul.mubr.f32.gmra.mrb[0].mxu0 %v206
  %v635 = vpop.f32.mrb[0].mxu0
  %v636 = vadd.f32 %v491, %v635
  %v637 = vpop.f32.mrb[0].mxu0
  %638 = vmatprep.mubr.f32.mxu0 0.0
  %639 = vmatmul.mubr.f32.gmra.mrb[0].mxu0 %v209
  %v640 = vpop.f32.mrb[0].mxu0
  %v641 = vadd.f32 %v496, %v640
  %v642 = vpop.f32.mrb[0].mxu0
  %643 = vmatprep.mubr.f32.mxu0 0.0
  %644 = vmatmul.mubr.f32.gmra.mrb[0].mxu0 %v212
  %v645 = vpop.f32.mrb[0].mxu0
  %v646 = vadd.f32 %v501, %v645
  %v647 = vpop.f32.mrb[0].mxu0
  %648 = vdwg.mxu0
  %649 = vst.msk [vmem:[%s2] sm:$0xff] %vm165, %v571
  %650 = vst.msk [vmem:[%s2 + $0x8] sm:$0xff] %vm165, %v576
  %651 = vst.msk [vmem:[%s2 + $0x10] sm:$0xff] %vm165, %v581
  %652 = vst.msk [vmem:[%s2 + $0x18] sm:$0xff] %vm165, %v586
  %653 = vst.msk [vmem:[%s2 + $0x20] sm:$0xff] %vm165, %v591
  %654 = vst.msk [vmem:[%s2 + $0x28] sm:$0xff] %vm165, %v596
  %655 = vst.msk [vmem:[%s2 + $0x30] sm:$0xff] %vm165, %v601
  %656 = vst.msk [vmem:[%s2 + $0x38] sm:$0xff] %vm165, %v606
  %657 = vst.msk [vmem:[%s2 + $0x40] sm:$0xff] %vm165, %v611
  %658 = vst.msk [vmem:[%s2 + $0x48] sm:$0xff] %vm165, %v616
  %659 = vst.msk [vmem:[%s2 + $0x50] sm:$0xff] %vm165, %v621
  %660 = vst.msk [vmem:[%s2 + $0x58] sm:$0xff] %vm165, %v626
  %661 = vst.msk [vmem:[%s2 + $0x60] sm:$0xff] %vm165, %v631
  %662 = vst.msk [vmem:[%s2 + $0x68] sm:$0xff] %vm165, %v636
  %663 = vst.msk [vmem:[%s2 + $0x70] sm:$0xff] %vm165, %v641
  %664 = vst.msk [vmem:[%s2 + $0x78] sm:$0xff] %vm165, %v646
  %p665 = scmp.eq.s32.totalorder 0, 0
  // Predicated region
  $region10: #{encoder_conv_com.24} parent=0 // pred_check
    %p666 = pneg %p665
  $region11: #{encoder_conv_com.24} parent=0 // pred_check_branch
    %668 = sbr.rel (%p666) target = $region13
  $region12: #{encoder_conv_com.24} parent=0 // pred_region
    %vm669 = vcmask 517120
    %670 = vst.msk [vmem:[%s3] sm:$0x3] %vm669, 0.0
  $region13: #{encoder_conv_com.24} parent=0 // pred_fallthru
    _
  %v671 = vld [vmem:[%s3] sm:$0x3]
  %v672 = vsel %vm165, %v571, 0.0
  %v673 = vsel %vm165, %v576, 0.0
  %v674 = vadd.f32 %v672, %v673
  %v675 = vsel %vm165, %v581, 0.0
  %v676 = vadd.f32 %v674, %v675
  %v677 = vsel %vm165, %v586, 0.0
  %v678 = vadd.f32 %v676, %v677
  %v679 = vsel %vm165, %v591, 0.0
  %v680 = vadd.f32 %v678, %v679
  %v681 = vsel %vm165, %v596, 0.0
  %v682 = vadd.f32 %v680, %v681
  %v683 = vsel %vm165, %v601, 0.0
  %v684 = vadd.f32 %v682, %v683
  %v685 = vsel %vm165, %v606, 0.0
  %v686 = vadd.f32 %v684, %v685
  %v687 = vsel %vm165, %v611, 0.0
  %v688 = vadd.f32 %v686, %v687
  %v689 = vsel %vm165, %v616, 0.0
  %v690 = vadd.f32 %v688, %v689
  %v691 = vsel %vm165, %v621, 0.0
  %v692 = vadd.f32 %v690, %v691
  %v693 = vsel %vm165, %v626, 0.0
  %v694 = vadd.f32 %v692, %v693
  %v695 = vsel %vm165, %v631, 0.0
  %v696 = vadd.f32 %v694, %v695
  %v697 = vsel %vm165, %v636, 0.0
  %v698 = vadd.f32 %v696, %v697
  %v699 = vsel %vm165, %v641, 0.0
  %v700 = vadd.f32 %v698, %v699
  %v701 = vsel %vm165, %v646, 0.0
  %v702 = vadd.f32 %v700, %v701
  %v703 = vrot.slane %v702, 4
  %v704 = vadd.f32 %v702, %v703
  %v705 = vrot.slane %v704, 2
  %v706 = vadd.f32 %v704, %v705
  %v707 = vrot.slane %v706, 1
  %v708 = vadd.f32 %v706, %v707
  %v709 = vmul.f32 %v571, %v571
  %v710 = vmul.f32 %v576, %v576
  %v711 = vmul.f32 %v581, %v581
  %v712 = vmul.f32 %v586, %v586
  %v713 = vmul.f32 %v591, %v591
  %v714 = vmul.f32 %v596, %v596
  %v715 = vmul.f32 %v601, %v601
  %v716 = vmul.f32 %v606, %v606
  %v717 = vmul.f32 %v611, %v611
  %v718 = vmul.f32 %v616, %v616
  %v719 = vmul.f32 %v621, %v621
  %v720 = vmul.f32 %v626, %v626
  %v721 = vmul.f32 %v631, %v631
  %v722 = vmul.f32 %v636, %v636
  %v723 = vmul.f32 %v641, %v641
  %v724 = vmul.f32 %v646, %v646
  %v725 = vsel %vm165, %v709, 0.0
  %v726 = vsel %vm165, %v710, 0.0
  %v727 = vadd.f32 %v725, %v726
  %v728 = vsel %vm165, %v711, 0.0
  %v729 = vadd.f32 %v727, %v728
  %v730 = vsel %vm165, %v712, 0.0
  %v731 = vadd.f32 %v729, %v730
  %v732 = vsel %vm165, %v713, 0.0
  %v733 = vadd.f32 %v731, %v732
  %v734 = vsel %vm165, %v714, 0.0
  %v735 = vadd.f32 %v733, %v734
  %v736 = vsel %vm165, %v715, 0.0
  %v737 = vadd.f32 %v735, %v736
  %v738 = vsel %vm165, %v716, 0.0
  %v739 = vadd.f32 %v737, %v738
  %v740 = vsel %vm165, %v717, 0.0
  %v741 = vadd.f32 %v739, %v740
  %v742 = vsel %vm165, %v718, 0.0
  %v743 = vadd.f32 %v741, %v742
  %v744 = vsel %vm165, %v719, 0.0
  %v745 = vadd.f32 %v743, %v744
  %v746 = vsel %vm165, %v720, 0.0
  %v747 = vadd.f32 %v745, %v746
  %v748 = vsel %vm165, %v721, 0.0
  %v749 = vadd.f32 %v747, %v748
  %v750 = vsel %vm165, %v722, 0.0
  %v751 = vadd.f32 %v749, %v750
  %v752 = vsel %vm165, %v723, 0.0
  %v753 = vadd.f32 %v751, %v752
  %v754 = vsel %vm165, %v724, 0.0
  %v755 = vadd.f32 %v753, %v754
  %v756 = vrot.slane %v755, 4
  %v757 = vadd.f32 %v755, %v756
  %v758 = vrot.slane %v757, 2
  %v759 = vadd.f32 %v757, %v758
  %v760 = vrot.slane %v759, 1
  %v761 = vadd.f32 %v759, %v760
  %vm762 = vcmask 1040384
  %v763 = vsel %vm762, %v708, %v761
  %v764 = vadd.f32 %v671, %v763
  %vm765 = vcmask 517120
  %766 = vst.msk [vmem:[%s3] sm:$0x3] %vm765, %v764
  // Predicated region
  $region14: #{encoder_conv_com.24} parent=0 // pred_check
    _
  $region15: #{encoder_conv_com.24} parent=0 // pred_check_branch
    %768 = sbr.rel (0) target = $region17
  $region16: #{encoder_conv_com.24} parent=0 // pred_region
    _
  $region17: #{encoder_conv_com.24} parent=0 // pred_fallthru
    _
  // Predicated region
  $region18: #{encoder_conv_com.24} parent=0 // pred_check
    _
  $region19: #{encoder_conv_com.24} parent=0 // pred_check_branch
    %770 = sbr.rel (0) target = $region21
  $region20: #{encoder_conv_com.24} parent=0 // pred_region
    _
  $region21: #{encoder_conv_com.24} parent=0 // pred_fallthru
    _
  // Predicated region
  $region22: #{encoder_conv_com.24} parent=0 // pred_check
    _
  $region23: #{encoder_conv_com.24} parent=0 // pred_check_branch
    %772 = sbr.rel (0) target = $region25
  $region24: #{encoder_conv_com.24} parent=0 // pred_region
    _
  $region25: #{encoder_conv_com.24} parent=0 // pred_fallthru
    _
  // Predicated region
  $region26: #{encoder_conv_com.24} parent=0 // pred_check
    _
  $region27: #{encoder_conv_com.24} parent=0 // pred_check_branch
    %774 = sbr.rel (0) target = $region29
  $region28: #{encoder_conv_com.24} parent=0 // pred_region
    _
  $region29: #{encoder_conv_com.24} parent=0 // pred_fallthru
    _

// kernel: encoder_conv_com.25
$region0: #{encoder_conv_com.25}
  #allocation0 [shape = 'u32[]', space=smem, size = 0x4, offset = 0x4, fixed_abs, tag = 'smem constant byte address 0x4 - core index']
  #allocation1 [shape = 'u32[144,128]{1,0:T(1,128)}', space=vmem, size = 0x12000, scoped, tag = 'internal scratch']
  %s0 = inlined_call_operand.vmem [shape: f32[16,512], index: 0, kind: input, shape index: {}]
  %s1 = inlined_call_operand.vmem [shape: f32[1,512], index: 1, kind: input, shape index: {}]
  %s2 = inlined_call_operand.vmem [shape: f32[1,512], index: 2, kind: input, shape index: {}]
  %s3 = inlined_call_operand.vmem [shape: f32[16,512], index: 3, kind: output, shape index: {}]
  %s4 = sld [smem:[#allocation0]]
  $region22: #{encoder_conv_com.25} parent=0
    _
  %s6 = ssub.s32 1, %s4
  %s7 = scalar_select 0, %s6, %s4
  // Predicated region
  $region2: #{encoder_conv_com.25} parent=0 // pred_check
    _
  $region3: #{encoder_conv_com.25} parent=0 // pred_check_branch
    %9 = sbr.rel (0) target = $region5
  $region4: #{encoder_conv_com.25} parent=0 // pred_region
    _
  $region5: #{encoder_conv_com.25} parent=0 // pred_fallthru
    _
  // Predicated region
  $region6: #{encoder_conv_com.25} parent=0 // pred_check
    _
  $region7: #{encoder_conv_com.25} parent=0 // pred_check_branch
    %11 = sbr.rel (0) target = $region9
  $region8: #{encoder_conv_com.25} parent=0 // pred_region
    _
  $region9: #{encoder_conv_com.25} parent=0 // pred_fallthru
    _
  // Predicated region
  $region10: #{encoder_conv_com.25} parent=0 // pred_check
    _
  $region11: #{encoder_conv_com.25} parent=0 // pred_check_branch
    %13 = sbr.rel (0) target = $region13
  $region12: #{encoder_conv_com.25} parent=0 // pred_region
    _
  $region13: #{encoder_conv_com.25} parent=0 // pred_fallthru
    _
  %v14 = vld [vmem:[%s0] sm:$0xff]
  %v15 = vld [vmem:[%s0 + $0x8] sm:$0xff]
  %v16 = vld [vmem:[%s0 + $0x10] sm:$0xff]
  %v17 = vld [vmem:[%s0 + $0x18] sm:$0xff]
  %v18 = vld [vmem:[%s0 + $0x20] sm:$0xff]
  %v19 = vld [vmem:[%s0 + $0x28] sm:$0xff]
  %v20 = vld [vmem:[%s0 + $0x30] sm:$0xff]
  %v21 = vld [vmem:[%s0 + $0x38] sm:$0xff]
  %v22 = vld [vmem:[%s1] sm:$0xf]
  %v24 = vlaneseq
  %v25 = vshrl.u32 %v24, 7
  %v26 = vsub.s32 0, %v25
  %v27 = vrot.slane %v22, %v26
  %v28 = vlaneseq
  %v29 = vshrl.u32 %v28, 7
  %v30 = vsub.s32 1, %v29
  %v31 = vrot.slane %v22, %v30
  %v32 = vlaneseq
  %v33 = vshrl.u32 %v32, 7
  %v34 = vsub.s32 2, %v33
  %v35 = vrot.slane %v22, %v34
  %v36 = vlaneseq
  %v37 = vshrl.u32 %v36, 7
  %v38 = vsub.s32 3, %v37
  %v39 = vrot.slane %v22, %v38
  %v44 = vmul.f32 %v14, %v27
  %v45 = vmul.f32 %v15, %v31
  %v46 = vmul.f32 %v16, %v35
  %v47 = vmul.f32 %v17, %v39
  %v48 = vmul.f32 %v18, %v27
  %v49 = vmul.f32 %v19, %v31
  %v50 = vmul.f32 %v20, %v35
  %v51 = vmul.f32 %v21, %v39
  %v52 = vld [vmem:[%s2] sm:$0xf]
  %v54 = vlaneseq
  %v55 = vshrl.u32 %v54, 7
  %v56 = vsub.s32 0, %v55
  %v57 = vrot.slane %v52, %v56
  %v58 = vlaneseq
  %v59 = vshrl.u32 %v58, 7
  %v60 = vsub.s32 1, %v59
  %v61 = vrot.slane %v52, %v60
  %v62 = vlaneseq
  %v63 = vshrl.u32 %v62, 7
  %v64 = vsub.s32 2, %v63
  %v65 = vrot.slane %v52, %v64
  %v66 = vlaneseq
  %v67 = vshrl.u32 %v66, 7
  %v68 = vsub.s32 3, %v67
  %v69 = vrot.slane %v52, %v68
  %v74 = vadd.f32 %v44, %v57
  %v75 = vadd.f32 %v45, %v61
  %v76 = vadd.f32 %v46, %v65
  %v77 = vadd.f32 %v47, %v69
  %v78 = vadd.f32 %v48, %v57
  %v79 = vadd.f32 %v49, %v61
  %v80 = vadd.f32 %v50, %v65
  %v81 = vadd.f32 %v51, %v69
  %v82 = vmax.f32 %v74, 0.0
  %v83 = vmax.f32 %v75, 0.0
  %v84 = vmax.f32 %v76, 0.0
  %v85 = vmax.f32 %v77, 0.0
  %v86 = vmax.f32 %v78, 0.0
  %v87 = vmax.f32 %v79, 0.0
  %v88 = vmax.f32 %v80, 0.0
  %v89 = vmax.f32 %v81, 0.0
  %90 = vst [vmem:[%s3] sm:$0xff] %v82
  %91 = vst [vmem:[%s3 + $0x8] sm:$0xff] %v83
  %92 = vst [vmem:[%s3 + $0x10] sm:$0xff] %v84
  %93 = vst [vmem:[%s3 + $0x18] sm:$0xff] %v85
  %94 = vst [vmem:[%s3 + $0x20] sm:$0xff] %v86
  %95 = vst [vmem:[%s3 + $0x28] sm:$0xff] %v87
  %96 = vst [vmem:[%s3 + $0x30] sm:$0xff] %v88
  %97 = vst [vmem:[%s3 + $0x38] sm:$0xff] %v89
  // Predicated region
  $region14: #{encoder_conv_com.25} parent=0 // pred_check
    _
  $region15: #{encoder_conv_com.25} parent=0 // pred_check_branch
    %99 = sbr.rel (0) target = $region17
  $region16: #{encoder_conv_com.25} parent=0 // pred_region
    _
  $region17: #{encoder_conv_com.25} parent=0 // pred_fallthru
    _
  // Predicated region
  $region18: #{encoder_conv_com.25} parent=0 // pred_check
    _
  $region19: #{encoder_conv_com.25} parent=0 // pred_check_branch
    %101 = sbr.rel (0) target = $region21
  $region20: #{encoder_conv_com.25} parent=0 // pred_region
    _
  $region21: #{encoder_conv_com.25} parent=0 // pred_fallthru
    _

// kernel: tile.127
$region0: #{tile.127}
  #allocation0 [shape = 's32[1]{0}', space=sflag, size = 0x4, scoped, tag = 'scoped memory for tile.127']
  %s0 = inlined_call_operand.vmem [shape: f32[128], index: 0, kind: input, shape index: {}]
  %s1 = inlined_call_operand.vmem [shape: f32[4,128], index: 1, kind: output, shape index: {}]
  // Predicated region
  $region2: #{tile.127} parent=0 // pred_check
    _
  $region3: #{tile.127} parent=0 // pred_check_branch
    %3 = sbr.rel (0) target = $region5
  $region4: #{tile.127} parent=0 // pred_region
    _
  $region5: #{tile.127} parent=0 // pred_fallthru
    _
  %v4 = vld [vmem:[%s0] ss:$0 sm:$0xff]
  %5 = vst [vmem:[%s1] sm:$0xf] %v4

// kernel: encoder_conv_com.29
$region0: #{encoder_conv_com.29}
  #allocation0 [shape = 'u32[]', space=smem, size = 0x4, offset = 0x4, fixed_abs, tag = 'smem constant byte address 0x4 - core index']
  #allocation1 [shape = 'u32[144,128]{1,0:T(1,128)}', space=vmem, size = 0x12000, scoped, tag = 'internal scratch']
  %s0 = inlined_call_operand.vmem [shape: f32[8,512], index: 0, kind: input, shape index: {}]
  %s1 = inlined_call_operand.vmem [shape: f32[1,512], index: 1, kind: input, shape index: {}]
  %s2 = inlined_call_operand.vmem [shape: f32[1,512], index: 2, kind: input, shape index: {}]
  %s3 = inlined_call_operand.vmem [shape: f32[8,512], index: 3, kind: output, shape index: {}]
  %s4 = sld [smem:[#allocation0]]
  $region22: #{encoder_conv_com.29} parent=0
    _
  %s6 = ssub.s32 1, %s4
  %s7 = scalar_select 0, %s6, %s4
  // Predicated region
  $region2: #{encoder_conv_com.29} parent=0 // pred_check
    _
  $region3: #{encoder_conv_com.29} parent=0 // pred_check_branch
    %9 = sbr.rel (0) target = $region5
  $region4: #{encoder_conv_com.29} parent=0 // pred_region
    _
  $region5: #{encoder_conv_com.29} parent=0 // pred_fallthru
    _
  // Predicated region
  $region6: #{encoder_conv_com.29} parent=0 // pred_check
    _
  $region7: #{encoder_conv_com.29} parent=0 // pred_check_branch
    %11 = sbr.rel (0) target = $region9
  $region8: #{encoder_conv_com.29} parent=0 // pred_region
    _
  $region9: #{encoder_conv_com.29} parent=0 // pred_fallthru
    _
  // Predicated region
  $region10: #{encoder_conv_com.29} parent=0 // pred_check
    _
  $region11: #{encoder_conv_com.29} parent=0 // pred_check_branch
    %13 = sbr.rel (0) target = $region13
  $region12: #{encoder_conv_com.29} parent=0 // pred_region
    _
  $region13: #{encoder_conv_com.29} parent=0 // pred_fallthru
    _
  %v14 = vld [vmem:[%s0] sm:$0xff]
  %v15 = vld [vmem:[%s0 + $0x8] sm:$0xff]
  %v16 = vld [vmem:[%s0 + $0x10] sm:$0xff]
  %v17 = vld [vmem:[%s0 + $0x18] sm:$0xff]
  %v18 = vld [vmem:[%s1] sm:$0xf]
  %v20 = vlaneseq
  %v21 = vshrl.u32 %v20, 7
  %v22 = vsub.s32 0, %v21
  %v23 = vrot.slane %v18, %v22
  %v24 = vlaneseq
  %v25 = vshrl.u32 %v24, 7
  %v26 = vsub.s32 1, %v25
  %v27 = vrot.slane %v18, %v26
  %v28 = vlaneseq
  %v29 = vshrl.u32 %v28, 7
  %v30 = vsub.s32 2, %v29
  %v31 = vrot.slane %v18, %v30
  %v32 = vlaneseq
  %v33 = vshrl.u32 %v32, 7
  %v34 = vsub.s32 3, %v33
  %v35 = vrot.slane %v18, %v34
  %v40 = vmul.f32 %v14, %v23
  %v41 = vmul.f32 %v15, %v27
  %v42 = vmul.f32 %v16, %v31
  %v43 = vmul.f32 %v17, %v35
  %v44 = vld [vmem:[%s2] sm:$0xf]
  %v46 = vlaneseq
  %v47 = vshrl.u32 %v46, 7
  %v48 = vsub.s32 0, %v47
  %v49 = vrot.slane %v44, %v48
  %v50 = vlaneseq
  %v51 = vshrl.u32 %v50, 7
  %v52 = vsub.s32 1, %v51
  %v53 = vrot.slane %v44, %v52
  %v54 = vlaneseq
  %v55 = vshrl.u32 %v54, 7
  %v56 = vsub.s32 2, %v55
  %v57 = vrot.slane %v44, %v56
  %v58 = vlaneseq
  %v59 = vshrl.u32 %v58, 7
  %v60 = vsub.s32 3, %v59
  %v61 = vrot.slane %v44, %v60
  %v66 = vadd.f32 %v40, %v49
  %v67 = vadd.f32 %v41, %v53
  %v68 = vadd.f32 %v42, %v57
  %v69 = vadd.f32 %v43, %v61
  %v70 = vmax.f32 %v66, 0.0
  %v71 = vmax.f32 %v67, 0.0
  %v72 = vmax.f32 %v68, 0.0
  %v73 = vmax.f32 %v69, 0.0
  %74 = vst [vmem:[%s3] sm:$0xff] %v70
  %75 = vst [vmem:[%s3 + $0x8] sm:$0xff] %v71
  %76 = vst [vmem:[%s3 + $0x10] sm:$0xff] %v72
  %77 = vst [vmem:[%s3 + $0x18] sm:$0xff] %v73
  // Predicated region
  $region14: #{encoder_conv_com.29} parent=0 // pred_check
    _
  $region15: #{encoder_conv_com.29} parent=0 // pred_check_branch
    %79 = sbr.rel (0) target = $region17
  $region16: #{encoder_conv_com.29} parent=0 // pred_region
    _
  $region17: #{encoder_conv_com.29} parent=0 // pred_fallthru
    _
  // Predicated region
  $region18: #{encoder_conv_com.29} parent=0 // pred_check
    _
  $region19: #{encoder_conv_com.29} parent=0 // pred_check_branch
    %81 = sbr.rel (0) target = $region21
  $region20: #{encoder_conv_com.29} parent=0 // pred_region
    _
  $region21: #{encoder_conv_com.29} parent=0 // pred_fallthru
    _

// kernel: encoder_conv_com.28
$region0: #{encoder_conv_com.28}
  #allocation0 [shape = 'u32[]', space=smem, size = 0x4, offset = 0x4, fixed_abs, tag = 'smem constant byte address 0x4 - core index']
  #allocation1 [shape = 'u32[144,128]{1,0:T(1,128)}', space=vmem, size = 0x12000, scoped, tag = 'internal scratch']
  %s0 = inlined_call_operand.vmem [shape: f32[32,576], index: 0, kind: input, shape index: {}]
  %s1 = inlined_call_operand.vmem [shape: f32[576,128], index: 1, kind: input, shape index: {}]
  %s2 = inlined_call_operand.vmem [shape: f32[32,128], index: 2, kind: output, shape index: {0}]
  %s3 = inlined_call_operand.vmem [shape: f32[2,128], index: 3, kind: output, shape index: {1}]
  %4 = xla_tuple %s2, %s3
  %s5 = sld [smem:[#allocation0]]
  $region30: #{encoder_conv_com.28} parent=0
    _
  %s7 = ssub.s32 1, %s5
  %s8 = scalar_select 0, %s7, %s5
  // Predicated region
  $region2: #{encoder_conv_com.28} parent=0 // pred_check
    _
  $region3: #{encoder_conv_com.28} parent=0 // pred_check_branch
    %10 = sbr.rel (0) target = $region5
  $region4: #{encoder_conv_com.28} parent=0 // pred_region
    _
  $region5: #{encoder_conv_com.28} parent=0 // pred_fallthru
    _
  // Predicated region
  $region6: #{encoder_conv_com.28} parent=0 // pred_check
    _
  $region7: #{encoder_conv_com.28} parent=0 // pred_check_branch
    %12 = sbr.rel (0) target = $region9
  $region8: #{encoder_conv_com.28} parent=0 // pred_region
    _
  $region9: #{encoder_conv_com.28} parent=0 // pred_fallthru
    _
  %v13 = vld [vmem:[%s0] sm:$0xff]
  %v14 = vld [vmem:[%s0 + $0x8] sm:$0xff]
  %v15 = vld [vmem:[%s0 + $0x10] sm:$0xff]
  %v16 = vld [vmem:[%s0 + $0x18] sm:$0xff]
  %v17 = vld [vmem:[%s0 + $0x20] sm:$0xff]
  %v18 = vld [vmem:[%s0 + $0x28] sm:$0xff]
  %v19 = vld [vmem:[%s0 + $0x30] sm:$0xff]
  %v20 = vld [vmem:[%s0 + $0x38] sm:$0xff]
  %v21 = vld [vmem:[%s0 + $0x40] sm:$0xff]
  %v22 = vld [vmem:[%s0 + $0x48] sm:$0xff]
  %v23 = vld [vmem:[%s0 + $0x50] sm:$0xff]
  %v24 = vld [vmem:[%s0 + $0x58] sm:$0xff]
  %v25 = vld [vmem:[%s0 + $0x60] sm:$0xff]
  %v26 = vld [vmem:[%s0 + $0x68] sm:$0xff]
  %v27 = vld [vmem:[%s0 + $0x70] sm:$0xff]
  %v28 = vld [vmem:[%s0 + $0x78] sm:$0xff]
  %v29 = vld [vmem:[%s0 + $0x80] sm:$0xff]
  %v30 = vld [vmem:[%s0 + $0x88] sm:$0xff]
  %v31 = vld [vmem:[%s0 + $0x90] sm:$0xff]
  %v32 = vld [vmem:[%s0 + $0x98] sm:$0xff]
  %v33 = vld [vmem:[%s1] sm:$0xff]
  %v34 = vld [vmem:[%s1 + $0x8] sm:$0xff]
  %v35 = vld [vmem:[%s1 + $0x10] sm:$0xff]
  %v36 = vld [vmem:[%s1 + $0x18] sm:$0xff]
  %v37 = vld [vmem:[%s1 + $0x20] sm:$0xff]
  %v38 = vld [vmem:[%s1 + $0x28] sm:$0xff]
  %v39 = vld [vmem:[%s1 + $0x30] sm:$0xff]
  %v40 = vld [vmem:[%s1 + $0x38] sm:$0xff]
  %v41 = vld [vmem:[%s1 + $0x40] sm:$0xff]
  %v42 = vld [vmem:[%s1 + $0x48] sm:$0xff]
  %v43 = vld [vmem:[%s1 + $0x50] sm:$0xff]
  %v44 = vld [vmem:[%s1 + $0x58] sm:$0xff]
  %v45 = vld [vmem:[%s1 + $0x60] sm:$0xff]
  %v46 = vld [vmem:[%s1 + $0x68] sm:$0xff]
  %v47 = vld [vmem:[%s1 + $0x70] sm:$0xff]
  %v48 = vld [vmem:[%s1 + $0x78] sm:$0xff]
  %v49 = vld [vmem:[%s1 + $0x80] sm:$0xff]
  %v50 = vld [vmem:[%s1 + $0x88] sm:$0xff]
  %v51 = vld [vmem:[%s1 + $0x90] sm:$0xff]
  %v52 = vld [vmem:[%s1 + $0x98] sm:$0xff]
  %v53 = vld [vmem:[%s1 + $0xa0] sm:$0xff]
  %v54 = vld [vmem:[%s1 + $0xa8] sm:$0xff]
  %v55 = vld [vmem:[%s1 + $0xb0] sm:$0xff]
  %v56 = vld [vmem:[%s1 + $0xb8] sm:$0xff]
  %v57 = vld [vmem:[%s1 + $0xc0] sm:$0xff]
  %v58 = vld [vmem:[%s1 + $0xc8] sm:$0xff]
  %v59 = vld [vmem:[%s1 + $0xd0] sm:$0xff]
  %v60 = vld [vmem:[%s1 + $0xd8] sm:$0xff]
  %v61 = vld [vmem:[%s1 + $0xe0] sm:$0xff]
  %v62 = vld [vmem:[%s1 + $0xe8] sm:$0xff]
  %v63 = vld [vmem:[%s1 + $0xf0] sm:$0xff]
  %v64 = vld [vmem:[%s1 + $0xf8] sm:$0xff]
  %v65 = vld [vmem:[%s1 + $0x100] sm:$0xff]
  %v66 = vld [vmem:[%s1 + $0x108] sm:$0xff]
  %v67 = vld [vmem:[%s1 + $0x110] sm:$0xff]
  %v68 = vld [vmem:[%s1 + $0x118] sm:$0xff]
  %v69 = vld [vmem:[%s1 + $0x120] sm:$0xff]
  %v70 = vld [vmem:[%s1 + $0x128] sm:$0xff]
  %v71 = vld [vmem:[%s1 + $0x130] sm:$0xff]
  %v72 = vld [vmem:[%s1 + $0x138] sm:$0xff]
  %v73 = vld [vmem:[%s1 + $0x140] sm:$0xff]
  %v74 = vld [vmem:[%s1 + $0x148] sm:$0xff]
  %v75 = vld [vmem:[%s1 + $0x150] sm:$0xff]
  %v76 = vld [vmem:[%s1 + $0x158] sm:$0xff]
  %v77 = vld [vmem:[%s1 + $0x160] sm:$0xff]
  %v78 = vld [vmem:[%s1 + $0x168] sm:$0xff]
  %v79 = vld [vmem:[%s1 + $0x170] sm:$0xff]
  %v80 = vld [vmem:[%s1 + $0x178] sm:$0xff]
  %v81 = vld [vmem:[%s1 + $0x180] sm:$0xff]
  %v82 = vld [vmem:[%s1 + $0x188] sm:$0xff]
  %v83 = vld [vmem:[%s1 + $0x190] sm:$0xff]
  %v84 = vld [vmem:[%s1 + $0x198] sm:$0xff]
  %v85 = vld [vmem:[%s1 + $0x1a0] sm:$0xff]
  %v86 = vld [vmem:[%s1 + $0x1a8] sm:$0xff]
  %v87 = vld [vmem:[%s1 + $0x1b0] sm:$0xff]
  %v88 = vld [vmem:[%s1 + $0x1b8] sm:$0xff]
  %v89 = vld [vmem:[%s1 + $0x1c0] sm:$0xff]
  %v90 = vld [vmem:[%s1 + $0x1c8] sm:$0xff]
  %v91 = vld [vmem:[%s1 + $0x1d0] sm:$0xff]
  %v92 = vld [vmem:[%s1 + $0x1d8] sm:$0xff]
  %v93 = vld [vmem:[%s1 + $0x1e0] sm:$0xff]
  %v94 = vld [vmem:[%s1 + $0x1e8] sm:$0xff]
  %v95 = vld [vmem:[%s1 + $0x1f0] sm:$0xff]
  %v96 = vld [vmem:[%s1 + $0x1f8] sm:$0xff]
  %v97 = vld [vmem:[%s1 + $0x200] sm:$0xff]
  %v98 = vld [vmem:[%s1 + $0x208] sm:$0xff]
  %v99 = vld [vmem:[%s1 + $0x210] sm:$0xff]
  %v100 = vld [vmem:[%s1 + $0x218] sm:$0xff]
  %v101 = vld [vmem:[%s1 + $0x220] sm:$0xff]
  %v102 = vld [vmem:[%s1 + $0x228] sm:$0xff]
  %v103 = vld [vmem:[%s1 + $0x230] sm:$0xff]
  %v104 = vld [vmem:[%s1 + $0x238] sm:$0xff]
  %vm105 = vcmask 523264
  %v107 = vsel %vm105, %v17, 0
  %v110 = vsel %vm105, %v22, 0
  %v113 = vsel %vm105, %v27, 0
  %v116 = vsel %vm105, %v32, 0
  %118 = vmatprep.subr.mxu0 0.0
  %119 = vmatpush1.msra.mxu0 %v33
  %120 = vmatprep.subr.mxu0 0.0
  %121 = vmatpush1.msra.mxu0 %v34
  %122 = vmatprep.subr.mxu0 0.0
  %123 = vmatpush1.msra.mxu0 %v35
  %124 = vmatprep.subr.mxu0 0.0
  %125 = vmatpush1.msra.mxu0 %v36
  %126 = vmatprep.subr.mxu0 0.0
  %127 = vmatpush1.msra.mxu0 %v37
  %128 = vmatprep.subr.mxu0 0.0
  %129 = vmatpush1.msra.mxu0 %v38
  %130 = vmatprep.subr.mxu0 0.0
  %131 = vmatpush1.msra.mxu0 %v39
  %132 = vmatprep.subr.mxu0 0.0
  %133 = vmatpush1.msra.mxu0 %v40
  %134 = vmatprep.subr.mxu0 0.0
  %135 = vmatpush1.msra.mxu0 %v41
  %136 = vmatprep.subr.mxu0 0.0
  %137 = vmatpush1.msra.mxu0 %v42
  %138 = vmatprep.subr.mxu0 0.0
  %139 = vmatpush1.msra.mxu0 %v43
  %140 = vmatprep.subr.mxu0 0.0
  %141 = vmatpush1.msra.mxu0 %v44
  %142 = vmatprep.subr.mxu0 0.0
  %143 = vmatpush1.msra.mxu0 %v45
  %144 = vmatprep.subr.mxu0 0.0
  %145 = vmatpush1.msra.mxu0 %v46
  %146 = vmatprep.subr.mxu0 0.0
  %147 = vmatpush1.msra.mxu0 %v47
  %148 = vmatprep.subr.mxu0 0.0
  %149 = vmatpush1.msra.mxu0 %v48
  %150 = vmatprep.subr.mxu0 0.0
  %151 = vmatpush1.msra.mxu0 %v49
  %152 = vmatprep.subr.mxu0 0.0
  %153 = vmatpush1.msra.mxu0 %v50
  %154 = vmatprep.subr.mxu0 0.0
  %155 = vmatpush1.msra.mxu0 %v51
  %156 = vmatprep.subr.mxu0 0.0
  %157 = vmatpush1.msra.mxu0 %v52
  %158 = vmatprep.subr.mxu0 0.0
  %159 = vmatpush1.msra.mxu0 %v53
  %160 = vmatprep.subr.mxu0 0.0
  %161 = vmatpush1.msra.mxu0 %v54
  %162 = vmatprep.subr.mxu0 0.0
  %163 = vmatpush1.msra.mxu0 %v55
  %164 = vmatprep.subr.mxu0 0.0
  %165 = vmatpush1.msra.mxu0 %v56
  %166 = vmatprep.subr.mxu0 0.0
  %167 = vmatpush1.msra.mxu0 %v57
  %168 = vmatprep.subr.mxu0 0.0
  %169 = vmatpush1.msra.mxu0 %v58
  %170 = vmatprep.subr.mxu0 0.0
  %171 = vmatpush1.msra.mxu0 %v59
  %172 = vmatprep.subr.mxu0 0.0
  %173 = vmatpush1.msra.mxu0 %v60
  %174 = vmatprep.subr.mxu0 0.0
  %175 = vmatpush1.msra.mxu0 %v61
  %176 = vmatprep.subr.mxu0 0.0
  %177 = vmatpush1.msra.mxu0 %v62
  %178 = vmatprep.subr.mxu0 0.0
  %179 = vmatpush1.msra.mxu0 %v63
  %180 = vmatprep.subr.mxu0 0.0
  %181 = vmatpush1.msra.mxu0 %v64
  %182 = vmatprep.mubr.f32.mxu0 %v14
  %183 = vmatmul.mubr.f32.gmra.mrb[0].mxu0 %v13
  %v184 = vpop.f32.mrb[0].mxu0
  %v185 = vadd.f32 0.0, %v184
  %v186 = vpop.f32.mrb[0].mxu0
  %187 = vmatprep.mubr.f32.mxu0 %v19
  %188 = vmatmul.mubr.f32.gmra.mrb[0].mxu0 %v18
  %v189 = vpop.f32.mrb[0].mxu0
  %v190 = vadd.f32 0.0, %v189
  %v191 = vpop.f32.mrb[0].mxu0
  %192 = vmatprep.mubr.f32.mxu0 %v24
  %193 = vmatmul.mubr.f32.gmra.mrb[0].mxu0 %v23
  %v194 = vpop.f32.mrb[0].mxu0
  %v195 = vadd.f32 0.0, %v194
  %v196 = vpop.f32.mrb[0].mxu0
  %197 = vmatprep.mubr.f32.mxu0 %v29
  %198 = vmatmul.mubr.f32.gmra.mrb[0].mxu0 %v28
  %v199 = vpop.f32.mrb[0].mxu0
  %v200 = vadd.f32 0.0, %v199
  %v201 = vpop.f32.mrb[0].mxu0
  %202 = vdwg.mxu0
  %203 = vmatprep.subr.mxu0 0.0
  %204 = vmatpush1.msra.mxu0 %v65
  %205 = vmatprep.subr.mxu0 0.0
  %206 = vmatpush1.msra.mxu0 %v66
  %207 = vmatprep.subr.mxu0 0.0
  %208 = vmatpush1.msra.mxu0 %v67
  %209 = vmatprep.subr.mxu0 0.0
  %210 = vmatpush1.msra.mxu0 %v68
  %211 = vmatprep.subr.mxu0 0.0
  %212 = vmatpush1.msra.mxu0 %v69
  %213 = vmatprep.subr.mxu0 0.0
  %214 = vmatpush1.msra.mxu0 %v70
  %215 = vmatprep.subr.mxu0 0.0
  %216 = vmatpush1.msra.mxu0 %v71
  %217 = vmatprep.subr.mxu0 0.0
  %218 = vmatpush1.msra.mxu0 %v72
  %219 = vmatprep.subr.mxu0 0.0
  %220 = vmatpush1.msra.mxu0 %v73
  %221 = vmatprep.subr.mxu0 0.0
  %222 = vmatpush1.msra.mxu0 %v74
  %223 = vmatprep.subr.mxu0 0.0
  %224 = vmatpush1.msra.mxu0 %v75
  %225 = vmatprep.subr.mxu0 0.0
  %226 = vmatpush1.msra.mxu0 %v76
  %227 = vmatprep.subr.mxu0 0.0
  %228 = vmatpush1.msra.mxu0 %v77
  %229 = vmatprep.subr.mxu0 0.0
  %230 = vmatpush1.msra.mxu0 %v78
  %231 = vmatprep.subr.mxu0 0.0
  %232 = vmatpush1.msra.mxu0 %v79
  %233 = vmatprep.subr.mxu0 0.0
  %234 = vmatpush1.msra.mxu0 %v80
  %235 = vmatprep.subr.mxu0 0.0
  %236 = vmatpush1.msra.mxu0 %v81
  %237 = vmatprep.subr.mxu0 0.0
  %238 = vmatpush1.msra.mxu0 %v82
  %239 = vmatprep.subr.mxu0 0.0
  %240 = vmatpush1.msra.mxu0 %v83
  %241 = vmatprep.subr.mxu0 0.0
  %242 = vmatpush1.msra.mxu0 %v84
  %243 = vmatprep.subr.mxu0 0.0
  %244 = vmatpush1.msra.mxu0 %v85
  %245 = vmatprep.subr.mxu0 0.0
  %246 = vmatpush1.msra.mxu0 %v86
  %247 = vmatprep.subr.mxu0 0.0
  %248 = vmatpush1.msra.mxu0 %v87
  %249 = vmatprep.subr.mxu0 0.0
  %250 = vmatpush1.msra.mxu0 %v88
  %251 = vmatprep.subr.mxu0 0.0
  %252 = vmatpush1.msra.mxu0 %v89
  %253 = vmatprep.subr.mxu0 0.0
  %254 = vmatpush1.msra.mxu0 %v90
  %255 = vmatprep.subr.mxu0 0.0
  %256 = vmatpush1.msra.mxu0 %v91
  %257 = vmatprep.subr.mxu0 0.0
  %258 = vmatpush1.msra.mxu0 %v92
  %259 = vmatprep.subr.mxu0 0.0
  %260 = vmatpush1.msra.mxu0 %v93
  %261 = vmatprep.subr.mxu0 0.0
  %262 = vmatpush1.msra.mxu0 %v94
  %263 = vmatprep.subr.mxu0 0.0
  %264 = vmatpush1.msra.mxu0 %v95
  %265 = vmatprep.subr.mxu0 0.0
  %266 = vmatpush1.msra.mxu0 %v96
  %267 = vmatprep.mubr.f32.mxu0 %v16
  %268 = vmatmul.mubr.f32.gmra.mrb[0].mxu0 %v15
  %v269 = vpop.f32.mrb[0].mxu0
  %v270 = vadd.f32 %v185, %v269
  %v271 = vpop.f32.mrb[0].mxu0
  %272 = vmatprep.mubr.f32.mxu0 %v21
  %273 = vmatmul.mubr.f32.gmra.mrb[0].mxu0 %v20
  %v274 = vpop.f32.mrb[0].mxu0
  %v275 = vadd.f32 %v190, %v274
  %v276 = vpop.f32.mrb[0].mxu0
  %277 = vmatprep.mubr.f32.mxu0 %v26
  %278 = vmatmul.mubr.f32.gmra.mrb[0].mxu0 %v25
  %v279 = vpop.f32.mrb[0].mxu0
  %v280 = vadd.f32 %v195, %v279
  %v281 = vpop.f32.mrb[0].mxu0
  %282 = vmatprep.mubr.f32.mxu0 %v31
  %283 = vmatmul.mubr.f32.gmra.mrb[0].mxu0 %v30
  %v284 = vpop.f32.mrb[0].mxu0
  %v285 = vadd.f32 %v200, %v284
  %v286 = vpop.f32.mrb[0].mxu0
  %287 = vdwg.mxu0
  %288 = vmatprep.subr.mxu0 0.0
  %289 = vmatpush1.msra.mxu0 %v97
  %290 = vmatprep.subr.mxu0 0.0
  %291 = vmatpush1.msra.mxu0 %v98
  %292 = vmatprep.subr.mxu0 0.0
  %293 = vmatpush1.msra.mxu0 %v99
  %294 = vmatprep.subr.mxu0 0.0
  %295 = vmatpush1.msra.mxu0 %v100
  %296 = vmatprep.subr.mxu0 0.0
  %297 = vmatpush1.msra.mxu0 %v101
  %298 = vmatprep.subr.mxu0 0.0
  %299 = vmatpush1.msra.mxu0 %v102
  %300 = vmatprep.subr.mxu0 0.0
  %301 = vmatpush1.msra.mxu0 %v103
  %302 = vmatprep.subr.mxu0 0.0
  %303 = vmatpush1.msra.mxu0 %v104
  %304 = vmatprep.subr.mxu0 0.0
  %305 = vmatpush1.msra.mxu0 0.0
  %306 = vmatprep.subr.mxu0 0.0
  %307 = vmatpush1.msra.mxu0 0.0
  %308 = vmatprep.subr.mxu0 0.0
  %309 = vmatpush1.msra.mxu0 0.0
  %310 = vmatprep.subr.mxu0 0.0
  %311 = vmatpush1.msra.mxu0 0.0
  %312 = vmatprep.subr.mxu0 0.0
  %313 = vmatpush1.msra.mxu0 0.0
  %314 = vmatprep.subr.mxu0 0.0
  %315 = vmatpush1.msra.mxu0 0.0
  %316 = vmatprep.subr.mxu0 0.0
  %317 = vmatpush1.msra.mxu0 0.0
  %318 = vmatprep.subr.mxu0 0.0
  %319 = vmatpush1.msra.mxu0 0.0
  %320 = vmatprep.subr.mxu0 0.0
  %321 = vmatpush1.msra.mxu0 0.0
  %322 = vmatprep.subr.mxu0 0.0
  %323 = vmatpush1.msra.mxu0 0.0
  %324 = vmatprep.subr.mxu0 0.0
  %325 = vmatpush1.msra.mxu0 0.0
  %326 = vmatprep.subr.mxu0 0.0
  %327 = vmatpush1.msra.mxu0 0.0
  %328 = vmatprep.subr.mxu0 0.0
  %329 = vmatpush1.msra.mxu0 0.0
  %330 = vmatprep.subr.mxu0 0.0
  %331 = vmatpush1.msra.mxu0 0.0
  %332 = vmatprep.subr.mxu0 0.0
  %333 = vmatpush1.msra.mxu0 0.0
  %334 = vmatprep.subr.mxu0 0.0
  %335 = vmatpush1.msra.mxu0 0.0
  %336 = vmatprep.subr.mxu0 0.0
  %337 = vmatpush1.msra.mxu0 0.0
  %338 = vmatprep.subr.mxu0 0.0
  %339 = vmatpush1.msra.mxu0 0.0
  %340 = vmatprep.subr.mxu0 0.0
  %341 = vmatpush1.msra.mxu0 0.0
  %342 = vmatprep.subr.mxu0 0.0
  %343 = vmatpush1.msra.mxu0 0.0
  %344 = vmatprep.subr.mxu0 0.0
  %345 = vmatpush1.msra.mxu0 0.0
  %346 = vmatprep.subr.mxu0 0.0
  %347 = vmatpush1.msra.mxu0 0.0
  %348 = vmatprep.subr.mxu0 0.0
  %349 = vmatpush1.msra.mxu0 0.0
  %350 = vmatprep.subr.mxu0 0.0
  %351 = vmatpush1.msra.mxu0 0.0
  %352 = vmatprep.mubr.f32.mxu0 0.0
  %353 = vmatmul.mubr.f32.gmra.mrb[0].mxu0 %v107
  %v354 = vpop.f32.mrb[0].mxu0
  %v355 = vadd.f32 %v270, %v354
  %v356 = vpop.f32.mrb[0].mxu0
  %357 = vmatprep.mubr.f32.mxu0 0.0
  %358 = vmatmul.mubr.f32.gmra.mrb[0].mxu0 %v110
  %v359 = vpop.f32.mrb[0].mxu0
  %v360 = vadd.f32 %v275, %v359
  %v361 = vpop.f32.mrb[0].mxu0
  %362 = vmatprep.mubr.f32.mxu0 0.0
  %363 = vmatmul.mubr.f32.gmra.mrb[0].mxu0 %v113
  %v364 = vpop.f32.mrb[0].mxu0
  %v365 = vadd.f32 %v280, %v364
  %v366 = vpop.f32.mrb[0].mxu0
  %367 = vmatprep.mubr.f32.mxu0 0.0
  %368 = vmatmul.mubr.f32.gmra.mrb[0].mxu0 %v116
  %v369 = vpop.f32.mrb[0].mxu0
  %v370 = vadd.f32 %v285, %v369
  %v371 = vpop.f32.mrb[0].mxu0
  %372 = vdwg.mxu0
  %373 = vst [vmem:[%s2] sm:$0xff] %v355
  %374 = vst [vmem:[%s2 + $0x8] sm:$0xff] %v360
  %375 = vst [vmem:[%s2 + $0x10] sm:$0xff] %v365
  %376 = vst [vmem:[%s2 + $0x18] sm:$0xff] %v370
  %p377 = scmp.eq.s32.totalorder 0, 0
  // Predicated region
  $region10: #{encoder_conv_com.28} parent=0 // pred_check
    %p378 = pneg %p377
  $region11: #{encoder_conv_com.28} parent=0 // pred_check_branch
    %380 = sbr.rel (%p378) target = $region13
  $region12: #{encoder_conv_com.28} parent=0 // pred_region
    %381 = vst [vmem:[%s3] sm:$0x3] 0.0
  $region13: #{encoder_conv_com.28} parent=0 // pred_fallthru
    _
  %v382 = vld [vmem:[%s3] sm:$0x3]
  %v383 = vadd.f32 %v355, %v360
  %v384 = vadd.f32 %v383, %v365
  %v385 = vadd.f32 %v384, %v370
  %v386 = vrot.slane %v385, 4
  %v387 = vadd.f32 %v385, %v386
  %v388 = vrot.slane %v387, 2
  %v389 = vadd.f32 %v387, %v388
  %v390 = vrot.slane %v389, 1
  %v391 = vadd.f32 %v389, %v390
  %v392 = vmul.f32 %v355, %v355
  %v393 = vmul.f32 %v360, %v360
  %v394 = vmul.f32 %v365, %v365
  %v395 = vmul.f32 %v370, %v370
  %v396 = vadd.f32 %v392, %v393
  %v397 = vadd.f32 %v396, %v394
  %v398 = vadd.f32 %v397, %v395
  %v399 = vrot.slane %v398, 4
  %v400 = vadd.f32 %v398, %v399
  %v401 = vrot.slane %v400, 2
  %v402 = vadd.f32 %v400, %v401
  %v403 = vrot.slane %v402, 1
  %v404 = vadd.f32 %v402, %v403
  %vm405 = vcmask 1040384
  %v406 = vsel %vm405, %v391, %v404
  %v407 = vadd.f32 %v382, %v406
  %408 = vst [vmem:[%s3] sm:$0x3] %v407
  // Predicated region
  $region14: #{encoder_conv_com.28} parent=0 // pred_check
    _
  $region15: #{encoder_conv_com.28} parent=0 // pred_check_branch
    %410 = sbr.rel (0) target = $region17
  $region16: #{encoder_conv_com.28} parent=0 // pred_region
    _
  $region17: #{encoder_conv_com.28} parent=0 // pred_fallthru
    _
  // Predicated region
  $region18: #{encoder_conv_com.28} parent=0 // pred_check
    _
  $region19: #{encoder_conv_com.28} parent=0 // pred_check_branch
    %412 = sbr.rel (0) target = $region21
  $region20: #{encoder_conv_com.28} parent=0 // pred_region
    _
  $region21: #{encoder_conv_com.28} parent=0 // pred_fallthru
    _
  // Predicated region
  $region22: #{encoder_conv_com.28} parent=0 // pred_check
    _
  $region23: #{encoder_conv_com.28} parent=0 // pred_check_branch
    %414 = sbr.rel (0) target = $region25
  $region24: #{encoder_conv_com.28} parent=0 // pred_region
    _
  $region25: #{encoder_conv_com.28} parent=0 // pred_fallthru
    _
  // Predicated region
  $region26: #{encoder_conv_com.28} parent=0 // pred_check
    _
  $region27: #{encoder_conv_com.28} parent=0 // pred_check_branch
    %416 = sbr.rel (0) target = $region29
  $region28: #{encoder_conv_com.28} parent=0 // pred_region
    _
  $region29: #{encoder_conv_com.28} parent=0 // pred_fallthru
    _

// kernel: tile.147
$region0: #{tile.147}
  #allocation0 [shape = 's32[1]{0}', space=sflag, size = 0x4, scoped, tag = 'scoped memory for tile.147']
  %s0 = inlined_call_operand.vmem [shape: f32[128], index: 0, kind: input, shape index: {}]
  %s1 = inlined_call_operand.vmem [shape: f32[2,128], index: 1, kind: output, shape index: {}]
  // Predicated region
  $region2: #{tile.147} parent=0 // pred_check
    _
  $region3: #{tile.147} parent=0 // pred_check_branch
    %3 = sbr.rel (0) target = $region5
  $region4: #{tile.147} parent=0 // pred_region
    _
  $region5: #{tile.147} parent=0 // pred_fallthru
    _
  %v4 = vld [vmem:[%s0] ss:$0 sm:$0xff]
  %5 = vst [vmem:[%s1] sm:$0x3] %v4

// kernel: encoder_conv_com.30
$region0: #{encoder_conv_com.30}
  #allocation0 [shape = 'u32[]', space=smem, size = 0x4, offset = 0x4, fixed_abs, tag = 'smem constant byte address 0x4 - core index']
  #allocation1 [shape = 'u32[144,128]{1,0:T(1,128)}', space=vmem, size = 0x12000, scoped, tag = 'internal scratch']
  %s0 = inlined_call_operand.vmem [shape: f32[32,1152], index: 0, kind: input, shape index: {}]
  %s1 = inlined_call_operand.vmem [shape: f32[1152,128], index: 1, kind: input, shape index: {}]
  %s2 = inlined_call_operand.vmem [shape: f32[32,128], index: 2, kind: output, shape index: {0}]
  %s3 = inlined_call_operand.vmem [shape: f32[2,128], index: 3, kind: output, shape index: {1}]
  %4 = xla_tuple %s2, %s3
  %s5 = sld [smem:[#allocation0]]
  $region30: #{encoder_conv_com.30} parent=0
    _
  %s7 = ssub.s32 1, %s5
  %s8 = scalar_select 0, %s7, %s5
  // Predicated region
  $region2: #{encoder_conv_com.30} parent=0 // pred_check
    _
  $region3: #{encoder_conv_com.30} parent=0 // pred_check_branch
    %10 = sbr.rel (0) target = $region5
  $region4: #{encoder_conv_com.30} parent=0 // pred_region
    _
  $region5: #{encoder_conv_com.30} parent=0 // pred_fallthru
    _
  // Predicated region
  $region6: #{encoder_conv_com.30} parent=0 // pred_check
    _
  $region7: #{encoder_conv_com.30} parent=0 // pred_check_branch
    %12 = sbr.rel (0) target = $region9
  $region8: #{encoder_conv_com.30} parent=0 // pred_region
    _
  $region9: #{encoder_conv_com.30} parent=0 // pred_fallthru
    _
  %v13 = vld [vmem:[%s0] sm:$0xff]
  %v14 = vld [vmem:[%s0 + $0x8] sm:$0xff]
  %v15 = vld [vmem:[%s0 + $0x10] sm:$0xff]
  %v16 = vld [vmem:[%s0 + $0x18] sm:$0xff]
  %v17 = vld [vmem:[%s0 + $0x20] sm:$0xff]
  %v18 = vld [vmem:[%s0 + $0x28] sm:$0xff]
  %v19 = vld [vmem:[%s0 + $0x30] sm:$0xff]
  %v20 = vld [vmem:[%s0 + $0x38] sm:$0xff]
  %v21 = vld [vmem:[%s0 + $0x40] sm:$0xff]
  %v22 = vld [vmem:[%s0 + $0x48] sm:$0xff]
  %v23 = vld [vmem:[%s0 + $0x50] sm:$0xff]
  %v24 = vld [vmem:[%s0 + $0x58] sm:$0xff]
  %v25 = vld [vmem:[%s0 + $0x60] sm:$0xff]
  %v26 = vld [vmem:[%s0 + $0x68] sm:$0xff]
  %v27 = vld [vmem:[%s0 + $0x70] sm:$0xff]
  %v28 = vld [vmem:[%s0 + $0x78] sm:$0xff]
  %v29 = vld [vmem:[%s0 + $0x80] sm:$0xff]
  %v30 = vld [vmem:[%s0 + $0x88] sm:$0xff]
  %v31 = vld [vmem:[%s0 + $0x90] sm:$0xff]
  %v32 = vld [vmem:[%s0 + $0x98] sm:$0xff]
  %v33 = vld [vmem:[%s0 + $0xa0] sm:$0xff]
  %v34 = vld [vmem:[%s0 + $0xa8] sm:$0xff]
  %v35 = vld [vmem:[%s0 + $0xb0] sm:$0xff]
  %v36 = vld [vmem:[%s0 + $0xb8] sm:$0xff]
  %v37 = vld [vmem:[%s0 + $0xc0] sm:$0xff]
  %v38 = vld [vmem:[%s0 + $0xc8] sm:$0xff]
  %v39 = vld [vmem:[%s0 + $0xd0] sm:$0xff]
  %v40 = vld [vmem:[%s0 + $0xd8] sm:$0xff]
  %v41 = vld [vmem:[%s0 + $0xe0] sm:$0xff]
  %v42 = vld [vmem:[%s0 + $0xe8] sm:$0xff]
  %v43 = vld [vmem:[%s0 + $0xf0] sm:$0xff]
  %v44 = vld [vmem:[%s0 + $0xf8] sm:$0xff]
  %v45 = vld [vmem:[%s0 + $0x100] sm:$0xff]
  %v46 = vld [vmem:[%s0 + $0x108] sm:$0xff]
  %v47 = vld [vmem:[%s0 + $0x110] sm:$0xff]
  %v48 = vld [vmem:[%s0 + $0x118] sm:$0xff]
  %v49 = vld [vmem:[%s1] sm:$0xff]
  %v50 = vld [vmem:[%s1 + $0x8] sm:$0xff]
  %v51 = vld [vmem:[%s1 + $0x10] sm:$0xff]
  %v52 = vld [vmem:[%s1 + $0x18] sm:$0xff]
  %v53 = vld [vmem:[%s1 + $0x20] sm:$0xff]
  %v54 = vld [vmem:[%s1 + $0x28] sm:$0xff]
  %v55 = vld [vmem:[%s1 + $0x30] sm:$0xff]
  %v56 = vld [vmem:[%s1 + $0x38] sm:$0xff]
  %v57 = vld [vmem:[%s1 + $0x40] sm:$0xff]
  %v58 = vld [vmem:[%s1 + $0x48] sm:$0xff]
  %v59 = vld [vmem:[%s1 + $0x50] sm:$0xff]
  %v60 = vld [vmem:[%s1 + $0x58] sm:$0xff]
  %v61 = vld [vmem:[%s1 + $0x60] sm:$0xff]
  %v62 = vld [vmem:[%s1 + $0x68] sm:$0xff]
  %v63 = vld [vmem:[%s1 + $0x70] sm:$0xff]
  %v64 = vld [vmem:[%s1 + $0x78] sm:$0xff]
  %v65 = vld [vmem:[%s1 + $0x80] sm:$0xff]
  %v66 = vld [vmem:[%s1 + $0x88] sm:$0xff]
  %v67 = vld [vmem:[%s1 + $0x90] sm:$0xff]
  %v68 = vld [vmem:[%s1 + $0x98] sm:$0xff]
  %v69 = vld [vmem:[%s1 + $0xa0] sm:$0xff]
  %v70 = vld [vmem:[%s1 + $0xa8] sm:$0xff]
  %v71 = vld [vmem:[%s1 + $0xb0] sm:$0xff]
  %v72 = vld [vmem:[%s1 + $0xb8] sm:$0xff]
  %v73 = vld [vmem:[%s1 + $0xc0] sm:$0xff]
  %v74 = vld [vmem:[%s1 + $0xc8] sm:$0xff]
  %v75 = vld [vmem:[%s1 + $0xd0] sm:$0xff]
  %v76 = vld [vmem:[%s1 + $0xd8] sm:$0xff]
  %v77 = vld [vmem:[%s1 + $0xe0] sm:$0xff]
  %v78 = vld [vmem:[%s1 + $0xe8] sm:$0xff]
  %v79 = vld [vmem:[%s1 + $0xf0] sm:$0xff]
  %v80 = vld [vmem:[%s1 + $0xf8] sm:$0xff]
  %v81 = vld [vmem:[%s1 + $0x100] sm:$0xff]
  %v82 = vld [vmem:[%s1 + $0x108] sm:$0xff]
  %v83 = vld [vmem:[%s1 + $0x110] sm:$0xff]
  %v84 = vld [vmem:[%s1 + $0x118] sm:$0xff]
  %v85 = vld [vmem:[%s1 + $0x120] sm:$0xff]
  %v86 = vld [vmem:[%s1 + $0x128] sm:$0xff]
  %v87 = vld [vmem:[%s1 + $0x130] sm:$0xff]
  %v88 = vld [vmem:[%s1 + $0x138] sm:$0xff]
  %v89 = vld [vmem:[%s1 + $0x140] sm:$0xff]
  %v90 = vld [vmem:[%s1 + $0x148] sm:$0xff]
  %v91 = vld [vmem:[%s1 + $0x150] sm:$0xff]
  %v92 = vld [vmem:[%s1 + $0x158] sm:$0xff]
  %v93 = vld [vmem:[%s1 + $0x160] sm:$0xff]
  %v94 = vld [vmem:[%s1 + $0x168] sm:$0xff]
  %v95 = vld [vmem:[%s1 + $0x170] sm:$0xff]
  %v96 = vld [vmem:[%s1 + $0x178] sm:$0xff]
  %v97 = vld [vmem:[%s1 + $0x180] sm:$0xff]
  %v98 = vld [vmem:[%s1 + $0x188] sm:$0xff]
  %v99 = vld [vmem:[%s1 + $0x190] sm:$0xff]
  %v100 = vld [vmem:[%s1 + $0x198] sm:$0xff]
  %v101 = vld [vmem:[%s1 + $0x1a0] sm:$0xff]
  %v102 = vld [vmem:[%s1 + $0x1a8] sm:$0xff]
  %v103 = vld [vmem:[%s1 + $0x1b0] sm:$0xff]
  %v104 = vld [vmem:[%s1 + $0x1b8] sm:$0xff]
  %v105 = vld [vmem:[%s1 + $0x1c0] sm:$0xff]
  %v106 = vld [vmem:[%s1 + $0x1c8] sm:$0xff]
  %v107 = vld [vmem:[%s1 + $0x1d0] sm:$0xff]
  %v108 = vld [vmem:[%s1 + $0x1d8] sm:$0xff]
  %v109 = vld [vmem:[%s1 + $0x1e0] sm:$0xff]
  %v110 = vld [vmem:[%s1 + $0x1e8] sm:$0xff]
  %v111 = vld [vmem:[%s1 + $0x1f0] sm:$0xff]
  %v112 = vld [vmem:[%s1 + $0x1f8] sm:$0xff]
  %v113 = vld [vmem:[%s1 + $0x200] sm:$0xff]
  %v114 = vld [vmem:[%s1 + $0x208] sm:$0xff]
  %v115 = vld [vmem:[%s1 + $0x210] sm:$0xff]
  %v116 = vld [vmem:[%s1 + $0x218] sm:$0xff]
  %v117 = vld [vmem:[%s1 + $0x220] sm:$0xff]
  %v118 = vld [vmem:[%s1 + $0x228] sm:$0xff]
  %v119 = vld [vmem:[%s1 + $0x230] sm:$0xff]
  %v120 = vld [vmem:[%s1 + $0x238] sm:$0xff]
  %v121 = vld [vmem:[%s1 + $0x240] sm:$0xff]
  %v122 = vld [vmem:[%s1 + $0x248] sm:$0xff]
  %v123 = vld [vmem:[%s1 + $0x250] sm:$0xff]
  %v124 = vld [vmem:[%s1 + $0x258] sm:$0xff]
  %v125 = vld [vmem:[%s1 + $0x260] sm:$0xff]
  %v126 = vld [vmem:[%s1 + $0x268] sm:$0xff]
  %v127 = vld [vmem:[%s1 + $0x270] sm:$0xff]
  %v128 = vld [vmem:[%s1 + $0x278] sm:$0xff]
  %v129 = vld [vmem:[%s1 + $0x280] sm:$0xff]
  %v130 = vld [vmem:[%s1 + $0x288] sm:$0xff]
  %v131 = vld [vmem:[%s1 + $0x290] sm:$0xff]
  %v132 = vld [vmem:[%s1 + $0x298] sm:$0xff]
  %v133 = vld [vmem:[%s1 + $0x2a0] sm:$0xff]
  %v134 = vld [vmem:[%s1 + $0x2a8] sm:$0xff]
  %v135 = vld [vmem:[%s1 + $0x2b0] sm:$0xff]
  %v136 = vld [vmem:[%s1 + $0x2b8] sm:$0xff]
  %v137 = vld [vmem:[%s1 + $0x2c0] sm:$0xff]
  %v138 = vld [vmem:[%s1 + $0x2c8] sm:$0xff]
  %v139 = vld [vmem:[%s1 + $0x2d0] sm:$0xff]
  %v140 = vld [vmem:[%s1 + $0x2d8] sm:$0xff]
  %v141 = vld [vmem:[%s1 + $0x2e0] sm:$0xff]
  %v142 = vld [vmem:[%s1 + $0x2e8] sm:$0xff]
  %v143 = vld [vmem:[%s1 + $0x2f0] sm:$0xff]
  %v144 = vld [vmem:[%s1 + $0x2f8] sm:$0xff]
  %v145 = vld [vmem:[%s1 + $0x300] sm:$0xff]
  %v146 = vld [vmem:[%s1 + $0x308] sm:$0xff]
  %v147 = vld [vmem:[%s1 + $0x310] sm:$0xff]
  %v148 = vld [vmem:[%s1 + $0x318] sm:$0xff]
  %v149 = vld [vmem:[%s1 + $0x320] sm:$0xff]
  %v150 = vld [vmem:[%s1 + $0x328] sm:$0xff]
  %v151 = vld [vmem:[%s1 + $0x330] sm:$0xff]
  %v152 = vld [vmem:[%s1 + $0x338] sm:$0xff]
  %v153 = vld [vmem:[%s1 + $0x340] sm:$0xff]
  %v154 = vld [vmem:[%s1 + $0x348] sm:$0xff]
  %v155 = vld [vmem:[%s1 + $0x350] sm:$0xff]
  %v156 = vld [vmem:[%s1 + $0x358] sm:$0xff]
  %v157 = vld [vmem:[%s1 + $0x360] sm:$0xff]
  %v158 = vld [vmem:[%s1 + $0x368] sm:$0xff]
  %v159 = vld [vmem:[%s1 + $0x370] sm:$0xff]
  %v160 = vld [vmem:[%s1 + $0x378] sm:$0xff]
  %v161 = vld [vmem:[%s1 + $0x380] sm:$0xff]
  %v162 = vld [vmem:[%s1 + $0x388] sm:$0xff]
  %v163 = vld [vmem:[%s1 + $0x390] sm:$0xff]
  %v164 = vld [vmem:[%s1 + $0x398] sm:$0xff]
  %v165 = vld [vmem:[%s1 + $0x3a0] sm:$0xff]
  %v166 = vld [vmem:[%s1 + $0x3a8] sm:$0xff]
  %v167 = vld [vmem:[%s1 + $0x3b0] sm:$0xff]
  %v168 = vld [vmem:[%s1 + $0x3b8] sm:$0xff]
  %v169 = vld [vmem:[%s1 + $0x3c0] sm:$0xff]
  %v170 = vld [vmem:[%s1 + $0x3c8] sm:$0xff]
  %v171 = vld [vmem:[%s1 + $0x3d0] sm:$0xff]
  %v172 = vld [vmem:[%s1 + $0x3d8] sm:$0xff]
  %v173 = vld [vmem:[%s1 + $0x3e0] sm:$0xff]
  %v174 = vld [vmem:[%s1 + $0x3e8] sm:$0xff]
  %v175 = vld [vmem:[%s1 + $0x3f0] sm:$0xff]
  %v176 = vld [vmem:[%s1 + $0x3f8] sm:$0xff]
  %v177 = vld [vmem:[%s1 + $0x400] sm:$0xff]
  %v178 = vld [vmem:[%s1 + $0x408] sm:$0xff]
  %v179 = vld [vmem:[%s1 + $0x410] sm:$0xff]
  %v180 = vld [vmem:[%s1 + $0x418] sm:$0xff]
  %v181 = vld [vmem:[%s1 + $0x420] sm:$0xff]
  %v182 = vld [vmem:[%s1 + $0x428] sm:$0xff]
  %v183 = vld [vmem:[%s1 + $0x430] sm:$0xff]
  %v184 = vld [vmem:[%s1 + $0x438] sm:$0xff]
  %v185 = vld [vmem:[%s1 + $0x440] sm:$0xff]
  %v186 = vld [vmem:[%s1 + $0x448] sm:$0xff]
  %v187 = vld [vmem:[%s1 + $0x450] sm:$0xff]
  %v188 = vld [vmem:[%s1 + $0x458] sm:$0xff]
  %v189 = vld [vmem:[%s1 + $0x460] sm:$0xff]
  %v190 = vld [vmem:[%s1 + $0x468] sm:$0xff]
  %v191 = vld [vmem:[%s1 + $0x470] sm:$0xff]
  %v192 = vld [vmem:[%s1 + $0x478] sm:$0xff]
  %193 = vmatprep.subr.mxu0 0.0
  %194 = vmatpush1.msra.mxu0 %v49
  %195 = vmatprep.subr.mxu0 0.0
  %196 = vmatpush1.msra.mxu0 %v50
  %197 = vmatprep.subr.mxu0 0.0
  %198 = vmatpush1.msra.mxu0 %v51
  %199 = vmatprep.subr.mxu0 0.0
  %200 = vmatpush1.msra.mxu0 %v52
  %201 = vmatprep.subr.mxu0 0.0
  %202 = vmatpush1.msra.mxu0 %v53
  %203 = vmatprep.subr.mxu0 0.0
  %204 = vmatpush1.msra.mxu0 %v54
  %205 = vmatprep.subr.mxu0 0.0
  %206 = vmatpush1.msra.mxu0 %v55
  %207 = vmatprep.subr.mxu0 0.0
  %208 = vmatpush1.msra.mxu0 %v56
  %209 = vmatprep.subr.mxu0 0.0
  %210 = vmatpush1.msra.mxu0 %v57
  %211 = vmatprep.subr.mxu0 0.0
  %212 = vmatpush1.msra.mxu0 %v58
  %213 = vmatprep.subr.mxu0 0.0
  %214 = vmatpush1.msra.mxu0 %v59
  %215 = vmatprep.subr.mxu0 0.0
  %216 = vmatpush1.msra.mxu0 %v60
  %217 = vmatprep.subr.mxu0 0.0
  %218 = vmatpush1.msra.mxu0 %v61
  %219 = vmatprep.subr.mxu0 0.0
  %220 = vmatpush1.msra.mxu0 %v62
  %221 = vmatprep.subr.mxu0 0.0
  %222 = vmatpush1.msra.mxu0 %v63
  %223 = vmatprep.subr.mxu0 0.0
  %224 = vmatpush1.msra.mxu0 %v64
  %225 = vmatprep.subr.mxu0 0.0
  %226 = vmatpush1.msra.mxu0 %v65
  %227 = vmatprep.subr.mxu0 0.0
  %228 = vmatpush1.msra.mxu0 %v66
  %229 = vmatprep.subr.mxu0 0.0
  %230 = vmatpush1.msra.mxu0 %v67
  %231 = vmatprep.subr.mxu0 0.0
  %232 = vmatpush1.msra.mxu0 %v68
  %233 = vmatprep.subr.mxu0 0.0
  %234 = vmatpush1.msra.mxu0 %v69
  %235 = vmatprep.subr.mxu0 0.0
  %236 = vmatpush1.msra.mxu0 %v70
  %237 = vmatprep.subr.mxu0 0.0
  %238 = vmatpush1.msra.mxu0 %v71
  %239 = vmatprep.subr.mxu0 0.0
  %240 = vmatpush1.msra.mxu0 %v72
  %241 = vmatprep.subr.mxu0 0.0
  %242 = vmatpush1.msra.mxu0 %v73
  %243 = vmatprep.subr.mxu0 0.0
  %244 = vmatpush1.msra.mxu0 %v74
  %245 = vmatprep.subr.mxu0 0.0
  %246 = vmatpush1.msra.mxu0 %v75
  %247 = vmatprep.subr.mxu0 0.0
  %248 = vmatpush1.msra.mxu0 %v76
  %249 = vmatprep.subr.mxu0 0.0
  %250 = vmatpush1.msra.mxu0 %v77
  %251 = vmatprep.subr.mxu0 0.0
  %252 = vmatpush1.msra.mxu0 %v78
  %253 = vmatprep.subr.mxu0 0.0
  %254 = vmatpush1.msra.mxu0 %v79
  %255 = vmatprep.subr.mxu0 0.0
  %256 = vmatpush1.msra.mxu0 %v80
  %257 = vmatprep.mubr.f32.mxu0 %v14
  %258 = vmatmul.mubr.f32.gmra.mrb[0].mxu0 %v13
  %v259 = vpop.f32.mrb[0].mxu0
  %v260 = vadd.f32 0.0, %v259
  %v261 = vpop.f32.mrb[0].mxu0
  %262 = vmatprep.mubr.f32.mxu0 %v23
  %263 = vmatmul.mubr.f32.gmra.mrb[0].mxu0 %v22
  %v264 = vpop.f32.mrb[0].mxu0
  %v265 = vadd.f32 0.0, %v264
  %v266 = vpop.f32.mrb[0].mxu0
  %267 = vmatprep.mubr.f32.mxu0 %v32
  %268 = vmatmul.mubr.f32.gmra.mrb[0].mxu0 %v31
  %v269 = vpop.f32.mrb[0].mxu0
  %v270 = vadd.f32 0.0, %v269
  %v271 = vpop.f32.mrb[0].mxu0
  %272 = vmatprep.mubr.f32.mxu0 %v41
  %273 = vmatmul.mubr.f32.gmra.mrb[0].mxu0 %v40
  %v274 = vpop.f32.mrb[0].mxu0
  %v275 = vadd.f32 0.0, %v274
  %v276 = vpop.f32.mrb[0].mxu0
  %277 = vdwg.mxu0
  %278 = vmatprep.subr.mxu0 0.0
  %279 = vmatpush1.msra.mxu0 %v81
  %280 = vmatprep.subr.mxu0 0.0
  %281 = vmatpush1.msra.mxu0 %v82
  %282 = vmatprep.subr.mxu0 0.0
  %283 = vmatpush1.msra.mxu0 %v83
  %284 = vmatprep.subr.mxu0 0.0
  %285 = vmatpush1.msra.mxu0 %v84
  %286 = vmatprep.subr.mxu0 0.0
  %287 = vmatpush1.msra.mxu0 %v85
  %288 = vmatprep.subr.mxu0 0.0
  %289 = vmatpush1.msra.mxu0 %v86
  %290 = vmatprep.subr.mxu0 0.0
  %291 = vmatpush1.msra.mxu0 %v87
  %292 = vmatprep.subr.mxu0 0.0
  %293 = vmatpush1.msra.mxu0 %v88
  %294 = vmatprep.subr.mxu0 0.0
  %295 = vmatpush1.msra.mxu0 %v89
  %296 = vmatprep.subr.mxu0 0.0
  %297 = vmatpush1.msra.mxu0 %v90
  %298 = vmatprep.subr.mxu0 0.0
  %299 = vmatpush1.msra.mxu0 %v91
  %300 = vmatprep.subr.mxu0 0.0
  %301 = vmatpush1.msra.mxu0 %v92
  %302 = vmatprep.subr.mxu0 0.0
  %303 = vmatpush1.msra.mxu0 %v93
  %304 = vmatprep.subr.mxu0 0.0
  %305 = vmatpush1.msra.mxu0 %v94
  %306 = vmatprep.subr.mxu0 0.0
  %307 = vmatpush1.msra.mxu0 %v95
  %308 = vmatprep.subr.mxu0 0.0
  %309 = vmatpush1.msra.mxu0 %v96
  %310 = vmatprep.subr.mxu0 0.0
  %311 = vmatpush1.msra.mxu0 %v97
  %312 = vmatprep.subr.mxu0 0.0
  %313 = vmatpush1.msra.mxu0 %v98
  %314 = vmatprep.subr.mxu0 0.0
  %315 = vmatpush1.msra.mxu0 %v99
  %316 = vmatprep.subr.mxu0 0.0
  %317 = vmatpush1.msra.mxu0 %v100
  %318 = vmatprep.subr.mxu0 0.0
  %319 = vmatpush1.msra.mxu0 %v101
  %320 = vmatprep.subr.mxu0 0.0
  %321 = vmatpush1.msra.mxu0 %v102
  %322 = vmatprep.subr.mxu0 0.0
  %323 = vmatpush1.msra.mxu0 %v103
  %324 = vmatprep.subr.mxu0 0.0
  %325 = vmatpush1.msra.mxu0 %v104
  %326 = vmatprep.subr.mxu0 0.0
  %327 = vmatpush1.msra.mxu0 %v105
  %328 = vmatprep.subr.mxu0 0.0
  %329 = vmatpush1.msra.mxu0 %v106
  %330 = vmatprep.subr.mxu0 0.0
  %331 = vmatpush1.msra.mxu0 %v107
  %332 = vmatprep.subr.mxu0 0.0
  %333 = vmatpush1.msra.mxu0 %v108
  %334 = vmatprep.subr.mxu0 0.0
  %335 = vmatpush1.msra.mxu0 %v109
  %336 = vmatprep.subr.mxu0 0.0
  %337 = vmatpush1.msra.mxu0 %v110
  %338 = vmatprep.subr.mxu0 0.0
  %339 = vmatpush1.msra.mxu0 %v111
  %340 = vmatprep.subr.mxu0 0.0
  %341 = vmatpush1.msra.mxu0 %v112
  %342 = vmatprep.mubr.f32.mxu0 %v16
  %343 = vmatmul.mubr.f32.gmra.mrb[0].mxu0 %v15
  %v344 = vpop.f32.mrb[0].mxu0
  %v345 = vadd.f32 %v260, %v344
  %v346 = vpop.f32.mrb[0].mxu0
  %347 = vmatprep.mubr.f32.mxu0 %v25
  %348 = vmatmul.mubr.f32.gmra.mrb[0].mxu0 %v24
  %v349 = vpop.f32.mrb[0].mxu0
  %v350 = vadd.f32 %v265, %v349
  %v351 = vpop.f32.mrb[0].mxu0
  %352 = vmatprep.mubr.f32.mxu0 %v34
  %353 = vmatmul.mubr.f32.gmra.mrb[0].mxu0 %v33
  %v354 = vpop.f32.mrb[0].mxu0
  %v355 = vadd.f32 %v270, %v354
  %v356 = vpop.f32.mrb[0].mxu0
  %357 = vmatprep.mubr.f32.mxu0 %v43
  %358 = vmatmul.mubr.f32.gmra.mrb[0].mxu0 %v42
  %v359 = vpop.f32.mrb[0].mxu0
  %v360 = vadd.f32 %v275, %v359
  %v361 = vpop.f32.mrb[0].mxu0
  %362 = vdwg.mxu0
  %363 = vmatprep.subr.mxu0 0.0
  %364 = vmatpush1.msra.mxu0 %v113
  %365 = vmatprep.subr.mxu0 0.0
  %366 = vmatpush1.msra.mxu0 %v114
  %367 = vmatprep.subr.mxu0 0.0
  %368 = vmatpush1.msra.mxu0 %v115
  %369 = vmatprep.subr.mxu0 0.0
  %370 = vmatpush1.msra.mxu0 %v116
  %371 = vmatprep.subr.mxu0 0.0
  %372 = vmatpush1.msra.mxu0 %v117
  %373 = vmatprep.subr.mxu0 0.0
  %374 = vmatpush1.msra.mxu0 %v118
  %375 = vmatprep.subr.mxu0 0.0
  %376 = vmatpush1.msra.mxu0 %v119
  %377 = vmatprep.subr.mxu0 0.0
  %378 = vmatpush1.msra.mxu0 %v120
  %379 = vmatprep.subr.mxu0 0.0
  %380 = vmatpush1.msra.mxu0 %v121
  %381 = vmatprep.subr.mxu0 0.0
  %382 = vmatpush1.msra.mxu0 %v122
  %383 = vmatprep.subr.mxu0 0.0
  %384 = vmatpush1.msra.mxu0 %v123
  %385 = vmatprep.subr.mxu0 0.0
  %386 = vmatpush1.msra.mxu0 %v124
  %387 = vmatprep.subr.mxu0 0.0
  %388 = vmatpush1.msra.mxu0 %v125
  %389 = vmatprep.subr.mxu0 0.0
  %390 = vmatpush1.msra.mxu0 %v126
  %391 = vmatprep.subr.mxu0 0.0
  %392 = vmatpush1.msra.mxu0 %v127
  %393 = vmatprep.subr.mxu0 0.0
  %394 = vmatpush1.msra.mxu0 %v128
  %395 = vmatprep.subr.mxu0 0.0
  %396 = vmatpush1.msra.mxu0 %v129
  %397 = vmatprep.subr.mxu0 0.0
  %398 = vmatpush1.msra.mxu0 %v130
  %399 = vmatprep.subr.mxu0 0.0
  %400 = vmatpush1.msra.mxu0 %v131
  %401 = vmatprep.subr.mxu0 0.0
  %402 = vmatpush1.msra.mxu0 %v132
  %403 = vmatprep.subr.mxu0 0.0
  %404 = vmatpush1.msra.mxu0 %v133
  %405 = vmatprep.subr.mxu0 0.0
  %406 = vmatpush1.msra.mxu0 %v134
  %407 = vmatprep.subr.mxu0 0.0
  %408 = vmatpush1.msra.mxu0 %v135
  %409 = vmatprep.subr.mxu0 0.0
  %410 = vmatpush1.msra.mxu0 %v136
  %411 = vmatprep.subr.mxu0 0.0
  %412 = vmatpush1.msra.mxu0 %v137
  %413 = vmatprep.subr.mxu0 0.0
  %414 = vmatpush1.msra.mxu0 %v138
  %415 = vmatprep.subr.mxu0 0.0
  %416 = vmatpush1.msra.mxu0 %v139
  %417 = vmatprep.subr.mxu0 0.0
  %418 = vmatpush1.msra.mxu0 %v140
  %419 = vmatprep.subr.mxu0 0.0
  %420 = vmatpush1.msra.mxu0 %v141
  %421 = vmatprep.subr.mxu0 0.0
  %422 = vmatpush1.msra.mxu0 %v142
  %423 = vmatprep.subr.mxu0 0.0
  %424 = vmatpush1.msra.mxu0 %v143
  %425 = vmatprep.subr.mxu0 0.0
  %426 = vmatpush1.msra.mxu0 %v144
  %427 = vmatprep.mubr.f32.mxu0 %v18
  %428 = vmatmul.mubr.f32.gmra.mrb[0].mxu0 %v17
  %v429 = vpop.f32.mrb[0].mxu0
  %v430 = vadd.f32 %v345, %v429
  %v431 = vpop.f32.mrb[0].mxu0
  %432 = vmatprep.mubr.f32.mxu0 %v27
  %433 = vmatmul.mubr.f32.gmra.mrb[0].mxu0 %v26
  %v434 = vpop.f32.mrb[0].mxu0
  %v435 = vadd.f32 %v350, %v434
  %v436 = vpop.f32.mrb[0].mxu0
  %437 = vmatprep.mubr.f32.mxu0 %v36
  %438 = vmatmul.mubr.f32.gmra.mrb[0].mxu0 %v35
  %v439 = vpop.f32.mrb[0].mxu0
  %v440 = vadd.f32 %v355, %v439
  %v441 = vpop.f32.mrb[0].mxu0
  %442 = vmatprep.mubr.f32.mxu0 %v45
  %443 = vmatmul.mubr.f32.gmra.mrb[0].mxu0 %v44
  %v444 = vpop.f32.mrb[0].mxu0
  %v445 = vadd.f32 %v360, %v444
  %v446 = vpop.f32.mrb[0].mxu0
  %447 = vdwg.mxu0
  %448 = vmatprep.subr.mxu0 0.0
  %449 = vmatpush1.msra.mxu0 %v145
  %450 = vmatprep.subr.mxu0 0.0
  %451 = vmatpush1.msra.mxu0 %v146
  %452 = vmatprep.subr.mxu0 0.0
  %453 = vmatpush1.msra.mxu0 %v147
  %454 = vmatprep.subr.mxu0 0.0
  %455 = vmatpush1.msra.mxu0 %v148
  %456 = vmatprep.subr.mxu0 0.0
  %457 = vmatpush1.msra.mxu0 %v149
  %458 = vmatprep.subr.mxu0 0.0
  %459 = vmatpush1.msra.mxu0 %v150
  %460 = vmatprep.subr.mxu0 0.0
  %461 = vmatpush1.msra.mxu0 %v151
  %462 = vmatprep.subr.mxu0 0.0
  %463 = vmatpush1.msra.mxu0 %v152
  %464 = vmatprep.subr.mxu0 0.0
  %465 = vmatpush1.msra.mxu0 %v153
  %466 = vmatprep.subr.mxu0 0.0
  %467 = vmatpush1.msra.mxu0 %v154
  %468 = vmatprep.subr.mxu0 0.0
  %469 = vmatpush1.msra.mxu0 %v155
  %470 = vmatprep.subr.mxu0 0.0
  %471 = vmatpush1.msra.mxu0 %v156
  %472 = vmatprep.subr.mxu0 0.0
  %473 = vmatpush1.msra.mxu0 %v157
  %474 = vmatprep.subr.mxu0 0.0
  %475 = vmatpush1.msra.mxu0 %v158
  %476 = vmatprep.subr.mxu0 0.0
  %477 = vmatpush1.msra.mxu0 %v159
  %478 = vmatprep.subr.mxu0 0.0
  %479 = vmatpush1.msra.mxu0 %v160
  %480 = vmatprep.subr.mxu0 0.0
  %481 = vmatpush1.msra.mxu0 %v161
  %482 = vmatprep.subr.mxu0 0.0
  %483 = vmatpush1.msra.mxu0 %v162
  %484 = vmatprep.subr.mxu0 0.0
  %485 = vmatpush1.msra.mxu0 %v163
  %486 = vmatprep.subr.mxu0 0.0
  %487 = vmatpush1.msra.mxu0 %v164
  %488 = vmatprep.subr.mxu0 0.0
  %489 = vmatpush1.msra.mxu0 %v165
  %490 = vmatprep.subr.mxu0 0.0
  %491 = vmatpush1.msra.mxu0 %v166
  %492 = vmatprep.subr.mxu0 0.0
  %493 = vmatpush1.msra.mxu0 %v167
  %494 = vmatprep.subr.mxu0 0.0
  %495 = vmatpush1.msra.mxu0 %v168
  %496 = vmatprep.subr.mxu0 0.0
  %497 = vmatpush1.msra.mxu0 %v169
  %498 = vmatprep.subr.mxu0 0.0
  %499 = vmatpush1.msra.mxu0 %v170
  %500 = vmatprep.subr.mxu0 0.0
  %501 = vmatpush1.msra.mxu0 %v171
  %502 = vmatprep.subr.mxu0 0.0
  %503 = vmatpush1.msra.mxu0 %v172
  %504 = vmatprep.subr.mxu0 0.0
  %505 = vmatpush1.msra.mxu0 %v173
  %506 = vmatprep.subr.mxu0 0.0
  %507 = vmatpush1.msra.mxu0 %v174
  %508 = vmatprep.subr.mxu0 0.0
  %509 = vmatpush1.msra.mxu0 %v175
  %510 = vmatprep.subr.mxu0 0.0
  %511 = vmatpush1.msra.mxu0 %v176
  %512 = vmatprep.mubr.f32.mxu0 %v20
  %513 = vmatmul.mubr.f32.gmra.mrb[0].mxu0 %v19
  %v514 = vpop.f32.mrb[0].mxu0
  %v515 = vadd.f32 %v430, %v514
  %v516 = vpop.f32.mrb[0].mxu0
  %517 = vmatprep.mubr.f32.mxu0 %v29
  %518 = vmatmul.mubr.f32.gmra.mrb[0].mxu0 %v28
  %v519 = vpop.f32.mrb[0].mxu0
  %v520 = vadd.f32 %v435, %v519
  %v521 = vpop.f32.mrb[0].mxu0
  %522 = vmatprep.mubr.f32.mxu0 %v38
  %523 = vmatmul.mubr.f32.gmra.mrb[0].mxu0 %v37
  %v524 = vpop.f32.mrb[0].mxu0
  %v525 = vadd.f32 %v440, %v524
  %v526 = vpop.f32.mrb[0].mxu0
  %527 = vmatprep.mubr.f32.mxu0 %v47
  %528 = vmatmul.mubr.f32.gmra.mrb[0].mxu0 %v46
  %v529 = vpop.f32.mrb[0].mxu0
  %v530 = vadd.f32 %v445, %v529
  %v531 = vpop.f32.mrb[0].mxu0
  %532 = vdwg.mxu0
  %533 = vmatprep.subr.mxu0 0.0
  %534 = vmatpush1.msra.mxu0 %v177
  %535 = vmatprep.subr.mxu0 0.0
  %536 = vmatpush1.msra.mxu0 %v178
  %537 = vmatprep.subr.mxu0 0.0
  %538 = vmatpush1.msra.mxu0 %v179
  %539 = vmatprep.subr.mxu0 0.0
  %540 = vmatpush1.msra.mxu0 %v180
  %541 = vmatprep.subr.mxu0 0.0
  %542 = vmatpush1.msra.mxu0 %v181
  %543 = vmatprep.subr.mxu0 0.0
  %544 = vmatpush1.msra.mxu0 %v182
  %545 = vmatprep.subr.mxu0 0.0
  %546 = vmatpush1.msra.mxu0 %v183
  %547 = vmatprep.subr.mxu0 0.0
  %548 = vmatpush1.msra.mxu0 %v184
  %549 = vmatprep.subr.mxu0 0.0
  %550 = vmatpush1.msra.mxu0 %v185
  %551 = vmatprep.subr.mxu0 0.0
  %552 = vmatpush1.msra.mxu0 %v186
  %553 = vmatprep.subr.mxu0 0.0
  %554 = vmatpush1.msra.mxu0 %v187
  %555 = vmatprep.subr.mxu0 0.0
  %556 = vmatpush1.msra.mxu0 %v188
  %557 = vmatprep.subr.mxu0 0.0
  %558 = vmatpush1.msra.mxu0 %v189
  %559 = vmatprep.subr.mxu0 0.0
  %560 = vmatpush1.msra.mxu0 %v190
  %561 = vmatprep.subr.mxu0 0.0
  %562 = vmatpush1.msra.mxu0 %v191
  %563 = vmatprep.subr.mxu0 0.0
  %564 = vmatpush1.msra.mxu0 %v192
  %565 = vmatprep.subr.mxu0 0.0
  %566 = vmatpush1.msra.mxu0 0.0
  %567 = vmatprep.subr.mxu0 0.0
  %568 = vmatpush1.msra.mxu0 0.0
  %569 = vmatprep.subr.mxu0 0.0
  %570 = vmatpush1.msra.mxu0 0.0
  %571 = vmatprep.subr.mxu0 0.0
  %572 = vmatpush1.msra.mxu0 0.0
  %573 = vmatprep.subr.mxu0 0.0
  %574 = vmatpush1.msra.mxu0 0.0
  %575 = vmatprep.subr.mxu0 0.0
  %576 = vmatpush1.msra.mxu0 0.0
  %577 = vmatprep.subr.mxu0 0.0
  %578 = vmatpush1.msra.mxu0 0.0
  %579 = vmatprep.subr.mxu0 0.0
  %580 = vmatpush1.msra.mxu0 0.0
  %581 = vmatprep.subr.mxu0 0.0
  %582 = vmatpush1.msra.mxu0 0.0
  %583 = vmatprep.subr.mxu0 0.0
  %584 = vmatpush1.msra.mxu0 0.0
  %585 = vmatprep.subr.mxu0 0.0
  %586 = vmatpush1.msra.mxu0 0.0
  %587 = vmatprep.subr.mxu0 0.0
  %588 = vmatpush1.msra.mxu0 0.0
  %589 = vmatprep.subr.mxu0 0.0
  %590 = vmatpush1.msra.mxu0 0.0
  %591 = vmatprep.subr.mxu0 0.0
  %592 = vmatpush1.msra.mxu0 0.0
  %593 = vmatprep.subr.mxu0 0.0
  %594 = vmatpush1.msra.mxu0 0.0
  %595 = vmatprep.subr.mxu0 0.0
  %596 = vmatpush1.msra.mxu0 0.0
  %597 = vmatprep.mubr.f32.mxu0 0.0
  %598 = vmatmul.mubr.f32.gmra.mrb[0].mxu0 %v21
  %v599 = vpop.f32.mrb[0].mxu0
  %v600 = vadd.f32 %v515, %v599
  %v601 = vpop.f32.mrb[0].mxu0
  %602 = vmatprep.mubr.f32.mxu0 0.0
  %603 = vmatmul.mubr.f32.gmra.mrb[0].mxu0 %v30
  %v604 = vpop.f32.mrb[0].mxu0
  %v605 = vadd.f32 %v520, %v604
  %v606 = vpop.f32.mrb[0].mxu0
  %607 = vmatprep.mubr.f32.mxu0 0.0
  %608 = vmatmul.mubr.f32.gmra.mrb[0].mxu0 %v39
  %v609 = vpop.f32.mrb[0].mxu0
  %v610 = vadd.f32 %v525, %v609
  %v611 = vpop.f32.mrb[0].mxu0
  %612 = vmatprep.mubr.f32.mxu0 0.0
  %613 = vmatmul.mubr.f32.gmra.mrb[0].mxu0 %v48
  %v614 = vpop.f32.mrb[0].mxu0
  %v615 = vadd.f32 %v530, %v614
  %v616 = vpop.f32.mrb[0].mxu0
  %617 = vdwg.mxu0
  %618 = vst [vmem:[%s2] sm:$0xff] %v600
  %619 = vst [vmem:[%s2 + $0x8] sm:$0xff] %v605
  %620 = vst [vmem:[%s2 + $0x10] sm:$0xff] %v610
  %621 = vst [vmem:[%s2 + $0x18] sm:$0xff] %v615
  %p622 = scmp.eq.s32.totalorder 0, 0
  // Predicated region
  $region10: #{encoder_conv_com.30} parent=0 // pred_check
    %p623 = pneg %p622
  $region11: #{encoder_conv_com.30} parent=0 // pred_check_branch
    %625 = sbr.rel (%p623) target = $region13
  $region12: #{encoder_conv_com.30} parent=0 // pred_region
    %626 = vst [vmem:[%s3] sm:$0x3] 0.0
  $region13: #{encoder_conv_com.30} parent=0 // pred_fallthru
    _
  %v627 = vld [vmem:[%s3] sm:$0x3]
  %v628 = vadd.f32 %v600, %v605
  %v629 = vadd.f32 %v628, %v610
  %v630 = vadd.f32 %v629, %v615
  %v631 = vrot.slane %v630, 4
  %v632 = vadd.f32 %v630, %v631
  %v633 = vrot.slane %v632, 2
  %v634 = vadd.f32 %v632, %v633
  %v635 = vrot.slane %v634, 1
  %v636 = vadd.f32 %v634, %v635
  %v637 = vmul.f32 %v600, %v600
  %v638 = vmul.f32 %v605, %v605
  %v639 = vmul.f32 %v610, %v610
  %v640 = vmul.f32 %v615, %v615
  %v641 = vadd.f32 %v637, %v638
  %v642 = vadd.f32 %v641, %v639
  %v643 = vadd.f32 %v642, %v640
  %v644 = vrot.slane %v643, 4
  %v645 = vadd.f32 %v643, %v644
  %v646 = vrot.slane %v645, 2
  %v647 = vadd.f32 %v645, %v646
  %v648 = vrot.slane %v647, 1
  %v649 = vadd.f32 %v647, %v648
  %vm650 = vcmask 1040384
  %v651 = vsel %vm650, %v636, %v649
  %v652 = vadd.f32 %v627, %v651
  %653 = vst [vmem:[%s3] sm:$0x3] %v652
  // Predicated region
  $region14: #{encoder_conv_com.30} parent=0 // pred_check
    _
  $region15: #{encoder_conv_com.30} parent=0 // pred_check_branch
    %655 = sbr.rel (0) target = $region17
  $region16: #{encoder_conv_com.30} parent=0 // pred_region
    _
  $region17: #{encoder_conv_com.30} parent=0 // pred_fallthru
    _
  // Predicated region
  $region18: #{encoder_conv_com.30} parent=0 // pred_check
    _
  $region19: #{encoder_conv_com.30} parent=0 // pred_check_branch
    %657 = sbr.rel (0) target = $region21
  $region20: #{encoder_conv_com.30} parent=0 // pred_region
    _
  $region21: #{encoder_conv_com.30} parent=0 // pred_fallthru
    _
  // Predicated region
  $region22: #{encoder_conv_com.30} parent=0 // pred_check
    _
  $region23: #{encoder_conv_com.30} parent=0 // pred_check_branch
    %659 = sbr.rel (0) target = $region25
  $region24: #{encoder_conv_com.30} parent=0 // pred_region
    _
  $region25: #{encoder_conv_com.30} parent=0 // pred_fallthru
    _
  // Predicated region
  $region26: #{encoder_conv_com.30} parent=0 // pred_check
    _
  $region27: #{encoder_conv_com.30} parent=0 // pred_check_branch
    %661 = sbr.rel (0) target = $region29
  $region28: #{encoder_conv_com.30} parent=0 // pred_region
    _
  $region29: #{encoder_conv_com.30} parent=0 // pred_fallthru
    _

// kernel: encoder_conv_com.33
$region0: #{encoder_conv_com.33}
  #allocation0 [shape = 'u32[]', space=smem, size = 0x4, offset = 0x4, fixed_abs, tag = 'smem constant byte address 0x4 - core index']
  #allocation1 [shape = 'u32[144,128]{1,0:T(1,128)}', space=vmem, size = 0x12000, scoped, tag = 'internal scratch']
  %s0 = inlined_call_operand.vmem [shape: f32[4,256], index: 0, kind: input, shape index: {}]
  %s1 = inlined_call_operand.vmem [shape: f32[1,256], index: 1, kind: input, shape index: {}]
  %s2 = inlined_call_operand.vmem [shape: f32[1,256], index: 2, kind: input, shape index: {}]
  %s3 = inlined_call_operand.vmem [shape: f32[4,256], index: 3, kind: output, shape index: {}]
  %s4 = sld [smem:[#allocation0]]
  $region22: #{encoder_conv_com.33} parent=0
    _
  %s6 = ssub.s32 1, %s4
  %s7 = scalar_select 0, %s6, %s4
  // Predicated region
  $region2: #{encoder_conv_com.33} parent=0 // pred_check
    _
  $region3: #{encoder_conv_com.33} parent=0 // pred_check_branch
    %9 = sbr.rel (0) target = $region5
  $region4: #{encoder_conv_com.33} parent=0 // pred_region
    _
  $region5: #{encoder_conv_com.33} parent=0 // pred_fallthru
    _
  // Predicated region
  $region6: #{encoder_conv_com.33} parent=0 // pred_check
    _
  $region7: #{encoder_conv_com.33} parent=0 // pred_check_branch
    %11 = sbr.rel (0) target = $region9
  $region8: #{encoder_conv_com.33} parent=0 // pred_region
    _
  $region9: #{encoder_conv_com.33} parent=0 // pred_fallthru
    _
  // Predicated region
  $region10: #{encoder_conv_com.33} parent=0 // pred_check
    _
  $region11: #{encoder_conv_com.33} parent=0 // pred_check_branch
    %13 = sbr.rel (0) target = $region13
  $region12: #{encoder_conv_com.33} parent=0 // pred_region
    _
  $region13: #{encoder_conv_com.33} parent=0 // pred_fallthru
    _
  %v14 = vld [vmem:[%s0] sm:$0xff]
  %v15 = vld [vmem:[%s1] sm:$0x3]
  %v17 = vlaneseq
  %v18 = vshrl.u32 %v17, 7
  %v19 = vsub.s32 0, %v18
  %v20 = vrot.slane %v15, %v19
  %v21 = vlaneseq
  %v22 = vshrl.u32 %v21, 7
  %v23 = vsub.s32 1, %v22
  %v24 = vrot.slane %v15, %v23
  %v25 = vcombine.low %v20, %v24
  %v27 = vmul.f32 %v14, %v25
  %v28 = vld [vmem:[%s2] sm:$0x3]
  %v30 = vlaneseq
  %v31 = vshrl.u32 %v30, 7
  %v32 = vsub.s32 0, %v31
  %v33 = vrot.slane %v28, %v32
  %v34 = vlaneseq
  %v35 = vshrl.u32 %v34, 7
  %v36 = vsub.s32 1, %v35
  %v37 = vrot.slane %v28, %v36
  %v38 = vcombine.low %v33, %v37
  %v40 = vadd.f32 %v27, %v38
  %v41 = vmax.f32 %v40, 0.0
  %42 = vst [vmem:[%s3] sm:$0xff] %v41
  // Predicated region
  $region14: #{encoder_conv_com.33} parent=0 // pred_check
    _
  $region15: #{encoder_conv_com.33} parent=0 // pred_check_branch
    %44 = sbr.rel (0) target = $region17
  $region16: #{encoder_conv_com.33} parent=0 // pred_region
    _
  $region17: #{encoder_conv_com.33} parent=0 // pred_fallthru
    _
  // Predicated region
  $region18: #{encoder_conv_com.33} parent=0 // pred_check
    _
  $region19: #{encoder_conv_com.33} parent=0 // pred_check_branch
    %46 = sbr.rel (0) target = $region21
  $region20: #{encoder_conv_com.33} parent=0 // pred_region
    _
  $region21: #{encoder_conv_com.33} parent=0 // pred_fallthru
    _

// kernel: encoder_conv_com.32
$region0: #{encoder_conv_com.32}
  #allocation0 [shape = 'u32[]', space=smem, size = 0x4, offset = 0x4, fixed_abs, tag = 'smem constant byte address 0x4 - core index']
  #allocation1 [shape = 'u32[144,128]{1,0:T(1,128)}', space=vmem, size = 0x12000, scoped, tag = 'internal scratch']
  %s0 = inlined_call_operand.vmem [shape: f32[8,1152], index: 0, kind: input, shape index: {}]
  %s1 = inlined_call_operand.vmem [shape: f32[1152,128], index: 1, kind: input, shape index: {}]
  %s2 = inlined_call_operand.vmem [shape: f32[8,128], index: 2, kind: output, shape index: {0}]
  %s3 = inlined_call_operand.vmem [shape: f32[2,128], index: 3, kind: output, shape index: {1}]
  %4 = xla_tuple %s2, %s3
  %s5 = sld [smem:[#allocation0]]
  $region30: #{encoder_conv_com.32} parent=0
    _
  %s7 = ssub.s32 1, %s5
  %s8 = scalar_select 0, %s7, %s5
  // Predicated region
  $region2: #{encoder_conv_com.32} parent=0 // pred_check
    _
  $region3: #{encoder_conv_com.32} parent=0 // pred_check_branch
    %10 = sbr.rel (0) target = $region5
  $region4: #{encoder_conv_com.32} parent=0 // pred_region
    _
  $region5: #{encoder_conv_com.32} parent=0 // pred_fallthru
    _
  // Predicated region
  $region6: #{encoder_conv_com.32} parent=0 // pred_check
    _
  $region7: #{encoder_conv_com.32} parent=0 // pred_check_branch
    %12 = sbr.rel (0) target = $region9
  $region8: #{encoder_conv_com.32} parent=0 // pred_region
    _
  $region9: #{encoder_conv_com.32} parent=0 // pred_fallthru
    _
  %v13 = vld [vmem:[%s0] sm:$0xff]
  %v14 = vld [vmem:[%s0 + $0x8] sm:$0xff]
  %v15 = vld [vmem:[%s0 + $0x10] sm:$0xff]
  %v16 = vld [vmem:[%s0 + $0x18] sm:$0xff]
  %v17 = vld [vmem:[%s0 + $0x20] sm:$0xff]
  %v18 = vld [vmem:[%s0 + $0x28] sm:$0xff]
  %v19 = vld [vmem:[%s0 + $0x30] sm:$0xff]
  %v20 = vld [vmem:[%s0 + $0x38] sm:$0xff]
  %v21 = vld [vmem:[%s0 + $0x40] sm:$0xff]
  %v22 = vld [vmem:[%s1] sm:$0xff]
  %v23 = vld [vmem:[%s1 + $0x8] sm:$0xff]
  %v24 = vld [vmem:[%s1 + $0x10] sm:$0xff]
  %v25 = vld [vmem:[%s1 + $0x18] sm:$0xff]
  %v26 = vld [vmem:[%s1 + $0x20] sm:$0xff]
  %v27 = vld [vmem:[%s1 + $0x28] sm:$0xff]
  %v28 = vld [vmem:[%s1 + $0x30] sm:$0xff]
  %v29 = vld [vmem:[%s1 + $0x38] sm:$0xff]
  %v30 = vld [vmem:[%s1 + $0x40] sm:$0xff]
  %v31 = vld [vmem:[%s1 + $0x48] sm:$0xff]
  %v32 = vld [vmem:[%s1 + $0x50] sm:$0xff]
  %v33 = vld [vmem:[%s1 + $0x58] sm:$0xff]
  %v34 = vld [vmem:[%s1 + $0x60] sm:$0xff]
  %v35 = vld [vmem:[%s1 + $0x68] sm:$0xff]
  %v36 = vld [vmem:[%s1 + $0x70] sm:$0xff]
  %v37 = vld [vmem:[%s1 + $0x78] sm:$0xff]
  %v38 = vld [vmem:[%s1 + $0x80] sm:$0xff]
  %v39 = vld [vmem:[%s1 + $0x88] sm:$0xff]
  %v40 = vld [vmem:[%s1 + $0x90] sm:$0xff]
  %v41 = vld [vmem:[%s1 + $0x98] sm:$0xff]
  %v42 = vld [vmem:[%s1 + $0xa0] sm:$0xff]
  %v43 = vld [vmem:[%s1 + $0xa8] sm:$0xff]
  %v44 = vld [vmem:[%s1 + $0xb0] sm:$0xff]
  %v45 = vld [vmem:[%s1 + $0xb8] sm:$0xff]
  %v46 = vld [vmem:[%s1 + $0xc0] sm:$0xff]
  %v47 = vld [vmem:[%s1 + $0xc8] sm:$0xff]
  %v48 = vld [vmem:[%s1 + $0xd0] sm:$0xff]
  %v49 = vld [vmem:[%s1 + $0xd8] sm:$0xff]
  %v50 = vld [vmem:[%s1 + $0xe0] sm:$0xff]
  %v51 = vld [vmem:[%s1 + $0xe8] sm:$0xff]
  %v52 = vld [vmem:[%s1 + $0xf0] sm:$0xff]
  %v53 = vld [vmem:[%s1 + $0xf8] sm:$0xff]
  %v54 = vld [vmem:[%s1 + $0x100] sm:$0xff]
  %v55 = vld [vmem:[%s1 + $0x108] sm:$0xff]
  %v56 = vld [vmem:[%s1 + $0x110] sm:$0xff]
  %v57 = vld [vmem:[%s1 + $0x118] sm:$0xff]
  %v58 = vld [vmem:[%s1 + $0x120] sm:$0xff]
  %v59 = vld [vmem:[%s1 + $0x128] sm:$0xff]
  %v60 = vld [vmem:[%s1 + $0x130] sm:$0xff]
  %v61 = vld [vmem:[%s1 + $0x138] sm:$0xff]
  %v62 = vld [vmem:[%s1 + $0x140] sm:$0xff]
  %v63 = vld [vmem:[%s1 + $0x148] sm:$0xff]
  %v64 = vld [vmem:[%s1 + $0x150] sm:$0xff]
  %v65 = vld [vmem:[%s1 + $0x158] sm:$0xff]
  %v66 = vld [vmem:[%s1 + $0x160] sm:$0xff]
  %v67 = vld [vmem:[%s1 + $0x168] sm:$0xff]
  %v68 = vld [vmem:[%s1 + $0x170] sm:$0xff]
  %v69 = vld [vmem:[%s1 + $0x178] sm:$0xff]
  %v70 = vld [vmem:[%s1 + $0x180] sm:$0xff]
  %v71 = vld [vmem:[%s1 + $0x188] sm:$0xff]
  %v72 = vld [vmem:[%s1 + $0x190] sm:$0xff]
  %v73 = vld [vmem:[%s1 + $0x198] sm:$0xff]
  %v74 = vld [vmem:[%s1 + $0x1a0] sm:$0xff]
  %v75 = vld [vmem:[%s1 + $0x1a8] sm:$0xff]
  %v76 = vld [vmem:[%s1 + $0x1b0] sm:$0xff]
  %v77 = vld [vmem:[%s1 + $0x1b8] sm:$0xff]
  %v78 = vld [vmem:[%s1 + $0x1c0] sm:$0xff]
  %v79 = vld [vmem:[%s1 + $0x1c8] sm:$0xff]
  %v80 = vld [vmem:[%s1 + $0x1d0] sm:$0xff]
  %v81 = vld [vmem:[%s1 + $0x1d8] sm:$0xff]
  %v82 = vld [vmem:[%s1 + $0x1e0] sm:$0xff]
  %v83 = vld [vmem:[%s1 + $0x1e8] sm:$0xff]
  %v84 = vld [vmem:[%s1 + $0x1f0] sm:$0xff]
  %v85 = vld [vmem:[%s1 + $0x1f8] sm:$0xff]
  %v86 = vld [vmem:[%s1 + $0x200] sm:$0xff]
  %v87 = vld [vmem:[%s1 + $0x208] sm:$0xff]
  %v88 = vld [vmem:[%s1 + $0x210] sm:$0xff]
  %v89 = vld [vmem:[%s1 + $0x218] sm:$0xff]
  %v90 = vld [vmem:[%s1 + $0x220] sm:$0xff]
  %v91 = vld [vmem:[%s1 + $0x228] sm:$0xff]
  %v92 = vld [vmem:[%s1 + $0x230] sm:$0xff]
  %v93 = vld [vmem:[%s1 + $0x238] sm:$0xff]
  %v94 = vld [vmem:[%s1 + $0x240] sm:$0xff]
  %v95 = vld [vmem:[%s1 + $0x248] sm:$0xff]
  %v96 = vld [vmem:[%s1 + $0x250] sm:$0xff]
  %v97 = vld [vmem:[%s1 + $0x258] sm:$0xff]
  %v98 = vld [vmem:[%s1 + $0x260] sm:$0xff]
  %v99 = vld [vmem:[%s1 + $0x268] sm:$0xff]
  %v100 = vld [vmem:[%s1 + $0x270] sm:$0xff]
  %v101 = vld [vmem:[%s1 + $0x278] sm:$0xff]
  %v102 = vld [vmem:[%s1 + $0x280] sm:$0xff]
  %v103 = vld [vmem:[%s1 + $0x288] sm:$0xff]
  %v104 = vld [vmem:[%s1 + $0x290] sm:$0xff]
  %v105 = vld [vmem:[%s1 + $0x298] sm:$0xff]
  %v106 = vld [vmem:[%s1 + $0x2a0] sm:$0xff]
  %v107 = vld [vmem:[%s1 + $0x2a8] sm:$0xff]
  %v108 = vld [vmem:[%s1 + $0x2b0] sm:$0xff]
  %v109 = vld [vmem:[%s1 + $0x2b8] sm:$0xff]
  %v110 = vld [vmem:[%s1 + $0x2c0] sm:$0xff]
  %v111 = vld [vmem:[%s1 + $0x2c8] sm:$0xff]
  %v112 = vld [vmem:[%s1 + $0x2d0] sm:$0xff]
  %v113 = vld [vmem:[%s1 + $0x2d8] sm:$0xff]
  %v114 = vld [vmem:[%s1 + $0x2e0] sm:$0xff]
  %v115 = vld [vmem:[%s1 + $0x2e8] sm:$0xff]
  %v116 = vld [vmem:[%s1 + $0x2f0] sm:$0xff]
  %v117 = vld [vmem:[%s1 + $0x2f8] sm:$0xff]
  %v118 = vld [vmem:[%s1 + $0x300] sm:$0xff]
  %v119 = vld [vmem:[%s1 + $0x308] sm:$0xff]
  %v120 = vld [vmem:[%s1 + $0x310] sm:$0xff]
  %v121 = vld [vmem:[%s1 + $0x318] sm:$0xff]
  %v122 = vld [vmem:[%s1 + $0x320] sm:$0xff]
  %v123 = vld [vmem:[%s1 + $0x328] sm:$0xff]
  %v124 = vld [vmem:[%s1 + $0x330] sm:$0xff]
  %v125 = vld [vmem:[%s1 + $0x338] sm:$0xff]
  %v126 = vld [vmem:[%s1 + $0x340] sm:$0xff]
  %v127 = vld [vmem:[%s1 + $0x348] sm:$0xff]
  %v128 = vld [vmem:[%s1 + $0x350] sm:$0xff]
  %v129 = vld [vmem:[%s1 + $0x358] sm:$0xff]
  %v130 = vld [vmem:[%s1 + $0x360] sm:$0xff]
  %v131 = vld [vmem:[%s1 + $0x368] sm:$0xff]
  %v132 = vld [vmem:[%s1 + $0x370] sm:$0xff]
  %v133 = vld [vmem:[%s1 + $0x378] sm:$0xff]
  %v134 = vld [vmem:[%s1 + $0x380] sm:$0xff]
  %v135 = vld [vmem:[%s1 + $0x388] sm:$0xff]
  %v136 = vld [vmem:[%s1 + $0x390] sm:$0xff]
  %v137 = vld [vmem:[%s1 + $0x398] sm:$0xff]
  %v138 = vld [vmem:[%s1 + $0x3a0] sm:$0xff]
  %v139 = vld [vmem:[%s1 + $0x3a8] sm:$0xff]
  %v140 = vld [vmem:[%s1 + $0x3b0] sm:$0xff]
  %v141 = vld [vmem:[%s1 + $0x3b8] sm:$0xff]
  %v142 = vld [vmem:[%s1 + $0x3c0] sm:$0xff]
  %v143 = vld [vmem:[%s1 + $0x3c8] sm:$0xff]
  %v144 = vld [vmem:[%s1 + $0x3d0] sm:$0xff]
  %v145 = vld [vmem:[%s1 + $0x3d8] sm:$0xff]
  %v146 = vld [vmem:[%s1 + $0x3e0] sm:$0xff]
  %v147 = vld [vmem:[%s1 + $0x3e8] sm:$0xff]
  %v148 = vld [vmem:[%s1 + $0x3f0] sm:$0xff]
  %v149 = vld [vmem:[%s1 + $0x3f8] sm:$0xff]
  %v150 = vld [vmem:[%s1 + $0x400] sm:$0xff]
  %v151 = vld [vmem:[%s1 + $0x408] sm:$0xff]
  %v152 = vld [vmem:[%s1 + $0x410] sm:$0xff]
  %v153 = vld [vmem:[%s1 + $0x418] sm:$0xff]
  %v154 = vld [vmem:[%s1 + $0x420] sm:$0xff]
  %v155 = vld [vmem:[%s1 + $0x428] sm:$0xff]
  %v156 = vld [vmem:[%s1 + $0x430] sm:$0xff]
  %v157 = vld [vmem:[%s1 + $0x438] sm:$0xff]
  %v158 = vld [vmem:[%s1 + $0x440] sm:$0xff]
  %v159 = vld [vmem:[%s1 + $0x448] sm:$0xff]
  %v160 = vld [vmem:[%s1 + $0x450] sm:$0xff]
  %v161 = vld [vmem:[%s1 + $0x458] sm:$0xff]
  %v162 = vld [vmem:[%s1 + $0x460] sm:$0xff]
  %v163 = vld [vmem:[%s1 + $0x468] sm:$0xff]
  %v164 = vld [vmem:[%s1 + $0x470] sm:$0xff]
  %v165 = vld [vmem:[%s1 + $0x478] sm:$0xff]
  %166 = vmatprep.subr.mxu0 0.0
  %167 = vmatpush1.msra.mxu0 %v22
  %168 = vmatprep.subr.mxu0 0.0
  %169 = vmatpush1.msra.mxu0 %v23
  %170 = vmatprep.subr.mxu0 0.0
  %171 = vmatpush1.msra.mxu0 %v24
  %172 = vmatprep.subr.mxu0 0.0
  %173 = vmatpush1.msra.mxu0 %v25
  %174 = vmatprep.subr.mxu0 0.0
  %175 = vmatpush1.msra.mxu0 %v26
  %176 = vmatprep.subr.mxu0 0.0
  %177 = vmatpush1.msra.mxu0 %v27
  %178 = vmatprep.subr.mxu0 0.0
  %179 = vmatpush1.msra.mxu0 %v28
  %180 = vmatprep.subr.mxu0 0.0
  %181 = vmatpush1.msra.mxu0 %v29
  %182 = vmatprep.subr.mxu0 0.0
  %183 = vmatpush1.msra.mxu0 %v30
  %184 = vmatprep.subr.mxu0 0.0
  %185 = vmatpush1.msra.mxu0 %v31
  %186 = vmatprep.subr.mxu0 0.0
  %187 = vmatpush1.msra.mxu0 %v32
  %188 = vmatprep.subr.mxu0 0.0
  %189 = vmatpush1.msra.mxu0 %v33
  %190 = vmatprep.subr.mxu0 0.0
  %191 = vmatpush1.msra.mxu0 %v34
  %192 = vmatprep.subr.mxu0 0.0
  %193 = vmatpush1.msra.mxu0 %v35
  %194 = vmatprep.subr.mxu0 0.0
  %195 = vmatpush1.msra.mxu0 %v36
  %196 = vmatprep.subr.mxu0 0.0
  %197 = vmatpush1.msra.mxu0 %v37
  %198 = vmatprep.subr.mxu0 0.0
  %199 = vmatpush1.msra.mxu0 %v38
  %200 = vmatprep.subr.mxu0 0.0
  %201 = vmatpush1.msra.mxu0 %v39
  %202 = vmatprep.subr.mxu0 0.0
  %203 = vmatpush1.msra.mxu0 %v40
  %204 = vmatprep.subr.mxu0 0.0
  %205 = vmatpush1.msra.mxu0 %v41
  %206 = vmatprep.subr.mxu0 0.0
  %207 = vmatpush1.msra.mxu0 %v42
  %208 = vmatprep.subr.mxu0 0.0
  %209 = vmatpush1.msra.mxu0 %v43
  %210 = vmatprep.subr.mxu0 0.0
  %211 = vmatpush1.msra.mxu0 %v44
  %212 = vmatprep.subr.mxu0 0.0
  %213 = vmatpush1.msra.mxu0 %v45
  %214 = vmatprep.subr.mxu0 0.0
  %215 = vmatpush1.msra.mxu0 %v46
  %216 = vmatprep.subr.mxu0 0.0
  %217 = vmatpush1.msra.mxu0 %v47
  %218 = vmatprep.subr.mxu0 0.0
  %219 = vmatpush1.msra.mxu0 %v48
  %220 = vmatprep.subr.mxu0 0.0
  %221 = vmatpush1.msra.mxu0 %v49
  %222 = vmatprep.subr.mxu0 0.0
  %223 = vmatpush1.msra.mxu0 %v50
  %224 = vmatprep.subr.mxu0 0.0
  %225 = vmatpush1.msra.mxu0 %v51
  %226 = vmatprep.subr.mxu0 0.0
  %227 = vmatpush1.msra.mxu0 %v52
  %228 = vmatprep.subr.mxu0 0.0
  %229 = vmatpush1.msra.mxu0 %v53
  %230 = vmatprep.mubr.f32.mxu0 %v14
  %231 = vmatmul.mubr.f32.gmra.mrb[0].mxu0 %v13
  %v232 = vpop.f32.mrb[0].mxu0
  %v233 = vadd.f32 0.0, %v232
  %v234 = vpop.f32.mrb[0].mxu0
  %235 = vdwg.mxu0
  %236 = vmatprep.subr.mxu0 0.0
  %237 = vmatpush1.msra.mxu0 %v54
  %238 = vmatprep.subr.mxu0 0.0
  %239 = vmatpush1.msra.mxu0 %v55
  %240 = vmatprep.subr.mxu0 0.0
  %241 = vmatpush1.msra.mxu0 %v56
  %242 = vmatprep.subr.mxu0 0.0
  %243 = vmatpush1.msra.mxu0 %v57
  %244 = vmatprep.subr.mxu0 0.0
  %245 = vmatpush1.msra.mxu0 %v58
  %246 = vmatprep.subr.mxu0 0.0
  %247 = vmatpush1.msra.mxu0 %v59
  %248 = vmatprep.subr.mxu0 0.0
  %249 = vmatpush1.msra.mxu0 %v60
  %250 = vmatprep.subr.mxu0 0.0
  %251 = vmatpush1.msra.mxu0 %v61
  %252 = vmatprep.subr.mxu0 0.0
  %253 = vmatpush1.msra.mxu0 %v62
  %254 = vmatprep.subr.mxu0 0.0
  %255 = vmatpush1.msra.mxu0 %v63
  %256 = vmatprep.subr.mxu0 0.0
  %257 = vmatpush1.msra.mxu0 %v64
  %258 = vmatprep.subr.mxu0 0.0
  %259 = vmatpush1.msra.mxu0 %v65
  %260 = vmatprep.subr.mxu0 0.0
  %261 = vmatpush1.msra.mxu0 %v66
  %262 = vmatprep.subr.mxu0 0.0
  %263 = vmatpush1.msra.mxu0 %v67
  %264 = vmatprep.subr.mxu0 0.0
  %265 = vmatpush1.msra.mxu0 %v68
  %266 = vmatprep.subr.mxu0 0.0
  %267 = vmatpush1.msra.mxu0 %v69
  %268 = vmatprep.subr.mxu0 0.0
  %269 = vmatpush1.msra.mxu0 %v70
  %270 = vmatprep.subr.mxu0 0.0
  %271 = vmatpush1.msra.mxu0 %v71
  %272 = vmatprep.subr.mxu0 0.0
  %273 = vmatpush1.msra.mxu0 %v72
  %274 = vmatprep.subr.mxu0 0.0
  %275 = vmatpush1.msra.mxu0 %v73
  %276 = vmatprep.subr.mxu0 0.0
  %277 = vmatpush1.msra.mxu0 %v74
  %278 = vmatprep.subr.mxu0 0.0
  %279 = vmatpush1.msra.mxu0 %v75
  %280 = vmatprep.subr.mxu0 0.0
  %281 = vmatpush1.msra.mxu0 %v76
  %282 = vmatprep.subr.mxu0 0.0
  %283 = vmatpush1.msra.mxu0 %v77
  %284 = vmatprep.subr.mxu0 0.0
  %285 = vmatpush1.msra.mxu0 %v78
  %286 = vmatprep.subr.mxu0 0.0
  %287 = vmatpush1.msra.mxu0 %v79
  %288 = vmatprep.subr.mxu0 0.0
  %289 = vmatpush1.msra.mxu0 %v80
  %290 = vmatprep.subr.mxu0 0.0
  %291 = vmatpush1.msra.mxu0 %v81
  %292 = vmatprep.subr.mxu0 0.0
  %293 = vmatpush1.msra.mxu0 %v82
  %294 = vmatprep.subr.mxu0 0.0
  %295 = vmatpush1.msra.mxu0 %v83
  %296 = vmatprep.subr.mxu0 0.0
  %297 = vmatpush1.msra.mxu0 %v84
  %298 = vmatprep.subr.mxu0 0.0
  %299 = vmatpush1.msra.mxu0 %v85
  %300 = vmatprep.mubr.f32.mxu0 %v16
  %301 = vmatmul.mubr.f32.gmra.mrb[0].mxu0 %v15
  %v302 = vpop.f32.mrb[0].mxu0
  %v303 = vadd.f32 %v233, %v302
  %v304 = vpop.f32.mrb[0].mxu0
  %305 = vdwg.mxu0
  %306 = vmatprep.subr.mxu0 0.0
  %307 = vmatpush1.msra.mxu0 %v86
  %308 = vmatprep.subr.mxu0 0.0
  %309 = vmatpush1.msra.mxu0 %v87
  %310 = vmatprep.subr.mxu0 0.0
  %311 = vmatpush1.msra.mxu0 %v88
  %312 = vmatprep.subr.mxu0 0.0
  %313 = vmatpush1.msra.mxu0 %v89
  %314 = vmatprep.subr.mxu0 0.0
  %315 = vmatpush1.msra.mxu0 %v90
  %316 = vmatprep.subr.mxu0 0.0
  %317 = vmatpush1.msra.mxu0 %v91
  %318 = vmatprep.subr.mxu0 0.0
  %319 = vmatpush1.msra.mxu0 %v92
  %320 = vmatprep.subr.mxu0 0.0
  %321 = vmatpush1.msra.mxu0 %v93
  %322 = vmatprep.subr.mxu0 0.0
  %323 = vmatpush1.msra.mxu0 %v94
  %324 = vmatprep.subr.mxu0 0.0
  %325 = vmatpush1.msra.mxu0 %v95
  %326 = vmatprep.subr.mxu0 0.0
  %327 = vmatpush1.msra.mxu0 %v96
  %328 = vmatprep.subr.mxu0 0.0
  %329 = vmatpush1.msra.mxu0 %v97
  %330 = vmatprep.subr.mxu0 0.0
  %331 = vmatpush1.msra.mxu0 %v98
  %332 = vmatprep.subr.mxu0 0.0
  %333 = vmatpush1.msra.mxu0 %v99
  %334 = vmatprep.subr.mxu0 0.0
  %335 = vmatpush1.msra.mxu0 %v100
  %336 = vmatprep.subr.mxu0 0.0
  %337 = vmatpush1.msra.mxu0 %v101
  %338 = vmatprep.subr.mxu0 0.0
  %339 = vmatpush1.msra.mxu0 %v102
  %340 = vmatprep.subr.mxu0 0.0
  %341 = vmatpush1.msra.mxu0 %v103
  %342 = vmatprep.subr.mxu0 0.0
  %343 = vmatpush1.msra.mxu0 %v104
  %344 = vmatprep.subr.mxu0 0.0
  %345 = vmatpush1.msra.mxu0 %v105
  %346 = vmatprep.subr.mxu0 0.0
  %347 = vmatpush1.msra.mxu0 %v106
  %348 = vmatprep.subr.mxu0 0.0
  %349 = vmatpush1.msra.mxu0 %v107
  %350 = vmatprep.subr.mxu0 0.0
  %351 = vmatpush1.msra.mxu0 %v108
  %352 = vmatprep.subr.mxu0 0.0
  %353 = vmatpush1.msra.mxu0 %v109
  %354 = vmatprep.subr.mxu0 0.0
  %355 = vmatpush1.msra.mxu0 %v110
  %356 = vmatprep.subr.mxu0 0.0
  %357 = vmatpush1.msra.mxu0 %v111
  %358 = vmatprep.subr.mxu0 0.0
  %359 = vmatpush1.msra.mxu0 %v112
  %360 = vmatprep.subr.mxu0 0.0
  %361 = vmatpush1.msra.mxu0 %v113
  %362 = vmatprep.subr.mxu0 0.0
  %363 = vmatpush1.msra.mxu0 %v114
  %364 = vmatprep.subr.mxu0 0.0
  %365 = vmatpush1.msra.mxu0 %v115
  %366 = vmatprep.subr.mxu0 0.0
  %367 = vmatpush1.msra.mxu0 %v116
  %368 = vmatprep.subr.mxu0 0.0
  %369 = vmatpush1.msra.mxu0 %v117
  %370 = vmatprep.mubr.f32.mxu0 %v18
  %371 = vmatmul.mubr.f32.gmra.mrb[0].mxu0 %v17
  %v372 = vpop.f32.mrb[0].mxu0
  %v373 = vadd.f32 %v303, %v372
  %v374 = vpop.f32.mrb[0].mxu0
  %375 = vdwg.mxu0
  %376 = vmatprep.subr.mxu0 0.0
  %377 = vmatpush1.msra.mxu0 %v118
  %378 = vmatprep.subr.mxu0 0.0
  %379 = vmatpush1.msra.mxu0 %v119
  %380 = vmatprep.subr.mxu0 0.0
  %381 = vmatpush1.msra.mxu0 %v120
  %382 = vmatprep.subr.mxu0 0.0
  %383 = vmatpush1.msra.mxu0 %v121
  %384 = vmatprep.subr.mxu0 0.0
  %385 = vmatpush1.msra.mxu0 %v122
  %386 = vmatprep.subr.mxu0 0.0
  %387 = vmatpush1.msra.mxu0 %v123
  %388 = vmatprep.subr.mxu0 0.0
  %389 = vmatpush1.msra.mxu0 %v124
  %390 = vmatprep.subr.mxu0 0.0
  %391 = vmatpush1.msra.mxu0 %v125
  %392 = vmatprep.subr.mxu0 0.0
  %393 = vmatpush1.msra.mxu0 %v126
  %394 = vmatprep.subr.mxu0 0.0
  %395 = vmatpush1.msra.mxu0 %v127
  %396 = vmatprep.subr.mxu0 0.0
  %397 = vmatpush1.msra.mxu0 %v128
  %398 = vmatprep.subr.mxu0 0.0
  %399 = vmatpush1.msra.mxu0 %v129
  %400 = vmatprep.subr.mxu0 0.0
  %401 = vmatpush1.msra.mxu0 %v130
  %402 = vmatprep.subr.mxu0 0.0
  %403 = vmatpush1.msra.mxu0 %v131
  %404 = vmatprep.subr.mxu0 0.0
  %405 = vmatpush1.msra.mxu0 %v132
  %406 = vmatprep.subr.mxu0 0.0
  %407 = vmatpush1.msra.mxu0 %v133
  %408 = vmatprep.subr.mxu0 0.0
  %409 = vmatpush1.msra.mxu0 %v134
  %410 = vmatprep.subr.mxu0 0.0
  %411 = vmatpush1.msra.mxu0 %v135
  %412 = vmatprep.subr.mxu0 0.0
  %413 = vmatpush1.msra.mxu0 %v136
  %414 = vmatprep.subr.mxu0 0.0
  %415 = vmatpush1.msra.mxu0 %v137
  %416 = vmatprep.subr.mxu0 0.0
  %417 = vmatpush1.msra.mxu0 %v138
  %418 = vmatprep.subr.mxu0 0.0
  %419 = vmatpush1.msra.mxu0 %v139
  %420 = vmatprep.subr.mxu0 0.0
  %421 = vmatpush1.msra.mxu0 %v140
  %422 = vmatprep.subr.mxu0 0.0
  %423 = vmatpush1.msra.mxu0 %v141
  %424 = vmatprep.subr.mxu0 0.0
  %425 = vmatpush1.msra.mxu0 %v142
  %426 = vmatprep.subr.mxu0 0.0
  %427 = vmatpush1.msra.mxu0 %v143
  %428 = vmatprep.subr.mxu0 0.0
  %429 = vmatpush1.msra.mxu0 %v144
  %430 = vmatprep.subr.mxu0 0.0
  %431 = vmatpush1.msra.mxu0 %v145
  %432 = vmatprep.subr.mxu0 0.0
  %433 = vmatpush1.msra.mxu0 %v146
  %434 = vmatprep.subr.mxu0 0.0
  %435 = vmatpush1.msra.mxu0 %v147
  %436 = vmatprep.subr.mxu0 0.0
  %437 = vmatpush1.msra.mxu0 %v148
  %438 = vmatprep.subr.mxu0 0.0
  %439 = vmatpush1.msra.mxu0 %v149
  %440 = vmatprep.mubr.f32.mxu0 %v20
  %441 = vmatmul.mubr.f32.gmra.mrb[0].mxu0 %v19
  %v442 = vpop.f32.mrb[0].mxu0
  %v443 = vadd.f32 %v373, %v442
  %v444 = vpop.f32.mrb[0].mxu0
  %445 = vdwg.mxu0
  %446 = vmatprep.subr.mxu0 0.0
  %447 = vmatpush1.msra.mxu0 %v150
  %448 = vmatprep.subr.mxu0 0.0
  %449 = vmatpush1.msra.mxu0 %v151
  %450 = vmatprep.subr.mxu0 0.0
  %451 = vmatpush1.msra.mxu0 %v152
  %452 = vmatprep.subr.mxu0 0.0
  %453 = vmatpush1.msra.mxu0 %v153
  %454 = vmatprep.subr.mxu0 0.0
  %455 = vmatpush1.msra.mxu0 %v154
  %456 = vmatprep.subr.mxu0 0.0
  %457 = vmatpush1.msra.mxu0 %v155
  %458 = vmatprep.subr.mxu0 0.0
  %459 = vmatpush1.msra.mxu0 %v156
  %460 = vmatprep.subr.mxu0 0.0
  %461 = vmatpush1.msra.mxu0 %v157
  %462 = vmatprep.subr.mxu0 0.0
  %463 = vmatpush1.msra.mxu0 %v158
  %464 = vmatprep.subr.mxu0 0.0
  %465 = vmatpush1.msra.mxu0 %v159
  %466 = vmatprep.subr.mxu0 0.0
  %467 = vmatpush1.msra.mxu0 %v160
  %468 = vmatprep.subr.mxu0 0.0
  %469 = vmatpush1.msra.mxu0 %v161
  %470 = vmatprep.subr.mxu0 0.0
  %471 = vmatpush1.msra.mxu0 %v162
  %472 = vmatprep.subr.mxu0 0.0
  %473 = vmatpush1.msra.mxu0 %v163
  %474 = vmatprep.subr.mxu0 0.0
  %475 = vmatpush1.msra.mxu0 %v164
  %476 = vmatprep.subr.mxu0 0.0
  %477 = vmatpush1.msra.mxu0 %v165
  %478 = vmatprep.subr.mxu0 0.0
  %479 = vmatpush1.msra.mxu0 0.0
  %480 = vmatprep.subr.mxu0 0.0
  %481 = vmatpush1.msra.mxu0 0.0
  %482 = vmatprep.subr.mxu0 0.0
  %483 = vmatpush1.msra.mxu0 0.0
  %484 = vmatprep.subr.mxu0 0.0
  %485 = vmatpush1.msra.mxu0 0.0
  %486 = vmatprep.subr.mxu0 0.0
  %487 = vmatpush1.msra.mxu0 0.0
  %488 = vmatprep.subr.mxu0 0.0
  %489 = vmatpush1.msra.mxu0 0.0
  %490 = vmatprep.subr.mxu0 0.0
  %491 = vmatpush1.msra.mxu0 0.0
  %492 = vmatprep.subr.mxu0 0.0
  %493 = vmatpush1.msra.mxu0 0.0
  %494 = vmatprep.subr.mxu0 0.0
  %495 = vmatpush1.msra.mxu0 0.0
  %496 = vmatprep.subr.mxu0 0.0
  %497 = vmatpush1.msra.mxu0 0.0
  %498 = vmatprep.subr.mxu0 0.0
  %499 = vmatpush1.msra.mxu0 0.0
  %500 = vmatprep.subr.mxu0 0.0
  %501 = vmatpush1.msra.mxu0 0.0
  %502 = vmatprep.subr.mxu0 0.0
  %503 = vmatpush1.msra.mxu0 0.0
  %504 = vmatprep.subr.mxu0 0.0
  %505 = vmatpush1.msra.mxu0 0.0
  %506 = vmatprep.subr.mxu0 0.0
  %507 = vmatpush1.msra.mxu0 0.0
  %508 = vmatprep.subr.mxu0 0.0
  %509 = vmatpush1.msra.mxu0 0.0
  %510 = vmatprep.mubr.f32.mxu0 0.0
  %511 = vmatmul.mubr.f32.gmra.mrb[0].mxu0 %v21
  %v512 = vpop.f32.mrb[0].mxu0
  %v513 = vadd.f32 %v443, %v512
  %v514 = vpop.f32.mrb[0].mxu0
  %515 = vdwg.mxu0
  %516 = vst [vmem:[%s2] sm:$0xff] %v513
  %p517 = scmp.eq.s32.totalorder 0, 0
  // Predicated region
  $region10: #{encoder_conv_com.32} parent=0 // pred_check
    %p518 = pneg %p517
  $region11: #{encoder_conv_com.32} parent=0 // pred_check_branch
    %520 = sbr.rel (%p518) target = $region13
  $region12: #{encoder_conv_com.32} parent=0 // pred_region
    %521 = vst [vmem:[%s3] sm:$0x3] 0.0
  $region13: #{encoder_conv_com.32} parent=0 // pred_fallthru
    _
  %v522 = vld [vmem:[%s3] sm:$0x3]
  %v523 = vrot.slane %v513, 4
  %v524 = vadd.f32 %v513, %v523
  %v525 = vrot.slane %v524, 2
  %v526 = vadd.f32 %v524, %v525
  %v527 = vrot.slane %v526, 1
  %v528 = vadd.f32 %v526, %v527
  %v529 = vmul.f32 %v513, %v513
  %v530 = vrot.slane %v529, 4
  %v531 = vadd.f32 %v529, %v530
  %v532 = vrot.slane %v531, 2
  %v533 = vadd.f32 %v531, %v532
  %v534 = vrot.slane %v533, 1
  %v535 = vadd.f32 %v533, %v534
  %vm536 = vcmask 1040384
  %v537 = vsel %vm536, %v528, %v535
  %v538 = vadd.f32 %v522, %v537
  %539 = vst [vmem:[%s3] sm:$0x3] %v538
  // Predicated region
  $region14: #{encoder_conv_com.32} parent=0 // pred_check
    _
  $region15: #{encoder_conv_com.32} parent=0 // pred_check_branch
    %541 = sbr.rel (0) target = $region17
  $region16: #{encoder_conv_com.32} parent=0 // pred_region
    _
  $region17: #{encoder_conv_com.32} parent=0 // pred_fallthru
    _
  // Predicated region
  $region18: #{encoder_conv_com.32} parent=0 // pred_check
    _
  $region19: #{encoder_conv_com.32} parent=0 // pred_check_branch
    %543 = sbr.rel (0) target = $region21
  $region20: #{encoder_conv_com.32} parent=0 // pred_region
    _
  $region21: #{encoder_conv_com.32} parent=0 // pred_fallthru
    _
  // Predicated region
  $region22: #{encoder_conv_com.32} parent=0 // pred_check
    _
  $region23: #{encoder_conv_com.32} parent=0 // pred_check_branch
    %545 = sbr.rel (0) target = $region25
  $region24: #{encoder_conv_com.32} parent=0 // pred_region
    _
  $region25: #{encoder_conv_com.32} parent=0 // pred_fallthru
    _
  // Predicated region
  $region26: #{encoder_conv_com.32} parent=0 // pred_check
    _
  $region27: #{encoder_conv_com.32} parent=0 // pred_check_branch
    %547 = sbr.rel (0) target = $region29
  $region28: #{encoder_conv_com.32} parent=0 // pred_region
    _
  $region29: #{encoder_conv_com.32} parent=0 // pred_fallthru
    _

// kernel: encoder_conv_com.39
$region0: #{encoder_conv_com.39}
  #allocation0 [shape = 'u32[]', space=smem, size = 0x4, offset = 0x4, fixed_abs, tag = 'smem constant byte address 0x4 - core index']
  #allocation1 [shape = 'u32[144,128]{1,0:T(1,128)}', space=vmem, size = 0x12000, scoped, tag = 'internal scratch']
  %s0 = inlined_call_operand.vmem [shape: f32[2,128], index: 0, kind: input, shape index: {}]
  %s1 = inlined_call_operand.vmem [shape: f32[1,128], index: 1, kind: input, shape index: {}]
  %s2 = inlined_call_operand.vmem [shape: f32[1,128], index: 2, kind: input, shape index: {}]
  %s3 = inlined_call_operand.hbm [shape: f32[2,128], index: 3, kind: output, shape index: {}]
  %s4 = sld [smem:[#allocation0]]
  $region22: #{encoder_conv_com.39} parent=0
    _
  %s6 = ssub.s32 1, %s4
  %s7 = scalar_select 0, %s6, %s4
  $region1: #{encoder_conv_com.39} parent=0
    #allocation2 [shape = 'u8[1024]{0}', space=vmem, size = 0x400, scoped, tag = 'output window, operand 0, single buffered']
    #allocation3 [shape = 's32[1]{0}', space=sflag, size = 0x4, scoped, tag = 'scoped memory for encoder_conv_com.39']
    %8 = vsyncpa [#allocation3], 0
    // Predicated region
    $region2: #{encoder_conv_com.39} parent=1 // pred_check
      _
    $region3: #{encoder_conv_com.39} parent=1 // pred_check_branch
      %10 = sbr.rel (0) target = $region5
    $region4: #{encoder_conv_com.39} parent=1 // pred_region
      _
    $region5: #{encoder_conv_com.39} parent=1 // pred_fallthru
      _
    // Predicated region
    $region6: #{encoder_conv_com.39} parent=1 // pred_check
      _
    $region7: #{encoder_conv_com.39} parent=1 // pred_check_branch
      %12 = sbr.rel (0) target = $region9
    $region8: #{encoder_conv_com.39} parent=1 // pred_region
      _
    $region9: #{encoder_conv_com.39} parent=1 // pred_fallthru
      _
    // Predicated region
    $region10: #{encoder_conv_com.39} parent=1 // pred_check
      _
    $region11: #{encoder_conv_com.39} parent=1 // pred_check_branch
      %14 = sbr.rel (0) target = $region13
    $region12: #{encoder_conv_com.39} parent=1 // pred_region
      _
    $region13: #{encoder_conv_com.39} parent=1 // pred_fallthru
      _
    %v15 = vld [vmem:[%s0] sm:$0x3]
    %v16 = vld [vmem:[%s1] sm:$0x1]
    %v18 = vlaneseq
    %v19 = vshrl.u32 %v18, 7
    %v20 = vsub.s32 0, %v19
    %v21 = vrot.slane %v16, %v20
    %v23 = vmul.f32 %v15, %v21
    %v24 = vld [vmem:[%s2] sm:$0x1]
    %v26 = vlaneseq
    %v27 = vshrl.u32 %v26, 7
    %v28 = vsub.s32 0, %v27
    %v29 = vrot.slane %v24, %v28
    %v31 = vadd.f32 %v23, %v29
    %v32 = vmax.f32 %v31, 0.0
    %33 = vst [vmem:[#allocation2] sm:$0x3] %v32
    // Predicated region
    $region14: #{encoder_conv_com.39} parent=1 // pred_check
      _
    $region15: #{encoder_conv_com.39} parent=1 // pred_check_branch
      %35 = sbr.rel (0) target = $region17
    $region16: #{encoder_conv_com.39} parent=1 // pred_region
      %s37 = ssub.s32 32, 32
      %38 = vsyncadd [#allocation3], %s37
      %s40 = sshll.u32 [#allocation2], 4
      %s41 = int_to_ptr.vmem [resolvable:$true] %s40
      %43 = dma.vmem_to_hbm [thread:$0]  %s41, 32, %s3, [#allocation3]
    $region17: #{encoder_conv_com.39} parent=1 // pred_fallthru
      _
    // Predicated region
    $region18: #{encoder_conv_com.39} parent=1 // pred_check
      _
    $region19: #{encoder_conv_com.39} parent=1 // pred_check_branch
      %45 = sbr.rel (0) target = $region21
    $region20: #{encoder_conv_com.39} parent=1 // pred_region
      %46 = dma.done [#allocation3], 32
    $region21: #{encoder_conv_com.39} parent=1 // pred_fallthru
      _
    %47 = vsyncpa [#allocation3], 1

// kernel: encoder_conv_com.37
$region0: #{encoder_conv_com.37}
  #allocation0 [shape = 'u32[]', space=smem, size = 0x4, offset = 0x4, fixed_abs, tag = 'smem constant byte address 0x4 - core index']
  #allocation1 [shape = 'u32[144,128]{1,0:T(1,128)}', space=vmem, size = 0x12000, scoped, tag = 'internal scratch']
  %s0 = inlined_call_operand.vmem [shape: f32[2,128], index: 0, kind: input, shape index: {}]
  %s1 = inlined_call_operand.vmem [shape: f32[1,128], index: 1, kind: input, shape index: {}]
  %s2 = inlined_call_operand.vmem [shape: f32[1,128], index: 2, kind: input, shape index: {}]
  %s3 = inlined_call_operand.vmem [shape: f32[2,128], index: 3, kind: output, shape index: {}]
  %s4 = sld [smem:[#allocation0]]
  $region22: #{encoder_conv_com.37} parent=0
    _
  %s6 = ssub.s32 1, %s4
  %s7 = scalar_select 0, %s6, %s4
  // Predicated region
  $region2: #{encoder_conv_com.37} parent=0 // pred_check
    _
  $region3: #{encoder_conv_com.37} parent=0 // pred_check_branch
    %9 = sbr.rel (0) target = $region5
  $region4: #{encoder_conv_com.37} parent=0 // pred_region
    _
  $region5: #{encoder_conv_com.37} parent=0 // pred_fallthru
    _
  // Predicated region
  $region6: #{encoder_conv_com.37} parent=0 // pred_check
    _
  $region7: #{encoder_conv_com.37} parent=0 // pred_check_branch
    %11 = sbr.rel (0) target = $region9
  $region8: #{encoder_conv_com.37} parent=0 // pred_region
    _
  $region9: #{encoder_conv_com.37} parent=0 // pred_fallthru
    _
  // Predicated region
  $region10: #{encoder_conv_com.37} parent=0 // pred_check
    _
  $region11: #{encoder_conv_com.37} parent=0 // pred_check_branch
    %13 = sbr.rel (0) target = $region13
  $region12: #{encoder_conv_com.37} parent=0 // pred_region
    _
  $region13: #{encoder_conv_com.37} parent=0 // pred_fallthru
    _
  %v14 = vld [vmem:[%s0] sm:$0x3]
  %v15 = vld [vmem:[%s1] sm:$0x1]
  %v17 = vlaneseq
  %v18 = vshrl.u32 %v17, 7
  %v19 = vsub.s32 0, %v18
  %v20 = vrot.slane %v15, %v19
  %v22 = vmul.f32 %v14, %v20
  %v23 = vld [vmem:[%s2] sm:$0x1]
  %v25 = vlaneseq
  %v26 = vshrl.u32 %v25, 7
  %v27 = vsub.s32 0, %v26
  %v28 = vrot.slane %v23, %v27
  %v30 = vadd.f32 %v22, %v28
  %v31 = vmax.f32 %v30, 0.0
  %32 = vst [vmem:[%s3] sm:$0x3] %v31
  // Predicated region
  $region14: #{encoder_conv_com.37} parent=0 // pred_check
    _
  $region15: #{encoder_conv_com.37} parent=0 // pred_check_branch
    %34 = sbr.rel (0) target = $region17
  $region16: #{encoder_conv_com.37} parent=0 // pred_region
    _
  $region17: #{encoder_conv_com.37} parent=0 // pred_fallthru
    _
  // Predicated region
  $region18: #{encoder_conv_com.37} parent=0 // pred_check
    _
  $region19: #{encoder_conv_com.37} parent=0 // pred_check_branch
    %36 = sbr.rel (0) target = $region21
  $region20: #{encoder_conv_com.37} parent=0 // pred_region
    _
  $region21: #{encoder_conv_com.37} parent=0 // pred_fallthru
    _

// kernel: encoder_conv_com.36
$region0: #{encoder_conv_com.36}
  #allocation0 [shape = 'u32[]', space=smem, size = 0x4, offset = 0x4, fixed_abs, tag = 'smem constant byte address 0x4 - core index']
  #allocation1 [shape = 'u32[144,128]{1,0:T(1,128)}', space=vmem, size = 0x12000, scoped, tag = 'internal scratch']
  %s0 = inlined_call_operand.vmem [shape: f32[2,1152], index: 0, kind: input, shape index: {}]
  %s1 = inlined_call_operand.vmem [shape: f32[1152,128], index: 1, kind: input, shape index: {}]
  %s2 = inlined_call_operand.vmem [shape: f32[2,128], index: 2, kind: output, shape index: {0}]
  %s3 = inlined_call_operand.vmem [shape: f32[2,128], index: 3, kind: output, shape index: {1}]
  %4 = xla_tuple %s2, %s3
  %s5 = sld [smem:[#allocation0]]
  $region30: #{encoder_conv_com.36} parent=0
    _
  %s7 = ssub.s32 1, %s5
  %s8 = scalar_select 0, %s7, %s5
  // Predicated region
  $region2: #{encoder_conv_com.36} parent=0 // pred_check
    _
  $region3: #{encoder_conv_com.36} parent=0 // pred_check_branch
    %10 = sbr.rel (0) target = $region5
  $region4: #{encoder_conv_com.36} parent=0 // pred_region
    _
  $region5: #{encoder_conv_com.36} parent=0 // pred_fallthru
    _
  // Predicated region
  $region6: #{encoder_conv_com.36} parent=0 // pred_check
    _
  $region7: #{encoder_conv_com.36} parent=0 // pred_check_branch
    %12 = sbr.rel (0) target = $region9
  $region8: #{encoder_conv_com.36} parent=0 // pred_region
    _
  $region9: #{encoder_conv_com.36} parent=0 // pred_fallthru
    _
  %v13 = vld [vmem:[%s0] sm:$0xff]
  %v14 = vld [vmem:[%s0 + $0x8] sm:$0xff]
  %v15 = vld [vmem:[%s0 + $0x10] sm:$0x3]
  %v16 = vld [vmem:[%s1] sm:$0xff]
  %v17 = vld [vmem:[%s1 + $0x8] sm:$0xff]
  %v18 = vld [vmem:[%s1 + $0x10] sm:$0xff]
  %v19 = vld [vmem:[%s1 + $0x18] sm:$0xff]
  %v20 = vld [vmem:[%s1 + $0x20] sm:$0xff]
  %v21 = vld [vmem:[%s1 + $0x28] sm:$0xff]
  %v22 = vld [vmem:[%s1 + $0x30] sm:$0xff]
  %v23 = vld [vmem:[%s1 + $0x38] sm:$0xff]
  %v24 = vld [vmem:[%s1 + $0x40] sm:$0xff]
  %v25 = vld [vmem:[%s1 + $0x48] sm:$0xff]
  %v26 = vld [vmem:[%s1 + $0x50] sm:$0xff]
  %v27 = vld [vmem:[%s1 + $0x58] sm:$0xff]
  %v28 = vld [vmem:[%s1 + $0x60] sm:$0xff]
  %v29 = vld [vmem:[%s1 + $0x68] sm:$0xff]
  %v30 = vld [vmem:[%s1 + $0x70] sm:$0xff]
  %v31 = vld [vmem:[%s1 + $0x78] sm:$0xff]
  %v32 = vld [vmem:[%s1 + $0x80] sm:$0xff]
  %v33 = vld [vmem:[%s1 + $0x88] sm:$0xff]
  %v34 = vld [vmem:[%s1 + $0x90] sm:$0xff]
  %v35 = vld [vmem:[%s1 + $0x98] sm:$0xff]
  %v36 = vld [vmem:[%s1 + $0xa0] sm:$0xff]
  %v37 = vld [vmem:[%s1 + $0xa8] sm:$0xff]
  %v38 = vld [vmem:[%s1 + $0xb0] sm:$0xff]
  %v39 = vld [vmem:[%s1 + $0xb8] sm:$0xff]
  %v40 = vld [vmem:[%s1 + $0xc0] sm:$0xff]
  %v41 = vld [vmem:[%s1 + $0xc8] sm:$0xff]
  %v42 = vld [vmem:[%s1 + $0xd0] sm:$0xff]
  %v43 = vld [vmem:[%s1 + $0xd8] sm:$0xff]
  %v44 = vld [vmem:[%s1 + $0xe0] sm:$0xff]
  %v45 = vld [vmem:[%s1 + $0xe8] sm:$0xff]
  %v46 = vld [vmem:[%s1 + $0xf0] sm:$0xff]
  %v47 = vld [vmem:[%s1 + $0xf8] sm:$0xff]
  %v48 = vld [vmem:[%s1 + $0x100] sm:$0xff]
  %v49 = vld [vmem:[%s1 + $0x108] sm:$0xff]
  %v50 = vld [vmem:[%s1 + $0x110] sm:$0xff]
  %v51 = vld [vmem:[%s1 + $0x118] sm:$0xff]
  %v52 = vld [vmem:[%s1 + $0x120] sm:$0xff]
  %v53 = vld [vmem:[%s1 + $0x128] sm:$0xff]
  %v54 = vld [vmem:[%s1 + $0x130] sm:$0xff]
  %v55 = vld [vmem:[%s1 + $0x138] sm:$0xff]
  %v56 = vld [vmem:[%s1 + $0x140] sm:$0xff]
  %v57 = vld [vmem:[%s1 + $0x148] sm:$0xff]
  %v58 = vld [vmem:[%s1 + $0x150] sm:$0xff]
  %v59 = vld [vmem:[%s1 + $0x158] sm:$0xff]
  %v60 = vld [vmem:[%s1 + $0x160] sm:$0xff]
  %v61 = vld [vmem:[%s1 + $0x168] sm:$0xff]
  %v62 = vld [vmem:[%s1 + $0x170] sm:$0xff]
  %v63 = vld [vmem:[%s1 + $0x178] sm:$0xff]
  %v64 = vld [vmem:[%s1 + $0x180] sm:$0xff]
  %v65 = vld [vmem:[%s1 + $0x188] sm:$0xff]
  %v66 = vld [vmem:[%s1 + $0x190] sm:$0xff]
  %v67 = vld [vmem:[%s1 + $0x198] sm:$0xff]
  %v68 = vld [vmem:[%s1 + $0x1a0] sm:$0xff]
  %v69 = vld [vmem:[%s1 + $0x1a8] sm:$0xff]
  %v70 = vld [vmem:[%s1 + $0x1b0] sm:$0xff]
  %v71 = vld [vmem:[%s1 + $0x1b8] sm:$0xff]
  %v72 = vld [vmem:[%s1 + $0x1c0] sm:$0xff]
  %v73 = vld [vmem:[%s1 + $0x1c8] sm:$0xff]
  %v74 = vld [vmem:[%s1 + $0x1d0] sm:$0xff]
  %v75 = vld [vmem:[%s1 + $0x1d8] sm:$0xff]
  %v76 = vld [vmem:[%s1 + $0x1e0] sm:$0xff]
  %v77 = vld [vmem:[%s1 + $0x1e8] sm:$0xff]
  %v78 = vld [vmem:[%s1 + $0x1f0] sm:$0xff]
  %v79 = vld [vmem:[%s1 + $0x1f8] sm:$0xff]
  %v80 = vld [vmem:[%s1 + $0x200] sm:$0xff]
  %v81 = vld [vmem:[%s1 + $0x208] sm:$0xff]
  %v82 = vld [vmem:[%s1 + $0x210] sm:$0xff]
  %v83 = vld [vmem:[%s1 + $0x218] sm:$0xff]
  %v84 = vld [vmem:[%s1 + $0x220] sm:$0xff]
  %v85 = vld [vmem:[%s1 + $0x228] sm:$0xff]
  %v86 = vld [vmem:[%s1 + $0x230] sm:$0xff]
  %v87 = vld [vmem:[%s1 + $0x238] sm:$0xff]
  %v88 = vld [vmem:[%s1 + $0x240] sm:$0xff]
  %v89 = vld [vmem:[%s1 + $0x248] sm:$0xff]
  %v90 = vld [vmem:[%s1 + $0x250] sm:$0xff]
  %v91 = vld [vmem:[%s1 + $0x258] sm:$0xff]
  %v92 = vld [vmem:[%s1 + $0x260] sm:$0xff]
  %v93 = vld [vmem:[%s1 + $0x268] sm:$0xff]
  %v94 = vld [vmem:[%s1 + $0x270] sm:$0xff]
  %v95 = vld [vmem:[%s1 + $0x278] sm:$0xff]
  %v96 = vld [vmem:[%s1 + $0x280] sm:$0xff]
  %v97 = vld [vmem:[%s1 + $0x288] sm:$0xff]
  %v98 = vld [vmem:[%s1 + $0x290] sm:$0xff]
  %v99 = vld [vmem:[%s1 + $0x298] sm:$0xff]
  %v100 = vld [vmem:[%s1 + $0x2a0] sm:$0xff]
  %v101 = vld [vmem:[%s1 + $0x2a8] sm:$0xff]
  %v102 = vld [vmem:[%s1 + $0x2b0] sm:$0xff]
  %v103 = vld [vmem:[%s1 + $0x2b8] sm:$0xff]
  %v104 = vld [vmem:[%s1 + $0x2c0] sm:$0xff]
  %v105 = vld [vmem:[%s1 + $0x2c8] sm:$0xff]
  %v106 = vld [vmem:[%s1 + $0x2d0] sm:$0xff]
  %v107 = vld [vmem:[%s1 + $0x2d8] sm:$0xff]
  %v108 = vld [vmem:[%s1 + $0x2e0] sm:$0xff]
  %v109 = vld [vmem:[%s1 + $0x2e8] sm:$0xff]
  %v110 = vld [vmem:[%s1 + $0x2f0] sm:$0xff]
  %v111 = vld [vmem:[%s1 + $0x2f8] sm:$0xff]
  %v112 = vld [vmem:[%s1 + $0x300] sm:$0xff]
  %v113 = vld [vmem:[%s1 + $0x308] sm:$0xff]
  %v114 = vld [vmem:[%s1 + $0x310] sm:$0xff]
  %v115 = vld [vmem:[%s1 + $0x318] sm:$0xff]
  %v116 = vld [vmem:[%s1 + $0x320] sm:$0xff]
  %v117 = vld [vmem:[%s1 + $0x328] sm:$0xff]
  %v118 = vld [vmem:[%s1 + $0x330] sm:$0xff]
  %v119 = vld [vmem:[%s1 + $0x338] sm:$0xff]
  %v120 = vld [vmem:[%s1 + $0x340] sm:$0xff]
  %v121 = vld [vmem:[%s1 + $0x348] sm:$0xff]
  %v122 = vld [vmem:[%s1 + $0x350] sm:$0xff]
  %v123 = vld [vmem:[%s1 + $0x358] sm:$0xff]
  %v124 = vld [vmem:[%s1 + $0x360] sm:$0xff]
  %v125 = vld [vmem:[%s1 + $0x368] sm:$0xff]
  %v126 = vld [vmem:[%s1 + $0x370] sm:$0xff]
  %v127 = vld [vmem:[%s1 + $0x378] sm:$0xff]
  %v128 = vld [vmem:[%s1 + $0x380] sm:$0xff]
  %v129 = vld [vmem:[%s1 + $0x388] sm:$0xff]
  %v130 = vld [vmem:[%s1 + $0x390] sm:$0xff]
  %v131 = vld [vmem:[%s1 + $0x398] sm:$0xff]
  %v132 = vld [vmem:[%s1 + $0x3a0] sm:$0xff]
  %v133 = vld [vmem:[%s1 + $0x3a8] sm:$0xff]
  %v134 = vld [vmem:[%s1 + $0x3b0] sm:$0xff]
  %v135 = vld [vmem:[%s1 + $0x3b8] sm:$0xff]
  %v136 = vld [vmem:[%s1 + $0x3c0] sm:$0xff]
  %v137 = vld [vmem:[%s1 + $0x3c8] sm:$0xff]
  %v138 = vld [vmem:[%s1 + $0x3d0] sm:$0xff]
  %v139 = vld [vmem:[%s1 + $0x3d8] sm:$0xff]
  %v140 = vld [vmem:[%s1 + $0x3e0] sm:$0xff]
  %v141 = vld [vmem:[%s1 + $0x3e8] sm:$0xff]
  %v142 = vld [vmem:[%s1 + $0x3f0] sm:$0xff]
  %v143 = vld [vmem:[%s1 + $0x3f8] sm:$0xff]
  %v144 = vld [vmem:[%s1 + $0x400] sm:$0xff]
  %v145 = vld [vmem:[%s1 + $0x408] sm:$0xff]
  %v146 = vld [vmem:[%s1 + $0x410] sm:$0xff]
  %v147 = vld [vmem:[%s1 + $0x418] sm:$0xff]
  %v148 = vld [vmem:[%s1 + $0x420] sm:$0xff]
  %v149 = vld [vmem:[%s1 + $0x428] sm:$0xff]
  %v150 = vld [vmem:[%s1 + $0x430] sm:$0xff]
  %v151 = vld [vmem:[%s1 + $0x438] sm:$0xff]
  %v152 = vld [vmem:[%s1 + $0x440] sm:$0xff]
  %v153 = vld [vmem:[%s1 + $0x448] sm:$0xff]
  %v154 = vld [vmem:[%s1 + $0x450] sm:$0xff]
  %v155 = vld [vmem:[%s1 + $0x458] sm:$0xff]
  %v156 = vld [vmem:[%s1 + $0x460] sm:$0xff]
  %v157 = vld [vmem:[%s1 + $0x468] sm:$0xff]
  %v158 = vld [vmem:[%s1 + $0x470] sm:$0xff]
  %v159 = vld [vmem:[%s1 + $0x478] sm:$0xff]
  %v163 = vcombine.high %v13, %v13
  %v165 = vunpack.c.l.s4 1983009808
  %v166 = vunpack.c.0.s8 %v165
  %v167 = vlaneseq
  %v168 = vshrl.u32 %v167, 7
  %v169 = vsub.s32 %v166, %v168
  %v170 = vrot.slane %v13, %v169
  %v172 = vunpack.c.l.s4 1983009808
  %v173 = vunpack.c.0.s8 %v172
  %v174 = vlaneseq
  %v175 = vshrl.u32 %v174, 7
  %v176 = vsub.s32 %v173, %v175
  %v177 = vrot.slane %v163, %v176
  %v178 = vcombine.high %v170, %v170
  %v179 = vcombine.high %v177, %v177
  %v180 = vcombine.high %v14, %v14
  %v182 = vunpack.c.l.s4 1983009808
  %v183 = vunpack.c.0.s8 %v182
  %v184 = vlaneseq
  %v185 = vshrl.u32 %v184, 7
  %v186 = vsub.s32 %v183, %v185
  %v187 = vrot.slane %v14, %v186
  %v189 = vunpack.c.l.s4 1983009808
  %v190 = vunpack.c.0.s8 %v189
  %v191 = vlaneseq
  %v192 = vshrl.u32 %v191, 7
  %v193 = vsub.s32 %v190, %v192
  %v194 = vrot.slane %v180, %v193
  %v195 = vcombine.high %v187, %v187
  %v196 = vcombine.high %v194, %v194
  %v198 = vunpack.c.l.s4 1983009808
  %v199 = vunpack.c.0.s8 %v198
  %v200 = vlaneseq
  %v201 = vshrl.u32 %v200, 7
  %v202 = vsub.s32 %v199, %v201
  %v203 = vrot.slane %v15, %v202
  %213 = vmatprep.subr.mxu0 0.0
  %214 = vmatpush1.msra.mxu0 %v16
  %215 = vmatprep.subr.mxu0 0.0
  %216 = vmatpush1.msra.mxu0 %v17
  %217 = vmatprep.subr.mxu0 0.0
  %218 = vmatpush1.msra.mxu0 %v18
  %219 = vmatprep.subr.mxu0 0.0
  %220 = vmatpush1.msra.mxu0 %v19
  %221 = vmatprep.subr.mxu0 0.0
  %222 = vmatpush1.msra.mxu0 %v20
  %223 = vmatprep.subr.mxu0 0.0
  %224 = vmatpush1.msra.mxu0 %v21
  %225 = vmatprep.subr.mxu0 0.0
  %226 = vmatpush1.msra.mxu0 %v22
  %227 = vmatprep.subr.mxu0 0.0
  %228 = vmatpush1.msra.mxu0 %v23
  %229 = vmatprep.subr.mxu0 0.0
  %230 = vmatpush1.msra.mxu0 %v24
  %231 = vmatprep.subr.mxu0 0.0
  %232 = vmatpush1.msra.mxu0 %v25
  %233 = vmatprep.subr.mxu0 0.0
  %234 = vmatpush1.msra.mxu0 %v26
  %235 = vmatprep.subr.mxu0 0.0
  %236 = vmatpush1.msra.mxu0 %v27
  %237 = vmatprep.subr.mxu0 0.0
  %238 = vmatpush1.msra.mxu0 %v28
  %239 = vmatprep.subr.mxu0 0.0
  %240 = vmatpush1.msra.mxu0 %v29
  %241 = vmatprep.subr.mxu0 0.0
  %242 = vmatpush1.msra.mxu0 %v30
  %243 = vmatprep.subr.mxu0 0.0
  %244 = vmatpush1.msra.mxu0 %v31
  %245 = vmatprep.subr.mxu0 0.0
  %246 = vmatpush1.msra.mxu0 %v32
  %247 = vmatprep.subr.mxu0 0.0
  %248 = vmatpush1.msra.mxu0 %v33
  %249 = vmatprep.subr.mxu0 0.0
  %250 = vmatpush1.msra.mxu0 %v34
  %251 = vmatprep.subr.mxu0 0.0
  %252 = vmatpush1.msra.mxu0 %v35
  %253 = vmatprep.subr.mxu0 0.0
  %254 = vmatpush1.msra.mxu0 %v36
  %255 = vmatprep.subr.mxu0 0.0
  %256 = vmatpush1.msra.mxu0 %v37
  %257 = vmatprep.subr.mxu0 0.0
  %258 = vmatpush1.msra.mxu0 %v38
  %259 = vmatprep.subr.mxu0 0.0
  %260 = vmatpush1.msra.mxu0 %v39
  %261 = vmatprep.subr.mxu0 0.0
  %262 = vmatpush1.msra.mxu0 %v40
  %263 = vmatprep.subr.mxu0 0.0
  %264 = vmatpush1.msra.mxu0 %v41
  %265 = vmatprep.subr.mxu0 0.0
  %266 = vmatpush1.msra.mxu0 %v42
  %267 = vmatprep.subr.mxu0 0.0
  %268 = vmatpush1.msra.mxu0 %v43
  %269 = vmatprep.subr.mxu0 0.0
  %270 = vmatpush1.msra.mxu0 %v44
  %271 = vmatprep.subr.mxu0 0.0
  %272 = vmatpush1.msra.mxu0 %v45
  %273 = vmatprep.subr.mxu0 0.0
  %274 = vmatpush1.msra.mxu0 %v46
  %275 = vmatprep.subr.mxu0 0.0
  %276 = vmatpush1.msra.mxu0 %v47
  %277 = vmatprep.mubr.f32.mxu0 %v178
  %278 = vmatmul.mubr.f32.gmra.mrb[0].mxu0 %v170
  %v279 = vpop.f32.mrb[0].mxu0
  %v280 = vadd.f32 0.0, %v279
  %v281 = vpop.f32.mrb[0].mxu0
  %282 = vdwg.mxu0
  %283 = vmatprep.subr.mxu0 0.0
  %284 = vmatpush1.msra.mxu0 %v48
  %285 = vmatprep.subr.mxu0 0.0
  %286 = vmatpush1.msra.mxu0 %v49
  %287 = vmatprep.subr.mxu0 0.0
  %288 = vmatpush1.msra.mxu0 %v50
  %289 = vmatprep.subr.mxu0 0.0
  %290 = vmatpush1.msra.mxu0 %v51
  %291 = vmatprep.subr.mxu0 0.0
  %292 = vmatpush1.msra.mxu0 %v52
  %293 = vmatprep.subr.mxu0 0.0
  %294 = vmatpush1.msra.mxu0 %v53
  %295 = vmatprep.subr.mxu0 0.0
  %296 = vmatpush1.msra.mxu0 %v54
  %297 = vmatprep.subr.mxu0 0.0
  %298 = vmatpush1.msra.mxu0 %v55
  %299 = vmatprep.subr.mxu0 0.0
  %300 = vmatpush1.msra.mxu0 %v56
  %301 = vmatprep.subr.mxu0 0.0
  %302 = vmatpush1.msra.mxu0 %v57
  %303 = vmatprep.subr.mxu0 0.0
  %304 = vmatpush1.msra.mxu0 %v58
  %305 = vmatprep.subr.mxu0 0.0
  %306 = vmatpush1.msra.mxu0 %v59
  %307 = vmatprep.subr.mxu0 0.0
  %308 = vmatpush1.msra.mxu0 %v60
  %309 = vmatprep.subr.mxu0 0.0
  %310 = vmatpush1.msra.mxu0 %v61
  %311 = vmatprep.subr.mxu0 0.0
  %312 = vmatpush1.msra.mxu0 %v62
  %313 = vmatprep.subr.mxu0 0.0
  %314 = vmatpush1.msra.mxu0 %v63
  %315 = vmatprep.subr.mxu0 0.0
  %316 = vmatpush1.msra.mxu0 %v64
  %317 = vmatprep.subr.mxu0 0.0
  %318 = vmatpush1.msra.mxu0 %v65
  %319 = vmatprep.subr.mxu0 0.0
  %320 = vmatpush1.msra.mxu0 %v66
  %321 = vmatprep.subr.mxu0 0.0
  %322 = vmatpush1.msra.mxu0 %v67
  %323 = vmatprep.subr.mxu0 0.0
  %324 = vmatpush1.msra.mxu0 %v68
  %325 = vmatprep.subr.mxu0 0.0
  %326 = vmatpush1.msra.mxu0 %v69
  %327 = vmatprep.subr.mxu0 0.0
  %328 = vmatpush1.msra.mxu0 %v70
  %329 = vmatprep.subr.mxu0 0.0
  %330 = vmatpush1.msra.mxu0 %v71
  %331 = vmatprep.subr.mxu0 0.0
  %332 = vmatpush1.msra.mxu0 %v72
  %333 = vmatprep.subr.mxu0 0.0
  %334 = vmatpush1.msra.mxu0 %v73
  %335 = vmatprep.subr.mxu0 0.0
  %336 = vmatpush1.msra.mxu0 %v74
  %337 = vmatprep.subr.mxu0 0.0
  %338 = vmatpush1.msra.mxu0 %v75
  %339 = vmatprep.subr.mxu0 0.0
  %340 = vmatpush1.msra.mxu0 %v76
  %341 = vmatprep.subr.mxu0 0.0
  %342 = vmatpush1.msra.mxu0 %v77
  %343 = vmatprep.subr.mxu0 0.0
  %344 = vmatpush1.msra.mxu0 %v78
  %345 = vmatprep.subr.mxu0 0.0
  %346 = vmatpush1.msra.mxu0 %v79
  %347 = vmatprep.mubr.f32.mxu0 %v179
  %348 = vmatmul.mubr.f32.gmra.mrb[0].mxu0 %v177
  %v349 = vpop.f32.mrb[0].mxu0
  %v350 = vadd.f32 %v280, %v349
  %v351 = vpop.f32.mrb[0].mxu0
  %352 = vdwg.mxu0
  %353 = vmatprep.subr.mxu0 0.0
  %354 = vmatpush1.msra.mxu0 %v80
  %355 = vmatprep.subr.mxu0 0.0
  %356 = vmatpush1.msra.mxu0 %v81
  %357 = vmatprep.subr.mxu0 0.0
  %358 = vmatpush1.msra.mxu0 %v82
  %359 = vmatprep.subr.mxu0 0.0
  %360 = vmatpush1.msra.mxu0 %v83
  %361 = vmatprep.subr.mxu0 0.0
  %362 = vmatpush1.msra.mxu0 %v84
  %363 = vmatprep.subr.mxu0 0.0
  %364 = vmatpush1.msra.mxu0 %v85
  %365 = vmatprep.subr.mxu0 0.0
  %366 = vmatpush1.msra.mxu0 %v86
  %367 = vmatprep.subr.mxu0 0.0
  %368 = vmatpush1.msra.mxu0 %v87
  %369 = vmatprep.subr.mxu0 0.0
  %370 = vmatpush1.msra.mxu0 %v88
  %371 = vmatprep.subr.mxu0 0.0
  %372 = vmatpush1.msra.mxu0 %v89
  %373 = vmatprep.subr.mxu0 0.0
  %374 = vmatpush1.msra.mxu0 %v90
  %375 = vmatprep.subr.mxu0 0.0
  %376 = vmatpush1.msra.mxu0 %v91
  %377 = vmatprep.subr.mxu0 0.0
  %378 = vmatpush1.msra.mxu0 %v92
  %379 = vmatprep.subr.mxu0 0.0
  %380 = vmatpush1.msra.mxu0 %v93
  %381 = vmatprep.subr.mxu0 0.0
  %382 = vmatpush1.msra.mxu0 %v94
  %383 = vmatprep.subr.mxu0 0.0
  %384 = vmatpush1.msra.mxu0 %v95
  %385 = vmatprep.subr.mxu0 0.0
  %386 = vmatpush1.msra.mxu0 %v96
  %387 = vmatprep.subr.mxu0 0.0
  %388 = vmatpush1.msra.mxu0 %v97
  %389 = vmatprep.subr.mxu0 0.0
  %390 = vmatpush1.msra.mxu0 %v98
  %391 = vmatprep.subr.mxu0 0.0
  %392 = vmatpush1.msra.mxu0 %v99
  %393 = vmatprep.subr.mxu0 0.0
  %394 = vmatpush1.msra.mxu0 %v100
  %395 = vmatprep.subr.mxu0 0.0
  %396 = vmatpush1.msra.mxu0 %v101
  %397 = vmatprep.subr.mxu0 0.0
  %398 = vmatpush1.msra.mxu0 %v102
  %399 = vmatprep.subr.mxu0 0.0
  %400 = vmatpush1.msra.mxu0 %v103
  %401 = vmatprep.subr.mxu0 0.0
  %402 = vmatpush1.msra.mxu0 %v104
  %403 = vmatprep.subr.mxu0 0.0
  %404 = vmatpush1.msra.mxu0 %v105
  %405 = vmatprep.subr.mxu0 0.0
  %406 = vmatpush1.msra.mxu0 %v106
  %407 = vmatprep.subr.mxu0 0.0
  %408 = vmatpush1.msra.mxu0 %v107
  %409 = vmatprep.subr.mxu0 0.0
  %410 = vmatpush1.msra.mxu0 %v108
  %411 = vmatprep.subr.mxu0 0.0
  %412 = vmatpush1.msra.mxu0 %v109
  %413 = vmatprep.subr.mxu0 0.0
  %414 = vmatpush1.msra.mxu0 %v110
  %415 = vmatprep.subr.mxu0 0.0
  %416 = vmatpush1.msra.mxu0 %v111
  %417 = vmatprep.mubr.f32.mxu0 %v195
  %418 = vmatmul.mubr.f32.gmra.mrb[0].mxu0 %v187
  %v419 = vpop.f32.mrb[0].mxu0
  %v420 = vadd.f32 %v350, %v419
  %v421 = vpop.f32.mrb[0].mxu0
  %422 = vdwg.mxu0
  %423 = vmatprep.subr.mxu0 0.0
  %424 = vmatpush1.msra.mxu0 %v112
  %425 = vmatprep.subr.mxu0 0.0
  %426 = vmatpush1.msra.mxu0 %v113
  %427 = vmatprep.subr.mxu0 0.0
  %428 = vmatpush1.msra.mxu0 %v114
  %429 = vmatprep.subr.mxu0 0.0
  %430 = vmatpush1.msra.mxu0 %v115
  %431 = vmatprep.subr.mxu0 0.0
  %432 = vmatpush1.msra.mxu0 %v116
  %433 = vmatprep.subr.mxu0 0.0
  %434 = vmatpush1.msra.mxu0 %v117
  %435 = vmatprep.subr.mxu0 0.0
  %436 = vmatpush1.msra.mxu0 %v118
  %437 = vmatprep.subr.mxu0 0.0
  %438 = vmatpush1.msra.mxu0 %v119
  %439 = vmatprep.subr.mxu0 0.0
  %440 = vmatpush1.msra.mxu0 %v120
  %441 = vmatprep.subr.mxu0 0.0
  %442 = vmatpush1.msra.mxu0 %v121
  %443 = vmatprep.subr.mxu0 0.0
  %444 = vmatpush1.msra.mxu0 %v122
  %445 = vmatprep.subr.mxu0 0.0
  %446 = vmatpush1.msra.mxu0 %v123
  %447 = vmatprep.subr.mxu0 0.0
  %448 = vmatpush1.msra.mxu0 %v124
  %449 = vmatprep.subr.mxu0 0.0
  %450 = vmatpush1.msra.mxu0 %v125
  %451 = vmatprep.subr.mxu0 0.0
  %452 = vmatpush1.msra.mxu0 %v126
  %453 = vmatprep.subr.mxu0 0.0
  %454 = vmatpush1.msra.mxu0 %v127
  %455 = vmatprep.subr.mxu0 0.0
  %456 = vmatpush1.msra.mxu0 %v128
  %457 = vmatprep.subr.mxu0 0.0
  %458 = vmatpush1.msra.mxu0 %v129
  %459 = vmatprep.subr.mxu0 0.0
  %460 = vmatpush1.msra.mxu0 %v130
  %461 = vmatprep.subr.mxu0 0.0
  %462 = vmatpush1.msra.mxu0 %v131
  %463 = vmatprep.subr.mxu0 0.0
  %464 = vmatpush1.msra.mxu0 %v132
  %465 = vmatprep.subr.mxu0 0.0
  %466 = vmatpush1.msra.mxu0 %v133
  %467 = vmatprep.subr.mxu0 0.0
  %468 = vmatpush1.msra.mxu0 %v134
  %469 = vmatprep.subr.mxu0 0.0
  %470 = vmatpush1.msra.mxu0 %v135
  %471 = vmatprep.subr.mxu0 0.0
  %472 = vmatpush1.msra.mxu0 %v136
  %473 = vmatprep.subr.mxu0 0.0
  %474 = vmatpush1.msra.mxu0 %v137
  %475 = vmatprep.subr.mxu0 0.0
  %476 = vmatpush1.msra.mxu0 %v138
  %477 = vmatprep.subr.mxu0 0.0
  %478 = vmatpush1.msra.mxu0 %v139
  %479 = vmatprep.subr.mxu0 0.0
  %480 = vmatpush1.msra.mxu0 %v140
  %481 = vmatprep.subr.mxu0 0.0
  %482 = vmatpush1.msra.mxu0 %v141
  %483 = vmatprep.subr.mxu0 0.0
  %484 = vmatpush1.msra.mxu0 %v142
  %485 = vmatprep.subr.mxu0 0.0
  %486 = vmatpush1.msra.mxu0 %v143
  %487 = vmatprep.mubr.f32.mxu0 %v196
  %488 = vmatmul.mubr.f32.gmra.mrb[0].mxu0 %v194
  %v489 = vpop.f32.mrb[0].mxu0
  %v490 = vadd.f32 %v420, %v489
  %v491 = vpop.f32.mrb[0].mxu0
  %492 = vdwg.mxu0
  %493 = vmatprep.subr.mxu0 0.0
  %494 = vmatpush1.msra.mxu0 %v144
  %495 = vmatprep.subr.mxu0 0.0
  %496 = vmatpush1.msra.mxu0 %v145
  %497 = vmatprep.subr.mxu0 0.0
  %498 = vmatpush1.msra.mxu0 %v146
  %499 = vmatprep.subr.mxu0 0.0
  %500 = vmatpush1.msra.mxu0 %v147
  %501 = vmatprep.subr.mxu0 0.0
  %502 = vmatpush1.msra.mxu0 %v148
  %503 = vmatprep.subr.mxu0 0.0
  %504 = vmatpush1.msra.mxu0 %v149
  %505 = vmatprep.subr.mxu0 0.0
  %506 = vmatpush1.msra.mxu0 %v150
  %507 = vmatprep.subr.mxu0 0.0
  %508 = vmatpush1.msra.mxu0 %v151
  %509 = vmatprep.subr.mxu0 0.0
  %510 = vmatpush1.msra.mxu0 %v152
  %511 = vmatprep.subr.mxu0 0.0
  %512 = vmatpush1.msra.mxu0 %v153
  %513 = vmatprep.subr.mxu0 0.0
  %514 = vmatpush1.msra.mxu0 %v154
  %515 = vmatprep.subr.mxu0 0.0
  %516 = vmatpush1.msra.mxu0 %v155
  %517 = vmatprep.subr.mxu0 0.0
  %518 = vmatpush1.msra.mxu0 %v156
  %519 = vmatprep.subr.mxu0 0.0
  %520 = vmatpush1.msra.mxu0 %v157
  %521 = vmatprep.subr.mxu0 0.0
  %522 = vmatpush1.msra.mxu0 %v158
  %523 = vmatprep.subr.mxu0 0.0
  %524 = vmatpush1.msra.mxu0 %v159
  %525 = vmatprep.subr.mxu0 0.0
  %526 = vmatpush1.msra.mxu0 0.0
  %527 = vmatprep.subr.mxu0 0.0
  %528 = vmatpush1.msra.mxu0 0.0
  %529 = vmatprep.subr.mxu0 0.0
  %530 = vmatpush1.msra.mxu0 0.0
  %531 = vmatprep.subr.mxu0 0.0
  %532 = vmatpush1.msra.mxu0 0.0
  %533 = vmatprep.subr.mxu0 0.0
  %534 = vmatpush1.msra.mxu0 0.0
  %535 = vmatprep.subr.mxu0 0.0
  %536 = vmatpush1.msra.mxu0 0.0
  %537 = vmatprep.subr.mxu0 0.0
  %538 = vmatpush1.msra.mxu0 0.0
  %539 = vmatprep.subr.mxu0 0.0
  %540 = vmatpush1.msra.mxu0 0.0
  %541 = vmatprep.subr.mxu0 0.0
  %542 = vmatpush1.msra.mxu0 0.0
  %543 = vmatprep.subr.mxu0 0.0
  %544 = vmatpush1.msra.mxu0 0.0
  %545 = vmatprep.subr.mxu0 0.0
  %546 = vmatpush1.msra.mxu0 0.0
  %547 = vmatprep.subr.mxu0 0.0
  %548 = vmatpush1.msra.mxu0 0.0
  %549 = vmatprep.subr.mxu0 0.0
  %550 = vmatpush1.msra.mxu0 0.0
  %551 = vmatprep.subr.mxu0 0.0
  %552 = vmatpush1.msra.mxu0 0.0
  %553 = vmatprep.subr.mxu0 0.0
  %554 = vmatpush1.msra.mxu0 0.0
  %555 = vmatprep.subr.mxu0 0.0
  %556 = vmatpush1.msra.mxu0 0.0
  %557 = vmatprep.mubr.f32.mxu0 0.0
  %558 = vmatmul.mubr.f32.gmra.mrb[0].mxu0 %v203
  %v559 = vpop.f32.mrb[0].mxu0
  %v560 = vadd.f32 %v490, %v559
  %v561 = vpop.f32.mrb[0].mxu0
  %562 = vdwg.mxu0
  %563 = vst [vmem:[%s2] sm:$0x3] %v560
  %p564 = scmp.eq.s32.totalorder 0, 0
  // Predicated region
  $region10: #{encoder_conv_com.36} parent=0 // pred_check
    %p565 = pneg %p564
  $region11: #{encoder_conv_com.36} parent=0 // pred_check_branch
    %567 = sbr.rel (%p565) target = $region13
  $region12: #{encoder_conv_com.36} parent=0 // pred_region
    %568 = vst [vmem:[%s3] sm:$0x3] 0.0
  $region13: #{encoder_conv_com.36} parent=0 // pred_fallthru
    _
  %v569 = vld [vmem:[%s3] sm:$0x3]
  %vm570 = vcmask 1041408
  %v571 = vsel %vm570, %v560, 0.0
  %v572 = vrot.slane %v571, 4
  %v573 = vadd.f32 %v571, %v572
  %v574 = vrot.slane %v573, 2
  %v575 = vadd.f32 %v573, %v574
  %v576 = vrot.slane %v575, 1
  %v577 = vadd.f32 %v575, %v576
  %v578 = vmul.f32 %v560, %v560
  %v579 = vsel %vm570, %v578, 0.0
  %v580 = vrot.slane %v579, 4
  %v581 = vadd.f32 %v579, %v580
  %v582 = vrot.slane %v581, 2
  %v583 = vadd.f32 %v581, %v582
  %v584 = vrot.slane %v583, 1
  %v585 = vadd.f32 %v583, %v584
  %vm586 = vcmask 1040384
  %v587 = vsel %vm586, %v577, %v585
  %v588 = vadd.f32 %v569, %v587
  %589 = vst [vmem:[%s3] sm:$0x3] %v588
  // Predicated region
  $region14: #{encoder_conv_com.36} parent=0 // pred_check
    _
  $region15: #{encoder_conv_com.36} parent=0 // pred_check_branch
    %591 = sbr.rel (0) target = $region17
  $region16: #{encoder_conv_com.36} parent=0 // pred_region
    _
  $region17: #{encoder_conv_com.36} parent=0 // pred_fallthru
    _
  // Predicated region
  $region18: #{encoder_conv_com.36} parent=0 // pred_check
    _
  $region19: #{encoder_conv_com.36} parent=0 // pred_check_branch
    %593 = sbr.rel (0) target = $region21
  $region20: #{encoder_conv_com.36} parent=0 // pred_region
    _
  $region21: #{encoder_conv_com.36} parent=0 // pred_fallthru
    _
  // Predicated region
  $region22: #{encoder_conv_com.36} parent=0 // pred_check
    _
  $region23: #{encoder_conv_com.36} parent=0 // pred_check_branch
    %595 = sbr.rel (0) target = $region25
  $region24: #{encoder_conv_com.36} parent=0 // pred_region
    _
  $region25: #{encoder_conv_com.36} parent=0 // pred_fallthru
    _
  // Predicated region
  $region26: #{encoder_conv_com.36} parent=0 // pred_check
    _
  $region27: #{encoder_conv_com.36} parent=0 // pred_check_branch
    %597 = sbr.rel (0) target = $region29
  $region28: #{encoder_conv_com.36} parent=0 // pred_region
    _
  $region29: #{encoder_conv_com.36} parent=0 // pred_fallthru
    _

</llo_original>
